<compile_context>
chip_gen: v6e
topology: v6e:2x2x1
jax: 0.10.0
libtpu: 0.0.40
codegen_flags: <defaults>
</compile_context>

<pallas_src>
import jax
import jax.numpy as jnp
from jax import lax
from jax.experimental import pallas as pl
from jax.experimental.pallas import tpu as pltpu


# ----------------------------------------------------------------------------
# Helpers (wrapper-side, plain XLA, executed once)
# ----------------------------------------------------------------------------
def _interleave_gate_blocks(wf, wb, H):
    """Interleave two (..., 4H) gate tensors into (..., 8H) with column layout
    [i_f, i_b, f_f, f_b, g_f, g_b, o_f, o_b] (torch LSTM gate order i,f,g,o)."""
    lead = wf.shape[:-1]
    wf = wf.reshape(*lead, 4, 1, H)
    wb = wb.reshape(*lead, 4, 1, H)
    return jnp.concatenate([wf, wb], axis=-2).reshape(*lead, 8 * H)


# ----------------------------------------------------------------------------
# Fused bidirectional attention-LSTM + classification-heads kernel.
# Single invocation (no grid); everything is VMEM-resident.
# ----------------------------------------------------------------------------
def _fused_tagger_kernel(
    x_ref,        # (B, T, E)    sentence embeddings
    encp2_ref,    # (B, T, 2H)   encoder attention projection, duplicated per dir
    wdec_ref,     # (2H, 2H)     block-diag(decoder_attention W^T, same)
    bdec_ref,     # (1, 2H)      decoder_attention bias, duplicated
    v_ref,        # (1, 2H)      attention vector v, duplicated
    wcf_ref,      # (E, 8H)      context half of fwd W_ih, scattered to fwd cols
    wcb_ref,      # (E, 8H)      context half of bwd W_ih, scattered to bwd cols
    whh_ref,      # (2H, 8H)     [fwd W_hh -> fwd cols ; bwd W_hh -> bwd cols]
    gx_ref,       # (T, B, 8H)   precomputed x_t gates (+ biases), bwd time-reversed
    wheads_ref,   # (2H, Lpad)   fused classification-head weights
    bheads_ref,   # (1, Lpad)
    comb_ref,     # OUT (T, B, 2H)   time-aligned combined hidden states
    heads_ref,    # OUT (T, B, Lpad) fused head logits
    scr_ref,      # SCRATCH (T, B, 2H) step-ordered recurrence output
):
    # Hoist all loop-invariant loads out of the recurrence.
    x = x_ref[...]
    encp2 = encp2_ref[...]
    wdec = wdec_ref[...]
    bdec = bdec_ref[...]
    v2 = v_ref[...]
    wcf = wcf_ref[...]
    wcb = wcb_ref[...]
    whh = whh_ref[...]

    B, T, E = x.shape
    H2 = wdec.shape[0]          # 2H
    H = H2 // 2

    def step(s, carry):
        # h, c: (B, 2H); lanes [:H] = forward direction, lanes [H:] = backward.
        h, c = carry

        # ---- Bahdanau attention, both directions lane-parallel -------------
        dec_proj = jnp.dot(h, wdec, preferred_element_type=jnp.float32) + bdec
        tanh_res = jnp.tanh(encp2 + dec_proj[:, None, :])        # (B, T, 2H)
        pre = v2 * tanh_res
        scores_f = jnp.sum(pre[:, :, :H], axis=2)                 # (B, T)
        scores_b = jnp.sum(pre[:, :, H:], axis=2)                 # (B, T)

        def softmax_t(sc):
            m = jnp.max(sc, axis=1, keepdims=True)
            e = jnp.exp(sc - m)
            return e * pl.reciprocal(jnp.sum(e, axis=1, keepdims=True),
                                     approx=True)

        aw_f = softmax_t(scores_f)
        aw_b = softmax_t(scores_b)

        # Context vectors.  VPU-mul + cross-sublane reduce is fine at toy T;
        # switch to an MXU einsum 'bt,bte->be' once T grows.
        ctx_f = jnp.sum(aw_f[:, :, None] * x, axis=1)              # (B, E)
        ctx_b = jnp.sum(aw_b[:, :, None] * x, axis=1)              # (B, E)

        # ---- LSTM cell step, both directions fused into one 8H gate block --
        # gx_ref[s] is a free leading-axis slice (no relayout).
        gates = (
            jnp.dot(ctx_f, wcf, preferred_element_type=jnp.float32)
            + jnp.dot(ctx_b, wcb, preferred_element_type=jnp.float32)
            + jnp.dot(h, whh, preferred_element_type=jnp.float32)
            + gx_ref[s]
        )                                                           # (B, 8H)

        sig = jax.nn.sigmoid(gates)
        tnh = jnp.tanh(gates)
        i_g = sig[:, 0 * H2:1 * H2]     # [i_f | i_b]
        f_g = sig[:, 1 * H2:2 * H2]     # [f_f | f_b]
        g_g = tnh[:, 2 * H2:3 * H2]     # [g_f | g_b]
        o_g = sig[:, 3 * H2:4 * H2]     # [o_f | o_b]

        c_new = f_g * c + i_g * g_g                                 # (B, 2H)
        h_new = o_g * jnp.tanh(c_new)                               # (B, 2H)

        # One dense 2H-lane row store per step (bwd half is step-ordered;
        # it is time-aligned in the epilogue below).
        scr_ref[s] = h_new
        return h_new, c_new

    h0 = jnp.zeros((B, H2), jnp.float32)
    c0 = jnp.zeros((B, H2), jnp.float32)
    lax.fori_loop(0, T, step, (h0, c0), unroll=True)
    # TODO(synk): switch to partial unroll (2-4) once T exceeds ~16-32 to keep
    # live ranges inside the 64-vreg budget.

    # ---- Epilogue: time-align the backward half + fused heads matmul -------
    wh = wheads_ref[...]
    bh = bheads_ref[...]
    lane = lax.broadcasted_iota(jnp.int32, (1, H2), 1)
    is_fwd = lane < H
    for t in range(T):                       # static tiny loop (T = seq len)
        row_f = scr_ref[t]                   # fwd hidden at time t in [:H]
        row_b = scr_ref[T - 1 - t]           # bwd hidden at time t in [H:]
        cat = jnp.where(is_fwd, row_f, row_b)                     # (B, 2H)
        comb_ref[t] = cat
        heads_ref[t] = (
            jnp.dot(cat, wh, preferred_element_type=jnp.float32) + bh
        )


# ----------------------------------------------------------------------------
# Module wrapper
# ----------------------------------------------------------------------------
class TaggerPallas:
    def __init__(self, input_size, label_classes, hidden_dim=32, key=None):
        self.input_size = input_size
        self.hidden_dim = hidden_dim
        self.label_classes = label_classes
        key = key if key is not None else jax.random.PRNGKey(0)

        E, H = input_size, hidden_dim
        n_keys = 16 + 2 * len(label_classes)
        keys = jax.random.split(key, n_keys)
        ki = iter(keys)

        def u(k, shape, scale=0.1):
            return jax.random.uniform(k, shape, jnp.float32, -scale, scale)

        # ---- shared Bahdanau attention params (shared between directions) --
        wenc = u(next(ki), (E, H))
        benc = u(next(ki), (1, H))
        wdec = u(next(ki), (H, H))
        bdec = u(next(ki), (1, H))
        v = jax.random.uniform(next(ki), (1, H), jnp.float32, 0.0, 1.0)

        self.wenc, self.benc = wenc, benc
        zH = jnp.zeros((H, H), jnp.float32)
        self.wdec_blk = jnp.concatenate(
            [jnp.concatenate([wdec, zH], axis=1),
             jnp.concatenate([zH, wdec], axis=1)], axis=0)          # (2H, 2H)
        self.bdec2 = jnp.concatenate([bdec, bdec], axis=1)          # (1, 2H)
        self.v2 = jnp.concatenate([v, v], axis=1)                   # (1, 2H)

        # ---- per-direction LSTM params (LSTM input = [context, x_t]) -------
        def lstm_dir():
            return {
                "wihc": u(next(ki), (E, 4 * H)),   # context rows of W_ih^T
                "wihx": u(next(ki), (E, 4 * H)),   # x_t rows of W_ih^T
                "whh":  u(next(ki), (H, 4 * H)),
                "bias": u(next(ki), (4 * H,)) + u(next(ki), (4 * H,)),  # b_ih+b_hh
            }

        fwd, bwd = lstm_dir(), lstm_dir()
        z_e = jnp.zeros((E, 4 * H), jnp.float32)
        z_h = jnp.zeros((H, 4 * H), jnp.float32)
        # Fused, column-interleaved weights (built once).
        self.wcf = _interleave_gate_blocks(fwd["wihc"], z_e, H)      # (E, 8H)
        self.wcb = _interleave_gate_blocks(z_e, bwd["wihc"], H)      # (E, 8H)
        self.whh_blk = jnp.concatenate(
            [_interleave_gate_blocks(fwd["whh"], z_h, H),
             _interleave_gate_blocks(z_h, bwd["whh"], H)], axis=0)   # (2H, 8H)
        self.wihx_f, self.bias_f = fwd["wihx"], fwd["bias"]
        self.wihx_b, self.bias_b = bwd["wihx"], bwd["bias"]

        # ---- classification heads (output_layers=1) -------------------------
        # Non-empty heads fused into one lane-padded (2H, Lpad) matmul;
        # empty label class -> empty nn.Sequential == identity.
        self.head_sizes = [len(labels) for labels in label_classes]
        total = sum(s for s in self.head_sizes if s > 0)
        self.Lpad = max(128, ((total + 127) // 128) * 128)
        self.head_offsets = []
        w_cols, b_cols, off = [], [], 0
        for s in self.head_sizes:
            if s > 0:
                w_cols.append(u(next(ki), (2 * H, s)))
                b_cols.append(u(next(ki), (1, s)))
                self.head_offsets.append(off)
                off += s
            else:
                self.head_offsets.append(-1)
        if total > 0:
            w_all = jnp.concatenate(w_cols, axis=1)
            b_all = jnp.concatenate(b_cols, axis=1)
            self.w_heads = jnp.pad(w_all, ((0, 0), (0, self.Lpad - total)))
            self.b_heads = jnp.pad(b_all, ((0, 0), (0, self.Lpad - total)))
        else:
            self.w_heads = jnp.zeros((2 * H, self.Lpad), jnp.float32)
            self.b_heads = jnp.zeros((1, self.Lpad), jnp.float32)

    def __call__(self, sentence_embeds):
        x = sentence_embeds
        B, T, E = x.shape
        H = self.hidden_dim

        # ---- hoisted, h-independent projections (plain XLA, once per call) --
        encp = (jnp.einsum("bte,eh->bth", x, self.wenc,
                           preferred_element_type=jnp.float32) + self.benc)
        encp2 = jnp.concatenate([encp, encp], axis=-1)               # (B, T, 2H)

        gx_f = (jnp.einsum("bte,ef->btf", x, self.wihx_f,
                           preferred_element_type=jnp.float32) + self.bias_f)
        gx_b = (jnp.einsum("bte,ef->btf", x, self.wihx_b,
                           preferred_element_type=jnp.float32) + self.bias_b)
        gx_b = gx_b[:, ::-1, :]          # backward dir consumes x[T-1-s] at step s
        gx = _interleave_gate_blocks(gx_f, gx_b, H)                  # (B, T, 8H)
        gx = jnp.transpose(gx, (1, 0, 2))                            # (T, B, 8H)

        vmem = pl.BlockSpec(memory_space=pltpu.MemorySpace.VMEM)
        comb_tb, heads_tb = pl.pallas_call(
            _fused_tagger_kernel,
            out_shape=(
                jax.ShapeDtypeStruct((T, B, 2 * H), jnp.float32),
                jax.ShapeDtypeStruct((T, B, self.Lpad), jnp.float32),
            ),
            in_specs=[vmem] * 11,
            out_specs=(vmem, vmem),
            scratch_shapes=[pltpu.VMEM((T, B, 2 * H), jnp.float32)],
        )(x, encp2, self.wdec_blk, self.bdec2, self.v2,
          self.wcf, self.wcb, self.whh_blk, gx, self.w_heads, self.b_heads)

        combined = jnp.transpose(comb_tb, (1, 0, 2))                 # (B, T, 2H)
        heads_out = jnp.transpose(heads_tb, (1, 0, 2))               # (B, T, Lpad)

        preds = []
        for size, off in zip(self.head_sizes, self.head_offsets):
            if size > 0:
                preds.append(heads_out[..., off:off + size])
            else:
                preds.append(combined)   # empty nn.Sequential is identity
        return preds


# TODO(synk): training-only pieces (CrossEntropyLoss / get_loss) are not part
# of the inference forward pass (labels=None) and are not implemented.

if __name__ == "__main__":
    B, T, E, H = 2, 8, 16, 32
    label_classes = [["a", "b", "c"], [], ["v", "w", "x", "y", "z"]]

    key = jax.random.PRNGKey(0)
    k_x, k_p = jax.random.split(key)
    sentence_embeds = jax.random.normal(k_x, (B, T, E), jnp.float32)

    model = TaggerPallas(input_size=E, label_classes=label_classes,
                         hidden_dim=H, key=k_p)
    preds = model(sentence_embeds)
    preds = jax.block_until_ready(preds)

    assert preds[0].shape == (B, T, 3)
    assert preds[1].shape == (B, T, 2 * H)   # empty head == identity on combined
    assert preds[2].shape == (B, T, 5)
    assert all(bool(jnp.all(jnp.isfinite(p))) for p in preds)
    print("KERNEL_OK")
</pallas_src>

<mosaic_0001>
module attributes {stable_mosaic.version = 11 : i64} {
  func.func @_fused_tagger_kernel(%arg0: memref<2x8x16xf32, #tpu.memory_space<vmem>>, %arg1: memref<2x8x64xf32, #tpu.memory_space<vmem>>, %arg2: memref<64x64xf32, #tpu.memory_space<vmem>>, %arg3: memref<1x64xf32, #tpu.memory_space<vmem>>, %arg4: memref<1x64xf32, #tpu.memory_space<vmem>>, %arg5: memref<16x256xf32, #tpu.memory_space<vmem>>, %arg6: memref<16x256xf32, #tpu.memory_space<vmem>>, %arg7: memref<64x256xf32, #tpu.memory_space<vmem>>, %arg8: memref<8x2x256xf32, #tpu.memory_space<vmem>>, %arg9: memref<64x128xf32, #tpu.memory_space<vmem>>, %arg10: memref<1x128xf32, #tpu.memory_space<vmem>>, %arg11: memref<8x2x64xf32, #tpu.memory_space<vmem>>, %arg12: memref<8x2x128xf32, #tpu.memory_space<vmem>>, %arg13: memref<8x2x64xf32, #tpu.memory_space<vmem>>) attributes {dimension_semantics = [], scalar_prefetch = 0 : i64, scratch_operands = 1 : i64, tpu.core_type = #tpu.core_type<tc>} {
    %c0 = arith.constant 0 : index
    %c0_0 = arith.constant 0 : index
    %c0_1 = arith.constant 0 : index
    %0 = vector.load %arg0[%c0, %c0_0, %c0_1] : memref<2x8x16xf32, #tpu.memory_space<vmem>>, vector<2x8x16xf32>
    %c0_2 = arith.constant 0 : index
    %c0_3 = arith.constant 0 : index
    %c0_4 = arith.constant 0 : index
    %1 = vector.load %arg1[%c0_2, %c0_3, %c0_4] : memref<2x8x64xf32, #tpu.memory_space<vmem>>, vector<2x8x64xf32>
    %c0_5 = arith.constant 0 : index
    %c0_6 = arith.constant 0 : index
    %2 = vector.load %arg2[%c0_5, %c0_6] : memref<64x64xf32, #tpu.memory_space<vmem>>, vector<64x64xf32>
    %c0_7 = arith.constant 0 : index
    %c0_8 = arith.constant 0 : index
    %3 = vector.load %arg3[%c0_7, %c0_8] : memref<1x64xf32, #tpu.memory_space<vmem>>, vector<1x64xf32>
    %c0_9 = arith.constant 0 : index
    %c0_10 = arith.constant 0 : index
    %4 = vector.load %arg4[%c0_9, %c0_10] : memref<1x64xf32, #tpu.memory_space<vmem>>, vector<1x64xf32>
    %c0_11 = arith.constant 0 : index
    %c0_12 = arith.constant 0 : index
    %5 = vector.load %arg5[%c0_11, %c0_12] : memref<16x256xf32, #tpu.memory_space<vmem>>, vector<16x256xf32>
    %c0_13 = arith.constant 0 : index
    %c0_14 = arith.constant 0 : index
    %6 = vector.load %arg6[%c0_13, %c0_14] : memref<16x256xf32, #tpu.memory_space<vmem>>, vector<16x256xf32>
    %c0_15 = arith.constant 0 : index
    %c0_16 = arith.constant 0 : index
    %7 = vector.load %arg7[%c0_15, %c0_16] : memref<64x256xf32, #tpu.memory_space<vmem>>, vector<64x256xf32>
    %cst = arith.constant 0.000000e+00 : f32
    %8 = vector.broadcast %cst : f32 to vector<2x64xf32>
    %cst_17 = arith.constant 0.000000e+00 : f32
    %9 = vector.broadcast %cst_17 : f32 to vector<2x64xf32>
    %c0_i32 = arith.constant 0 : i32
    %cst_18 = arith.constant dense<0.000000e+00> : vector<2x64xf32>
    %10 = tpu.matmul %8, %2, %cst_18 {dimension_numbers = #tpu.dot_dimension_numbers<[1], [0], [0], [1], [0, 0, 1, 1], [], []>} : vector<2x64xf32>, vector<64x64xf32>, vector<2x64xf32> -> vector<2x64xf32>
    %11 = vector.broadcast %3 : vector<1x64xf32> to vector<2x64xf32>
    %12 = arith.addf %10, %11 : vector<2x64xf32>
    %13 = vector.shape_cast %12 : vector<2x64xf32> to vector<2x1x64xf32>
    %14 = vector.broadcast %13 : vector<2x1x64xf32> to vector<2x8x64xf32>
    %15 = arith.addf %1, %14 : vector<2x8x64xf32>
    %16 = math.tanh %15 : vector<2x8x64xf32>
    %17 = vector.shape_cast %4 : vector<1x64xf32> to vector<1x1x64xf32>
    %18 = vector.broadcast %17 : vector<1x1x64xf32> to vector<2x8x64xf32>
    %19 = arith.mulf %18, %16 : vector<2x8x64xf32>
    %20 = vector.extract_strided_slice %19 {offsets = [0, 0, 0], sizes = [2, 8, 32], strides = [1, 1, 1]} : vector<2x8x64xf32> to vector<2x8x32xf32>
    %cst_19 = arith.constant dense<0.000000e+00> : vector<2x8xf32>
    %21 = vector.multi_reduction <add>, %20, %cst_19 [2] : vector<2x8x32xf32> to vector<2x8xf32>
    %22 = vector.extract_strided_slice %19 {offsets = [0, 0, 32], sizes = [2, 8, 32], strides = [1, 1, 1]} : vector<2x8x64xf32> to vector<2x8x32xf32>
    %cst_20 = arith.constant dense<0.000000e+00> : vector<2x8xf32>
    %23 = vector.multi_reduction <add>, %22, %cst_20 [2] : vector<2x8x32xf32> to vector<2x8xf32>
    %cst_21 = arith.constant dense<0xFF800000> : vector<2xf32>
    %24 = vector.multi_reduction <maximumf>, %21, %cst_21 [1] : vector<2x8xf32> to vector<2xf32>
    %25 = vector.shape_cast %24 : vector<2xf32> to vector<2x1xf32>
    %26 = vector.broadcast %25 : vector<2x1xf32> to vector<2x8xf32>
    %27 = arith.subf %21, %26 : vector<2x8xf32>
    %28 = math.exp %27 : vector<2x8xf32>
    %cst_22 = arith.constant dense<0.000000e+00> : vector<2xf32>
    %29 = vector.multi_reduction <add>, %28, %cst_22 [1] : vector<2x8xf32> to vector<2xf32>
    %30 = vector.shape_cast %29 : vector<2xf32> to vector<2x1xf32>
    %31 = tpu.reciprocal %30 {approx = true} : vector<2x1xf32> -> vector<2x1xf32>
    %32 = vector.broadcast %31 : vector<2x1xf32> to vector<2x8xf32>
    %33 = arith.mulf %28, %32 : vector<2x8xf32>
    %cst_23 = arith.constant dense<0xFF800000> : vector<2xf32>
    %34 = vector.multi_reduction <maximumf>, %23, %cst_23 [1] : vector<2x8xf32> to vector<2xf32>
    %35 = vector.shape_cast %34 : vector<2xf32> to vector<2x1xf32>
    %36 = vector.broadcast %35 : vector<2x1xf32> to vector<2x8xf32>
    %37 = arith.subf %23, %36 : vector<2x8xf32>
    %38 = math.exp %37 : vector<2x8xf32>
    %cst_24 = arith.constant dense<0.000000e+00> : vector<2xf32>
    %39 = vector.multi_reduction <add>, %38, %cst_24 [1] : vector<2x8xf32> to vector<2xf32>
    %40 = vector.shape_cast %39 : vector<2xf32> to vector<2x1xf32>
    %41 = tpu.reciprocal %40 {approx = true} : vector<2x1xf32> -> vector<2x1xf32>
    %42 = vector.broadcast %41 : vector<2x1xf32> to vector<2x8xf32>
    %43 = arith.mulf %38, %42 : vector<2x8xf32>
    %44 = vector.shape_cast %33 : vector<2x8xf32> to vector<2x8x1xf32>
    %45 = vector.broadcast %44 : vector<2x8x1xf32> to vector<2x8x16xf32>
    %46 = arith.mulf %45, %0 : vector<2x8x16xf32>
    %cst_25 = arith.constant dense<0.000000e+00> : vector<2x16xf32>
    %47 = vector.multi_reduction <add>, %46, %cst_25 [1] : vector<2x8x16xf32> to vector<2x16xf32>
    %48 = vector.shape_cast %43 : vector<2x8xf32> to vector<2x8x1xf32>
    %49 = vector.broadcast %48 : vector<2x8x1xf32> to vector<2x8x16xf32>
    %50 = arith.mulf %49, %0 : vector<2x8x16xf32>
    %cst_26 = arith.constant dense<0.000000e+00> : vector<2x16xf32>
    %51 = vector.multi_reduction <add>, %50, %cst_26 [1] : vector<2x8x16xf32> to vector<2x16xf32>
    %cst_27 = arith.constant dense<0.000000e+00> : vector<2x256xf32>
    %52 = tpu.matmul %47, %5, %cst_27 {dimension_numbers = #tpu.dot_dimension_numbers<[1], [0], [0], [1], [0, 0, 1, 1], [], []>} : vector<2x16xf32>, vector<16x256xf32>, vector<2x256xf32> -> vector<2x256xf32>
    %cst_28 = arith.constant dense<0.000000e+00> : vector<2x256xf32>
    %53 = tpu.matmul %51, %6, %cst_28 {dimension_numbers = #tpu.dot_dimension_numbers<[1], [0], [0], [1], [0, 0, 1, 1], [], []>} : vector<2x16xf32>, vector<16x256xf32>, vector<2x256xf32> -> vector<2x256xf32>
    %54 = arith.addf %52, %53 : vector<2x256xf32>
    %cst_29 = arith.constant dense<0.000000e+00> : vector<2x256xf32>
    %55 = tpu.matmul %8, %7, %cst_29 {dimension_numbers = #tpu.dot_dimension_numbers<[1], [0], [0], [1], [0, 0, 1, 1], [], []>} : vector<2x64xf32>, vector<64x256xf32>, vector<2x256xf32> -> vector<2x256xf32>
    %56 = arith.addf %54, %55 : vector<2x256xf32>
    %57 = arith.index_cast %c0_i32 : i32 to index
    %c0_30 = arith.constant 0 : index
    %c0_31 = arith.constant 0 : index
    %58 = vector.load %arg8[%57, %c0_30, %c0_31] : memref<8x2x256xf32, #tpu.memory_space<vmem>>, vector<1x2x256xf32>
    %59 = vector.shape_cast %58 : vector<1x2x256xf32> to vector<2x256xf32>
    %60 = arith.addf %56, %59 : vector<2x256xf32>
    %61 = arith.negf %60 : vector<2x256xf32>
    %62 = math.exp %61 : vector<2x256xf32>
    %cst_32 = arith.constant 1.000000e+00 : f32
    %63 = vector.broadcast %cst_32 : f32 to vector<2x256xf32>
    %64 = arith.addf %63, %62 : vector<2x256xf32>
    %65 = arith.divf %63, %64 : vector<2x256xf32>
    %66 = math.tanh %60 : vector<2x256xf32>
    %67 = vector.extract_strided_slice %65 {offsets = [0, 0], sizes = [2, 64], strides = [1, 1]} : vector<2x256xf32> to vector<2x64xf32>
    %68 = vector.extract_strided_slice %65 {offsets = [0, 64], sizes = [2, 64], strides = [1, 1]} : vector<2x256xf32> to vector<2x64xf32>
    %69 = vector.extract_strided_slice %66 {offsets = [0, 128], sizes = [2, 64], strides = [1, 1]} : vector<2x256xf32> to vector<2x64xf32>
    %70 = vector.extract_strided_slice %65 {offsets = [0, 192], sizes = [2, 64], strides = [1, 1]} : vector<2x256xf32> to vector<2x64xf32>
    %71 = arith.mulf %68, %9 : vector<2x64xf32>
    %72 = arith.mulf %67, %69 : vector<2x64xf32>
    %73 = arith.addf %71, %72 : vector<2x64xf32>
    %74 = math.tanh %73 : vector<2x64xf32>
    %75 = arith.mulf %70, %74 : vector<2x64xf32>
    %76 = arith.index_cast %c0_i32 : i32 to index
    %c0_33 = arith.constant 0 : index
    %c0_34 = arith.constant 0 : index
    %77 = vector.load %arg13[%76, %c0_33, %c0_34] : memref<8x2x64xf32, #tpu.memory_space<vmem>>, vector<1x2x64xf32>
    %78 = vector.shape_cast %77 : vector<1x2x64xf32> to vector<2x64xf32>
    %79 = vector.shape_cast %75 : vector<2x64xf32> to vector<1x2x64xf32>
    tpu.vector_store %arg13[%76, %c0_33, %c0_34], %79 {strides = array<i32>} : memref<8x2x64xf32, #tpu.memory_space<vmem>>, vector<1x2x64xf32>,
    %c1_i32 = arith.constant 1 : i32
    %cst_35 = arith.constant dense<0.000000e+00> : vector<2x64xf32>
    %80 = tpu.matmul %75, %2, %cst_35 {dimension_numbers = #tpu.dot_dimension_numbers<[1], [0], [0], [1], [0, 0, 1, 1], [], []>} : vector<2x64xf32>, vector<64x64xf32>, vector<2x64xf32> -> vector<2x64xf32>
    %81 = vector.broadcast %3 : vector<1x64xf32> to vector<2x64xf32>
    %82 = arith.addf %80, %81 : vector<2x64xf32>
    %83 = vector.shape_cast %82 : vector<2x64xf32> to vector<2x1x64xf32>
    %84 = vector.broadcast %83 : vector<2x1x64xf32> to vector<2x8x64xf32>
    %85 = arith.addf %1, %84 : vector<2x8x64xf32>
    %86 = math.tanh %85 : vector<2x8x64xf32>
    %87 = vector.shape_cast %4 : vector<1x64xf32> to vector<1x1x64xf32>
    %88 = vector.broadcast %87 : vector<1x1x64xf32> to vector<2x8x64xf32>
    %89 = arith.mulf %88, %86 : vector<2x8x64xf32>
    %90 = vector.extract_strided_slice %89 {offsets = [0, 0, 0], sizes = [2, 8, 32], strides = [1, 1, 1]} : vector<2x8x64xf32> to vector<2x8x32xf32>
    %cst_36 = arith.constant dense<0.000000e+00> : vector<2x8xf32>
    %91 = vector.multi_reduction <add>, %90, %cst_36 [2] : vector<2x8x32xf32> to vector<2x8xf32>
    %92 = vector.extract_strided_slice %89 {offsets = [0, 0, 32], sizes = [2, 8, 32], strides = [1, 1, 1]} : vector<2x8x64xf32> to vector<2x8x32xf32>
    %cst_37 = arith.constant dense<0.000000e+00> : vector<2x8xf32>
    %93 = vector.multi_reduction <add>, %92, %cst_37 [2] : vector<2x8x32xf32> to vector<2x8xf32>
    %cst_38 = arith.constant dense<0xFF800000> : vector<2xf32>
    %94 = vector.multi_reduction <maximumf>, %91, %cst_38 [1] : vector<2x8xf32> to vector<2xf32>
    %95 = vector.shape_cast %94 : vector<2xf32> to vector<2x1xf32>
    %96 = vector.broadcast %95 : vector<2x1xf32> to vector<2x8xf32>
    %97 = arith.subf %91, %96 : vector<2x8xf32>
    %98 = math.exp %97 : vector<2x8xf32>
    %cst_39 = arith.constant dense<0.000000e+00> : vector<2xf32>
    %99 = vector.multi_reduction <add>, %98, %cst_39 [1] : vector<2x8xf32> to vector<2xf32>
    %100 = vector.shape_cast %99 : vector<2xf32> to vector<2x1xf32>
    %101 = tpu.reciprocal %100 {approx = true} : vector<2x1xf32> -> vector<2x1xf32>
    %102 = vector.broadcast %101 : vector<2x1xf32> to vector<2x8xf32>
    %103 = arith.mulf %98, %102 : vector<2x8xf32>
    %cst_40 = arith.constant dense<0xFF800000> : vector<2xf32>
    %104 = vector.multi_reduction <maximumf>, %93, %cst_40 [1] : vector<2x8xf32> to vector<2xf32>
    %105 = vector.shape_cast %104 : vector<2xf32> to vector<2x1xf32>
    %106 = vector.broadcast %105 : vector<2x1xf32> to vector<2x8xf32>
    %107 = arith.subf %93, %106 : vector<2x8xf32>
    %108 = math.exp %107 : vector<2x8xf32>
    %cst_41 = arith.constant dense<0.000000e+00> : vector<2xf32>
    %109 = vector.multi_reduction <add>, %108, %cst_41 [1] : vector<2x8xf32> to vector<2xf32>
    %110 = vector.shape_cast %109 : vector<2xf32> to vector<2x1xf32>
    %111 = tpu.reciprocal %110 {approx = true} : vector<2x1xf32> -> vector<2x1xf32>
    %112 = vector.broadcast %111 : vector<2x1xf32> to vector<2x8xf32>
    %113 = arith.mulf %108, %112 : vector<2x8xf32>
    %114 = vector.shape_cast %103 : vector<2x8xf32> to vector<2x8x1xf32>
    %115 = vector.broadcast %114 : vector<2x8x1xf32> to vector<2x8x16xf32>
    %116 = arith.mulf %115, %0 : vector<2x8x16xf32>
    %cst_42 = arith.constant dense<0.000000e+00> : vector<2x16xf32>
    %117 = vector.multi_reduction <add>, %116, %cst_42 [1] : vector<2x8x16xf32> to vector<2x16xf32>
    %118 = vector.shape_cast %113 : vector<2x8xf32> to vector<2x8x1xf32>
    %119 = vector.broadcast %118 : vector<2x8x1xf32> to vector<2x8x16xf32>
    %120 = arith.mulf %119, %0 : vector<2x8x16xf32>
    %cst_43 = arith.constant dense<0.000000e+00> : vector<2x16xf32>
    %121 = vector.multi_reduction <add>, %120, %cst_43 [1] : vector<2x8x16xf32> to vector<2x16xf32>
    %cst_44 = arith.constant dense<0.000000e+00> : vector<2x256xf32>
    %122 = tpu.matmul %117, %5, %cst_44 {dimension_numbers = #tpu.dot_dimension_numbers<[1], [0], [0], [1], [0, 0, 1, 1], [], []>} : vector<2x16xf32>, vector<16x256xf32>, vector<2x256xf32> -> vector<2x256xf32>
    %cst_45 = arith.constant dense<0.000000e+00> : vector<2x256xf32>
    %123 = tpu.matmul %121, %6, %cst_45 {dimension_numbers = #tpu.dot_dimension_numbers<[1], [0], [0], [1], [0, 0, 1, 1], [], []>} : vector<2x16xf32>, vector<16x256xf32>, vector<2x256xf32> -> vector<2x256xf32>
    %124 = arith.addf %122, %123 : vector<2x256xf32>
    %cst_46 = arith.constant dense<0.000000e+00> : vector<2x256xf32>
    %125 = tpu.matmul %75, %7, %cst_46 {dimension_numbers = #tpu.dot_dimension_numbers<[1], [0], [0], [1], [0, 0, 1, 1], [], []>} : vector<2x64xf32>, vector<64x256xf32>, vector<2x256xf32> -> vector<2x256xf32>
    %126 = arith.addf %124, %125 : vector<2x256xf32>
    %127 = arith.index_cast %c1_i32 : i32 to index
    %c0_47 = arith.constant 0 : index
    %c0_48 = arith.constant 0 : index
    %128 = vector.load %arg8[%127, %c0_47, %c0_48] : memref<8x2x256xf32, #tpu.memory_space<vmem>>, vector<1x2x256xf32>
    %129 = vector.shape_cast %128 : vector<1x2x256xf32> to vector<2x256xf32>
    %130 = arith.addf %126, %129 : vector<2x256xf32>
    %131 = arith.negf %130 : vector<2x256xf32>
    %132 = math.exp %131 : vector<2x256xf32>
    %cst_49 = arith.constant 1.000000e+00 : f32
    %133 = vector.broadcast %cst_49 : f32 to vector<2x256xf32>
    %134 = arith.addf %133, %132 : vector<2x256xf32>
    %135 = arith.divf %133, %134 : vector<2x256xf32>
    %136 = math.tanh %130 : vector<2x256xf32>
    %137 = vector.extract_strided_slice %135 {offsets = [0, 0], sizes = [2, 64], strides = [1, 1]} : vector<2x256xf32> to vector<2x64xf32>
    %138 = vector.extract_strided_slice %135 {offsets = [0, 64], sizes = [2, 64], strides = [1, 1]} : vector<2x256xf32> to vector<2x64xf32>
    %139 = vector.extract_strided_slice %136 {offsets = [0, 128], sizes = [2, 64], strides = [1, 1]} : vector<2x256xf32> to vector<2x64xf32>
    %140 = vector.extract_strided_slice %135 {offsets = [0, 192], sizes = [2, 64], strides = [1, 1]} : vector<2x256xf32> to vector<2x64xf32>
    %141 = arith.mulf %138, %73 : vector<2x64xf32>
    %142 = arith.mulf %137, %139 : vector<2x64xf32>
    %143 = arith.addf %141, %142 : vector<2x64xf32>
    %144 = math.tanh %143 : vector<2x64xf32>
    %145 = arith.mulf %140, %144 : vector<2x64xf32>
    %146 = arith.index_cast %c1_i32 : i32 to index
    %c0_50 = arith.constant 0 : index
    %c0_51 = arith.constant 0 : index
    %147 = vector.load %arg13[%146, %c0_50, %c0_51] : memref<8x2x64xf32, #tpu.memory_space<vmem>>, vector<1x2x64xf32>
    %148 = vector.shape_cast %147 : vector<1x2x64xf32> to vector<2x64xf32>
    %149 = vector.shape_cast %145 : vector<2x64xf32> to vector<1x2x64xf32>
    tpu.vector_store %arg13[%146, %c0_50, %c0_51], %149 {strides = array<i32>} : memref<8x2x64xf32, #tpu.memory_space<vmem>>, vector<1x2x64xf32>,
    %c2_i32 = arith.constant 2 : i32
    %cst_52 = arith.constant dense<0.000000e+00> : vector<2x64xf32>
    %150 = tpu.matmul %145, %2, %cst_52 {dimension_numbers = #tpu.dot_dimension_numbers<[1], [0], [0], [1], [0, 0, 1, 1], [], []>} : vector<2x64xf32>, vector<64x64xf32>, vector<2x64xf32> -> vector<2x64xf32>
    %151 = vector.broadcast %3 : vector<1x64xf32> to vector<2x64xf32>
    %152 = arith.addf %150, %151 : vector<2x64xf32>
    %153 = vector.shape_cast %152 : vector<2x64xf32> to vector<2x1x64xf32>
    %154 = vector.broadcast %153 : vector<2x1x64xf32> to vector<2x8x64xf32>
    %155 = arith.addf %1, %154 : vector<2x8x64xf32>
    %156 = math.tanh %155 : vector<2x8x64xf32>
    %157 = vector.shape_cast %4 : vector<1x64xf32> to vector<1x1x64xf32>
    %158 = vector.broadcast %157 : vector<1x1x64xf32> to vector<2x8x64xf32>
    %159 = arith.mulf %158, %156 : vector<2x8x64xf32>
    %160 = vector.extract_strided_slice %159 {offsets = [0, 0, 0], sizes = [2, 8, 32], strides = [1, 1, 1]} : vector<2x8x64xf32> to vector<2x8x32xf32>
    %cst_53 = arith.constant dense<0.000000e+00> : vector<2x8xf32>
    %161 = vector.multi_reduction <add>, %160, %cst_53 [2] : vector<2x8x32xf32> to vector<2x8xf32>
    %162 = vector.extract_strided_slice %159 {offsets = [0, 0, 32], sizes = [2, 8, 32], strides = [1, 1, 1]} : vector<2x8x64xf32> to vector<2x8x32xf32>
    %cst_54 = arith.constant dense<0.000000e+00> : vector<2x8xf32>
    %163 = vector.multi_reduction <add>, %162, %cst_54 [2] : vector<2x8x32xf32> to vector<2x8xf32>
    %cst_55 = arith.constant dense<0xFF800000> : vector<2xf32>
    %164 = vector.multi_reduction <maximumf>, %161, %cst_55 [1] : vector<2x8xf32> to vector<2xf32>
    %165 = vector.shape_cast %164 : vector<2xf32> to vector<2x1xf32>
    %166 = vector.broadcast %165 : vector<2x1xf32> to vector<2x8xf32>
    %167 = arith.subf %161, %166 : vector<2x8xf32>
    %168 = math.exp %167 : vector<2x8xf32>
    %cst_56 = arith.constant dense<0.000000e+00> : vector<2xf32>
    %169 = vector.multi_reduction <add>, %168, %cst_56 [1] : vector<2x8xf32> to vector<2xf32>
    %170 = vector.shape_cast %169 : vector<2xf32> to vector<2x1xf32>
    %171 = tpu.reciprocal %170 {approx = true} : vector<2x1xf32> -> vector<2x1xf32>
    %172 = vector.broadcast %171 : vector<2x1xf32> to vector<2x8xf32>
    %173 = arith.mulf %168, %172 : vector<2x8xf32>
    %cst_57 = arith.constant dense<0xFF800000> : vector<2xf32>
    %174 = vector.multi_reduction <maximumf>, %163, %cst_57 [1] : vector<2x8xf32> to vector<2xf32>
    %175 = vector.shape_cast %174 : vector<2xf32> to vector<2x1xf32>
    %176 = vector.broadcast %175 : vector<2x1xf32> to vector<2x8xf32>
    %177 = arith.subf %163, %176 : vector<2x8xf32>
    %178 = math.exp %177 : vector<2x8xf32>
    %cst_58 = arith.constant dense<0.000000e+00> : vector<2xf32>
    %179 = vector.multi_reduction <add>, %178, %cst_58 [1] : vector<2x8xf32> to vector<2xf32>
    %180 = vector.shape_cast %179 : vector<2xf32> to vector<2x1xf32>
    %181 = tpu.reciprocal %180 {approx = true} : vector<2x1xf32> -> vector<2x1xf32>
    %182 = vector.broadcast %181 : vector<2x1xf32> to vector<2x8xf32>
    %183 = arith.mulf %178, %182 : vector<2x8xf32>
    %184 = vector.shape_cast %173 : vector<2x8xf32> to vector<2x8x1xf32>
    %185 = vector.broadcast %184 : vector<2x8x1xf32> to vector<2x8x16xf32>
    %186 = arith.mulf %185, %0 : vector<2x8x16xf32>
    %cst_59 = arith.constant dense<0.000000e+00> : vector<2x16xf32>
    %187 = vector.multi_reduction <add>, %186, %cst_59 [1] : vector<2x8x16xf32> to vector<2x16xf32>
    %188 = vector.shape_cast %183 : vector<2x8xf32> to vector<2x8x1xf32>
    %189 = vector.broadcast %188 : vector<2x8x1xf32> to vector<2x8x16xf32>
    %190 = arith.mulf %189, %0 : vector<2x8x16xf32>
    %cst_60 = arith.constant dense<0.000000e+00> : vector<2x16xf32>
    %191 = vector.multi_reduction <add>, %190, %cst_60 [1] : vector<2x8x16xf32> to vector<2x16xf32>
    %cst_61 = arith.constant dense<0.000000e+00> : vector<2x256xf32>
    %192 = tpu.matmul %187, %5, %cst_61 {dimension_numbers = #tpu.dot_dimension_numbers<[1], [0], [0], [1], [0, 0, 1, 1], [], []>} : vector<2x16xf32>, vector<16x256xf32>, vector<2x256xf32> -> vector<2x256xf32>
    %cst_62 = arith.constant dense<0.000000e+00> : vector<2x256xf32>
    %193 = tpu.matmul %191, %6, %cst_62 {dimension_numbers = #tpu.dot_dimension_numbers<[1], [0], [0], [1], [0, 0, 1, 1], [], []>} : vector<2x16xf32>, vector<16x256xf32>, vector<2x256xf32> -> vector<2x256xf32>
    %194 = arith.addf %192, %193 : vector<2x256xf32>
    %cst_63 = arith.constant dense<0.000000e+00> : vector<2x256xf32>
    %195 = tpu.matmul %145, %7, %cst_63 {dimension_numbers = #tpu.dot_dimension_numbers<[1], [0], [0], [1], [0, 0, 1, 1], [], []>} : vector<2x64xf32>, vector<64x256xf32>, vector<2x256xf32> -> vector<2x256xf32>
    %196 = arith.addf %194, %195 : vector<2x256xf32>
    %197 = arith.index_cast %c2_i32 : i32 to index
    %c0_64 = arith.constant 0 : index
    %c0_65 = arith.constant 0 : index
    %198 = vector.load %arg8[%197, %c0_64, %c0_65] : memref<8x2x256xf32, #tpu.memory_space<vmem>>, vector<1x2x256xf32>
    %199 = vector.shape_cast %198 : vector<1x2x256xf32> to vector<2x256xf32>
    %200 = arith.addf %196, %199 : vector<2x256xf32>
    %201 = arith.negf %200 : vector<2x256xf32>
    %202 = math.exp %201 : vector<2x256xf32>
    %cst_66 = arith.constant 1.000000e+00 : f32
    %203 = vector.broadcast %cst_66 : f32 to vector<2x256xf32>
    %204 = arith.addf %203, %202 : vector<2x256xf32>
    %205 = arith.divf %203, %204 : vector<2x256xf32>
    %206 = math.tanh %200 : vector<2x256xf32>
    %207 = vector.extract_strided_slice %205 {offsets = [0, 0], sizes = [2, 64], strides = [1, 1]} : vector<2x256xf32> to vector<2x64xf32>
    %208 = vector.extract_strided_slice %205 {offsets = [0, 64], sizes = [2, 64], strides = [1, 1]} : vector<2x256xf32> to vector<2x64xf32>
    %209 = vector.extract_strided_slice %206 {offsets = [0, 128], sizes = [2, 64], strides = [1, 1]} : vector<2x256xf32> to vector<2x64xf32>
    %210 = vector.extract_strided_slice %205 {offsets = [0, 192], sizes = [2, 64], strides = [1, 1]} : vector<2x256xf32> to vector<2x64xf32>
    %211 = arith.mulf %208, %143 : vector<2x64xf32>
    %212 = arith.mulf %207, %209 : vector<2x64xf32>
    %213 = arith.addf %211, %212 : vector<2x64xf32>
    %214 = math.tanh %213 : vector<2x64xf32>
    %215 = arith.mulf %210, %214 : vector<2x64xf32>
    %216 = arith.index_cast %c2_i32 : i32 to index
    %c0_67 = arith.constant 0 : index
    %c0_68 = arith.constant 0 : index
    %217 = vector.load %arg13[%216, %c0_67, %c0_68] : memref<8x2x64xf32, #tpu.memory_space<vmem>>, vector<1x2x64xf32>
    %218 = vector.shape_cast %217 : vector<1x2x64xf32> to vector<2x64xf32>
    %219 = vector.shape_cast %215 : vector<2x64xf32> to vector<1x2x64xf32>
    tpu.vector_store %arg13[%216, %c0_67, %c0_68], %219 {strides = array<i32>} : memref<8x2x64xf32, #tpu.memory_space<vmem>>, vector<1x2x64xf32>,
    %c3_i32 = arith.constant 3 : i32
    %cst_69 = arith.constant dense<0.000000e+00> : vector<2x64xf32>
    %220 = tpu.matmul %215, %2, %cst_69 {dimension_numbers = #tpu.dot_dimension_numbers<[1], [0], [0], [1], [0, 0, 1, 1], [], []>} : vector<2x64xf32>, vector<64x64xf32>, vector<2x64xf32> -> vector<2x64xf32>
    %221 = vector.broadcast %3 : vector<1x64xf32> to vector<2x64xf32>
    %222 = arith.addf %220, %221 : vector<2x64xf32>
    %223 = vector.shape_cast %222 : vector<2x64xf32> to vector<2x1x64xf32>
    %224 = vector.broadcast %223 : vector<2x1x64xf32> to vector<2x8x64xf32>
    %225 = arith.addf %1, %224 : vector<2x8x64xf32>
    %226 = math.tanh %225 : vector<2x8x64xf32>
    %227 = vector.shape_cast %4 : vector<1x64xf32> to vector<1x1x64xf32>
    %228 = vector.broadcast %227 : vector<1x1x64xf32> to vector<2x8x64xf32>
    %229 = arith.mulf %228, %226 : vector<2x8x64xf32>
    %230 = vector.extract_strided_slice %229 {offsets = [0, 0, 0], sizes = [2, 8, 32], strides = [1, 1, 1]} : vector<2x8x64xf32> to vector<2x8x32xf32>
    %cst_70 = arith.constant dense<0.000000e+00> : vector<2x8xf32>
    %231 = vector.multi_reduction <add>, %230, %cst_70 [2] : vector<2x8x32xf32> to vector<2x8xf32>
    %232 = vector.extract_strided_slice %229 {offsets = [0, 0, 32], sizes = [2, 8, 32], strides = [1, 1, 1]} : vector<2x8x64xf32> to vector<2x8x32xf32>
    %cst_71 = arith.constant dense<0.000000e+00> : vector<2x8xf32>
    %233 = vector.multi_reduction <add>, %232, %cst_71 [2] : vector<2x8x32xf32> to vector<2x8xf32>
    %cst_72 = arith.constant dense<0xFF800000> : vector<2xf32>
    %234 = vector.multi_reduction <maximumf>, %231, %cst_72 [1] : vector<2x8xf32> to vector<2xf32>
    %235 = vector.shape_cast %234 : vector<2xf32> to vector<2x1xf32>
    %236 = vector.broadcast %235 : vector<2x1xf32> to vector<2x8xf32>
    %237 = arith.subf %231, %236 : vector<2x8xf32>
    %238 = math.exp %237 : vector<2x8xf32>
    %cst_73 = arith.constant dense<0.000000e+00> : vector<2xf32>
    %239 = vector.multi_reduction <add>, %238, %cst_73 [1] : vector<2x8xf32> to vector<2xf32>
    %240 = vector.shape_cast %239 : vector<2xf32> to vector<2x1xf32>
    %241 = tpu.reciprocal %240 {approx = true} : vector<2x1xf32> -> vector<2x1xf32>
    %242 = vector.broadcast %241 : vector<2x1xf32> to vector<2x8xf32>
    %243 = arith.mulf %238, %242 : vector<2x8xf32>
    %cst_74 = arith.constant dense<0xFF800000> : vector<2xf32>
    %244 = vector.multi_reduction <maximumf>, %233, %cst_74 [1] : vector<2x8xf32> to vector<2xf32>
    %245 = vector.shape_cast %244 : vector<2xf32> to vector<2x1xf32>
    %246 = vector.broadcast %245 : vector<2x1xf32> to vector<2x8xf32>
    %247 = arith.subf %233, %246 : vector<2x8xf32>
    %248 = math.exp %247 : vector<2x8xf32>
    %cst_75 = arith.constant dense<0.000000e+00> : vector<2xf32>
    %249 = vector.multi_reduction <add>, %248, %cst_75 [1] : vector<2x8xf32> to vector<2xf32>
    %250 = vector.shape_cast %249 : vector<2xf32> to vector<2x1xf32>
    %251 = tpu.reciprocal %250 {approx = true} : vector<2x1xf32> -> vector<2x1xf32>
    %252 = vector.broadcast %251 : vector<2x1xf32> to vector<2x8xf32>
    %253 = arith.mulf %248, %252 : vector<2x8xf32>
    %254 = vector.shape_cast %243 : vector<2x8xf32> to vector<2x8x1xf32>
    %255 = vector.broadcast %254 : vector<2x8x1xf32> to vector<2x8x16xf32>
    %256 = arith.mulf %255, %0 : vector<2x8x16xf32>
    %cst_76 = arith.constant dense<0.000000e+00> : vector<2x16xf32>
    %257 = vector.multi_reduction <add>, %256, %cst_76 [1] : vector<2x8x16xf32> to vector<2x16xf32>
    %258 = vector.shape_cast %253 : vector<2x8xf32> to vector<2x8x1xf32>
    %259 = vector.broadcast %258 : vector<2x8x1xf32> to vector<2x8x16xf32>
    %260 = arith.mulf %259, %0 : vector<2x8x16xf32>
    %cst_77 = arith.constant dense<0.000000e+00> : vector<2x16xf32>
    %261 = vector.multi_reduction <add>, %260, %cst_77 [1] : vector<2x8x16xf32> to vector<2x16xf32>
    %cst_78 = arith.constant dense<0.000000e+00> : vector<2x256xf32>
    %262 = tpu.matmul %257, %5, %cst_78 {dimension_numbers = #tpu.dot_dimension_numbers<[1], [0], [0], [1], [0, 0, 1, 1], [], []>} : vector<2x16xf32>, vector<16x256xf32>, vector<2x256xf32> -> vector<2x256xf32>
    %cst_79 = arith.constant dense<0.000000e+00> : vector<2x256xf32>
    %263 = tpu.matmul %261, %6, %cst_79 {dimension_numbers = #tpu.dot_dimension_numbers<[1], [0], [0], [1], [0, 0, 1, 1], [], []>} : vector<2x16xf32>, vector<16x256xf32>, vector<2x256xf32> -> vector<2x256xf32>
    %264 = arith.addf %262, %263 : vector<2x256xf32>
    %cst_80 = arith.constant dense<0.000000e+00> : vector<2x256xf32>
    %265 = tpu.matmul %215, %7, %cst_80 {dimension_numbers = #tpu.dot_dimension_numbers<[1], [0], [0], [1], [0, 0, 1, 1], [], []>} : vector<2x64xf32>, vector<64x256xf32>, vector<2x256xf32> -> vector<2x256xf32>
    %266 = arith.addf %264, %265 : vector<2x256xf32>
    %267 = arith.index_cast %c3_i32 : i32 to index
    %c0_81 = arith.constant 0 : index
    %c0_82 = arith.constant 0 : index
    %268 = vector.load %arg8[%267, %c0_81, %c0_82] : memref<8x2x256xf32, #tpu.memory_space<vmem>>, vector<1x2x256xf32>
    %269 = vector.shape_cast %268 : vector<1x2x256xf32> to vector<2x256xf32>
    %270 = arith.addf %266, %269 : vector<2x256xf32>
    %271 = arith.negf %270 : vector<2x256xf32>
    %272 = math.exp %271 : vector<2x256xf32>
    %cst_83 = arith.constant 1.000000e+00 : f32
    %273 = vector.broadcast %cst_83 : f32 to vector<2x256xf32>
    %274 = arith.addf %273, %272 : vector<2x256xf32>
    %275 = arith.divf %273, %274 : vector<2x256xf32>
    %276 = math.tanh %270 : vector<2x256xf32>
    %277 = vector.extract_strided_slice %275 {offsets = [0, 0], sizes = [2, 64], strides = [1, 1]} : vector<2x256xf32> to vector<2x64xf32>
    %278 = vector.extract_strided_slice %275 {offsets = [0, 64], sizes = [2, 64], strides = [1, 1]} : vector<2x256xf32> to vector<2x64xf32>
    %279 = vector.extract_strided_slice %276 {offsets = [0, 128], sizes = [2, 64], strides = [1, 1]} : vector<2x256xf32> to vector<2x64xf32>
    %280 = vector.extract_strided_slice %275 {offsets = [0, 192], sizes = [2, 64], strides = [1, 1]} : vector<2x256xf32> to vector<2x64xf32>
    %281 = arith.mulf %278, %213 : vector<2x64xf32>
    %282 = arith.mulf %277, %279 : vector<2x64xf32>
    %283 = arith.addf %281, %282 : vector<2x64xf32>
    %284 = math.tanh %283 : vector<2x64xf32>
    %285 = arith.mulf %280, %284 : vector<2x64xf32>
    %286 = arith.index_cast %c3_i32 : i32 to index
    %c0_84 = arith.constant 0 : index
    %c0_85 = arith.constant 0 : index
    %287 = vector.load %arg13[%286, %c0_84, %c0_85] : memref<8x2x64xf32, #tpu.memory_space<vmem>>, vector<1x2x64xf32>
    %288 = vector.shape_cast %287 : vector<1x2x64xf32> to vector<2x64xf32>
    %289 = vector.shape_cast %285 : vector<2x64xf32> to vector<1x2x64xf32>
    tpu.vector_store %arg13[%286, %c0_84, %c0_85], %289 {strides = array<i32>} : memref<8x2x64xf32, #tpu.memory_space<vmem>>, vector<1x2x64xf32>,
    %c4_i32 = arith.constant 4 : i32
    %cst_86 = arith.constant dense<0.000000e+00> : vector<2x64xf32>
    %290 = tpu.matmul %285, %2, %cst_86 {dimension_numbers = #tpu.dot_dimension_numbers<[1], [0], [0], [1], [0, 0, 1, 1], [], []>} : vector<2x64xf32>, vector<64x64xf32>, vector<2x64xf32> -> vector<2x64xf32>
    %291 = vector.broadcast %3 : vector<1x64xf32> to vector<2x64xf32>
    %292 = arith.addf %290, %291 : vector<2x64xf32>
    %293 = vector.shape_cast %292 : vector<2x64xf32> to vector<2x1x64xf32>
    %294 = vector.broadcast %293 : vector<2x1x64xf32> to vector<2x8x64xf32>
    %295 = arith.addf %1, %294 : vector<2x8x64xf32>
    %296 = math.tanh %295 : vector<2x8x64xf32>
    %297 = vector.shape_cast %4 : vector<1x64xf32> to vector<1x1x64xf32>
    %298 = vector.broadcast %297 : vector<1x1x64xf32> to vector<2x8x64xf32>
    %299 = arith.mulf %298, %296 : vector<2x8x64xf32>
    %300 = vector.extract_strided_slice %299 {offsets = [0, 0, 0], sizes = [2, 8, 32], strides = [1, 1, 1]} : vector<2x8x64xf32> to vector<2x8x32xf32>
    %cst_87 = arith.constant dense<0.000000e+00> : vector<2x8xf32>
    %301 = vector.multi_reduction <add>, %300, %cst_87 [2] : vector<2x8x32xf32> to vector<2x8xf32>
    %302 = vector.extract_strided_slice %299 {offsets = [0, 0, 32], sizes = [2, 8, 32], strides = [1, 1, 1]} : vector<2x8x64xf32> to vector<2x8x32xf32>
    %cst_88 = arith.constant dense<0.000000e+00> : vector<2x8xf32>
    %303 = vector.multi_reduction <add>, %302, %cst_88 [2] : vector<2x8x32xf32> to vector<2x8xf32>
    %cst_89 = arith.constant dense<0xFF800000> : vector<2xf32>
    %304 = vector.multi_reduction <maximumf>, %301, %cst_89 [1] : vector<2x8xf32> to vector<2xf32>
    %305 = vector.shape_cast %304 : vector<2xf32> to vector<2x1xf32>
    %306 = vector.broadcast %305 : vector<2x1xf32> to vector<2x8xf32>
    %307 = arith.subf %301, %306 : vector<2x8xf32>
    %308 = math.exp %307 : vector<2x8xf32>
    %cst_90 = arith.constant dense<0.000000e+00> : vector<2xf32>
    %309 = vector.multi_reduction <add>, %308, %cst_90 [1] : vector<2x8xf32> to vector<2xf32>
    %310 = vector.shape_cast %309 : vector<2xf32> to vector<2x1xf32>
    %311 = tpu.reciprocal %310 {approx = true} : vector<2x1xf32> -> vector<2x1xf32>
    %312 = vector.broadcast %311 : vector<2x1xf32> to vector<2x8xf32>
    %313 = arith.mulf %308, %312 : vector<2x8xf32>
    %cst_91 = arith.constant dense<0xFF800000> : vector<2xf32>
    %314 = vector.multi_reduction <maximumf>, %303, %cst_91 [1] : vector<2x8xf32> to vector<2xf32>
    %315 = vector.shape_cast %314 : vector<2xf32> to vector<2x1xf32>
    %316 = vector.broadcast %315 : vector<2x1xf32> to vector<2x8xf32>
    %317 = arith.subf %303, %316 : vector<2x8xf32>
    %318 = math.exp %317 : vector<2x8xf32>
    %cst_92 = arith.constant dense<0.000000e+00> : vector<2xf32>
    %319 = vector.multi_reduction <add>, %318, %cst_92 [1] : vector<2x8xf32> to vector<2xf32>
    %320 = vector.shape_cast %319 : vector<2xf32> to vector<2x1xf32>
    %321 = tpu.reciprocal %320 {approx = true} : vector<2x1xf32> -> vector<2x1xf32>
    %322 = vector.broadcast %321 : vector<2x1xf32> to vector<2x8xf32>
    %323 = arith.mulf %318, %322 : vector<2x8xf32>
    %324 = vector.shape_cast %313 : vector<2x8xf32> to vector<2x8x1xf32>
    %325 = vector.broadcast %324 : vector<2x8x1xf32> to vector<2x8x16xf32>
    %326 = arith.mulf %325, %0 : vector<2x8x16xf32>
    %cst_93 = arith.constant dense<0.000000e+00> : vector<2x16xf32>
    %327 = vector.multi_reduction <add>, %326, %cst_93 [1] : vector<2x8x16xf32> to vector<2x16xf32>
    %328 = vector.shape_cast %323 : vector<2x8xf32> to vector<2x8x1xf32>
    %329 = vector.broadcast %328 : vector<2x8x1xf32> to vector<2x8x16xf32>
    %330 = arith.mulf %329, %0 : vector<2x8x16xf32>
    %cst_94 = arith.constant dense<0.000000e+00> : vector<2x16xf32>
    %331 = vector.multi_reduction <add>, %330, %cst_94 [1] : vector<2x8x16xf32> to vector<2x16xf32>
    %cst_95 = arith.constant dense<0.000000e+00> : vector<2x256xf32>
    %332 = tpu.matmul %327, %5, %cst_95 {dimension_numbers = #tpu.dot_dimension_numbers<[1], [0], [0], [1], [0, 0, 1, 1], [], []>} : vector<2x16xf32>, vector<16x256xf32>, vector<2x256xf32> -> vector<2x256xf32>
    %cst_96 = arith.constant dense<0.000000e+00> : vector<2x256xf32>
    %333 = tpu.matmul %331, %6, %cst_96 {dimension_numbers = #tpu.dot_dimension_numbers<[1], [0], [0], [1], [0, 0, 1, 1], [], []>} : vector<2x16xf32>, vector<16x256xf32>, vector<2x256xf32> -> vector<2x256xf32>
    %334 = arith.addf %332, %333 : vector<2x256xf32>
    %cst_97 = arith.constant dense<0.000000e+00> : vector<2x256xf32>
    %335 = tpu.matmul %285, %7, %cst_97 {dimension_numbers = #tpu.dot_dimension_numbers<[1], [0], [0], [1], [0, 0, 1, 1], [], []>} : vector<2x64xf32>, vector<64x256xf32>, vector<2x256xf32> -> vector<2x256xf32>
    %336 = arith.addf %334, %335 : vector<2x256xf32>
    %337 = arith.index_cast %c4_i32 : i32 to index
    %c0_98 = arith.constant 0 : index
    %c0_99 = arith.constant 0 : index
    %338 = vector.load %arg8[%337, %c0_98, %c0_99] : memref<8x2x256xf32, #tpu.memory_space<vmem>>, vector<1x2x256xf32>
    %339 = vector.shape_cast %338 : vector<1x2x256xf32> to vector<2x256xf32>
    %340 = arith.addf %336, %339 : vector<2x256xf32>
    %341 = arith.negf %340 : vector<2x256xf32>
    %342 = math.exp %341 : vector<2x256xf32>
    %cst_100 = arith.constant 1.000000e+00 : f32
    %343 = vector.broadcast %cst_100 : f32 to vector<2x256xf32>
    %344 = arith.addf %343, %342 : vector<2x256xf32>
    %345 = arith.divf %343, %344 : vector<2x256xf32>
    %346 = math.tanh %340 : vector<2x256xf32>
    %347 = vector.extract_strided_slice %345 {offsets = [0, 0], sizes = [2, 64], strides = [1, 1]} : vector<2x256xf32> to vector<2x64xf32>
    %348 = vector.extract_strided_slice %345 {offsets = [0, 64], sizes = [2, 64], strides = [1, 1]} : vector<2x256xf32> to vector<2x64xf32>
    %349 = vector.extract_strided_slice %346 {offsets = [0, 128], sizes = [2, 64], strides = [1, 1]} : vector<2x256xf32> to vector<2x64xf32>
    %350 = vector.extract_strided_slice %345 {offsets = [0, 192], sizes = [2, 64], strides = [1, 1]} : vector<2x256xf32> to vector<2x64xf32>
    %351 = arith.mulf %348, %283 : vector<2x64xf32>
    %352 = arith.mulf %347, %349 : vector<2x64xf32>
    %353 = arith.addf %351, %352 : vector<2x64xf32>
    %354 = math.tanh %353 : vector<2x64xf32>
    %355 = arith.mulf %350, %354 : vector<2x64xf32>
    %356 = arith.index_cast %c4_i32 : i32 to index
    %c0_101 = arith.constant 0 : index
    %c0_102 = arith.constant 0 : index
    %357 = vector.load %arg13[%356, %c0_101, %c0_102] : memref<8x2x64xf32, #tpu.memory_space<vmem>>, vector<1x2x64xf32>
    %358 = vector.shape_cast %357 : vector<1x2x64xf32> to vector<2x64xf32>
    %359 = vector.shape_cast %355 : vector<2x64xf32> to vector<1x2x64xf32>
    tpu.vector_store %arg13[%356, %c0_101, %c0_102], %359 {strides = array<i32>} : memref<8x2x64xf32, #tpu.memory_space<vmem>>, vector<1x2x64xf32>,
    %c5_i32 = arith.constant 5 : i32
    %cst_103 = arith.constant dense<0.000000e+00> : vector<2x64xf32>
    %360 = tpu.matmul %355, %2, %cst_103 {dimension_numbers = #tpu.dot_dimension_numbers<[1], [0], [0], [1], [0, 0, 1, 1], [], []>} : vector<2x64xf32>, vector<64x64xf32>, vector<2x64xf32> -> vector<2x64xf32>
    %361 = vector.broadcast %3 : vector<1x64xf32> to vector<2x64xf32>
    %362 = arith.addf %360, %361 : vector<2x64xf32>
    %363 = vector.shape_cast %362 : vector<2x64xf32> to vector<2x1x64xf32>
    %364 = vector.broadcast %363 : vector<2x1x64xf32> to vector<2x8x64xf32>
    %365 = arith.addf %1, %364 : vector<2x8x64xf32>
    %366 = math.tanh %365 : vector<2x8x64xf32>
    %367 = vector.shape_cast %4 : vector<1x64xf32> to vector<1x1x64xf32>
    %368 = vector.broadcast %367 : vector<1x1x64xf32> to vector<2x8x64xf32>
    %369 = arith.mulf %368, %366 : vector<2x8x64xf32>
    %370 = vector.extract_strided_slice %369 {offsets = [0, 0, 0], sizes = [2, 8, 32], strides = [1, 1, 1]} : vector<2x8x64xf32> to vector<2x8x32xf32>
    %cst_104 = arith.constant dense<0.000000e+00> : vector<2x8xf32>
    %371 = vector.multi_reduction <add>, %370, %cst_104 [2] : vector<2x8x32xf32> to vector<2x8xf32>
    %372 = vector.extract_strided_slice %369 {offsets = [0, 0, 32], sizes = [2, 8, 32], strides = [1, 1, 1]} : vector<2x8x64xf32> to vector<2x8x32xf32>
    %cst_105 = arith.constant dense<0.000000e+00> : vector<2x8xf32>
    %373 = vector.multi_reduction <add>, %372, %cst_105 [2] : vector<2x8x32xf32> to vector<2x8xf32>
    %cst_106 = arith.constant dense<0xFF800000> : vector<2xf32>
    %374 = vector.multi_reduction <maximumf>, %371, %cst_106 [1] : vector<2x8xf32> to vector<2xf32>
    %375 = vector.shape_cast %374 : vector<2xf32> to vector<2x1xf32>
    %376 = vector.broadcast %375 : vector<2x1xf32> to vector<2x8xf32>
    %377 = arith.subf %371, %376 : vector<2x8xf32>
    %378 = math.exp %377 : vector<2x8xf32>
    %cst_107 = arith.constant dense<0.000000e+00> : vector<2xf32>
    %379 = vector.multi_reduction <add>, %378, %cst_107 [1] : vector<2x8xf32> to vector<2xf32>
    %380 = vector.shape_cast %379 : vector<2xf32> to vector<2x1xf32>
    %381 = tpu.reciprocal %380 {approx = true} : vector<2x1xf32> -> vector<2x1xf32>
    %382 = vector.broadcast %381 : vector<2x1xf32> to vector<2x8xf32>
    %383 = arith.mulf %378, %382 : vector<2x8xf32>
    %cst_108 = arith.constant dense<0xFF800000> : vector<2xf32>
    %384 = vector.multi_reduction <maximumf>, %373, %cst_108 [1] : vector<2x8xf32> to vector<2xf32>
    %385 = vector.shape_cast %384 : vector<2xf32> to vector<2x1xf32>
    %386 = vector.broadcast %385 : vector<2x1xf32> to vector<2x8xf32>
    %387 = arith.subf %373, %386 : vector<2x8xf32>
    %388 = math.exp %387 : vector<2x8xf32>
    %cst_109 = arith.constant dense<0.000000e+00> : vector<2xf32>
    %389 = vector.multi_reduction <add>, %388, %cst_109 [1] : vector<2x8xf32> to vector<2xf32>
    %390 = vector.shape_cast %389 : vector<2xf32> to vector<2x1xf32>
    %391 = tpu.reciprocal %390 {approx = true} : vector<2x1xf32> -> vector<2x1xf32>
    %392 = vector.broadcast %391 : vector<2x1xf32> to vector<2x8xf32>
    %393 = arith.mulf %388, %392 : vector<2x8xf32>
    %394 = vector.shape_cast %383 : vector<2x8xf32> to vector<2x8x1xf32>
    %395 = vector.broadcast %394 : vector<2x8x1xf32> to vector<2x8x16xf32>
    %396 = arith.mulf %395, %0 : vector<2x8x16xf32>
    %cst_110 = arith.constant dense<0.000000e+00> : vector<2x16xf32>
    %397 = vector.multi_reduction <add>, %396, %cst_110 [1] : vector<2x8x16xf32> to vector<2x16xf32>
    %398 = vector.shape_cast %393 : vector<2x8xf32> to vector<2x8x1xf32>
    %399 = vector.broadcast %398 : vector<2x8x1xf32> to vector<2x8x16xf32>
    %400 = arith.mulf %399, %0 : vector<2x8x16xf32>
    %cst_111 = arith.constant dense<0.000000e+00> : vector<2x16xf32>
    %401 = vector.multi_reduction <add>, %400, %cst_111 [1] : vector<2x8x16xf32> to vector<2x16xf32>
    %cst_112 = arith.constant dense<0.000000e+00> : vector<2x256xf32>
    %402 = tpu.matmul %397, %5, %cst_112 {dimension_numbers = #tpu.dot_dimension_numbers<[1], [0], [0], [1], [0, 0, 1, 1], [], []>} : vector<2x16xf32>, vector<16x256xf32>, vector<2x256xf32> -> vector<2x256xf32>
    %cst_113 = arith.constant dense<0.000000e+00> : vector<2x256xf32>
    %403 = tpu.matmul %401, %6, %cst_113 {dimension_numbers = #tpu.dot_dimension_numbers<[1], [0], [0], [1], [0, 0, 1, 1], [], []>} : vector<2x16xf32>, vector<16x256xf32>, vector<2x256xf32> -> vector<2x256xf32>
    %404 = arith.addf %402, %403 : vector<2x256xf32>
    %cst_114 = arith.constant dense<0.000000e+00> : vector<2x256xf32>
    %405 = tpu.matmul %355, %7, %cst_114 {dimension_numbers = #tpu.dot_dimension_numbers<[1], [0], [0], [1], [0, 0, 1, 1], [], []>} : vector<2x64xf32>, vector<64x256xf32>, vector<2x256xf32> -> vector<2x256xf32>
    %406 = arith.addf %404, %405 : vector<2x256xf32>
    %407 = arith.index_cast %c5_i32 : i32 to index
    %c0_115 = arith.constant 0 : index
    %c0_116 = arith.constant 0 : index
    %408 = vector.load %arg8[%407, %c0_115, %c0_116] : memref<8x2x256xf32, #tpu.memory_space<vmem>>, vector<1x2x256xf32>
    %409 = vector.shape_cast %408 : vector<1x2x256xf32> to vector<2x256xf32>
    %410 = arith.addf %406, %409 : vector<2x256xf32>
    %411 = arith.negf %410 : vector<2x256xf32>
    %412 = math.exp %411 : vector<2x256xf32>
    %cst_117 = arith.constant 1.000000e+00 : f32
    %413 = vector.broadcast %cst_117 : f32 to vector<2x256xf32>
    %414 = arith.addf %413, %412 : vector<2x256xf32>
    %415 = arith.divf %413, %414 : vector<2x256xf32>
    %416 = math.tanh %410 : vector<2x256xf32>
    %417 = vector.extract_strided_slice %415 {offsets = [0, 0], sizes = [2, 64], strides = [1, 1]} : vector<2x256xf32> to vector<2x64xf32>
    %418 = vector.extract_strided_slice %415 {offsets = [0, 64], sizes = [2, 64], strides = [1, 1]} : vector<2x256xf32> to vector<2x64xf32>
    %419 = vector.extract_strided_slice %416 {offsets = [0, 128], sizes = [2, 64], strides = [1, 1]} : vector<2x256xf32> to vector<2x64xf32>
    %420 = vector.extract_strided_slice %415 {offsets = [0, 192], sizes = [2, 64], strides = [1, 1]} : vector<2x256xf32> to vector<2x64xf32>
    %421 = arith.mulf %418, %353 : vector<2x64xf32>
    %422 = arith.mulf %417, %419 : vector<2x64xf32>
    %423 = arith.addf %421, %422 : vector<2x64xf32>
    %424 = math.tanh %423 : vector<2x64xf32>
    %425 = arith.mulf %420, %424 : vector<2x64xf32>
    %426 = arith.index_cast %c5_i32 : i32 to index
    %c0_118 = arith.constant 0 : index
    %c0_119 = arith.constant 0 : index
    %427 = vector.load %arg13[%426, %c0_118, %c0_119] : memref<8x2x64xf32, #tpu.memory_space<vmem>>, vector<1x2x64xf32>
    %428 = vector.shape_cast %427 : vector<1x2x64xf32> to vector<2x64xf32>
    %429 = vector.shape_cast %425 : vector<2x64xf32> to vector<1x2x64xf32>
    tpu.vector_store %arg13[%426, %c0_118, %c0_119], %429 {strides = array<i32>} : memref<8x2x64xf32, #tpu.memory_space<vmem>>, vector<1x2x64xf32>,
    %c6_i32 = arith.constant 6 : i32
    %cst_120 = arith.constant dense<0.000000e+00> : vector<2x64xf32>
    %430 = tpu.matmul %425, %2, %cst_120 {dimension_numbers = #tpu.dot_dimension_numbers<[1], [0], [0], [1], [0, 0, 1, 1], [], []>} : vector<2x64xf32>, vector<64x64xf32>, vector<2x64xf32> -> vector<2x64xf32>
    %431 = vector.broadcast %3 : vector<1x64xf32> to vector<2x64xf32>
    %432 = arith.addf %430, %431 : vector<2x64xf32>
    %433 = vector.shape_cast %432 : vector<2x64xf32> to vector<2x1x64xf32>
    %434 = vector.broadcast %433 : vector<2x1x64xf32> to vector<2x8x64xf32>
    %435 = arith.addf %1, %434 : vector<2x8x64xf32>
    %436 = math.tanh %435 : vector<2x8x64xf32>
    %437 = vector.shape_cast %4 : vector<1x64xf32> to vector<1x1x64xf32>
    %438 = vector.broadcast %437 : vector<1x1x64xf32> to vector<2x8x64xf32>
    %439 = arith.mulf %438, %436 : vector<2x8x64xf32>
    %440 = vector.extract_strided_slice %439 {offsets = [0, 0, 0], sizes = [2, 8, 32], strides = [1, 1, 1]} : vector<2x8x64xf32> to vector<2x8x32xf32>
    %cst_121 = arith.constant dense<0.000000e+00> : vector<2x8xf32>
    %441 = vector.multi_reduction <add>, %440, %cst_121 [2] : vector<2x8x32xf32> to vector<2x8xf32>
    %442 = vector.extract_strided_slice %439 {offsets = [0, 0, 32], sizes = [2, 8, 32], strides = [1, 1, 1]} : vector<2x8x64xf32> to vector<2x8x32xf32>
    %cst_122 = arith.constant dense<0.000000e+00> : vector<2x8xf32>
    %443 = vector.multi_reduction <add>, %442, %cst_122 [2] : vector<2x8x32xf32> to vector<2x8xf32>
    %cst_123 = arith.constant dense<0xFF800000> : vector<2xf32>
    %444 = vector.multi_reduction <maximumf>, %441, %cst_123 [1] : vector<2x8xf32> to vector<2xf32>
    %445 = vector.shape_cast %444 : vector<2xf32> to vector<2x1xf32>
    %446 = vector.broadcast %445 : vector<2x1xf32> to vector<2x8xf32>
    %447 = arith.subf %441, %446 : vector<2x8xf32>
    %448 = math.exp %447 : vector<2x8xf32>
    %cst_124 = arith.constant dense<0.000000e+00> : vector<2xf32>
    %449 = vector.multi_reduction <add>, %448, %cst_124 [1] : vector<2x8xf32> to vector<2xf32>
    %450 = vector.shape_cast %449 : vector<2xf32> to vector<2x1xf32>
    %451 = tpu.reciprocal %450 {approx = true} : vector<2x1xf32> -> vector<2x1xf32>
    %452 = vector.broadcast %451 : vector<2x1xf32> to vector<2x8xf32>
    %453 = arith.mulf %448, %452 : vector<2x8xf32>
    %cst_125 = arith.constant dense<0xFF800000> : vector<2xf32>
    %454 = vector.multi_reduction <maximumf>, %443, %cst_125 [1] : vector<2x8xf32> to vector<2xf32>
    %455 = vector.shape_cast %454 : vector<2xf32> to vector<2x1xf32>
    %456 = vector.broadcast %455 : vector<2x1xf32> to vector<2x8xf32>
    %457 = arith.subf %443, %456 : vector<2x8xf32>
    %458 = math.exp %457 : vector<2x8xf32>
    %cst_126 = arith.constant dense<0.000000e+00> : vector<2xf32>
    %459 = vector.multi_reduction <add>, %458, %cst_126 [1] : vector<2x8xf32> to vector<2xf32>
    %460 = vector.shape_cast %459 : vector<2xf32> to vector<2x1xf32>
    %461 = tpu.reciprocal %460 {approx = true} : vector<2x1xf32> -> vector<2x1xf32>
    %462 = vector.broadcast %461 : vector<2x1xf32> to vector<2x8xf32>
    %463 = arith.mulf %458, %462 : vector<2x8xf32>
    %464 = vector.shape_cast %453 : vector<2x8xf32> to vector<2x8x1xf32>
    %465 = vector.broadcast %464 : vector<2x8x1xf32> to vector<2x8x16xf32>
    %466 = arith.mulf %465, %0 : vector<2x8x16xf32>
    %cst_127 = arith.constant dense<0.000000e+00> : vector<2x16xf32>
    %467 = vector.multi_reduction <add>, %466, %cst_127 [1] : vector<2x8x16xf32> to vector<2x16xf32>
    %468 = vector.shape_cast %463 : vector<2x8xf32> to vector<2x8x1xf32>
    %469 = vector.broadcast %468 : vector<2x8x1xf32> to vector<2x8x16xf32>
    %470 = arith.mulf %469, %0 : vector<2x8x16xf32>
    %cst_128 = arith.constant dense<0.000000e+00> : vector<2x16xf32>
    %471 = vector.multi_reduction <add>, %470, %cst_128 [1] : vector<2x8x16xf32> to vector<2x16xf32>
    %cst_129 = arith.constant dense<0.000000e+00> : vector<2x256xf32>
    %472 = tpu.matmul %467, %5, %cst_129 {dimension_numbers = #tpu.dot_dimension_numbers<[1], [0], [0], [1], [0, 0, 1, 1], [], []>} : vector<2x16xf32>, vector<16x256xf32>, vector<2x256xf32> -> vector<2x256xf32>
    %cst_130 = arith.constant dense<0.000000e+00> : vector<2x256xf32>
    %473 = tpu.matmul %471, %6, %cst_130 {dimension_numbers = #tpu.dot_dimension_numbers<[1], [0], [0], [1], [0, 0, 1, 1], [], []>} : vector<2x16xf32>, vector<16x256xf32>, vector<2x256xf32> -> vector<2x256xf32>
    %474 = arith.addf %472, %473 : vector<2x256xf32>
    %cst_131 = arith.constant dense<0.000000e+00> : vector<2x256xf32>
    %475 = tpu.matmul %425, %7, %cst_131 {dimension_numbers = #tpu.dot_dimension_numbers<[1], [0], [0], [1], [0, 0, 1, 1], [], []>} : vector<2x64xf32>, vector<64x256xf32>, vector<2x256xf32> -> vector<2x256xf32>
    %476 = arith.addf %474, %475 : vector<2x256xf32>
    %477 = arith.index_cast %c6_i32 : i32 to index
    %c0_132 = arith.constant 0 : index
    %c0_133 = arith.constant 0 : index
    %478 = vector.load %arg8[%477, %c0_132, %c0_133] : memref<8x2x256xf32, #tpu.memory_space<vmem>>, vector<1x2x256xf32>
    %479 = vector.shape_cast %478 : vector<1x2x256xf32> to vector<2x256xf32>
    %480 = arith.addf %476, %479 : vector<2x256xf32>
    %481 = arith.negf %480 : vector<2x256xf32>
    %482 = math.exp %481 : vector<2x256xf32>
    %cst_134 = arith.constant 1.000000e+00 : f32
    %483 = vector.broadcast %cst_134 : f32 to vector<2x256xf32>
    %484 = arith.addf %483, %482 : vector<2x256xf32>
    %485 = arith.divf %483, %484 : vector<2x256xf32>
    %486 = math.tanh %480 : vector<2x256xf32>
    %487 = vector.extract_strided_slice %485 {offsets = [0, 0], sizes = [2, 64], strides = [1, 1]} : vector<2x256xf32> to vector<2x64xf32>
    %488 = vector.extract_strided_slice %485 {offsets = [0, 64], sizes = [2, 64], strides = [1, 1]} : vector<2x256xf32> to vector<2x64xf32>
    %489 = vector.extract_strided_slice %486 {offsets = [0, 128], sizes = [2, 64], strides = [1, 1]} : vector<2x256xf32> to vector<2x64xf32>
    %490 = vector.extract_strided_slice %485 {offsets = [0, 192], sizes = [2, 64], strides = [1, 1]} : vector<2x256xf32> to vector<2x64xf32>
    %491 = arith.mulf %488, %423 : vector<2x64xf32>
    %492 = arith.mulf %487, %489 : vector<2x64xf32>
    %493 = arith.addf %491, %492 : vector<2x64xf32>
    %494 = math.tanh %493 : vector<2x64xf32>
    %495 = arith.mulf %490, %494 : vector<2x64xf32>
    %496 = arith.index_cast %c6_i32 : i32 to index
    %c0_135 = arith.constant 0 : index
    %c0_136 = arith.constant 0 : index
    %497 = vector.load %arg13[%496, %c0_135, %c0_136] : memref<8x2x64xf32, #tpu.memory_space<vmem>>, vector<1x2x64xf32>
    %498 = vector.shape_cast %497 : vector<1x2x64xf32> to vector<2x64xf32>
    %499 = vector.shape_cast %495 : vector<2x64xf32> to vector<1x2x64xf32>
    tpu.vector_store %arg13[%496, %c0_135, %c0_136], %499 {strides = array<i32>} : memref<8x2x64xf32, #tpu.memory_space<vmem>>, vector<1x2x64xf32>,
    %c7_i32 = arith.constant 7 : i32
    %cst_137 = arith.constant dense<0.000000e+00> : vector<2x64xf32>
    %500 = tpu.matmul %495, %2, %cst_137 {dimension_numbers = #tpu.dot_dimension_numbers<[1], [0], [0], [1], [0, 0, 1, 1], [], []>} : vector<2x64xf32>, vector<64x64xf32>, vector<2x64xf32> -> vector<2x64xf32>
    %501 = vector.broadcast %3 : vector<1x64xf32> to vector<2x64xf32>
    %502 = arith.addf %500, %501 : vector<2x64xf32>
    %503 = vector.shape_cast %502 : vector<2x64xf32> to vector<2x1x64xf32>
    %504 = vector.broadcast %503 : vector<2x1x64xf32> to vector<2x8x64xf32>
    %505 = arith.addf %1, %504 : vector<2x8x64xf32>
    %506 = math.tanh %505 : vector<2x8x64xf32>
    %507 = vector.shape_cast %4 : vector<1x64xf32> to vector<1x1x64xf32>
    %508 = vector.broadcast %507 : vector<1x1x64xf32> to vector<2x8x64xf32>
    %509 = arith.mulf %508, %506 : vector<2x8x64xf32>
    %510 = vector.extract_strided_slice %509 {offsets = [0, 0, 0], sizes = [2, 8, 32], strides = [1, 1, 1]} : vector<2x8x64xf32> to vector<2x8x32xf32>
    %cst_138 = arith.constant dense<0.000000e+00> : vector<2x8xf32>
    %511 = vector.multi_reduction <add>, %510, %cst_138 [2] : vector<2x8x32xf32> to vector<2x8xf32>
    %512 = vector.extract_strided_slice %509 {offsets = [0, 0, 32], sizes = [2, 8, 32], strides = [1, 1, 1]} : vector<2x8x64xf32> to vector<2x8x32xf32>
    %cst_139 = arith.constant dense<0.000000e+00> : vector<2x8xf32>
    %513 = vector.multi_reduction <add>, %512, %cst_139 [2] : vector<2x8x32xf32> to vector<2x8xf32>
    %cst_140 = arith.constant dense<0xFF800000> : vector<2xf32>
    %514 = vector.multi_reduction <maximumf>, %511, %cst_140 [1] : vector<2x8xf32> to vector<2xf32>
    %515 = vector.shape_cast %514 : vector<2xf32> to vector<2x1xf32>
    %516 = vector.broadcast %515 : vector<2x1xf32> to vector<2x8xf32>
    %517 = arith.subf %511, %516 : vector<2x8xf32>
    %518 = math.exp %517 : vector<2x8xf32>
    %cst_141 = arith.constant dense<0.000000e+00> : vector<2xf32>
    %519 = vector.multi_reduction <add>, %518, %cst_141 [1] : vector<2x8xf32> to vector<2xf32>
    %520 = vector.shape_cast %519 : vector<2xf32> to vector<2x1xf32>
    %521 = tpu.reciprocal %520 {approx = true} : vector<2x1xf32> -> vector<2x1xf32>
    %522 = vector.broadcast %521 : vector<2x1xf32> to vector<2x8xf32>
    %523 = arith.mulf %518, %522 : vector<2x8xf32>
    %cst_142 = arith.constant dense<0xFF800000> : vector<2xf32>
    %524 = vector.multi_reduction <maximumf>, %513, %cst_142 [1] : vector<2x8xf32> to vector<2xf32>
    %525 = vector.shape_cast %524 : vector<2xf32> to vector<2x1xf32>
    %526 = vector.broadcast %525 : vector<2x1xf32> to vector<2x8xf32>
    %527 = arith.subf %513, %526 : vector<2x8xf32>
    %528 = math.exp %527 : vector<2x8xf32>
    %cst_143 = arith.constant dense<0.000000e+00> : vector<2xf32>
    %529 = vector.multi_reduction <add>, %528, %cst_143 [1] : vector<2x8xf32> to vector<2xf32>
    %530 = vector.shape_cast %529 : vector<2xf32> to vector<2x1xf32>
    %531 = tpu.reciprocal %530 {approx = true} : vector<2x1xf32> -> vector<2x1xf32>
    %532 = vector.broadcast %531 : vector<2x1xf32> to vector<2x8xf32>
    %533 = arith.mulf %528, %532 : vector<2x8xf32>
    %534 = vector.shape_cast %523 : vector<2x8xf32> to vector<2x8x1xf32>
    %535 = vector.broadcast %534 : vector<2x8x1xf32> to vector<2x8x16xf32>
    %536 = arith.mulf %535, %0 : vector<2x8x16xf32>
    %cst_144 = arith.constant dense<0.000000e+00> : vector<2x16xf32>
    %537 = vector.multi_reduction <add>, %536, %cst_144 [1] : vector<2x8x16xf32> to vector<2x16xf32>
    %538 = vector.shape_cast %533 : vector<2x8xf32> to vector<2x8x1xf32>
    %539 = vector.broadcast %538 : vector<2x8x1xf32> to vector<2x8x16xf32>
    %540 = arith.mulf %539, %0 : vector<2x8x16xf32>
    %cst_145 = arith.constant dense<0.000000e+00> : vector<2x16xf32>
    %541 = vector.multi_reduction <add>, %540, %cst_145 [1] : vector<2x8x16xf32> to vector<2x16xf32>
    %cst_146 = arith.constant dense<0.000000e+00> : vector<2x256xf32>
    %542 = tpu.matmul %537, %5, %cst_146 {dimension_numbers = #tpu.dot_dimension_numbers<[1], [0], [0], [1], [0, 0, 1, 1], [], []>} : vector<2x16xf32>, vector<16x256xf32>, vector<2x256xf32> -> vector<2x256xf32>
    %cst_147 = arith.constant dense<0.000000e+00> : vector<2x256xf32>
    %543 = tpu.matmul %541, %6, %cst_147 {dimension_numbers = #tpu.dot_dimension_numbers<[1], [0], [0], [1], [0, 0, 1, 1], [], []>} : vector<2x16xf32>, vector<16x256xf32>, vector<2x256xf32> -> vector<2x256xf32>
    %544 = arith.addf %542, %543 : vector<2x256xf32>
    %cst_148 = arith.constant dense<0.000000e+00> : vector<2x256xf32>
    %545 = tpu.matmul %495, %7, %cst_148 {dimension_numbers = #tpu.dot_dimension_numbers<[1], [0], [0], [1], [0, 0, 1, 1], [], []>} : vector<2x64xf32>, vector<64x256xf32>, vector<2x256xf32> -> vector<2x256xf32>
    %546 = arith.addf %544, %545 : vector<2x256xf32>
    %547 = arith.index_cast %c7_i32 : i32 to index
    %c0_149 = arith.constant 0 : index
    %c0_150 = arith.constant 0 : index
    %548 = vector.load %arg8[%547, %c0_149, %c0_150] : memref<8x2x256xf32, #tpu.memory_space<vmem>>, vector<1x2x256xf32>
    %549 = vector.shape_cast %548 : vector<1x2x256xf32> to vector<2x256xf32>
    %550 = arith.addf %546, %549 : vector<2x256xf32>
    %551 = arith.negf %550 : vector<2x256xf32>
    %552 = math.exp %551 : vector<2x256xf32>
    %cst_151 = arith.constant 1.000000e+00 : f32
    %553 = vector.broadcast %cst_151 : f32 to vector<2x256xf32>
    %554 = arith.addf %553, %552 : vector<2x256xf32>
    %555 = arith.divf %553, %554 : vector<2x256xf32>
    %556 = math.tanh %550 : vector<2x256xf32>
    %557 = vector.extract_strided_slice %555 {offsets = [0, 0], sizes = [2, 64], strides = [1, 1]} : vector<2x256xf32> to vector<2x64xf32>
    %558 = vector.extract_strided_slice %555 {offsets = [0, 64], sizes = [2, 64], strides = [1, 1]} : vector<2x256xf32> to vector<2x64xf32>
    %559 = vector.extract_strided_slice %556 {offsets = [0, 128], sizes = [2, 64], strides = [1, 1]} : vector<2x256xf32> to vector<2x64xf32>
    %560 = vector.extract_strided_slice %555 {offsets = [0, 192], sizes = [2, 64], strides = [1, 1]} : vector<2x256xf32> to vector<2x64xf32>
    %561 = arith.mulf %558, %493 : vector<2x64xf32>
    %562 = arith.mulf %557, %559 : vector<2x64xf32>
    %563 = arith.addf %561, %562 : vector<2x64xf32>
    %564 = math.tanh %563 : vector<2x64xf32>
    %565 = arith.mulf %560, %564 : vector<2x64xf32>
    %566 = arith.index_cast %c7_i32 : i32 to index
    %c0_152 = arith.constant 0 : index
    %c0_153 = arith.constant 0 : index
    %567 = vector.load %arg13[%566, %c0_152, %c0_153] : memref<8x2x64xf32, #tpu.memory_space<vmem>>, vector<1x2x64xf32>
    %568 = vector.shape_cast %567 : vector<1x2x64xf32> to vector<2x64xf32>
    %569 = vector.shape_cast %565 : vector<2x64xf32> to vector<1x2x64xf32>
    tpu.vector_store %arg13[%566, %c0_152, %c0_153], %569 {strides = array<i32>} : memref<8x2x64xf32, #tpu.memory_space<vmem>>, vector<1x2x64xf32>,
    %c8_i32 = arith.constant 8 : i32
    %c0_154 = arith.constant 0 : index
    %c0_155 = arith.constant 0 : index
    %570 = vector.load %arg9[%c0_154, %c0_155] : memref<64x128xf32, #tpu.memory_space<vmem>>, vector<64x128xf32>
    %c0_156 = arith.constant 0 : index
    %c0_157 = arith.constant 0 : index
    %571 = vector.load %arg10[%c0_156, %c0_157] : memref<1x128xf32, #tpu.memory_space<vmem>>, vector<1x128xf32>
    %572 = tpu.iota {dimensions = array<i32: 1>} : vector<1x64xi32>
    %c32_i32 = arith.constant 32 : i32
    %573 = vector.broadcast %c32_i32 : i32 to vector<1x64xi32>
    %574 = arith.cmpi slt, %572, %573 : vector<1x64xi32>
    %c0_158 = arith.constant 0 : index
    %c0_159 = arith.constant 0 : index
    %c0_160 = arith.constant 0 : index
    %575 = vector.load %arg13[%c0_158, %c0_159, %c0_160] : memref<8x2x64xf32, #tpu.memory_space<vmem>>, vector<1x2x64xf32>
    %576 = vector.shape_cast %575 : vector<1x2x64xf32> to vector<2x64xf32>
    %c7 = arith.constant 7 : index
    %c0_161 = arith.constant 0 : index
    %c0_162 = arith.constant 0 : index
    %577 = vector.load %arg13[%c7, %c0_161, %c0_162] : memref<8x2x64xf32, #tpu.memory_space<vmem>>, vector<1x2x64xf32>
    %578 = vector.shape_cast %577 : vector<1x2x64xf32> to vector<2x64xf32>
    %579 = vector.shape_cast %574 : vector<1x64xi1> to vector<1x64xi1>
    %580 = vector.broadcast %579 : vector<1x64xi1> to vector<2x64xi1>
    %581 = arith.select %580, %576, %578 : vector<2x64xi1>, vector<2x64xf32>
    %c0_163 = arith.constant 0 : index
    %c0_164 = arith.constant 0 : index
    %c0_165 = arith.constant 0 : index
    %582 = vector.load %arg11[%c0_163, %c0_164, %c0_165] : memref<8x2x64xf32, #tpu.memory_space<vmem>>, vector<1x2x64xf32>
    %583 = vector.shape_cast %582 : vector<1x2x64xf32> to vector<2x64xf32>
    %584 = vector.shape_cast %581 : vector<2x64xf32> to vector<1x2x64xf32>
    tpu.vector_store %arg11[%c0_163, %c0_164, %c0_165], %584 {strides = array<i32>} : memref<8x2x64xf32, #tpu.memory_space<vmem>>, vector<1x2x64xf32>,
    %cst_166 = arith.constant dense<0.000000e+00> : vector<2x128xf32>
    %585 = tpu.matmul %581, %570, %cst_166 {dimension_numbers = #tpu.dot_dimension_numbers<[1], [0], [0], [1], [0, 0, 1, 1], [], []>} : vector<2x64xf32>, vector<64x128xf32>, vector<2x128xf32> -> vector<2x128xf32>
    %586 = vector.broadcast %571 : vector<1x128xf32> to vector<2x128xf32>
    %587 = arith.addf %585, %586 : vector<2x128xf32>
    %c0_167 = arith.constant 0 : index
    %c0_168 = arith.constant 0 : index
    %c0_169 = arith.constant 0 : index
    %588 = vector.load %arg12[%c0_167, %c0_168, %c0_169] : memref<8x2x128xf32, #tpu.memory_space<vmem>>, vector<1x2x128xf32>
    %589 = vector.shape_cast %588 : vector<1x2x128xf32> to vector<2x128xf32>
    %590 = vector.shape_cast %587 : vector<2x128xf32> to vector<1x2x128xf32>
    tpu.vector_store %arg12[%c0_167, %c0_168, %c0_169], %590 {strides = array<i32>} : memref<8x2x128xf32, #tpu.memory_space<vmem>>, vector<1x2x128xf32>,
    %c1 = arith.constant 1 : index
    %c0_170 = arith.constant 0 : index
    %c0_171 = arith.constant 0 : index
    %591 = vector.load %arg13[%c1, %c0_170, %c0_171] : memref<8x2x64xf32, #tpu.memory_space<vmem>>, vector<1x2x64xf32>
    %592 = vector.shape_cast %591 : vector<1x2x64xf32> to vector<2x64xf32>
    %c6 = arith.constant 6 : index
    %c0_172 = arith.constant 0 : index
    %c0_173 = arith.constant 0 : index
    %593 = vector.load %arg13[%c6, %c0_172, %c0_173] : memref<8x2x64xf32, #tpu.memory_space<vmem>>, vector<1x2x64xf32>
    %594 = vector.shape_cast %593 : vector<1x2x64xf32> to vector<2x64xf32>
    %595 = vector.shape_cast %574 : vector<1x64xi1> to vector<1x64xi1>
    %596 = vector.broadcast %595 : vector<1x64xi1> to vector<2x64xi1>
    %597 = arith.select %596, %592, %594 : vector<2x64xi1>, vector<2x64xf32>
    %c1_174 = arith.constant 1 : index
    %c0_175 = arith.constant 0 : index
    %c0_176 = arith.constant 0 : index
    %598 = vector.load %arg11[%c1_174, %c0_175, %c0_176] : memref<8x2x64xf32, #tpu.memory_space<vmem>>, vector<1x2x64xf32>
    %599 = vector.shape_cast %598 : vector<1x2x64xf32> to vector<2x64xf32>
    %600 = vector.shape_cast %597 : vector<2x64xf32> to vector<1x2x64xf32>
    tpu.vector_store %arg11[%c1_174, %c0_175, %c0_176], %600 {strides = array<i32>} : memref<8x2x64xf32, #tpu.memory_space<vmem>>, vector<1x2x64xf32>,
    %cst_177 = arith.constant dense<0.000000e+00> : vector<2x128xf32>
    %601 = tpu.matmul %597, %570, %cst_177 {dimension_numbers = #tpu.dot_dimension_numbers<[1], [0], [0], [1], [0, 0, 1, 1], [], []>} : vector<2x64xf32>, vector<64x128xf32>, vector<2x128xf32> -> vector<2x128xf32>
    %602 = vector.broadcast %571 : vector<1x128xf32> to vector<2x128xf32>
    %603 = arith.addf %601, %602 : vector<2x128xf32>
    %c1_178 = arith.constant 1 : index
    %c0_179 = arith.constant 0 : index
    %c0_180 = arith.constant 0 : index
    %604 = vector.load %arg12[%c1_178, %c0_179, %c0_180] : memref<8x2x128xf32, #tpu.memory_space<vmem>>, vector<1x2x128xf32>
    %605 = vector.shape_cast %604 : vector<1x2x128xf32> to vector<2x128xf32>
    %606 = vector.shape_cast %603 : vector<2x128xf32> to vector<1x2x128xf32>
    tpu.vector_store %arg12[%c1_178, %c0_179, %c0_180], %606 {strides = array<i32>} : memref<8x2x128xf32, #tpu.memory_space<vmem>>, vector<1x2x128xf32>,
    %c2 = arith.constant 2 : index
    %c0_181 = arith.constant 0 : index
    %c0_182 = arith.constant 0 : index
    %607 = vector.load %arg13[%c2, %c0_181, %c0_182] : memref<8x2x64xf32, #tpu.memory_space<vmem>>, vector<1x2x64xf32>
    %608 = vector.shape_cast %607 : vector<1x2x64xf32> to vector<2x64xf32>
    %c5 = arith.constant 5 : index
    %c0_183 = arith.constant 0 : index
    %c0_184 = arith.constant 0 : index
    %609 = vector.load %arg13[%c5, %c0_183, %c0_184] : memref<8x2x64xf32, #tpu.memory_space<vmem>>, vector<1x2x64xf32>
    %610 = vector.shape_cast %609 : vector<1x2x64xf32> to vector<2x64xf32>
    %611 = vector.shape_cast %574 : vector<1x64xi1> to vector<1x64xi1>
    %612 = vector.broadcast %611 : vector<1x64xi1> to vector<2x64xi1>
    %613 = arith.select %612, %608, %610 : vector<2x64xi1>, vector<2x64xf32>
    %c2_185 = arith.constant 2 : index
    %c0_186 = arith.constant 0 : index
    %c0_187 = arith.constant 0 : index
    %614 = vector.load %arg11[%c2_185, %c0_186, %c0_187] : memref<8x2x64xf32, #tpu.memory_space<vmem>>, vector<1x2x64xf32>
    %615 = vector.shape_cast %614 : vector<1x2x64xf32> to vector<2x64xf32>
    %616 = vector.shape_cast %613 : vector<2x64xf32> to vector<1x2x64xf32>
    tpu.vector_store %arg11[%c2_185, %c0_186, %c0_187], %616 {strides = array<i32>} : memref<8x2x64xf32, #tpu.memory_space<vmem>>, vector<1x2x64xf32>,
    %cst_188 = arith.constant dense<0.000000e+00> : vector<2x128xf32>
    %617 = tpu.matmul %613, %570, %cst_188 {dimension_numbers = #tpu.dot_dimension_numbers<[1], [0], [0], [1], [0, 0, 1, 1], [], []>} : vector<2x64xf32>, vector<64x128xf32>, vector<2x128xf32> -> vector<2x128xf32>
    %618 = vector.broadcast %571 : vector<1x128xf32> to vector<2x128xf32>
    %619 = arith.addf %617, %618 : vector<2x128xf32>
    %c2_189 = arith.constant 2 : index
    %c0_190 = arith.constant 0 : index
    %c0_191 = arith.constant 0 : index
    %620 = vector.load %arg12[%c2_189, %c0_190, %c0_191] : memref<8x2x128xf32, #tpu.memory_space<vmem>>, vector<1x2x128xf32>
    %621 = vector.shape_cast %620 : vector<1x2x128xf32> to vector<2x128xf32>
    %622 = vector.shape_cast %619 : vector<2x128xf32> to vector<1x2x128xf32>
    tpu.vector_store %arg12[%c2_189, %c0_190, %c0_191], %622 {strides = array<i32>} : memref<8x2x128xf32, #tpu.memory_space<vmem>>, vector<1x2x128xf32>,
    %c3 = arith.constant 3 : index
    %c0_192 = arith.constant 0 : index
    %c0_193 = arith.constant 0 : index
    %623 = vector.load %arg13[%c3, %c0_192, %c0_193] : memref<8x2x64xf32, #tpu.memory_space<vmem>>, vector<1x2x64xf32>
    %624 = vector.shape_cast %623 : vector<1x2x64xf32> to vector<2x64xf32>
    %c4 = arith.constant 4 : index
    %c0_194 = arith.constant 0 : index
    %c0_195 = arith.constant 0 : index
    %625 = vector.load %arg13[%c4, %c0_194, %c0_195] : memref<8x2x64xf32, #tpu.memory_space<vmem>>, vector<1x2x64xf32>
    %626 = vector.shape_cast %625 : vector<1x2x64xf32> to vector<2x64xf32>
    %627 = vector.shape_cast %574 : vector<1x64xi1> to vector<1x64xi1>
    %628 = vector.broadcast %627 : vector<1x64xi1> to vector<2x64xi1>
    %629 = arith.select %628, %624, %626 : vector<2x64xi1>, vector<2x64xf32>
    %c3_196 = arith.constant 3 : index
    %c0_197 = arith.constant 0 : index
    %c0_198 = arith.constant 0 : index
    %630 = vector.load %arg11[%c3_196, %c0_197, %c0_198] : memref<8x2x64xf32, #tpu.memory_space<vmem>>, vector<1x2x64xf32>
    %631 = vector.shape_cast %630 : vector<1x2x64xf32> to vector<2x64xf32>
    %632 = vector.shape_cast %629 : vector<2x64xf32> to vector<1x2x64xf32>
    tpu.vector_store %arg11[%c3_196, %c0_197, %c0_198], %632 {strides = array<i32>} : memref<8x2x64xf32, #tpu.memory_space<vmem>>, vector<1x2x64xf32>,
    %cst_199 = arith.constant dense<0.000000e+00> : vector<2x128xf32>
    %633 = tpu.matmul %629, %570, %cst_199 {dimension_numbers = #tpu.dot_dimension_numbers<[1], [0], [0], [1], [0, 0, 1, 1], [], []>} : vector<2x64xf32>, vector<64x128xf32>, vector<2x128xf32> -> vector<2x128xf32>
    %634 = vector.broadcast %571 : vector<1x128xf32> to vector<2x128xf32>
    %635 = arith.addf %633, %634 : vector<2x128xf32>
    %c3_200 = arith.constant 3 : index
    %c0_201 = arith.constant 0 : index
    %c0_202 = arith.constant 0 : index
    %636 = vector.load %arg12[%c3_200, %c0_201, %c0_202] : memref<8x2x128xf32, #tpu.memory_space<vmem>>, vector<1x2x128xf32>
    %637 = vector.shape_cast %636 : vector<1x2x128xf32> to vector<2x128xf32>
    %638 = vector.shape_cast %635 : vector<2x128xf32> to vector<1x2x128xf32>
    tpu.vector_store %arg12[%c3_200, %c0_201, %c0_202], %638 {strides = array<i32>} : memref<8x2x128xf32, #tpu.memory_space<vmem>>, vector<1x2x128xf32>,
    %c4_203 = arith.constant 4 : index
    %c0_204 = arith.constant 0 : index
    %c0_205 = arith.constant 0 : index
    %639 = vector.load %arg13[%c4_203, %c0_204, %c0_205] : memref<8x2x64xf32, #tpu.memory_space<vmem>>, vector<1x2x64xf32>
    %640 = vector.shape_cast %639 : vector<1x2x64xf32> to vector<2x64xf32>
    %c3_206 = arith.constant 3 : index
    %c0_207 = arith.constant 0 : index
    %c0_208 = arith.constant 0 : index
    %641 = vector.load %arg13[%c3_206, %c0_207, %c0_208] : memref<8x2x64xf32, #tpu.memory_space<vmem>>, vector<1x2x64xf32>
    %642 = vector.shape_cast %641 : vector<1x2x64xf32> to vector<2x64xf32>
    %643 = vector.shape_cast %574 : vector<1x64xi1> to vector<1x64xi1>
    %644 = vector.broadcast %643 : vector<1x64xi1> to vector<2x64xi1>
    %645 = arith.select %644, %640, %642 : vector<2x64xi1>, vector<2x64xf32>
    %c4_209 = arith.constant 4 : index
    %c0_210 = arith.constant 0 : index
    %c0_211 = arith.constant 0 : index
    %646 = vector.load %arg11[%c4_209, %c0_210, %c0_211] : memref<8x2x64xf32, #tpu.memory_space<vmem>>, vector<1x2x64xf32>
    %647 = vector.shape_cast %646 : vector<1x2x64xf32> to vector<2x64xf32>
    %648 = vector.shape_cast %645 : vector<2x64xf32> to vector<1x2x64xf32>
    tpu.vector_store %arg11[%c4_209, %c0_210, %c0_211], %648 {strides = array<i32>} : memref<8x2x64xf32, #tpu.memory_space<vmem>>, vector<1x2x64xf32>,
    %cst_212 = arith.constant dense<0.000000e+00> : vector<2x128xf32>
    %649 = tpu.matmul %645, %570, %cst_212 {dimension_numbers = #tpu.dot_dimension_numbers<[1], [0], [0], [1], [0, 0, 1, 1], [], []>} : vector<2x64xf32>, vector<64x128xf32>, vector<2x128xf32> -> vector<2x128xf32>
    %650 = vector.broadcast %571 : vector<1x128xf32> to vector<2x128xf32>
    %651 = arith.addf %649, %650 : vector<2x128xf32>
    %c4_213 = arith.constant 4 : index
    %c0_214 = arith.constant 0 : index
    %c0_215 = arith.constant 0 : index
    %652 = vector.load %arg12[%c4_213, %c0_214, %c0_215] : memref<8x2x128xf32, #tpu.memory_space<vmem>>, vector<1x2x128xf32>
    %653 = vector.shape_cast %652 : vector<1x2x128xf32> to vector<2x128xf32>
    %654 = vector.shape_cast %651 : vector<2x128xf32> to vector<1x2x128xf32>
    tpu.vector_store %arg12[%c4_213, %c0_214, %c0_215], %654 {strides = array<i32>} : memref<8x2x128xf32, #tpu.memory_space<vmem>>, vector<1x2x128xf32>,
    %c5_216 = arith.constant 5 : index
    %c0_217 = arith.constant 0 : index
    %c0_218 = arith.constant 0 : index
    %655 = vector.load %arg13[%c5_216, %c0_217, %c0_218] : memref<8x2x64xf32, #tpu.memory_space<vmem>>, vector<1x2x64xf32>
    %656 = vector.shape_cast %655 : vector<1x2x64xf32> to vector<2x64xf32>
    %c2_219 = arith.constant 2 : index
    %c0_220 = arith.constant 0 : index
    %c0_221 = arith.constant 0 : index
    %657 = vector.load %arg13[%c2_219, %c0_220, %c0_221] : memref<8x2x64xf32, #tpu.memory_space<vmem>>, vector<1x2x64xf32>
    %658 = vector.shape_cast %657 : vector<1x2x64xf32> to vector<2x64xf32>
    %659 = vector.shape_cast %574 : vector<1x64xi1> to vector<1x64xi1>
    %660 = vector.broadcast %659 : vector<1x64xi1> to vector<2x64xi1>
    %661 = arith.select %660, %656, %658 : vector<2x64xi1>, vector<2x64xf32>
    %c5_222 = arith.constant 5 : index
    %c0_223 = arith.constant 0 : index
    %c0_224 = arith.constant 0 : index
    %662 = vector.load %arg11[%c5_222, %c0_223, %c0_224] : memref<8x2x64xf32, #tpu.memory_space<vmem>>, vector<1x2x64xf32>
    %663 = vector.shape_cast %662 : vector<1x2x64xf32> to vector<2x64xf32>
    %664 = vector.shape_cast %661 : vector<2x64xf32> to vector<1x2x64xf32>
    tpu.vector_store %arg11[%c5_222, %c0_223, %c0_224], %664 {strides = array<i32>} : memref<8x2x64xf32, #tpu.memory_space<vmem>>, vector<1x2x64xf32>,
    %cst_225 = arith.constant dense<0.000000e+00> : vector<2x128xf32>
    %665 = tpu.matmul %661, %570, %cst_225 {dimension_numbers = #tpu.dot_dimension_numbers<[1], [0], [0], [1], [0, 0, 1, 1], [], []>} : vector<2x64xf32>, vector<64x128xf32>, vector<2x128xf32> -> vector<2x128xf32>
    %666 = vector.broadcast %571 : vector<1x128xf32> to vector<2x128xf32>
    %667 = arith.addf %665, %666 : vector<2x128xf32>
    %c5_226 = arith.constant 5 : index
    %c0_227 = arith.constant 0 : index
    %c0_228 = arith.constant 0 : index
    %668 = vector.load %arg12[%c5_226, %c0_227, %c0_228] : memref<8x2x128xf32, #tpu.memory_space<vmem>>, vector<1x2x128xf32>
    %669 = vector.shape_cast %668 : vector<1x2x128xf32> to vector<2x128xf32>
    %670 = vector.shape_cast %667 : vector<2x128xf32> to vector<1x2x128xf32>
    tpu.vector_store %arg12[%c5_226, %c0_227, %c0_228], %670 {strides = array<i32>} : memref<8x2x128xf32, #tpu.memory_space<vmem>>, vector<1x2x128xf32>,
    %c6_229 = arith.constant 6 : index
    %c0_230 = arith.constant 0 : index
    %c0_231 = arith.constant 0 : index
    %671 = vector.load %arg13[%c6_229, %c0_230, %c0_231] : memref<8x2x64xf32, #tpu.memory_space<vmem>>, vector<1x2x64xf32>
    %672 = vector.shape_cast %671 : vector<1x2x64xf32> to vector<2x64xf32>
    %c1_232 = arith.constant 1 : index
    %c0_233 = arith.constant 0 : index
    %c0_234 = arith.constant 0 : index
    %673 = vector.load %arg13[%c1_232, %c0_233, %c0_234] : memref<8x2x64xf32, #tpu.memory_space<vmem>>, vector<1x2x64xf32>
    %674 = vector.shape_cast %673 : vector<1x2x64xf32> to vector<2x64xf32>
    %675 = vector.shape_cast %574 : vector<1x64xi1> to vector<1x64xi1>
    %676 = vector.broadcast %675 : vector<1x64xi1> to vector<2x64xi1>
    %677 = arith.select %676, %672, %674 : vector<2x64xi1>, vector<2x64xf32>
    %c6_235 = arith.constant 6 : index
    %c0_236 = arith.constant 0 : index
    %c0_237 = arith.constant 0 : index
    %678 = vector.load %arg11[%c6_235, %c0_236, %c0_237] : memref<8x2x64xf32, #tpu.memory_space<vmem>>, vector<1x2x64xf32>
    %679 = vector.shape_cast %678 : vector<1x2x64xf32> to vector<2x64xf32>
    %680 = vector.shape_cast %677 : vector<2x64xf32> to vector<1x2x64xf32>
    tpu.vector_store %arg11[%c6_235, %c0_236, %c0_237], %680 {strides = array<i32>} : memref<8x2x64xf32, #tpu.memory_space<vmem>>, vector<1x2x64xf32>,
    %cst_238 = arith.constant dense<0.000000e+00> : vector<2x128xf32>
    %681 = tpu.matmul %677, %570, %cst_238 {dimension_numbers = #tpu.dot_dimension_numbers<[1], [0], [0], [1], [0, 0, 1, 1], [], []>} : vector<2x64xf32>, vector<64x128xf32>, vector<2x128xf32> -> vector<2x128xf32>
    %682 = vector.broadcast %571 : vector<1x128xf32> to vector<2x128xf32>
    %683 = arith.addf %681, %682 : vector<2x128xf32>
    %c6_239 = arith.constant 6 : index
    %c0_240 = arith.constant 0 : index
    %c0_241 = arith.constant 0 : index
    %684 = vector.load %arg12[%c6_239, %c0_240, %c0_241] : memref<8x2x128xf32, #tpu.memory_space<vmem>>, vector<1x2x128xf32>
    %685 = vector.shape_cast %684 : vector<1x2x128xf32> to vector<2x128xf32>
    %686 = vector.shape_cast %683 : vector<2x128xf32> to vector<1x2x128xf32>
    tpu.vector_store %arg12[%c6_239, %c0_240, %c0_241], %686 {strides = array<i32>} : memref<8x2x128xf32, #tpu.memory_space<vmem>>, vector<1x2x128xf32>,
    %c7_242 = arith.constant 7 : index
    %c0_243 = arith.constant 0 : index
    %c0_244 = arith.constant 0 : index
    %687 = vector.load %arg13[%c7_242, %c0_243, %c0_244] : memref<8x2x64xf32, #tpu.memory_space<vmem>>, vector<1x2x64xf32>
    %688 = vector.shape_cast %687 : vector<1x2x64xf32> to vector<2x64xf32>
    %c0_245 = arith.constant 0 : index
    %c0_246 = arith.constant 0 : index
    %c0_247 = arith.constant 0 : index
    %689 = vector.load %arg13[%c0_245, %c0_246, %c0_247] : memref<8x2x64xf32, #tpu.memory_space<vmem>>, vector<1x2x64xf32>
    %690 = vector.shape_cast %689 : vector<1x2x64xf32> to vector<2x64xf32>
    %691 = vector.shape_cast %574 : vector<1x64xi1> to vector<1x64xi1>
    %692 = vector.broadcast %691 : vector<1x64xi1> to vector<2x64xi1>
    %693 = arith.select %692, %688, %690 : vector<2x64xi1>, vector<2x64xf32>
    %c7_248 = arith.constant 7 : index
    %c0_249 = arith.constant 0 : index
    %c0_250 = arith.constant 0 : index
    %694 = vector.load %arg11[%c7_248, %c0_249, %c0_250] : memref<8x2x64xf32, #tpu.memory_space<vmem>>, vector<1x2x64xf32>
    %695 = vector.shape_cast %694 : vector<1x2x64xf32> to vector<2x64xf32>
    %696 = vector.shape_cast %693 : vector<2x64xf32> to vector<1x2x64xf32>
    tpu.vector_store %arg11[%c7_248, %c0_249, %c0_250], %696 {strides = array<i32>} : memref<8x2x64xf32, #tpu.memory_space<vmem>>, vector<1x2x64xf32>,
    %cst_251 = arith.constant dense<0.000000e+00> : vector<2x128xf32>
    %697 = tpu.matmul %693, %570, %cst_251 {dimension_numbers = #tpu.dot_dimension_numbers<[1], [0], [0], [1], [0, 0, 1, 1], [], []>} : vector<2x64xf32>, vector<64x128xf32>, vector<2x128xf32> -> vector<2x128xf32>
    %698 = vector.broadcast %571 : vector<1x128xf32> to vector<2x128xf32>
    %699 = arith.addf %697, %698 : vector<2x128xf32>
    %c7_252 = arith.constant 7 : index
    %c0_253 = arith.constant 0 : index
    %c0_254 = arith.constant 0 : index
    %700 = vector.load %arg12[%c7_252, %c0_253, %c0_254] : memref<8x2x128xf32, #tpu.memory_space<vmem>>, vector<1x2x128xf32>
    %701 = vector.shape_cast %700 : vector<1x2x128xf32> to vector<2x128xf32>
    %702 = vector.shape_cast %699 : vector<2x128xf32> to vector<1x2x128xf32>
    tpu.vector_store %arg12[%c7_252, %c0_253, %c0_254], %702 {strides = array<i32>} : memref<8x2x128xf32, #tpu.memory_space<vmem>>, vector<1x2x128xf32>,
    return
  }
}

</mosaic_0001>

<llo_original>
// kernel: tpu_custom_call.1
$region0: #{tpu_custom_call.1}
  #allocation0 [shape = 'u32[]', space=smem, size = 0x4, offset = 0x4, fixed_abs, tag = 'smem constant byte address 0x4 - core index']
  #allocation1 [shape = 'u32[144,128]{1,0:T(1,128)}', space=vmem, size = 0x12000, scoped, tag = 'internal scratch']
  #allocation2 [shape = 'f32[8,2,64]{2,1,0:T(2,128)}', space=vmem, size = 0x2000, scoped, tag = 'scratch operand']
  %s0 = inlined_call_operand.hbm [shape: f32[2,8,16], index: 0, kind: input, shape index: {}]
  %s1 = inlined_call_operand.hbm [shape: f32[2,8,64], index: 1, kind: input, shape index: {}]
  %s2 = inlined_call_operand.hbm [shape: f32[64,64], index: 2, kind: input, shape index: {}]
  %s3 = inlined_call_operand.vmem [shape: f32[1,64], index: 3, kind: input, shape index: {}]
  %s4 = inlined_call_operand.vmem [shape: f32[1,64], index: 4, kind: input, shape index: {}]
  %s5 = inlined_call_operand.hbm [shape: f32[16,256], index: 5, kind: input, shape index: {}]
  %s6 = inlined_call_operand.hbm [shape: f32[16,256], index: 6, kind: input, shape index: {}]
  %s7 = inlined_call_operand.hbm [shape: f32[64,256], index: 7, kind: input, shape index: {}]
  %s8 = inlined_call_operand.hbm [shape: f32[8,2,256], index: 8, kind: input, shape index: {}]
  %s9 = inlined_call_operand.hbm [shape: f32[64,128], index: 9, kind: input, shape index: {}]
  %s10 = inlined_call_operand.vmem [shape: f32[1,128], index: 10, kind: input, shape index: {}]
  %s11 = inlined_call_operand.hbm [shape: f32[8,2,64], index: 11, kind: output, shape index: {0}]
  %s12 = inlined_call_operand.hbm [shape: f32[8,2,128], index: 12, kind: output, shape index: {1}]
  %13 = xla_tuple %s11, %s12
  %s14 = sld [smem:[#allocation0]]
  $region94: #{tpu_custom_call.1} parent=0
    _
  %s16 = ssub.s32 1, %s14
  %s17 = scalar_select 0, %s16, %s14
  $region1: #{tpu_custom_call.1} parent=0
    #allocation3 [shape = 'u8[8192]{0}', space=vmem, size = 0x2000, scoped, tag = 'input window, operand 0, single buffered']
    #allocation4 [shape = 's32[1]{0}', space=sflag, size = 0x4, scoped, tag = 'scoped memory for tpu_custom_call.1']
    #allocation5 [shape = 's32[1]{0}', space=sflag, size = 0x4, scoped, tag = 'scoped memory for tpu_custom_call.1']
    #allocation6 [shape = 'u8[8192]{0}', space=vmem, size = 0x2000, scoped, tag = 'input window, operand 1, single buffered']
    #allocation7 [shape = 's32[1]{0}', space=sflag, size = 0x4, scoped, tag = 'scoped memory for tpu_custom_call.1']
    #allocation8 [shape = 'u8[32768]{0}', space=vmem, size = 0x8000, scoped, tag = 'input window, operand 2, single buffered']
    #allocation9 [shape = 'u8[16384]{0}', space=vmem, size = 0x4000, scoped, tag = 'input window, operand 5, single buffered']
    #allocation10 [shape = 's32[1]{0}', space=sflag, size = 0x4, scoped, tag = 'scoped memory for tpu_custom_call.1']
    #allocation11 [shape = 'u8[16384]{0}', space=vmem, size = 0x4000, scoped, tag = 'input window, operand 6, single buffered']
    #allocation12 [shape = 'u8[65536]{0}', space=vmem, size = 0x10000, scoped, tag = 'input window, operand 7, single buffered']
    #allocation13 [shape = 's32[1]{0}', space=sflag, size = 0x4, scoped, tag = 'scoped memory for tpu_custom_call.1']
    #allocation14 [shape = 'u8[16384]{0}', space=vmem, size = 0x4000, scoped, tag = 'input window, operand 8, single buffered']
    #allocation15 [shape = 'u8[32768]{0}', space=vmem, size = 0x8000, scoped, tag = 'input window, operand 9, single buffered']
    #allocation16 [shape = 's32[1]{0}', space=sflag, size = 0x4, scoped, tag = 'scoped memory for tpu_custom_call.1']
    #allocation17 [shape = 'u8[8192]{0}', space=vmem, size = 0x2000, scoped, tag = 'output window, operand 0, single buffered']
    #allocation18 [shape = 'u8[8192]{0}', space=vmem, size = 0x2000, scoped, tag = 'output window, operand 1, single buffered']
    #allocation19 [shape = 's32[1]{0}', space=sflag, size = 0x4, scoped, tag = 'scoped memory for tpu_custom_call.1']
    %18 = vsyncpa [#allocation4], 0
    %19 = vsyncpa [#allocation7], 0
    %20 = vsyncpa [#allocation10], 0
    %21 = vsyncpa [#allocation13], 0
    %22 = vsyncpa [#allocation16], 0
    %23 = vsyncpa [#allocation5], 0
    %24 = vsyncpa [#allocation19], 0
    // Predicated region
    $region2: #{tpu_custom_call.1} parent=1 // pred_check
      _
    $region3: #{tpu_custom_call.1} parent=1 // pred_check_branch
      %26 = sbr.rel (0) target = $region5
    $region4: #{tpu_custom_call.1} parent=1 // pred_region
      %s28 = ssub.s32 256, 256
      %29 = vsyncadd [#allocation4], %s28
      %s30 = sshll.u32 [#allocation3], 4
      %s31 = int_to_ptr.vmem [resolvable:$true] %s30
      %36 = dma.hbm_to_vmem [thread:$0]  %s0, 256, %s31, [#allocation4], 128, 128, 8
    $region5: #{tpu_custom_call.1} parent=1 // pred_fallthru
      _
    // Predicated region
    $region6: #{tpu_custom_call.1} parent=1 // pred_check
      _
    $region7: #{tpu_custom_call.1} parent=1 // pred_check_branch
      %38 = sbr.rel (0) target = $region9
    $region8: #{tpu_custom_call.1} parent=1 // pred_region
      %s40 = ssub.s32 256, 256
      %41 = vsyncadd [#allocation7], %s40
      %s42 = sshll.u32 [#allocation6], 4
      %s43 = int_to_ptr.vmem [resolvable:$true] %s42
      %48 = dma.hbm_to_vmem [thread:$0]  %s1, 256, %s43, [#allocation7], 128, 128, 8
    $region9: #{tpu_custom_call.1} parent=1 // pred_fallthru
      _
    // Predicated region
    $region10: #{tpu_custom_call.1} parent=1 // pred_check
      _
    $region11: #{tpu_custom_call.1} parent=1 // pred_check_branch
      %50 = sbr.rel (0) target = $region13
    $region12: #{tpu_custom_call.1} parent=1 // pred_region
      %s52 = ssub.s32 1024, 1024
      %53 = vsyncadd [#allocation7], %s52
      %s54 = sshll.u32 [#allocation8], 4
      %s55 = int_to_ptr.vmem [resolvable:$true] %s54
      %60 = dma.hbm_to_vmem [thread:$0]  %s2, 1024, %s55, [#allocation7], 128, 128, 8
    $region13: #{tpu_custom_call.1} parent=1 // pred_fallthru
      _
    // Predicated region
    $region14: #{tpu_custom_call.1} parent=1 // pred_check
      _
    $region15: #{tpu_custom_call.1} parent=1 // pred_check_branch
      %62 = sbr.rel (0) target = $region17
    $region16: #{tpu_custom_call.1} parent=1 // pred_region
      _
    $region17: #{tpu_custom_call.1} parent=1 // pred_fallthru
      _
    // Predicated region
    $region18: #{tpu_custom_call.1} parent=1 // pred_check
      _
    $region19: #{tpu_custom_call.1} parent=1 // pred_check_branch
      %64 = sbr.rel (0) target = $region21
    $region20: #{tpu_custom_call.1} parent=1 // pred_region
      _
    $region21: #{tpu_custom_call.1} parent=1 // pred_fallthru
      _
    // Predicated region
    $region22: #{tpu_custom_call.1} parent=1 // pred_check
      _
    $region23: #{tpu_custom_call.1} parent=1 // pred_check_branch
      %66 = sbr.rel (0) target = $region25
    $region24: #{tpu_custom_call.1} parent=1 // pred_region
      %s68 = ssub.s32 512, 512
      %69 = vsyncadd [#allocation10], %s68
      %s70 = sshll.u32 [#allocation9], 4
      %s71 = int_to_ptr.vmem [resolvable:$true] %s70
      %76 = dma.hbm_to_vmem [thread:$0]  %s5, 512, %s71, [#allocation10], 256, 256, 16
    $region25: #{tpu_custom_call.1} parent=1 // pred_fallthru
      _
    // Predicated region
    $region26: #{tpu_custom_call.1} parent=1 // pred_check
      _
    $region27: #{tpu_custom_call.1} parent=1 // pred_check_branch
      %78 = sbr.rel (0) target = $region29
    $region28: #{tpu_custom_call.1} parent=1 // pred_region
      %s80 = ssub.s32 512, 512
      %81 = vsyncadd [#allocation10], %s80
      %s82 = sshll.u32 [#allocation11], 4
      %s83 = int_to_ptr.vmem [resolvable:$true] %s82
      %88 = dma.hbm_to_vmem [thread:$0]  %s6, 512, %s83, [#allocation10], 256, 256, 16
    $region29: #{tpu_custom_call.1} parent=1 // pred_fallthru
      _
    // Predicated region
    $region30: #{tpu_custom_call.1} parent=1 // pred_check
      _
    $region31: #{tpu_custom_call.1} parent=1 // pred_check_branch
      %90 = sbr.rel (0) target = $region33
    $region32: #{tpu_custom_call.1} parent=1 // pred_region
      %s92 = ssub.s32 2048, 2048
      %93 = vsyncadd [#allocation13], %s92
      %s94 = sshll.u32 [#allocation12], 4
      %s95 = int_to_ptr.vmem [resolvable:$true] %s94
      %100 = dma.hbm_to_vmem [thread:$0]  %s7, 2048, %s95, [#allocation13], 256, 256, 16
    $region33: #{tpu_custom_call.1} parent=1 // pred_fallthru
      _
    // Predicated region
    $region34: #{tpu_custom_call.1} parent=1 // pred_check
      _
    $region35: #{tpu_custom_call.1} parent=1 // pred_check_branch
      %102 = sbr.rel (0) target = $region37
    $region36: #{tpu_custom_call.1} parent=1 // pred_region
      %s104 = ssub.s32 512, 512
      %105 = vsyncadd [#allocation13], %s104
      %s106 = sshll.u32 [#allocation14], 4
      %s107 = int_to_ptr.vmem [resolvable:$true] %s106
      %112 = dma.hbm_to_vmem [thread:$0]  %s8, 512, %s107, [#allocation13], 64, 64, 4
    $region37: #{tpu_custom_call.1} parent=1 // pred_fallthru
      _
    // Predicated region
    $region38: #{tpu_custom_call.1} parent=1 // pred_check
      _
    $region39: #{tpu_custom_call.1} parent=1 // pred_check_branch
      %114 = sbr.rel (0) target = $region41
    $region40: #{tpu_custom_call.1} parent=1 // pred_region
      %s116 = ssub.s32 1024, 1024
      %117 = vsyncadd [#allocation16], %s116
      %s118 = sshll.u32 [#allocation15], 4
      %s119 = int_to_ptr.vmem [resolvable:$true] %s118
      %124 = dma.hbm_to_vmem [thread:$0]  %s9, 1024, %s119, [#allocation16], 128, 128, 8
    $region41: #{tpu_custom_call.1} parent=1 // pred_fallthru
      _
    // Predicated region
    $region42: #{tpu_custom_call.1} parent=1 // pred_check
      _
    $region43: #{tpu_custom_call.1} parent=1 // pred_check_branch
      %126 = sbr.rel (0) target = $region45
    $region44: #{tpu_custom_call.1} parent=1 // pred_region
      _
    $region45: #{tpu_custom_call.1} parent=1 // pred_fallthru
      _
    // Predicated region
    $region46: #{tpu_custom_call.1} parent=1 // pred_check
      _
    $region47: #{tpu_custom_call.1} parent=1 // pred_check_branch
      %128 = sbr.rel (0) target = $region49
    $region48: #{tpu_custom_call.1} parent=1 // pred_region
      %129 = dma.done [#allocation4], 256
    $region49: #{tpu_custom_call.1} parent=1 // pred_fallthru
      _
    // Predicated region
    $region50: #{tpu_custom_call.1} parent=1 // pred_check
      _
    $region51: #{tpu_custom_call.1} parent=1 // pred_check_branch
      %131 = sbr.rel (0) target = $region53
    $region52: #{tpu_custom_call.1} parent=1 // pred_region
      %132 = dma.done [#allocation7], 256
    $region53: #{tpu_custom_call.1} parent=1 // pred_fallthru
      _
    // Predicated region
    $region54: #{tpu_custom_call.1} parent=1 // pred_check
      _
    $region55: #{tpu_custom_call.1} parent=1 // pred_check_branch
      %134 = sbr.rel (0) target = $region57
    $region56: #{tpu_custom_call.1} parent=1 // pred_region
      %135 = dma.done [#allocation7], 1024
    $region57: #{tpu_custom_call.1} parent=1 // pred_fallthru
      _
    // Predicated region
    $region58: #{tpu_custom_call.1} parent=1 // pred_check
      _
    $region59: #{tpu_custom_call.1} parent=1 // pred_check_branch
      %137 = sbr.rel (0) target = $region61
    $region60: #{tpu_custom_call.1} parent=1 // pred_region
      %138 = dma.done [#allocation10], 512
    $region61: #{tpu_custom_call.1} parent=1 // pred_fallthru
      _
    // Predicated region
    $region62: #{tpu_custom_call.1} parent=1 // pred_check
      _
    $region63: #{tpu_custom_call.1} parent=1 // pred_check_branch
      %140 = sbr.rel (0) target = $region65
    $region64: #{tpu_custom_call.1} parent=1 // pred_region
      %141 = dma.done [#allocation10], 512
    $region65: #{tpu_custom_call.1} parent=1 // pred_fallthru
      _
    // Predicated region
    $region66: #{tpu_custom_call.1} parent=1 // pred_check
      _
    $region67: #{tpu_custom_call.1} parent=1 // pred_check_branch
      %143 = sbr.rel (0) target = $region69
    $region68: #{tpu_custom_call.1} parent=1 // pred_region
      %144 = dma.done [#allocation13], 2048
    $region69: #{tpu_custom_call.1} parent=1 // pred_fallthru
      _
    // Predicated region
    $region70: #{tpu_custom_call.1} parent=1 // pred_check
      _
    $region71: #{tpu_custom_call.1} parent=1 // pred_check_branch
      %146 = sbr.rel (0) target = $region73
    $region72: #{tpu_custom_call.1} parent=1 // pred_region
      %147 = dma.done [#allocation13], 512
    $region73: #{tpu_custom_call.1} parent=1 // pred_fallthru
      _
    // Predicated region
    $region74: #{tpu_custom_call.1} parent=1 // pred_check
      _
    $region75: #{tpu_custom_call.1} parent=1 // pred_check_branch
      %149 = sbr.rel (0) target = $region77
    $region76: #{tpu_custom_call.1} parent=1 // pred_region
      %150 = dma.done [#allocation16], 1024
    $region77: #{tpu_custom_call.1} parent=1 // pred_fallthru
      _
    %v151 = vld [vmem:[#allocation3] sm:$0xff]
    %v152 = vld [vmem:[#allocation3 + $0x8] sm:$0xff]
    %v153 = vld [vmem:[#allocation6] sm:$0xff]
    %v154 = vld [vmem:[#allocation6 + $0x8] sm:$0xff]
    %v155 = vld [vmem:[#allocation8] sm:$0xff]
    %v156 = vld [vmem:[#allocation8 + $0x8] sm:$0xff]
    %v157 = vld [vmem:[#allocation8 + $0x10] sm:$0xff]
    %v158 = vld [vmem:[#allocation8 + $0x18] sm:$0xff]
    %v159 = vld [vmem:[#allocation8 + $0x20] sm:$0xff]
    %v160 = vld [vmem:[#allocation8 + $0x28] sm:$0xff]
    %v161 = vld [vmem:[#allocation8 + $0x30] sm:$0xff]
    %v162 = vld [vmem:[#allocation8 + $0x38] sm:$0xff]
    %v163 = vld [vmem:[%s3] sm:$0x1]
    %v164 = vld [vmem:[%s4] sm:$0x1]
    %v165 = vld [vmem:[#allocation9] sm:$0xff]
    %v166 = vld [vmem:[#allocation9 + $0x8] sm:$0xff]
    %v167 = vld [vmem:[#allocation9 + $0x10] sm:$0xff]
    %v168 = vld [vmem:[#allocation9 + $0x18] sm:$0xff]
    %v169 = vld [vmem:[#allocation11] sm:$0xff]
    %v170 = vld [vmem:[#allocation11 + $0x8] sm:$0xff]
    %v171 = vld [vmem:[#allocation11 + $0x10] sm:$0xff]
    %v172 = vld [vmem:[#allocation11 + $0x18] sm:$0xff]
    %v173 = vld [vmem:[#allocation12] sm:$0xff]
    %v174 = vld [vmem:[#allocation12 + $0x8] sm:$0xff]
    %v175 = vld [vmem:[#allocation12 + $0x10] sm:$0xff]
    %v176 = vld [vmem:[#allocation12 + $0x18] sm:$0xff]
    %v177 = vld [vmem:[#allocation12 + $0x20] sm:$0xff]
    %v178 = vld [vmem:[#allocation12 + $0x28] sm:$0xff]
    %v179 = vld [vmem:[#allocation12 + $0x30] sm:$0xff]
    %v180 = vld [vmem:[#allocation12 + $0x38] sm:$0xff]
    %v181 = vld [vmem:[#allocation12 + $0x40] sm:$0xff]
    %v182 = vld [vmem:[#allocation12 + $0x48] sm:$0xff]
    %v183 = vld [vmem:[#allocation12 + $0x50] sm:$0xff]
    %v184 = vld [vmem:[#allocation12 + $0x58] sm:$0xff]
    %v185 = vld [vmem:[#allocation12 + $0x60] sm:$0xff]
    %v186 = vld [vmem:[#allocation12 + $0x68] sm:$0xff]
    %v187 = vld [vmem:[#allocation12 + $0x70] sm:$0xff]
    %v188 = vld [vmem:[#allocation12 + $0x78] sm:$0xff]
    %v190 = vlaneseq
    %v191 = vshrl.u32 %v190, 7
    %v192 = vsub.s32 0, %v191
    %v193 = vrot.slane %v163, %v192
    %vm195 = vcmask 523264
    %v197 = vsel %vm195, 0.0, 0
    %199 = vmatprep.subr.mxu0 0.0
    %200 = vmatpush1.msra.mxu0 0.0
    %201 = vmatprep.subr.mxu0 0.0
    %202 = vmatpush1.msra.mxu0 0.0
    %203 = vmatprep.subr.mxu0 0.0
    %204 = vmatpush1.msra.mxu0 0.0
    %205 = vmatprep.subr.mxu0 0.0
    %206 = vmatpush1.msra.mxu0 0.0
    %207 = vmatprep.subr.mxu0 0.0
    %208 = vmatpush1.msra.mxu0 0.0
    %209 = vmatprep.subr.mxu0 0.0
    %210 = vmatpush1.msra.mxu0 0.0
    %211 = vmatprep.subr.mxu0 0.0
    %212 = vmatpush1.msra.mxu0 0.0
    %213 = vmatprep.subr.mxu0 0.0
    %214 = vmatpush1.msra.mxu0 0.0
    %215 = vmatprep.subr.mxu0 0.0
    %216 = vmatpush1.msra.mxu0 %v162
    %217 = vmatprep.subr.mxu0 0.0
    %218 = vmatpush1.msra.mxu0 %v161
    %219 = vmatprep.subr.mxu0 0.0
    %220 = vmatpush1.msra.mxu0 %v160
    %221 = vmatprep.subr.mxu0 0.0
    %222 = vmatpush1.msra.mxu0 %v159
    %223 = vmatprep.subr.mxu0 0.0
    %224 = vmatpush1.msra.mxu0 %v158
    %225 = vmatprep.subr.mxu0 0.0
    %226 = vmatpush1.msra.mxu0 %v157
    %227 = vmatprep.subr.mxu0 0.0
    %228 = vmatpush1.msra.mxu0 %v156
    %229 = vmatprep.subr.mxu0 0.0
    %230 = vmatpush1.msra.mxu0 %v155
    %231 = vmatprep.subr.mxu0 0.0
    %232 = vmatpush2.msra.mxu0 0.0
    %233 = vmatprep.subr.mxu0 0.0
    %234 = vmatpush2.msra.mxu0 0.0
    %235 = vmatprep.subr.mxu0 0.0
    %236 = vmatpush2.msra.mxu0 0.0
    %237 = vmatprep.subr.mxu0 0.0
    %238 = vmatpush2.msra.mxu0 0.0
    %239 = vmatprep.subr.mxu0 0.0
    %240 = vmatpush2.msra.mxu0 0.0
    %241 = vmatprep.subr.mxu0 0.0
    %242 = vmatpush2.msra.mxu0 0.0
    %243 = vmatprep.subr.mxu0 0.0
    %244 = vmatpush2.msra.mxu0 0.0
    %245 = vmatprep.subr.mxu0 0.0
    %246 = vmatpush2.msra.mxu0 0.0
    %247 = vmatprep.subr.mxu0 0.0
    %248 = vmatpush2.msra.mxu0 0.0
    %249 = vmatprep.subr.mxu0 0.0
    %250 = vmatpush2.msra.mxu0 0.0
    %251 = vmatprep.subr.mxu0 0.0
    %252 = vmatpush2.msra.mxu0 0.0
    %253 = vmatprep.subr.mxu0 0.0
    %254 = vmatpush2.msra.mxu0 0.0
    %255 = vmatprep.subr.mxu0 0.0
    %256 = vmatpush2.msra.mxu0 0.0
    %257 = vmatprep.subr.mxu0 0.0
    %258 = vmatpush2.msra.mxu0 0.0
    %259 = vmatprep.subr.mxu0 0.0
    %260 = vmatpush2.msra.mxu0 0.0
    %261 = vmatprep.subr.mxu0 0.0
    %262 = vmatpush2.msra.mxu0 0.0
    %263 = vmatprep.mubr.f32.mxu0 0.0
    %264 = vmatmul.mubr.f32.gmra.mxu0 %v197
    %v265 = vpop.f32.mrf.mxu0
    %v266 = vadd.f32 %v193, %v265
    %v267 = vpop.f32.mrf.mxu0
    %268 = vdwg.mxu0
    %v271 = vunpack.c.l.s4 1966171168
    %v272 = vunpack.c.0.s8 %v271
    %v273 = vlaneseq
    %v274 = vshrl.u32 %v273, 7
    %v275 = vsub.s32 %v272, %v274
    %v276 = vrot.slane %v266, %v275
    %v277 = vcombine.high %v276, %v276
    %v279 = vunpack.c.l.s4 1966171168
    %v280 = vunpack.c.0.s8 %v279
    %v281 = vlaneseq
    %v282 = vshrl.u32 %v281, 7
    %v283 = vsub.s32 %v280, %v282
    %v284 = vrot.slane %v276, %v283
    %v286 = vunpack.c.l.s4 1966171168
    %v287 = vunpack.c.0.s8 %v286
    %v288 = vlaneseq
    %v289 = vshrl.u32 %v288, 7
    %v290 = vsub.s32 %v287, %v289
    %v291 = vrot.slane %v277, %v290
    %v292 = vlaneseq
    %v293 = vshrl.u32 %v292, 7
    %v294 = vsub.s32 0, %v293
    %v295 = vrot.slane %v284, %v294
    %v296 = vlaneseq
    %v297 = vshrl.u32 %v296, 7
    %v298 = vsub.s32 0, %v297
    %v299 = vrot.slane %v291, %v298
    %v302 = vadd.f32 %v153, %v295
    %v303 = vadd.f32 %v154, %v299
    %v304 = vtanh.pop %v302
    %v305 = vtanh.pop %v303
    %v307 = vlaneseq
    %v308 = vshrl.u32 %v307, 7
    %v309 = vsub.s32 0, %v308
    %v310 = vrot.slane %v164, %v309
    %v312 = vmul.f32 %v310, %v304
    %v313 = vmul.f32 %v310, %v305
    %vm314 = vcmask 261120
    %v315 = vsel %vm314, %v312, 0.0
    %316 = vadd.xlane.f32.xlu0 %v315
    %v317 = vpop.xlane.xlu0 %316
    %v318 = vsel %vm314, %v313, 0.0
    %319 = vadd.xlane.f32.xlu0 %v318
    %v320 = vpop.xlane.xlu0 %319
    %323 = vrot.lane.b32.xlu0 %v312, 96
    %v324 = vpop.permute.xlu0 %323
    %325 = vrot.lane.b32.xlu0 %v313, 96
    %v326 = vpop.permute.xlu0 %325
    %v329 = vsel %vm314, %v324, 0.0
    %330 = vadd.xlane.f32.xlu0 %v329
    %v331 = vpop.xlane.xlu0 %330
    %v332 = vsel %vm314, %v326, 0.0
    %333 = vadd.xlane.f32.xlu0 %v332
    %v334 = vpop.xlane.xlu0 %333
    %v337 = vlaneseq
    %v338 = vand.u32 %v337, 127
    %v339 = vlaneseq
    %v340 = vshrl.u32 %v339, 7
    %v341 = vsub.s32 %v338, %v340
    %v342 = vrot.slane %v317, %v341
    %v343 = vlaneseq
    %v344 = vshrl.u32 %v343, 7
    %v345 = vsub.s32 %v338, %v344
    %v346 = vrot.slane %v320, %v345
    %vm347 = vcmask 1041409
    %v348 = vsel %vm347, %v346, %v342
    %vm350 = vcmask 58368
    %v351 = vsel %vm350, %v348, -inf
    %352 = vmax.xlane.f32.xlu0 %v351
    %v353 = vpop.xlane.xlu0 %352
    %v355 = vlaneseq
    %v356 = vshrl.u32 %v355, 7
    %v357 = vsub.s32 0, %v356
    %v358 = vrot.slane %v353, %v357
    %v359 = vlaneseq
    %v360 = vshrl.u32 %v359, 7
    %v361 = vsub.s32 1, %v360
    %v362 = vrot.slane %v353, %v361
    %v365 = vsub.f32 %v317, %v358
    %v366 = vsub.f32 %v320, %v362
    %v367 = vmul.f32 %v365, 1.442695
    %v368 = vpow.pop %v367
    %v369 = vmul.f32 %v366, 1.442695
    %v370 = vpow.pop %v369
    %373 = vset.pattern.permute.xlu0 0
    %374 = vperm.xlu0 %373, %v368
    %v375 = vpop.permute.xlu0 %374
    %376 = vset.pattern.permute.xlu0 0
    %377 = vperm.xlu0 %376, %v370
    %v378 = vpop.permute.xlu0 %377
    %v379 = vlaneseq
    %v380 = vshrl.u32 %v379, 7
    %v381 = vsub.s32 %v338, %v380
    %v382 = vrot.slane %v375, %v381
    %v383 = vlaneseq
    %v384 = vshrl.u32 %v383, 7
    %v385 = vsub.s32 %v338, %v384
    %v386 = vrot.slane %v378, %v385
    %v387 = vsel %vm347, %v386, %v382
    %v389 = vsel %vm350, %v387, 0.0
    %390 = vadd.xlane.f32.xlu0 %v389
    %v391 = vpop.xlane.xlu0 %390
    %v392 = vrcp.pop %v391
    %v394 = vlaneseq
    %v395 = vshrl.u32 %v394, 7
    %v396 = vsub.s32 0, %v395
    %v397 = vrot.slane %v392, %v396
    %v398 = vlaneseq
    %v399 = vshrl.u32 %v398, 7
    %v400 = vsub.s32 1, %v399
    %v401 = vrot.slane %v392, %v400
    %v404 = vmul.f32 %v368, %v397
    %v405 = vmul.f32 %v370, %v401
    %v408 = vlaneseq
    %v409 = vshrl.u32 %v408, 7
    %v410 = vsub.s32 %v338, %v409
    %v411 = vrot.slane %v331, %v410
    %v412 = vlaneseq
    %v413 = vshrl.u32 %v412, 7
    %v414 = vsub.s32 %v338, %v413
    %v415 = vrot.slane %v334, %v414
    %v416 = vsel %vm347, %v415, %v411
    %v418 = vsel %vm350, %v416, -inf
    %419 = vmax.xlane.f32.xlu0 %v418
    %v420 = vpop.xlane.xlu0 %419
    %v422 = vlaneseq
    %v423 = vshrl.u32 %v422, 7
    %v424 = vsub.s32 0, %v423
    %v425 = vrot.slane %v420, %v424
    %v426 = vlaneseq
    %v427 = vshrl.u32 %v426, 7
    %v428 = vsub.s32 1, %v427
    %v429 = vrot.slane %v420, %v428
    %v432 = vsub.f32 %v331, %v425
    %v433 = vsub.f32 %v334, %v429
    %v434 = vmul.f32 %v432, 1.442695
    %v435 = vpow.pop %v434
    %v436 = vmul.f32 %v433, 1.442695
    %v437 = vpow.pop %v436
    %440 = vset.pattern.permute.xlu0 0
    %441 = vperm.xlu0 %440, %v435
    %v442 = vpop.permute.xlu0 %441
    %443 = vset.pattern.permute.xlu0 0
    %444 = vperm.xlu0 %443, %v437
    %v445 = vpop.permute.xlu0 %444
    %v446 = vlaneseq
    %v447 = vshrl.u32 %v446, 7
    %v448 = vsub.s32 %v338, %v447
    %v449 = vrot.slane %v442, %v448
    %v450 = vlaneseq
    %v451 = vshrl.u32 %v450, 7
    %v452 = vsub.s32 %v338, %v451
    %v453 = vrot.slane %v445, %v452
    %v454 = vsel %vm347, %v453, %v449
    %v456 = vsel %vm350, %v454, 0.0
    %457 = vadd.xlane.f32.xlu0 %v456
    %v458 = vpop.xlane.xlu0 %457
    %v459 = vrcp.pop %v458
    %v461 = vlaneseq
    %v462 = vshrl.u32 %v461, 7
    %v463 = vsub.s32 0, %v462
    %v464 = vrot.slane %v459, %v463
    %v465 = vlaneseq
    %v466 = vshrl.u32 %v465, 7
    %v467 = vsub.s32 1, %v466
    %v468 = vrot.slane %v459, %v467
    %v471 = vmul.f32 %v435, %v464
    %v472 = vmul.f32 %v437, %v468
    %474 = vset.pattern.permute.xlu0 0
    %475 = vperm.xlu0 %474, %v404
    %v476 = vpop.permute.xlu0 %475
    %479 = vset.pattern.permute.xlu0 0
    %480 = vperm.xlu0 %479, %v405
    %v481 = vpop.permute.xlu0 %480
    %v483 = vmul.f32 %v476, %v151
    %v484 = vmul.f32 %v481, %v152
    %vm485 = vcmask 130048
    %v486 = vsel %vm485, %v483, 0.0
    %v487 = vrot.slane %v486, 4
    %v488 = vadd.f32 %v486, %v487
    %v489 = vrot.slane %v488, 2
    %v490 = vadd.f32 %v488, %v489
    %v491 = vrot.slane %v490, 1
    %v492 = vadd.f32 %v490, %v491
    %v493 = vsel %vm485, %v484, 0.0
    %v494 = vrot.slane %v493, 4
    %v495 = vadd.f32 %v493, %v494
    %v496 = vrot.slane %v495, 2
    %v497 = vadd.f32 %v495, %v496
    %v498 = vrot.slane %v497, 1
    %v499 = vadd.f32 %v497, %v498
    %501 = vset.pattern.permute.xlu0 0
    %502 = vperm.xlu0 %501, %v471
    %v503 = vpop.permute.xlu0 %502
    %506 = vset.pattern.permute.xlu0 0
    %507 = vperm.xlu0 %506, %v472
    %v508 = vpop.permute.xlu0 %507
    %v510 = vmul.f32 %v503, %v151
    %v511 = vmul.f32 %v508, %v152
    %v512 = vsel %vm485, %v510, 0.0
    %v513 = vrot.slane %v512, 4
    %v514 = vadd.f32 %v512, %v513
    %v515 = vrot.slane %v514, 2
    %v516 = vadd.f32 %v514, %v515
    %v517 = vrot.slane %v516, 1
    %v518 = vadd.f32 %v516, %v517
    %v519 = vsel %vm485, %v511, 0.0
    %v520 = vrot.slane %v519, 4
    %v521 = vadd.f32 %v519, %v520
    %v522 = vrot.slane %v521, 2
    %v523 = vadd.f32 %v521, %v522
    %v524 = vrot.slane %v523, 1
    %v525 = vadd.f32 %v523, %v524
    %v528 = vsel %vm347, %v525, %v518
    %v529 = vsel %vm485, %v528, 0
    %531 = vmatprep.subr.mxu0 0.0
    %532 = vmatpush1.msra.mxu0 0.0
    %533 = vmatprep.subr.mxu0 0.0
    %534 = vmatpush1.msra.mxu0 0.0
    %535 = vmatprep.subr.mxu0 0.0
    %536 = vmatpush1.msra.mxu0 0.0
    %537 = vmatprep.subr.mxu0 0.0
    %538 = vmatpush1.msra.mxu0 0.0
    %539 = vmatprep.subr.mxu0 0.0
    %540 = vmatpush1.msra.mxu0 0.0
    %541 = vmatprep.subr.mxu0 0.0
    %542 = vmatpush1.msra.mxu0 0.0
    %543 = vmatprep.subr.mxu0 0.0
    %544 = vmatpush1.msra.mxu0 0.0
    %545 = vmatprep.subr.mxu0 0.0
    %546 = vmatpush1.msra.mxu0 0.0
    %547 = vmatprep.subr.mxu0 0.0
    %548 = vmatpush1.msra.mxu0 0.0
    %549 = vmatprep.subr.mxu0 0.0
    %550 = vmatpush1.msra.mxu0 0.0
    %551 = vmatprep.subr.mxu0 0.0
    %552 = vmatpush1.msra.mxu0 0.0
    %553 = vmatprep.subr.mxu0 0.0
    %554 = vmatpush1.msra.mxu0 0.0
    %555 = vmatprep.subr.mxu0 0.0
    %556 = vmatpush1.msra.mxu0 0.0
    %557 = vmatprep.subr.mxu0 0.0
    %558 = vmatpush1.msra.mxu0 0.0
    %559 = vmatprep.subr.mxu0 %v172
    %560 = vmatpush1.msra.mxu0 %v171
    %561 = vmatprep.subr.mxu0 %v170
    %562 = vmatpush1.msra.mxu0 %v169
    %563 = vmatprep.subr.mxu0 0.0
    %564 = vmatpush2.msra.mxu0 0.0
    %565 = vmatprep.subr.mxu0 0.0
    %566 = vmatpush2.msra.mxu0 0.0
    %567 = vmatprep.subr.mxu0 0.0
    %568 = vmatpush2.msra.mxu0 0.0
    %569 = vmatprep.subr.mxu0 0.0
    %570 = vmatpush2.msra.mxu0 0.0
    %571 = vmatprep.subr.mxu0 0.0
    %572 = vmatpush2.msra.mxu0 0.0
    %573 = vmatprep.subr.mxu0 0.0
    %574 = vmatpush2.msra.mxu0 0.0
    %575 = vmatprep.subr.mxu0 0.0
    %576 = vmatpush2.msra.mxu0 0.0
    %577 = vmatprep.subr.mxu0 0.0
    %578 = vmatpush2.msra.mxu0 0.0
    %579 = vmatprep.subr.mxu0 0.0
    %580 = vmatpush2.msra.mxu0 0.0
    %581 = vmatprep.subr.mxu0 0.0
    %582 = vmatpush2.msra.mxu0 0.0
    %583 = vmatprep.subr.mxu0 0.0
    %584 = vmatpush2.msra.mxu0 0.0
    %585 = vmatprep.subr.mxu0 0.0
    %586 = vmatpush2.msra.mxu0 0.0
    %587 = vmatprep.subr.mxu0 0.0
    %588 = vmatpush2.msra.mxu0 0.0
    %589 = vmatprep.subr.mxu0 0.0
    %590 = vmatpush2.msra.mxu0 0.0
    %591 = vmatprep.subr.mxu0 0.0
    %592 = vmatpush2.msra.mxu0 0.0
    %593 = vmatprep.subr.mxu0 0.0
    %594 = vmatpush2.msra.mxu0 0.0
    %595 = vmatprep.mubr.f32.mxu0 0.0
    %596 = vmatmul.mubr.f32.gmra.mxu0 %v529
    %v597 = vpop.f32.mrf.mxu0
    %v598 = vadd.f32 0.0, %v597
    %v599 = vpop.f32.mrf.mxu0
    %v600 = vadd.f32 0.0, %v599
    %601 = vdwg.mxu0
    %v604 = vsel %vm347, %v499, %v492
    %v605 = vsel %vm485, %v604, 0
    %607 = vmatprep.subr.mxu0 0.0
    %608 = vmatpush1.msra.mxu0 0.0
    %609 = vmatprep.subr.mxu0 0.0
    %610 = vmatpush1.msra.mxu0 0.0
    %611 = vmatprep.subr.mxu0 0.0
    %612 = vmatpush1.msra.mxu0 0.0
    %613 = vmatprep.subr.mxu0 0.0
    %614 = vmatpush1.msra.mxu0 0.0
    %615 = vmatprep.subr.mxu0 0.0
    %616 = vmatpush1.msra.mxu0 0.0
    %617 = vmatprep.subr.mxu0 0.0
    %618 = vmatpush1.msra.mxu0 0.0
    %619 = vmatprep.subr.mxu0 0.0
    %620 = vmatpush1.msra.mxu0 0.0
    %621 = vmatprep.subr.mxu0 0.0
    %622 = vmatpush1.msra.mxu0 0.0
    %623 = vmatprep.subr.mxu0 0.0
    %624 = vmatpush1.msra.mxu0 0.0
    %625 = vmatprep.subr.mxu0 0.0
    %626 = vmatpush1.msra.mxu0 0.0
    %627 = vmatprep.subr.mxu0 0.0
    %628 = vmatpush1.msra.mxu0 0.0
    %629 = vmatprep.subr.mxu0 0.0
    %630 = vmatpush1.msra.mxu0 0.0
    %631 = vmatprep.subr.mxu0 0.0
    %632 = vmatpush1.msra.mxu0 0.0
    %633 = vmatprep.subr.mxu0 0.0
    %634 = vmatpush1.msra.mxu0 0.0
    %635 = vmatprep.subr.mxu0 %v168
    %636 = vmatpush1.msra.mxu0 %v167
    %637 = vmatprep.subr.mxu0 %v166
    %638 = vmatpush1.msra.mxu0 %v165
    %639 = vmatprep.subr.mxu0 0.0
    %640 = vmatpush2.msra.mxu0 0.0
    %641 = vmatprep.subr.mxu0 0.0
    %642 = vmatpush2.msra.mxu0 0.0
    %643 = vmatprep.subr.mxu0 0.0
    %644 = vmatpush2.msra.mxu0 0.0
    %645 = vmatprep.subr.mxu0 0.0
    %646 = vmatpush2.msra.mxu0 0.0
    %647 = vmatprep.subr.mxu0 0.0
    %648 = vmatpush2.msra.mxu0 0.0
    %649 = vmatprep.subr.mxu0 0.0
    %650 = vmatpush2.msra.mxu0 0.0
    %651 = vmatprep.subr.mxu0 0.0
    %652 = vmatpush2.msra.mxu0 0.0
    %653 = vmatprep.subr.mxu0 0.0
    %654 = vmatpush2.msra.mxu0 0.0
    %655 = vmatprep.subr.mxu0 0.0
    %656 = vmatpush2.msra.mxu0 0.0
    %657 = vmatprep.subr.mxu0 0.0
    %658 = vmatpush2.msra.mxu0 0.0
    %659 = vmatprep.subr.mxu0 0.0
    %660 = vmatpush2.msra.mxu0 0.0
    %661 = vmatprep.subr.mxu0 0.0
    %662 = vmatpush2.msra.mxu0 0.0
    %663 = vmatprep.subr.mxu0 0.0
    %664 = vmatpush2.msra.mxu0 0.0
    %665 = vmatprep.subr.mxu0 0.0
    %666 = vmatpush2.msra.mxu0 0.0
    %667 = vmatprep.subr.mxu0 0.0
    %668 = vmatpush2.msra.mxu0 0.0
    %669 = vmatprep.subr.mxu0 0.0
    %670 = vmatpush2.msra.mxu0 0.0
    %671 = vmatprep.mubr.f32.mxu0 0.0
    %672 = vmatmul.mubr.f32.gmra.mxu0 %v605
    %v673 = vpop.f32.mrf.mxu0
    %v674 = vadd.f32 %v598, %v673
    %v675 = vpop.f32.mrf.mxu0
    %v676 = vadd.f32 %v600, %v675
    %677 = vdwg.mxu0
    %678 = vmatprep.subr.mxu0 0.0
    %679 = vmatpush1.msra.mxu0 0.0
    %680 = vmatprep.subr.mxu0 0.0
    %681 = vmatpush1.msra.mxu0 0.0
    %682 = vmatprep.subr.mxu0 0.0
    %683 = vmatpush1.msra.mxu0 0.0
    %684 = vmatprep.subr.mxu0 0.0
    %685 = vmatpush1.msra.mxu0 0.0
    %686 = vmatprep.subr.mxu0 0.0
    %687 = vmatpush1.msra.mxu0 0.0
    %688 = vmatprep.subr.mxu0 0.0
    %689 = vmatpush1.msra.mxu0 0.0
    %690 = vmatprep.subr.mxu0 0.0
    %691 = vmatpush1.msra.mxu0 0.0
    %692 = vmatprep.subr.mxu0 0.0
    %693 = vmatpush1.msra.mxu0 0.0
    %694 = vmatprep.subr.mxu0 %v188
    %695 = vmatpush1.msra.mxu0 %v187
    %696 = vmatprep.subr.mxu0 %v186
    %697 = vmatpush1.msra.mxu0 %v185
    %698 = vmatprep.subr.mxu0 %v184
    %699 = vmatpush1.msra.mxu0 %v183
    %700 = vmatprep.subr.mxu0 %v182
    %701 = vmatpush1.msra.mxu0 %v181
    %702 = vmatprep.subr.mxu0 %v180
    %703 = vmatpush1.msra.mxu0 %v179
    %704 = vmatprep.subr.mxu0 %v178
    %705 = vmatpush1.msra.mxu0 %v177
    %706 = vmatprep.subr.mxu0 %v176
    %707 = vmatpush1.msra.mxu0 %v175
    %708 = vmatprep.subr.mxu0 %v174
    %709 = vmatpush1.msra.mxu0 %v173
    %710 = vmatprep.subr.mxu0 0.0
    %711 = vmatpush2.msra.mxu0 0.0
    %712 = vmatprep.subr.mxu0 0.0
    %713 = vmatpush2.msra.mxu0 0.0
    %714 = vmatprep.subr.mxu0 0.0
    %715 = vmatpush2.msra.mxu0 0.0
    %716 = vmatprep.subr.mxu0 0.0
    %717 = vmatpush2.msra.mxu0 0.0
    %718 = vmatprep.subr.mxu0 0.0
    %719 = vmatpush2.msra.mxu0 0.0
    %720 = vmatprep.subr.mxu0 0.0
    %721 = vmatpush2.msra.mxu0 0.0
    %722 = vmatprep.subr.mxu0 0.0
    %723 = vmatpush2.msra.mxu0 0.0
    %724 = vmatprep.subr.mxu0 0.0
    %725 = vmatpush2.msra.mxu0 0.0
    %726 = vmatprep.subr.mxu0 0.0
    %727 = vmatpush2.msra.mxu0 0.0
    %728 = vmatprep.subr.mxu0 0.0
    %729 = vmatpush2.msra.mxu0 0.0
    %730 = vmatprep.subr.mxu0 0.0
    %731 = vmatpush2.msra.mxu0 0.0
    %732 = vmatprep.subr.mxu0 0.0
    %733 = vmatpush2.msra.mxu0 0.0
    %734 = vmatprep.subr.mxu0 0.0
    %735 = vmatpush2.msra.mxu0 0.0
    %736 = vmatprep.subr.mxu0 0.0
    %737 = vmatpush2.msra.mxu0 0.0
    %738 = vmatprep.subr.mxu0 0.0
    %739 = vmatpush2.msra.mxu0 0.0
    %740 = vmatprep.subr.mxu0 0.0
    %741 = vmatpush2.msra.mxu0 0.0
    %742 = vmatprep.mubr.f32.mxu0 0.0
    %743 = vmatmul.mubr.f32.gmra.mxu0 %v197
    %v744 = vpop.f32.mrf.mxu0
    %v745 = vadd.f32 0.0, %v744
    %v746 = vpop.f32.mrf.mxu0
    %v747 = vadd.f32 0.0, %v746
    %748 = vdwg.mxu0
    %v749 = vadd.f32 %v674, %v745
    %v750 = vadd.f32 %v676, %v747
    %v751 = vld [vmem:[#allocation14] sm:$0xf]
    %v754 = vunpack.c.l.s4 1983009808
    %v755 = vunpack.c.0.s8 %v754
    %v756 = vlaneseq
    %v757 = vshrl.u32 %v756, 7
    %v758 = vsub.s32 %v755, %v757
    %v759 = vrot.slane %v751, %v758
    %v760 = vcombine.high %v759, %v759
    %v763 = vadd.f32 %v749, %v759
    %v764 = vadd.f32 %v750, %v760
    %v765 = vxor.u32 %v763, 2147483648
    %v766 = vxor.u32 %v764, 2147483648
    %v767 = vmul.f32 %v765, 1.442695
    %v768 = vpow.pop %v767
    %v769 = vmul.f32 %v766, 1.442695
    %v770 = vpow.pop %v769
    %v771 = vadd.f32 %v768, 1.0
    %v772 = vadd.f32 %v770, 1.0
    %v773 = vrcp.pop %v771
    %v774 = vmul.f32 1.0, %v773
    %v775 = vrcp.pop %v772
    %v776 = vmul.f32 1.0, %v775
    %v777 = vtanh.pop %v764
    %v778 = vmul.f32 %v774, 0.0
    %v779 = vmul.f32 %v774, %v777
    %781 = vrot.lane.b32.xlu0 %v779, 64
    %v782 = vpop.permute.xlu0 %781
    %v784 = vadd.f32 %v778, %v782
    %v785 = vtanh.pop %v784
    %v786 = vmul.f32 %v776, %v785
    %788 = vrot.lane.b32.xlu0 %v786, 64
    %v789 = vpop.permute.xlu0 %788
    %vm791 = vcmask 517120
    %792 = vst.msk [vmem:[#allocation2] sm:$0x3] %vm791, %v789
    %v793 = vsel %vm195, %v789, 0
    %795 = vmatprep.subr.mxu0 0.0
    %796 = vmatpush1.msra.mxu0 0.0
    %797 = vmatprep.subr.mxu0 0.0
    %798 = vmatpush1.msra.mxu0 0.0
    %799 = vmatprep.subr.mxu0 0.0
    %800 = vmatpush1.msra.mxu0 0.0
    %801 = vmatprep.subr.mxu0 0.0
    %802 = vmatpush1.msra.mxu0 0.0
    %803 = vmatprep.subr.mxu0 0.0
    %804 = vmatpush1.msra.mxu0 0.0
    %805 = vmatprep.subr.mxu0 0.0
    %806 = vmatpush1.msra.mxu0 0.0
    %807 = vmatprep.subr.mxu0 0.0
    %808 = vmatpush1.msra.mxu0 0.0
    %809 = vmatprep.subr.mxu0 0.0
    %810 = vmatpush1.msra.mxu0 0.0
    %811 = vmatprep.subr.mxu0 0.0
    %812 = vmatpush1.msra.mxu0 %v162
    %813 = vmatprep.subr.mxu0 0.0
    %814 = vmatpush1.msra.mxu0 %v161
    %815 = vmatprep.subr.mxu0 0.0
    %816 = vmatpush1.msra.mxu0 %v160
    %817 = vmatprep.subr.mxu0 0.0
    %818 = vmatpush1.msra.mxu0 %v159
    %819 = vmatprep.subr.mxu0 0.0
    %820 = vmatpush1.msra.mxu0 %v158
    %821 = vmatprep.subr.mxu0 0.0
    %822 = vmatpush1.msra.mxu0 %v157
    %823 = vmatprep.subr.mxu0 0.0
    %824 = vmatpush1.msra.mxu0 %v156
    %825 = vmatprep.subr.mxu0 0.0
    %826 = vmatpush1.msra.mxu0 %v155
    %827 = vmatprep.subr.mxu0 0.0
    %828 = vmatpush2.msra.mxu0 0.0
    %829 = vmatprep.subr.mxu0 0.0
    %830 = vmatpush2.msra.mxu0 0.0
    %831 = vmatprep.subr.mxu0 0.0
    %832 = vmatpush2.msra.mxu0 0.0
    %833 = vmatprep.subr.mxu0 0.0
    %834 = vmatpush2.msra.mxu0 0.0
    %835 = vmatprep.subr.mxu0 0.0
    %836 = vmatpush2.msra.mxu0 0.0
    %837 = vmatprep.subr.mxu0 0.0
    %838 = vmatpush2.msra.mxu0 0.0
    %839 = vmatprep.subr.mxu0 0.0
    %840 = vmatpush2.msra.mxu0 0.0
    %841 = vmatprep.subr.mxu0 0.0
    %842 = vmatpush2.msra.mxu0 0.0
    %843 = vmatprep.subr.mxu0 0.0
    %844 = vmatpush2.msra.mxu0 0.0
    %845 = vmatprep.subr.mxu0 0.0
    %846 = vmatpush2.msra.mxu0 0.0
    %847 = vmatprep.subr.mxu0 0.0
    %848 = vmatpush2.msra.mxu0 0.0
    %849 = vmatprep.subr.mxu0 0.0
    %850 = vmatpush2.msra.mxu0 0.0
    %851 = vmatprep.subr.mxu0 0.0
    %852 = vmatpush2.msra.mxu0 0.0
    %853 = vmatprep.subr.mxu0 0.0
    %854 = vmatpush2.msra.mxu0 0.0
    %855 = vmatprep.subr.mxu0 0.0
    %856 = vmatpush2.msra.mxu0 0.0
    %857 = vmatprep.subr.mxu0 0.0
    %858 = vmatpush2.msra.mxu0 0.0
    %859 = vmatprep.mubr.f32.mxu0 0.0
    %860 = vmatmul.mubr.f32.gmra.mxu0 %v793
    %v861 = vpop.f32.mrf.mxu0
    %v862 = vadd.f32 %v193, %v861
    %v863 = vpop.f32.mrf.mxu0
    %864 = vdwg.mxu0
    %v867 = vunpack.c.l.s4 1966171168
    %v868 = vunpack.c.0.s8 %v867
    %v869 = vlaneseq
    %v870 = vshrl.u32 %v869, 7
    %v871 = vsub.s32 %v868, %v870
    %v872 = vrot.slane %v862, %v871
    %v873 = vcombine.high %v872, %v872
    %v875 = vunpack.c.l.s4 1966171168
    %v876 = vunpack.c.0.s8 %v875
    %v877 = vlaneseq
    %v878 = vshrl.u32 %v877, 7
    %v879 = vsub.s32 %v876, %v878
    %v880 = vrot.slane %v872, %v879
    %v882 = vunpack.c.l.s4 1966171168
    %v883 = vunpack.c.0.s8 %v882
    %v884 = vlaneseq
    %v885 = vshrl.u32 %v884, 7
    %v886 = vsub.s32 %v883, %v885
    %v887 = vrot.slane %v873, %v886
    %v888 = vlaneseq
    %v889 = vshrl.u32 %v888, 7
    %v890 = vsub.s32 0, %v889
    %v891 = vrot.slane %v880, %v890
    %v892 = vlaneseq
    %v893 = vshrl.u32 %v892, 7
    %v894 = vsub.s32 0, %v893
    %v895 = vrot.slane %v887, %v894
    %v898 = vadd.f32 %v153, %v891
    %v899 = vadd.f32 %v154, %v895
    %v900 = vtanh.pop %v898
    %v901 = vtanh.pop %v899
    %v902 = vmul.f32 %v310, %v900
    %v903 = vmul.f32 %v310, %v901
    %v904 = vsel %vm314, %v902, 0.0
    %905 = vadd.xlane.f32.xlu0 %v904
    %v906 = vpop.xlane.xlu0 %905
    %v907 = vsel %vm314, %v903, 0.0
    %908 = vadd.xlane.f32.xlu0 %v907
    %v909 = vpop.xlane.xlu0 %908
    %912 = vrot.lane.b32.xlu0 %v902, 96
    %v913 = vpop.permute.xlu0 %912
    %914 = vrot.lane.b32.xlu0 %v903, 96
    %v915 = vpop.permute.xlu0 %914
    %v918 = vsel %vm314, %v913, 0.0
    %919 = vadd.xlane.f32.xlu0 %v918
    %v920 = vpop.xlane.xlu0 %919
    %v921 = vsel %vm314, %v915, 0.0
    %922 = vadd.xlane.f32.xlu0 %v921
    %v923 = vpop.xlane.xlu0 %922
    %v926 = vlaneseq
    %v927 = vshrl.u32 %v926, 7
    %v928 = vsub.s32 %v338, %v927
    %v929 = vrot.slane %v906, %v928
    %v930 = vlaneseq
    %v931 = vshrl.u32 %v930, 7
    %v932 = vsub.s32 %v338, %v931
    %v933 = vrot.slane %v909, %v932
    %v934 = vsel %vm347, %v933, %v929
    %v936 = vsel %vm350, %v934, -inf
    %937 = vmax.xlane.f32.xlu0 %v936
    %v938 = vpop.xlane.xlu0 %937
    %v940 = vlaneseq
    %v941 = vshrl.u32 %v940, 7
    %v942 = vsub.s32 0, %v941
    %v943 = vrot.slane %v938, %v942
    %v944 = vlaneseq
    %v945 = vshrl.u32 %v944, 7
    %v946 = vsub.s32 1, %v945
    %v947 = vrot.slane %v938, %v946
    %v950 = vsub.f32 %v906, %v943
    %v951 = vsub.f32 %v909, %v947
    %v952 = vmul.f32 %v950, 1.442695
    %v953 = vpow.pop %v952
    %v954 = vmul.f32 %v951, 1.442695
    %v955 = vpow.pop %v954
    %958 = vset.pattern.permute.xlu0 0
    %959 = vperm.xlu0 %958, %v953
    %v960 = vpop.permute.xlu0 %959
    %961 = vset.pattern.permute.xlu0 0
    %962 = vperm.xlu0 %961, %v955
    %v963 = vpop.permute.xlu0 %962
    %v964 = vlaneseq
    %v965 = vshrl.u32 %v964, 7
    %v966 = vsub.s32 %v338, %v965
    %v967 = vrot.slane %v960, %v966
    %v968 = vlaneseq
    %v969 = vshrl.u32 %v968, 7
    %v970 = vsub.s32 %v338, %v969
    %v971 = vrot.slane %v963, %v970
    %v972 = vsel %vm347, %v971, %v967
    %v974 = vsel %vm350, %v972, 0.0
    %975 = vadd.xlane.f32.xlu0 %v974
    %v976 = vpop.xlane.xlu0 %975
    %v977 = vrcp.pop %v976
    %v979 = vlaneseq
    %v980 = vshrl.u32 %v979, 7
    %v981 = vsub.s32 0, %v980
    %v982 = vrot.slane %v977, %v981
    %v983 = vlaneseq
    %v984 = vshrl.u32 %v983, 7
    %v985 = vsub.s32 1, %v984
    %v986 = vrot.slane %v977, %v985
    %v989 = vmul.f32 %v953, %v982
    %v990 = vmul.f32 %v955, %v986
    %v993 = vlaneseq
    %v994 = vshrl.u32 %v993, 7
    %v995 = vsub.s32 %v338, %v994
    %v996 = vrot.slane %v920, %v995
    %v997 = vlaneseq
    %v998 = vshrl.u32 %v997, 7
    %v999 = vsub.s32 %v338, %v998
    %v1000 = vrot.slane %v923, %v999
    %v1001 = vsel %vm347, %v1000, %v996
    %v1003 = vsel %vm350, %v1001, -inf
    %1004 = vmax.xlane.f32.xlu0 %v1003
    %v1005 = vpop.xlane.xlu0 %1004
    %v1007 = vlaneseq
    %v1008 = vshrl.u32 %v1007, 7
    %v1009 = vsub.s32 0, %v1008
    %v1010 = vrot.slane %v1005, %v1009
    %v1011 = vlaneseq
    %v1012 = vshrl.u32 %v1011, 7
    %v1013 = vsub.s32 1, %v1012
    %v1014 = vrot.slane %v1005, %v1013
    %v1017 = vsub.f32 %v920, %v1010
    %v1018 = vsub.f32 %v923, %v1014
    %v1019 = vmul.f32 %v1017, 1.442695
    %v1020 = vpow.pop %v1019
    %v1021 = vmul.f32 %v1018, 1.442695
    %v1022 = vpow.pop %v1021
    %1025 = vset.pattern.permute.xlu0 0
    %1026 = vperm.xlu0 %1025, %v1020
    %v1027 = vpop.permute.xlu0 %1026
    %1028 = vset.pattern.permute.xlu0 0
    %1029 = vperm.xlu0 %1028, %v1022
    %v1030 = vpop.permute.xlu0 %1029
    %v1031 = vlaneseq
    %v1032 = vshrl.u32 %v1031, 7
    %v1033 = vsub.s32 %v338, %v1032
    %v1034 = vrot.slane %v1027, %v1033
    %v1035 = vlaneseq
    %v1036 = vshrl.u32 %v1035, 7
    %v1037 = vsub.s32 %v338, %v1036
    %v1038 = vrot.slane %v1030, %v1037
    %v1039 = vsel %vm347, %v1038, %v1034
    %v1041 = vsel %vm350, %v1039, 0.0
    %1042 = vadd.xlane.f32.xlu0 %v1041
    %v1043 = vpop.xlane.xlu0 %1042
    %v1044 = vrcp.pop %v1043
    %v1046 = vlaneseq
    %v1047 = vshrl.u32 %v1046, 7
    %v1048 = vsub.s32 0, %v1047
    %v1049 = vrot.slane %v1044, %v1048
    %v1050 = vlaneseq
    %v1051 = vshrl.u32 %v1050, 7
    %v1052 = vsub.s32 1, %v1051
    %v1053 = vrot.slane %v1044, %v1052
    %v1056 = vmul.f32 %v1020, %v1049
    %v1057 = vmul.f32 %v1022, %v1053
    %1059 = vset.pattern.permute.xlu0 0
    %1060 = vperm.xlu0 %1059, %v989
    %v1061 = vpop.permute.xlu0 %1060
    %1064 = vset.pattern.permute.xlu0 0
    %1065 = vperm.xlu0 %1064, %v990
    %v1066 = vpop.permute.xlu0 %1065
    %v1068 = vmul.f32 %v1061, %v151
    %v1069 = vmul.f32 %v1066, %v152
    %v1070 = vsel %vm485, %v1068, 0.0
    %v1071 = vrot.slane %v1070, 4
    %v1072 = vadd.f32 %v1070, %v1071
    %v1073 = vrot.slane %v1072, 2
    %v1074 = vadd.f32 %v1072, %v1073
    %v1075 = vrot.slane %v1074, 1
    %v1076 = vadd.f32 %v1074, %v1075
    %v1077 = vsel %vm485, %v1069, 0.0
    %v1078 = vrot.slane %v1077, 4
    %v1079 = vadd.f32 %v1077, %v1078
    %v1080 = vrot.slane %v1079, 2
    %v1081 = vadd.f32 %v1079, %v1080
    %v1082 = vrot.slane %v1081, 1
    %v1083 = vadd.f32 %v1081, %v1082
    %1085 = vset.pattern.permute.xlu0 0
    %1086 = vperm.xlu0 %1085, %v1056
    %v1087 = vpop.permute.xlu0 %1086
    %1090 = vset.pattern.permute.xlu0 0
    %1091 = vperm.xlu0 %1090, %v1057
    %v1092 = vpop.permute.xlu0 %1091
    %v1094 = vmul.f32 %v1087, %v151
    %v1095 = vmul.f32 %v1092, %v152
    %v1096 = vsel %vm485, %v1094, 0.0
    %v1097 = vrot.slane %v1096, 4
    %v1098 = vadd.f32 %v1096, %v1097
    %v1099 = vrot.slane %v1098, 2
    %v1100 = vadd.f32 %v1098, %v1099
    %v1101 = vrot.slane %v1100, 1
    %v1102 = vadd.f32 %v1100, %v1101
    %v1103 = vsel %vm485, %v1095, 0.0
    %v1104 = vrot.slane %v1103, 4
    %v1105 = vadd.f32 %v1103, %v1104
    %v1106 = vrot.slane %v1105, 2
    %v1107 = vadd.f32 %v1105, %v1106
    %v1108 = vrot.slane %v1107, 1
    %v1109 = vadd.f32 %v1107, %v1108
    %v1112 = vsel %vm347, %v1109, %v1102
    %v1113 = vsel %vm485, %v1112, 0
    %1115 = vmatprep.subr.mxu0 0.0
    %1116 = vmatpush1.msra.mxu0 0.0
    %1117 = vmatprep.subr.mxu0 0.0
    %1118 = vmatpush1.msra.mxu0 0.0
    %1119 = vmatprep.subr.mxu0 0.0
    %1120 = vmatpush1.msra.mxu0 0.0
    %1121 = vmatprep.subr.mxu0 0.0
    %1122 = vmatpush1.msra.mxu0 0.0
    %1123 = vmatprep.subr.mxu0 0.0
    %1124 = vmatpush1.msra.mxu0 0.0
    %1125 = vmatprep.subr.mxu0 0.0
    %1126 = vmatpush1.msra.mxu0 0.0
    %1127 = vmatprep.subr.mxu0 0.0
    %1128 = vmatpush1.msra.mxu0 0.0
    %1129 = vmatprep.subr.mxu0 0.0
    %1130 = vmatpush1.msra.mxu0 0.0
    %1131 = vmatprep.subr.mxu0 0.0
    %1132 = vmatpush1.msra.mxu0 0.0
    %1133 = vmatprep.subr.mxu0 0.0
    %1134 = vmatpush1.msra.mxu0 0.0
    %1135 = vmatprep.subr.mxu0 0.0
    %1136 = vmatpush1.msra.mxu0 0.0
    %1137 = vmatprep.subr.mxu0 0.0
    %1138 = vmatpush1.msra.mxu0 0.0
    %1139 = vmatprep.subr.mxu0 0.0
    %1140 = vmatpush1.msra.mxu0 0.0
    %1141 = vmatprep.subr.mxu0 0.0
    %1142 = vmatpush1.msra.mxu0 0.0
    %1143 = vmatprep.subr.mxu0 %v172
    %1144 = vmatpush1.msra.mxu0 %v171
    %1145 = vmatprep.subr.mxu0 %v170
    %1146 = vmatpush1.msra.mxu0 %v169
    %1147 = vmatprep.subr.mxu0 0.0
    %1148 = vmatpush2.msra.mxu0 0.0
    %1149 = vmatprep.subr.mxu0 0.0
    %1150 = vmatpush2.msra.mxu0 0.0
    %1151 = vmatprep.subr.mxu0 0.0
    %1152 = vmatpush2.msra.mxu0 0.0
    %1153 = vmatprep.subr.mxu0 0.0
    %1154 = vmatpush2.msra.mxu0 0.0
    %1155 = vmatprep.subr.mxu0 0.0
    %1156 = vmatpush2.msra.mxu0 0.0
    %1157 = vmatprep.subr.mxu0 0.0
    %1158 = vmatpush2.msra.mxu0 0.0
    %1159 = vmatprep.subr.mxu0 0.0
    %1160 = vmatpush2.msra.mxu0 0.0
    %1161 = vmatprep.subr.mxu0 0.0
    %1162 = vmatpush2.msra.mxu0 0.0
    %1163 = vmatprep.subr.mxu0 0.0
    %1164 = vmatpush2.msra.mxu0 0.0
    %1165 = vmatprep.subr.mxu0 0.0
    %1166 = vmatpush2.msra.mxu0 0.0
    %1167 = vmatprep.subr.mxu0 0.0
    %1168 = vmatpush2.msra.mxu0 0.0
    %1169 = vmatprep.subr.mxu0 0.0
    %1170 = vmatpush2.msra.mxu0 0.0
    %1171 = vmatprep.subr.mxu0 0.0
    %1172 = vmatpush2.msra.mxu0 0.0
    %1173 = vmatprep.subr.mxu0 0.0
    %1174 = vmatpush2.msra.mxu0 0.0
    %1175 = vmatprep.subr.mxu0 0.0
    %1176 = vmatpush2.msra.mxu0 0.0
    %1177 = vmatprep.subr.mxu0 0.0
    %1178 = vmatpush2.msra.mxu0 0.0
    %1179 = vmatprep.mubr.f32.mxu0 0.0
    %1180 = vmatmul.mubr.f32.gmra.mxu0 %v1113
    %v1181 = vpop.f32.mrf.mxu0
    %v1182 = vadd.f32 0.0, %v1181
    %v1183 = vpop.f32.mrf.mxu0
    %v1184 = vadd.f32 0.0, %v1183
    %1185 = vdwg.mxu0
    %v1188 = vsel %vm347, %v1083, %v1076
    %v1189 = vsel %vm485, %v1188, 0
    %1191 = vmatprep.subr.mxu0 0.0
    %1192 = vmatpush1.msra.mxu0 0.0
    %1193 = vmatprep.subr.mxu0 0.0
    %1194 = vmatpush1.msra.mxu0 0.0
    %1195 = vmatprep.subr.mxu0 0.0
    %1196 = vmatpush1.msra.mxu0 0.0
    %1197 = vmatprep.subr.mxu0 0.0
    %1198 = vmatpush1.msra.mxu0 0.0
    %1199 = vmatprep.subr.mxu0 0.0
    %1200 = vmatpush1.msra.mxu0 0.0
    %1201 = vmatprep.subr.mxu0 0.0
    %1202 = vmatpush1.msra.mxu0 0.0
    %1203 = vmatprep.subr.mxu0 0.0
    %1204 = vmatpush1.msra.mxu0 0.0
    %1205 = vmatprep.subr.mxu0 0.0
    %1206 = vmatpush1.msra.mxu0 0.0
    %1207 = vmatprep.subr.mxu0 0.0
    %1208 = vmatpush1.msra.mxu0 0.0
    %1209 = vmatprep.subr.mxu0 0.0
    %1210 = vmatpush1.msra.mxu0 0.0
    %1211 = vmatprep.subr.mxu0 0.0
    %1212 = vmatpush1.msra.mxu0 0.0
    %1213 = vmatprep.subr.mxu0 0.0
    %1214 = vmatpush1.msra.mxu0 0.0
    %1215 = vmatprep.subr.mxu0 0.0
    %1216 = vmatpush1.msra.mxu0 0.0
    %1217 = vmatprep.subr.mxu0 0.0
    %1218 = vmatpush1.msra.mxu0 0.0
    %1219 = vmatprep.subr.mxu0 %v168
    %1220 = vmatpush1.msra.mxu0 %v167
    %1221 = vmatprep.subr.mxu0 %v166
    %1222 = vmatpush1.msra.mxu0 %v165
    %1223 = vmatprep.subr.mxu0 0.0
    %1224 = vmatpush2.msra.mxu0 0.0
    %1225 = vmatprep.subr.mxu0 0.0
    %1226 = vmatpush2.msra.mxu0 0.0
    %1227 = vmatprep.subr.mxu0 0.0
    %1228 = vmatpush2.msra.mxu0 0.0
    %1229 = vmatprep.subr.mxu0 0.0
    %1230 = vmatpush2.msra.mxu0 0.0
    %1231 = vmatprep.subr.mxu0 0.0
    %1232 = vmatpush2.msra.mxu0 0.0
    %1233 = vmatprep.subr.mxu0 0.0
    %1234 = vmatpush2.msra.mxu0 0.0
    %1235 = vmatprep.subr.mxu0 0.0
    %1236 = vmatpush2.msra.mxu0 0.0
    %1237 = vmatprep.subr.mxu0 0.0
    %1238 = vmatpush2.msra.mxu0 0.0
    %1239 = vmatprep.subr.mxu0 0.0
    %1240 = vmatpush2.msra.mxu0 0.0
    %1241 = vmatprep.subr.mxu0 0.0
    %1242 = vmatpush2.msra.mxu0 0.0
    %1243 = vmatprep.subr.mxu0 0.0
    %1244 = vmatpush2.msra.mxu0 0.0
    %1245 = vmatprep.subr.mxu0 0.0
    %1246 = vmatpush2.msra.mxu0 0.0
    %1247 = vmatprep.subr.mxu0 0.0
    %1248 = vmatpush2.msra.mxu0 0.0
    %1249 = vmatprep.subr.mxu0 0.0
    %1250 = vmatpush2.msra.mxu0 0.0
    %1251 = vmatprep.subr.mxu0 0.0
    %1252 = vmatpush2.msra.mxu0 0.0
    %1253 = vmatprep.subr.mxu0 0.0
    %1254 = vmatpush2.msra.mxu0 0.0
    %1255 = vmatprep.mubr.f32.mxu0 0.0
    %1256 = vmatmul.mubr.f32.gmra.mxu0 %v1189
    %v1257 = vpop.f32.mrf.mxu0
    %v1258 = vadd.f32 %v1182, %v1257
    %v1259 = vpop.f32.mrf.mxu0
    %v1260 = vadd.f32 %v1184, %v1259
    %1261 = vdwg.mxu0
    %1262 = vmatprep.subr.mxu0 0.0
    %1263 = vmatpush1.msra.mxu0 0.0
    %1264 = vmatprep.subr.mxu0 0.0
    %1265 = vmatpush1.msra.mxu0 0.0
    %1266 = vmatprep.subr.mxu0 0.0
    %1267 = vmatpush1.msra.mxu0 0.0
    %1268 = vmatprep.subr.mxu0 0.0
    %1269 = vmatpush1.msra.mxu0 0.0
    %1270 = vmatprep.subr.mxu0 0.0
    %1271 = vmatpush1.msra.mxu0 0.0
    %1272 = vmatprep.subr.mxu0 0.0
    %1273 = vmatpush1.msra.mxu0 0.0
    %1274 = vmatprep.subr.mxu0 0.0
    %1275 = vmatpush1.msra.mxu0 0.0
    %1276 = vmatprep.subr.mxu0 0.0
    %1277 = vmatpush1.msra.mxu0 0.0
    %1278 = vmatprep.subr.mxu0 %v188
    %1279 = vmatpush1.msra.mxu0 %v187
    %1280 = vmatprep.subr.mxu0 %v186
    %1281 = vmatpush1.msra.mxu0 %v185
    %1282 = vmatprep.subr.mxu0 %v184
    %1283 = vmatpush1.msra.mxu0 %v183
    %1284 = vmatprep.subr.mxu0 %v182
    %1285 = vmatpush1.msra.mxu0 %v181
    %1286 = vmatprep.subr.mxu0 %v180
    %1287 = vmatpush1.msra.mxu0 %v179
    %1288 = vmatprep.subr.mxu0 %v178
    %1289 = vmatpush1.msra.mxu0 %v177
    %1290 = vmatprep.subr.mxu0 %v176
    %1291 = vmatpush1.msra.mxu0 %v175
    %1292 = vmatprep.subr.mxu0 %v174
    %1293 = vmatpush1.msra.mxu0 %v173
    %1294 = vmatprep.subr.mxu0 0.0
    %1295 = vmatpush2.msra.mxu0 0.0
    %1296 = vmatprep.subr.mxu0 0.0
    %1297 = vmatpush2.msra.mxu0 0.0
    %1298 = vmatprep.subr.mxu0 0.0
    %1299 = vmatpush2.msra.mxu0 0.0
    %1300 = vmatprep.subr.mxu0 0.0
    %1301 = vmatpush2.msra.mxu0 0.0
    %1302 = vmatprep.subr.mxu0 0.0
    %1303 = vmatpush2.msra.mxu0 0.0
    %1304 = vmatprep.subr.mxu0 0.0
    %1305 = vmatpush2.msra.mxu0 0.0
    %1306 = vmatprep.subr.mxu0 0.0
    %1307 = vmatpush2.msra.mxu0 0.0
    %1308 = vmatprep.subr.mxu0 0.0
    %1309 = vmatpush2.msra.mxu0 0.0
    %1310 = vmatprep.subr.mxu0 0.0
    %1311 = vmatpush2.msra.mxu0 0.0
    %1312 = vmatprep.subr.mxu0 0.0
    %1313 = vmatpush2.msra.mxu0 0.0
    %1314 = vmatprep.subr.mxu0 0.0
    %1315 = vmatpush2.msra.mxu0 0.0
    %1316 = vmatprep.subr.mxu0 0.0
    %1317 = vmatpush2.msra.mxu0 0.0
    %1318 = vmatprep.subr.mxu0 0.0
    %1319 = vmatpush2.msra.mxu0 0.0
    %1320 = vmatprep.subr.mxu0 0.0
    %1321 = vmatpush2.msra.mxu0 0.0
    %1322 = vmatprep.subr.mxu0 0.0
    %1323 = vmatpush2.msra.mxu0 0.0
    %1324 = vmatprep.subr.mxu0 0.0
    %1325 = vmatpush2.msra.mxu0 0.0
    %1326 = vmatprep.mubr.f32.mxu0 0.0
    %1327 = vmatmul.mubr.f32.gmra.mxu0 %v793
    %v1328 = vpop.f32.mrf.mxu0
    %v1329 = vadd.f32 0.0, %v1328
    %v1330 = vpop.f32.mrf.mxu0
    %v1331 = vadd.f32 0.0, %v1330
    %1332 = vdwg.mxu0
    %v1333 = vadd.f32 %v1258, %v1329
    %v1334 = vadd.f32 %v1260, %v1331
    %s1335 = scalar_lea.vmem [#allocation14], 4
    %v1336 = vld [vmem:[%s1335] sm:$0xf]
    %v1339 = vunpack.c.l.s4 1983009808
    %v1340 = vunpack.c.0.s8 %v1339
    %v1341 = vlaneseq
    %v1342 = vshrl.u32 %v1341, 7
    %v1343 = vsub.s32 %v1340, %v1342
    %v1344 = vrot.slane %v1336, %v1343
    %v1345 = vcombine.high %v1344, %v1344
    %v1348 = vadd.f32 %v1333, %v1344
    %v1349 = vadd.f32 %v1334, %v1345
    %v1350 = vxor.u32 %v1348, 2147483648
    %v1351 = vxor.u32 %v1349, 2147483648
    %v1352 = vmul.f32 %v1350, 1.442695
    %v1353 = vpow.pop %v1352
    %v1354 = vmul.f32 %v1351, 1.442695
    %v1355 = vpow.pop %v1354
    %v1356 = vadd.f32 %v1353, 1.0
    %v1357 = vadd.f32 %v1355, 1.0
    %v1358 = vrcp.pop %v1356
    %v1359 = vmul.f32 1.0, %v1358
    %v1360 = vrcp.pop %v1357
    %v1361 = vmul.f32 1.0, %v1360
    %v1362 = vtanh.pop %v1349
    %v1363 = vmul.f32 %v1359, %v784
    %v1364 = vmul.f32 %v1359, %v1362
    %1366 = vrot.lane.b32.xlu0 %v1364, 64
    %v1367 = vpop.permute.xlu0 %1366
    %v1369 = vadd.f32 %v1363, %v1367
    %v1370 = vtanh.pop %v1369
    %v1371 = vmul.f32 %v1361, %v1370
    %1373 = vrot.lane.b32.xlu0 %v1371, 64
    %v1374 = vpop.permute.xlu0 %1373
    %s1376 = scalar_lea.vmem [#allocation2], 2
    %1377 = vst.msk [vmem:[%s1376] sm:$0x3] %vm791, %v1374
    %v1378 = vsel %vm195, %v1374, 0
    %1380 = vmatprep.subr.mxu0 0.0
    %1381 = vmatpush1.msra.mxu0 0.0
    %1382 = vmatprep.subr.mxu0 0.0
    %1383 = vmatpush1.msra.mxu0 0.0
    %1384 = vmatprep.subr.mxu0 0.0
    %1385 = vmatpush1.msra.mxu0 0.0
    %1386 = vmatprep.subr.mxu0 0.0
    %1387 = vmatpush1.msra.mxu0 0.0
    %1388 = vmatprep.subr.mxu0 0.0
    %1389 = vmatpush1.msra.mxu0 0.0
    %1390 = vmatprep.subr.mxu0 0.0
    %1391 = vmatpush1.msra.mxu0 0.0
    %1392 = vmatprep.subr.mxu0 0.0
    %1393 = vmatpush1.msra.mxu0 0.0
    %1394 = vmatprep.subr.mxu0 0.0
    %1395 = vmatpush1.msra.mxu0 0.0
    %1396 = vmatprep.subr.mxu0 0.0
    %1397 = vmatpush1.msra.mxu0 %v162
    %1398 = vmatprep.subr.mxu0 0.0
    %1399 = vmatpush1.msra.mxu0 %v161
    %1400 = vmatprep.subr.mxu0 0.0
    %1401 = vmatpush1.msra.mxu0 %v160
    %1402 = vmatprep.subr.mxu0 0.0
    %1403 = vmatpush1.msra.mxu0 %v159
    %1404 = vmatprep.subr.mxu0 0.0
    %1405 = vmatpush1.msra.mxu0 %v158
    %1406 = vmatprep.subr.mxu0 0.0
    %1407 = vmatpush1.msra.mxu0 %v157
    %1408 = vmatprep.subr.mxu0 0.0
    %1409 = vmatpush1.msra.mxu0 %v156
    %1410 = vmatprep.subr.mxu0 0.0
    %1411 = vmatpush1.msra.mxu0 %v155
    %1412 = vmatprep.subr.mxu0 0.0
    %1413 = vmatpush2.msra.mxu0 0.0
    %1414 = vmatprep.subr.mxu0 0.0
    %1415 = vmatpush2.msra.mxu0 0.0
    %1416 = vmatprep.subr.mxu0 0.0
    %1417 = vmatpush2.msra.mxu0 0.0
    %1418 = vmatprep.subr.mxu0 0.0
    %1419 = vmatpush2.msra.mxu0 0.0
    %1420 = vmatprep.subr.mxu0 0.0
    %1421 = vmatpush2.msra.mxu0 0.0
    %1422 = vmatprep.subr.mxu0 0.0
    %1423 = vmatpush2.msra.mxu0 0.0
    %1424 = vmatprep.subr.mxu0 0.0
    %1425 = vmatpush2.msra.mxu0 0.0
    %1426 = vmatprep.subr.mxu0 0.0
    %1427 = vmatpush2.msra.mxu0 0.0
    %1428 = vmatprep.subr.mxu0 0.0
    %1429 = vmatpush2.msra.mxu0 0.0
    %1430 = vmatprep.subr.mxu0 0.0
    %1431 = vmatpush2.msra.mxu0 0.0
    %1432 = vmatprep.subr.mxu0 0.0
    %1433 = vmatpush2.msra.mxu0 0.0
    %1434 = vmatprep.subr.mxu0 0.0
    %1435 = vmatpush2.msra.mxu0 0.0
    %1436 = vmatprep.subr.mxu0 0.0
    %1437 = vmatpush2.msra.mxu0 0.0
    %1438 = vmatprep.subr.mxu0 0.0
    %1439 = vmatpush2.msra.mxu0 0.0
    %1440 = vmatprep.subr.mxu0 0.0
    %1441 = vmatpush2.msra.mxu0 0.0
    %1442 = vmatprep.subr.mxu0 0.0
    %1443 = vmatpush2.msra.mxu0 0.0
    %1444 = vmatprep.mubr.f32.mxu0 0.0
    %1445 = vmatmul.mubr.f32.gmra.mxu0 %v1378
    %v1446 = vpop.f32.mrf.mxu0
    %v1447 = vadd.f32 %v193, %v1446
    %v1448 = vpop.f32.mrf.mxu0
    %1449 = vdwg.mxu0
    %v1452 = vunpack.c.l.s4 1966171168
    %v1453 = vunpack.c.0.s8 %v1452
    %v1454 = vlaneseq
    %v1455 = vshrl.u32 %v1454, 7
    %v1456 = vsub.s32 %v1453, %v1455
    %v1457 = vrot.slane %v1447, %v1456
    %v1458 = vcombine.high %v1457, %v1457
    %v1460 = vunpack.c.l.s4 1966171168
    %v1461 = vunpack.c.0.s8 %v1460
    %v1462 = vlaneseq
    %v1463 = vshrl.u32 %v1462, 7
    %v1464 = vsub.s32 %v1461, %v1463
    %v1465 = vrot.slane %v1457, %v1464
    %v1467 = vunpack.c.l.s4 1966171168
    %v1468 = vunpack.c.0.s8 %v1467
    %v1469 = vlaneseq
    %v1470 = vshrl.u32 %v1469, 7
    %v1471 = vsub.s32 %v1468, %v1470
    %v1472 = vrot.slane %v1458, %v1471
    %v1473 = vlaneseq
    %v1474 = vshrl.u32 %v1473, 7
    %v1475 = vsub.s32 0, %v1474
    %v1476 = vrot.slane %v1465, %v1475
    %v1477 = vlaneseq
    %v1478 = vshrl.u32 %v1477, 7
    %v1479 = vsub.s32 0, %v1478
    %v1480 = vrot.slane %v1472, %v1479
    %v1483 = vadd.f32 %v153, %v1476
    %v1484 = vadd.f32 %v154, %v1480
    %v1485 = vtanh.pop %v1483
    %v1486 = vtanh.pop %v1484
    %v1487 = vmul.f32 %v310, %v1485
    %v1488 = vmul.f32 %v310, %v1486
    %v1489 = vsel %vm314, %v1487, 0.0
    %1490 = vadd.xlane.f32.xlu0 %v1489
    %v1491 = vpop.xlane.xlu0 %1490
    %v1492 = vsel %vm314, %v1488, 0.0
    %1493 = vadd.xlane.f32.xlu0 %v1492
    %v1494 = vpop.xlane.xlu0 %1493
    %1497 = vrot.lane.b32.xlu0 %v1487, 96
    %v1498 = vpop.permute.xlu0 %1497
    %1499 = vrot.lane.b32.xlu0 %v1488, 96
    %v1500 = vpop.permute.xlu0 %1499
    %v1503 = vsel %vm314, %v1498, 0.0
    %1504 = vadd.xlane.f32.xlu0 %v1503
    %v1505 = vpop.xlane.xlu0 %1504
    %v1506 = vsel %vm314, %v1500, 0.0
    %1507 = vadd.xlane.f32.xlu0 %v1506
    %v1508 = vpop.xlane.xlu0 %1507
    %v1511 = vlaneseq
    %v1512 = vshrl.u32 %v1511, 7
    %v1513 = vsub.s32 %v338, %v1512
    %v1514 = vrot.slane %v1491, %v1513
    %v1515 = vlaneseq
    %v1516 = vshrl.u32 %v1515, 7
    %v1517 = vsub.s32 %v338, %v1516
    %v1518 = vrot.slane %v1494, %v1517
    %v1519 = vsel %vm347, %v1518, %v1514
    %v1521 = vsel %vm350, %v1519, -inf
    %1522 = vmax.xlane.f32.xlu0 %v1521
    %v1523 = vpop.xlane.xlu0 %1522
    %v1525 = vlaneseq
    %v1526 = vshrl.u32 %v1525, 7
    %v1527 = vsub.s32 0, %v1526
    %v1528 = vrot.slane %v1523, %v1527
    %v1529 = vlaneseq
    %v1530 = vshrl.u32 %v1529, 7
    %v1531 = vsub.s32 1, %v1530
    %v1532 = vrot.slane %v1523, %v1531
    %v1535 = vsub.f32 %v1491, %v1528
    %v1536 = vsub.f32 %v1494, %v1532
    %v1537 = vmul.f32 %v1535, 1.442695
    %v1538 = vpow.pop %v1537
    %v1539 = vmul.f32 %v1536, 1.442695
    %v1540 = vpow.pop %v1539
    %1543 = vset.pattern.permute.xlu0 0
    %1544 = vperm.xlu0 %1543, %v1538
    %v1545 = vpop.permute.xlu0 %1544
    %1546 = vset.pattern.permute.xlu0 0
    %1547 = vperm.xlu0 %1546, %v1540
    %v1548 = vpop.permute.xlu0 %1547
    %v1549 = vlaneseq
    %v1550 = vshrl.u32 %v1549, 7
    %v1551 = vsub.s32 %v338, %v1550
    %v1552 = vrot.slane %v1545, %v1551
    %v1553 = vlaneseq
    %v1554 = vshrl.u32 %v1553, 7
    %v1555 = vsub.s32 %v338, %v1554
    %v1556 = vrot.slane %v1548, %v1555
    %v1557 = vsel %vm347, %v1556, %v1552
    %v1559 = vsel %vm350, %v1557, 0.0
    %1560 = vadd.xlane.f32.xlu0 %v1559
    %v1561 = vpop.xlane.xlu0 %1560
    %v1562 = vrcp.pop %v1561
    %v1564 = vlaneseq
    %v1565 = vshrl.u32 %v1564, 7
    %v1566 = vsub.s32 0, %v1565
    %v1567 = vrot.slane %v1562, %v1566
    %v1568 = vlaneseq
    %v1569 = vshrl.u32 %v1568, 7
    %v1570 = vsub.s32 1, %v1569
    %v1571 = vrot.slane %v1562, %v1570
    %v1574 = vmul.f32 %v1538, %v1567
    %v1575 = vmul.f32 %v1540, %v1571
    %v1578 = vlaneseq
    %v1579 = vshrl.u32 %v1578, 7
    %v1580 = vsub.s32 %v338, %v1579
    %v1581 = vrot.slane %v1505, %v1580
    %v1582 = vlaneseq
    %v1583 = vshrl.u32 %v1582, 7
    %v1584 = vsub.s32 %v338, %v1583
    %v1585 = vrot.slane %v1508, %v1584
    %v1586 = vsel %vm347, %v1585, %v1581
    %v1588 = vsel %vm350, %v1586, -inf
    %1589 = vmax.xlane.f32.xlu0 %v1588
    %v1590 = vpop.xlane.xlu0 %1589
    %v1592 = vlaneseq
    %v1593 = vshrl.u32 %v1592, 7
    %v1594 = vsub.s32 0, %v1593
    %v1595 = vrot.slane %v1590, %v1594
    %v1596 = vlaneseq
    %v1597 = vshrl.u32 %v1596, 7
    %v1598 = vsub.s32 1, %v1597
    %v1599 = vrot.slane %v1590, %v1598
    %v1602 = vsub.f32 %v1505, %v1595
    %v1603 = vsub.f32 %v1508, %v1599
    %v1604 = vmul.f32 %v1602, 1.442695
    %v1605 = vpow.pop %v1604
    %v1606 = vmul.f32 %v1603, 1.442695
    %v1607 = vpow.pop %v1606
    %1610 = vset.pattern.permute.xlu0 0
    %1611 = vperm.xlu0 %1610, %v1605
    %v1612 = vpop.permute.xlu0 %1611
    %1613 = vset.pattern.permute.xlu0 0
    %1614 = vperm.xlu0 %1613, %v1607
    %v1615 = vpop.permute.xlu0 %1614
    %v1616 = vlaneseq
    %v1617 = vshrl.u32 %v1616, 7
    %v1618 = vsub.s32 %v338, %v1617
    %v1619 = vrot.slane %v1612, %v1618
    %v1620 = vlaneseq
    %v1621 = vshrl.u32 %v1620, 7
    %v1622 = vsub.s32 %v338, %v1621
    %v1623 = vrot.slane %v1615, %v1622
    %v1624 = vsel %vm347, %v1623, %v1619
    %v1626 = vsel %vm350, %v1624, 0.0
    %1627 = vadd.xlane.f32.xlu0 %v1626
    %v1628 = vpop.xlane.xlu0 %1627
    %v1629 = vrcp.pop %v1628
    %v1631 = vlaneseq
    %v1632 = vshrl.u32 %v1631, 7
    %v1633 = vsub.s32 0, %v1632
    %v1634 = vrot.slane %v1629, %v1633
    %v1635 = vlaneseq
    %v1636 = vshrl.u32 %v1635, 7
    %v1637 = vsub.s32 1, %v1636
    %v1638 = vrot.slane %v1629, %v1637
    %v1641 = vmul.f32 %v1605, %v1634
    %v1642 = vmul.f32 %v1607, %v1638
    %1644 = vset.pattern.permute.xlu0 0
    %1645 = vperm.xlu0 %1644, %v1574
    %v1646 = vpop.permute.xlu0 %1645
    %1649 = vset.pattern.permute.xlu0 0
    %1650 = vperm.xlu0 %1649, %v1575
    %v1651 = vpop.permute.xlu0 %1650
    %v1653 = vmul.f32 %v1646, %v151
    %v1654 = vmul.f32 %v1651, %v152
    %v1655 = vsel %vm485, %v1653, 0.0
    %v1656 = vrot.slane %v1655, 4
    %v1657 = vadd.f32 %v1655, %v1656
    %v1658 = vrot.slane %v1657, 2
    %v1659 = vadd.f32 %v1657, %v1658
    %v1660 = vrot.slane %v1659, 1
    %v1661 = vadd.f32 %v1659, %v1660
    %v1662 = vsel %vm485, %v1654, 0.0
    %v1663 = vrot.slane %v1662, 4
    %v1664 = vadd.f32 %v1662, %v1663
    %v1665 = vrot.slane %v1664, 2
    %v1666 = vadd.f32 %v1664, %v1665
    %v1667 = vrot.slane %v1666, 1
    %v1668 = vadd.f32 %v1666, %v1667
    %1670 = vset.pattern.permute.xlu0 0
    %1671 = vperm.xlu0 %1670, %v1641
    %v1672 = vpop.permute.xlu0 %1671
    %1675 = vset.pattern.permute.xlu0 0
    %1676 = vperm.xlu0 %1675, %v1642
    %v1677 = vpop.permute.xlu0 %1676
    %v1679 = vmul.f32 %v1672, %v151
    %v1680 = vmul.f32 %v1677, %v152
    %v1681 = vsel %vm485, %v1679, 0.0
    %v1682 = vrot.slane %v1681, 4
    %v1683 = vadd.f32 %v1681, %v1682
    %v1684 = vrot.slane %v1683, 2
    %v1685 = vadd.f32 %v1683, %v1684
    %v1686 = vrot.slane %v1685, 1
    %v1687 = vadd.f32 %v1685, %v1686
    %v1688 = vsel %vm485, %v1680, 0.0
    %v1689 = vrot.slane %v1688, 4
    %v1690 = vadd.f32 %v1688, %v1689
    %v1691 = vrot.slane %v1690, 2
    %v1692 = vadd.f32 %v1690, %v1691
    %v1693 = vrot.slane %v1692, 1
    %v1694 = vadd.f32 %v1692, %v1693
    %v1697 = vsel %vm347, %v1694, %v1687
    %v1698 = vsel %vm485, %v1697, 0
    %1700 = vmatprep.subr.mxu0 0.0
    %1701 = vmatpush1.msra.mxu0 0.0
    %1702 = vmatprep.subr.mxu0 0.0
    %1703 = vmatpush1.msra.mxu0 0.0
    %1704 = vmatprep.subr.mxu0 0.0
    %1705 = vmatpush1.msra.mxu0 0.0
    %1706 = vmatprep.subr.mxu0 0.0
    %1707 = vmatpush1.msra.mxu0 0.0
    %1708 = vmatprep.subr.mxu0 0.0
    %1709 = vmatpush1.msra.mxu0 0.0
    %1710 = vmatprep.subr.mxu0 0.0
    %1711 = vmatpush1.msra.mxu0 0.0
    %1712 = vmatprep.subr.mxu0 0.0
    %1713 = vmatpush1.msra.mxu0 0.0
    %1714 = vmatprep.subr.mxu0 0.0
    %1715 = vmatpush1.msra.mxu0 0.0
    %1716 = vmatprep.subr.mxu0 0.0
    %1717 = vmatpush1.msra.mxu0 0.0
    %1718 = vmatprep.subr.mxu0 0.0
    %1719 = vmatpush1.msra.mxu0 0.0
    %1720 = vmatprep.subr.mxu0 0.0
    %1721 = vmatpush1.msra.mxu0 0.0
    %1722 = vmatprep.subr.mxu0 0.0
    %1723 = vmatpush1.msra.mxu0 0.0
    %1724 = vmatprep.subr.mxu0 0.0
    %1725 = vmatpush1.msra.mxu0 0.0
    %1726 = vmatprep.subr.mxu0 0.0
    %1727 = vmatpush1.msra.mxu0 0.0
    %1728 = vmatprep.subr.mxu0 %v172
    %1729 = vmatpush1.msra.mxu0 %v171
    %1730 = vmatprep.subr.mxu0 %v170
    %1731 = vmatpush1.msra.mxu0 %v169
    %1732 = vmatprep.subr.mxu0 0.0
    %1733 = vmatpush2.msra.mxu0 0.0
    %1734 = vmatprep.subr.mxu0 0.0
    %1735 = vmatpush2.msra.mxu0 0.0
    %1736 = vmatprep.subr.mxu0 0.0
    %1737 = vmatpush2.msra.mxu0 0.0
    %1738 = vmatprep.subr.mxu0 0.0
    %1739 = vmatpush2.msra.mxu0 0.0
    %1740 = vmatprep.subr.mxu0 0.0
    %1741 = vmatpush2.msra.mxu0 0.0
    %1742 = vmatprep.subr.mxu0 0.0
    %1743 = vmatpush2.msra.mxu0 0.0
    %1744 = vmatprep.subr.mxu0 0.0
    %1745 = vmatpush2.msra.mxu0 0.0
    %1746 = vmatprep.subr.mxu0 0.0
    %1747 = vmatpush2.msra.mxu0 0.0
    %1748 = vmatprep.subr.mxu0 0.0
    %1749 = vmatpush2.msra.mxu0 0.0
    %1750 = vmatprep.subr.mxu0 0.0
    %1751 = vmatpush2.msra.mxu0 0.0
    %1752 = vmatprep.subr.mxu0 0.0
    %1753 = vmatpush2.msra.mxu0 0.0
    %1754 = vmatprep.subr.mxu0 0.0
    %1755 = vmatpush2.msra.mxu0 0.0
    %1756 = vmatprep.subr.mxu0 0.0
    %1757 = vmatpush2.msra.mxu0 0.0
    %1758 = vmatprep.subr.mxu0 0.0
    %1759 = vmatpush2.msra.mxu0 0.0
    %1760 = vmatprep.subr.mxu0 0.0
    %1761 = vmatpush2.msra.mxu0 0.0
    %1762 = vmatprep.subr.mxu0 0.0
    %1763 = vmatpush2.msra.mxu0 0.0
    %1764 = vmatprep.mubr.f32.mxu0 0.0
    %1765 = vmatmul.mubr.f32.gmra.mxu0 %v1698
    %v1766 = vpop.f32.mrf.mxu0
    %v1767 = vadd.f32 0.0, %v1766
    %v1768 = vpop.f32.mrf.mxu0
    %v1769 = vadd.f32 0.0, %v1768
    %1770 = vdwg.mxu0
    %v1773 = vsel %vm347, %v1668, %v1661
    %v1774 = vsel %vm485, %v1773, 0
    %1776 = vmatprep.subr.mxu0 0.0
    %1777 = vmatpush1.msra.mxu0 0.0
    %1778 = vmatprep.subr.mxu0 0.0
    %1779 = vmatpush1.msra.mxu0 0.0
    %1780 = vmatprep.subr.mxu0 0.0
    %1781 = vmatpush1.msra.mxu0 0.0
    %1782 = vmatprep.subr.mxu0 0.0
    %1783 = vmatpush1.msra.mxu0 0.0
    %1784 = vmatprep.subr.mxu0 0.0
    %1785 = vmatpush1.msra.mxu0 0.0
    %1786 = vmatprep.subr.mxu0 0.0
    %1787 = vmatpush1.msra.mxu0 0.0
    %1788 = vmatprep.subr.mxu0 0.0
    %1789 = vmatpush1.msra.mxu0 0.0
    %1790 = vmatprep.subr.mxu0 0.0
    %1791 = vmatpush1.msra.mxu0 0.0
    %1792 = vmatprep.subr.mxu0 0.0
    %1793 = vmatpush1.msra.mxu0 0.0
    %1794 = vmatprep.subr.mxu0 0.0
    %1795 = vmatpush1.msra.mxu0 0.0
    %1796 = vmatprep.subr.mxu0 0.0
    %1797 = vmatpush1.msra.mxu0 0.0
    %1798 = vmatprep.subr.mxu0 0.0
    %1799 = vmatpush1.msra.mxu0 0.0
    %1800 = vmatprep.subr.mxu0 0.0
    %1801 = vmatpush1.msra.mxu0 0.0
    %1802 = vmatprep.subr.mxu0 0.0
    %1803 = vmatpush1.msra.mxu0 0.0
    %1804 = vmatprep.subr.mxu0 %v168
    %1805 = vmatpush1.msra.mxu0 %v167
    %1806 = vmatprep.subr.mxu0 %v166
    %1807 = vmatpush1.msra.mxu0 %v165
    %1808 = vmatprep.subr.mxu0 0.0
    %1809 = vmatpush2.msra.mxu0 0.0
    %1810 = vmatprep.subr.mxu0 0.0
    %1811 = vmatpush2.msra.mxu0 0.0
    %1812 = vmatprep.subr.mxu0 0.0
    %1813 = vmatpush2.msra.mxu0 0.0
    %1814 = vmatprep.subr.mxu0 0.0
    %1815 = vmatpush2.msra.mxu0 0.0
    %1816 = vmatprep.subr.mxu0 0.0
    %1817 = vmatpush2.msra.mxu0 0.0
    %1818 = vmatprep.subr.mxu0 0.0
    %1819 = vmatpush2.msra.mxu0 0.0
    %1820 = vmatprep.subr.mxu0 0.0
    %1821 = vmatpush2.msra.mxu0 0.0
    %1822 = vmatprep.subr.mxu0 0.0
    %1823 = vmatpush2.msra.mxu0 0.0
    %1824 = vmatprep.subr.mxu0 0.0
    %1825 = vmatpush2.msra.mxu0 0.0
    %1826 = vmatprep.subr.mxu0 0.0
    %1827 = vmatpush2.msra.mxu0 0.0
    %1828 = vmatprep.subr.mxu0 0.0
    %1829 = vmatpush2.msra.mxu0 0.0
    %1830 = vmatprep.subr.mxu0 0.0
    %1831 = vmatpush2.msra.mxu0 0.0
    %1832 = vmatprep.subr.mxu0 0.0
    %1833 = vmatpush2.msra.mxu0 0.0
    %1834 = vmatprep.subr.mxu0 0.0
    %1835 = vmatpush2.msra.mxu0 0.0
    %1836 = vmatprep.subr.mxu0 0.0
    %1837 = vmatpush2.msra.mxu0 0.0
    %1838 = vmatprep.subr.mxu0 0.0
    %1839 = vmatpush2.msra.mxu0 0.0
    %1840 = vmatprep.mubr.f32.mxu0 0.0
    %1841 = vmatmul.mubr.f32.gmra.mxu0 %v1774
    %v1842 = vpop.f32.mrf.mxu0
    %v1843 = vadd.f32 %v1767, %v1842
    %v1844 = vpop.f32.mrf.mxu0
    %v1845 = vadd.f32 %v1769, %v1844
    %1846 = vdwg.mxu0
    %1847 = vmatprep.subr.mxu0 0.0
    %1848 = vmatpush1.msra.mxu0 0.0
    %1849 = vmatprep.subr.mxu0 0.0
    %1850 = vmatpush1.msra.mxu0 0.0
    %1851 = vmatprep.subr.mxu0 0.0
    %1852 = vmatpush1.msra.mxu0 0.0
    %1853 = vmatprep.subr.mxu0 0.0
    %1854 = vmatpush1.msra.mxu0 0.0
    %1855 = vmatprep.subr.mxu0 0.0
    %1856 = vmatpush1.msra.mxu0 0.0
    %1857 = vmatprep.subr.mxu0 0.0
    %1858 = vmatpush1.msra.mxu0 0.0
    %1859 = vmatprep.subr.mxu0 0.0
    %1860 = vmatpush1.msra.mxu0 0.0
    %1861 = vmatprep.subr.mxu0 0.0
    %1862 = vmatpush1.msra.mxu0 0.0
    %1863 = vmatprep.subr.mxu0 %v188
    %1864 = vmatpush1.msra.mxu0 %v187
    %1865 = vmatprep.subr.mxu0 %v186
    %1866 = vmatpush1.msra.mxu0 %v185
    %1867 = vmatprep.subr.mxu0 %v184
    %1868 = vmatpush1.msra.mxu0 %v183
    %1869 = vmatprep.subr.mxu0 %v182
    %1870 = vmatpush1.msra.mxu0 %v181
    %1871 = vmatprep.subr.mxu0 %v180
    %1872 = vmatpush1.msra.mxu0 %v179
    %1873 = vmatprep.subr.mxu0 %v178
    %1874 = vmatpush1.msra.mxu0 %v177
    %1875 = vmatprep.subr.mxu0 %v176
    %1876 = vmatpush1.msra.mxu0 %v175
    %1877 = vmatprep.subr.mxu0 %v174
    %1878 = vmatpush1.msra.mxu0 %v173
    %1879 = vmatprep.subr.mxu0 0.0
    %1880 = vmatpush2.msra.mxu0 0.0
    %1881 = vmatprep.subr.mxu0 0.0
    %1882 = vmatpush2.msra.mxu0 0.0
    %1883 = vmatprep.subr.mxu0 0.0
    %1884 = vmatpush2.msra.mxu0 0.0
    %1885 = vmatprep.subr.mxu0 0.0
    %1886 = vmatpush2.msra.mxu0 0.0
    %1887 = vmatprep.subr.mxu0 0.0
    %1888 = vmatpush2.msra.mxu0 0.0
    %1889 = vmatprep.subr.mxu0 0.0
    %1890 = vmatpush2.msra.mxu0 0.0
    %1891 = vmatprep.subr.mxu0 0.0
    %1892 = vmatpush2.msra.mxu0 0.0
    %1893 = vmatprep.subr.mxu0 0.0
    %1894 = vmatpush2.msra.mxu0 0.0
    %1895 = vmatprep.subr.mxu0 0.0
    %1896 = vmatpush2.msra.mxu0 0.0
    %1897 = vmatprep.subr.mxu0 0.0
    %1898 = vmatpush2.msra.mxu0 0.0
    %1899 = vmatprep.subr.mxu0 0.0
    %1900 = vmatpush2.msra.mxu0 0.0
    %1901 = vmatprep.subr.mxu0 0.0
    %1902 = vmatpush2.msra.mxu0 0.0
    %1903 = vmatprep.subr.mxu0 0.0
    %1904 = vmatpush2.msra.mxu0 0.0
    %1905 = vmatprep.subr.mxu0 0.0
    %1906 = vmatpush2.msra.mxu0 0.0
    %1907 = vmatprep.subr.mxu0 0.0
    %1908 = vmatpush2.msra.mxu0 0.0
    %1909 = vmatprep.subr.mxu0 0.0
    %1910 = vmatpush2.msra.mxu0 0.0
    %1911 = vmatprep.mubr.f32.mxu0 0.0
    %1912 = vmatmul.mubr.f32.gmra.mxu0 %v1378
    %v1913 = vpop.f32.mrf.mxu0
    %v1914 = vadd.f32 0.0, %v1913
    %v1915 = vpop.f32.mrf.mxu0
    %v1916 = vadd.f32 0.0, %v1915
    %1917 = vdwg.mxu0
    %v1918 = vadd.f32 %v1843, %v1914
    %v1919 = vadd.f32 %v1845, %v1916
    %s1920 = scalar_lea.vmem [#allocation14], 8
    %v1921 = vld [vmem:[%s1920] sm:$0xf]
    %v1924 = vunpack.c.l.s4 1983009808
    %v1925 = vunpack.c.0.s8 %v1924
    %v1926 = vlaneseq
    %v1927 = vshrl.u32 %v1926, 7
    %v1928 = vsub.s32 %v1925, %v1927
    %v1929 = vrot.slane %v1921, %v1928
    %v1930 = vcombine.high %v1929, %v1929
    %v1933 = vadd.f32 %v1918, %v1929
    %v1934 = vadd.f32 %v1919, %v1930
    %v1935 = vxor.u32 %v1933, 2147483648
    %v1936 = vxor.u32 %v1934, 2147483648
    %v1937 = vmul.f32 %v1935, 1.442695
    %v1938 = vpow.pop %v1937
    %v1939 = vmul.f32 %v1936, 1.442695
    %v1940 = vpow.pop %v1939
    %v1941 = vadd.f32 %v1938, 1.0
    %v1942 = vadd.f32 %v1940, 1.0
    %v1943 = vrcp.pop %v1941
    %v1944 = vmul.f32 1.0, %v1943
    %v1945 = vrcp.pop %v1942
    %v1946 = vmul.f32 1.0, %v1945
    %v1947 = vtanh.pop %v1934
    %v1948 = vmul.f32 %v1944, %v1369
    %v1949 = vmul.f32 %v1944, %v1947
    %1951 = vrot.lane.b32.xlu0 %v1949, 64
    %v1952 = vpop.permute.xlu0 %1951
    %v1954 = vadd.f32 %v1948, %v1952
    %v1955 = vtanh.pop %v1954
    %v1956 = vmul.f32 %v1946, %v1955
    %1958 = vrot.lane.b32.xlu0 %v1956, 64
    %v1959 = vpop.permute.xlu0 %1958
    %s1961 = scalar_lea.vmem [#allocation2], 4
    %1962 = vst.msk [vmem:[%s1961] sm:$0x3] %vm791, %v1959
    %v1963 = vsel %vm195, %v1959, 0
    %1965 = vmatprep.subr.mxu0 0.0
    %1966 = vmatpush1.msra.mxu0 0.0
    %1967 = vmatprep.subr.mxu0 0.0
    %1968 = vmatpush1.msra.mxu0 0.0
    %1969 = vmatprep.subr.mxu0 0.0
    %1970 = vmatpush1.msra.mxu0 0.0
    %1971 = vmatprep.subr.mxu0 0.0
    %1972 = vmatpush1.msra.mxu0 0.0
    %1973 = vmatprep.subr.mxu0 0.0
    %1974 = vmatpush1.msra.mxu0 0.0
    %1975 = vmatprep.subr.mxu0 0.0
    %1976 = vmatpush1.msra.mxu0 0.0
    %1977 = vmatprep.subr.mxu0 0.0
    %1978 = vmatpush1.msra.mxu0 0.0
    %1979 = vmatprep.subr.mxu0 0.0
    %1980 = vmatpush1.msra.mxu0 0.0
    %1981 = vmatprep.subr.mxu0 0.0
    %1982 = vmatpush1.msra.mxu0 %v162
    %1983 = vmatprep.subr.mxu0 0.0
    %1984 = vmatpush1.msra.mxu0 %v161
    %1985 = vmatprep.subr.mxu0 0.0
    %1986 = vmatpush1.msra.mxu0 %v160
    %1987 = vmatprep.subr.mxu0 0.0
    %1988 = vmatpush1.msra.mxu0 %v159
    %1989 = vmatprep.subr.mxu0 0.0
    %1990 = vmatpush1.msra.mxu0 %v158
    %1991 = vmatprep.subr.mxu0 0.0
    %1992 = vmatpush1.msra.mxu0 %v157
    %1993 = vmatprep.subr.mxu0 0.0
    %1994 = vmatpush1.msra.mxu0 %v156
    %1995 = vmatprep.subr.mxu0 0.0
    %1996 = vmatpush1.msra.mxu0 %v155
    %1997 = vmatprep.subr.mxu0 0.0
    %1998 = vmatpush2.msra.mxu0 0.0
    %1999 = vmatprep.subr.mxu0 0.0
    %2000 = vmatpush2.msra.mxu0 0.0
    %2001 = vmatprep.subr.mxu0 0.0
    %2002 = vmatpush2.msra.mxu0 0.0
    %2003 = vmatprep.subr.mxu0 0.0
    %2004 = vmatpush2.msra.mxu0 0.0
    %2005 = vmatprep.subr.mxu0 0.0
    %2006 = vmatpush2.msra.mxu0 0.0
    %2007 = vmatprep.subr.mxu0 0.0
    %2008 = vmatpush2.msra.mxu0 0.0
    %2009 = vmatprep.subr.mxu0 0.0
    %2010 = vmatpush2.msra.mxu0 0.0
    %2011 = vmatprep.subr.mxu0 0.0
    %2012 = vmatpush2.msra.mxu0 0.0
    %2013 = vmatprep.subr.mxu0 0.0
    %2014 = vmatpush2.msra.mxu0 0.0
    %2015 = vmatprep.subr.mxu0 0.0
    %2016 = vmatpush2.msra.mxu0 0.0
    %2017 = vmatprep.subr.mxu0 0.0
    %2018 = vmatpush2.msra.mxu0 0.0
    %2019 = vmatprep.subr.mxu0 0.0
    %2020 = vmatpush2.msra.mxu0 0.0
    %2021 = vmatprep.subr.mxu0 0.0
    %2022 = vmatpush2.msra.mxu0 0.0
    %2023 = vmatprep.subr.mxu0 0.0
    %2024 = vmatpush2.msra.mxu0 0.0
    %2025 = vmatprep.subr.mxu0 0.0
    %2026 = vmatpush2.msra.mxu0 0.0
    %2027 = vmatprep.subr.mxu0 0.0
    %2028 = vmatpush2.msra.mxu0 0.0
    %2029 = vmatprep.mubr.f32.mxu0 0.0
    %2030 = vmatmul.mubr.f32.gmra.mxu0 %v1963
    %v2031 = vpop.f32.mrf.mxu0
    %v2032 = vadd.f32 %v193, %v2031
    %v2033 = vpop.f32.mrf.mxu0
    %2034 = vdwg.mxu0
    %v2037 = vunpack.c.l.s4 1966171168
    %v2038 = vunpack.c.0.s8 %v2037
    %v2039 = vlaneseq
    %v2040 = vshrl.u32 %v2039, 7
    %v2041 = vsub.s32 %v2038, %v2040
    %v2042 = vrot.slane %v2032, %v2041
    %v2043 = vcombine.high %v2042, %v2042
    %v2045 = vunpack.c.l.s4 1966171168
    %v2046 = vunpack.c.0.s8 %v2045
    %v2047 = vlaneseq
    %v2048 = vshrl.u32 %v2047, 7
    %v2049 = vsub.s32 %v2046, %v2048
    %v2050 = vrot.slane %v2042, %v2049
    %v2052 = vunpack.c.l.s4 1966171168
    %v2053 = vunpack.c.0.s8 %v2052
    %v2054 = vlaneseq
    %v2055 = vshrl.u32 %v2054, 7
    %v2056 = vsub.s32 %v2053, %v2055
    %v2057 = vrot.slane %v2043, %v2056
    %v2058 = vlaneseq
    %v2059 = vshrl.u32 %v2058, 7
    %v2060 = vsub.s32 0, %v2059
    %v2061 = vrot.slane %v2050, %v2060
    %v2062 = vlaneseq
    %v2063 = vshrl.u32 %v2062, 7
    %v2064 = vsub.s32 0, %v2063
    %v2065 = vrot.slane %v2057, %v2064
    %v2068 = vadd.f32 %v153, %v2061
    %v2069 = vadd.f32 %v154, %v2065
    %v2070 = vtanh.pop %v2068
    %v2071 = vtanh.pop %v2069
    %v2072 = vmul.f32 %v310, %v2070
    %v2073 = vmul.f32 %v310, %v2071
    %v2074 = vsel %vm314, %v2072, 0.0
    %2075 = vadd.xlane.f32.xlu0 %v2074
    %v2076 = vpop.xlane.xlu0 %2075
    %v2077 = vsel %vm314, %v2073, 0.0
    %2078 = vadd.xlane.f32.xlu0 %v2077
    %v2079 = vpop.xlane.xlu0 %2078
    %2082 = vrot.lane.b32.xlu0 %v2072, 96
    %v2083 = vpop.permute.xlu0 %2082
    %2084 = vrot.lane.b32.xlu0 %v2073, 96
    %v2085 = vpop.permute.xlu0 %2084
    %v2088 = vsel %vm314, %v2083, 0.0
    %2089 = vadd.xlane.f32.xlu0 %v2088
    %v2090 = vpop.xlane.xlu0 %2089
    %v2091 = vsel %vm314, %v2085, 0.0
    %2092 = vadd.xlane.f32.xlu0 %v2091
    %v2093 = vpop.xlane.xlu0 %2092
    %v2096 = vlaneseq
    %v2097 = vshrl.u32 %v2096, 7
    %v2098 = vsub.s32 %v338, %v2097
    %v2099 = vrot.slane %v2076, %v2098
    %v2100 = vlaneseq
    %v2101 = vshrl.u32 %v2100, 7
    %v2102 = vsub.s32 %v338, %v2101
    %v2103 = vrot.slane %v2079, %v2102
    %v2104 = vsel %vm347, %v2103, %v2099
    %v2106 = vsel %vm350, %v2104, -inf
    %2107 = vmax.xlane.f32.xlu0 %v2106
    %v2108 = vpop.xlane.xlu0 %2107
    %v2110 = vlaneseq
    %v2111 = vshrl.u32 %v2110, 7
    %v2112 = vsub.s32 0, %v2111
    %v2113 = vrot.slane %v2108, %v2112
    %v2114 = vlaneseq
    %v2115 = vshrl.u32 %v2114, 7
    %v2116 = vsub.s32 1, %v2115
    %v2117 = vrot.slane %v2108, %v2116
    %v2120 = vsub.f32 %v2076, %v2113
    %v2121 = vsub.f32 %v2079, %v2117
    %v2122 = vmul.f32 %v2120, 1.442695
    %v2123 = vpow.pop %v2122
    %v2124 = vmul.f32 %v2121, 1.442695
    %v2125 = vpow.pop %v2124
    %2128 = vset.pattern.permute.xlu0 0
    %2129 = vperm.xlu0 %2128, %v2123
    %v2130 = vpop.permute.xlu0 %2129
    %2131 = vset.pattern.permute.xlu0 0
    %2132 = vperm.xlu0 %2131, %v2125
    %v2133 = vpop.permute.xlu0 %2132
    %v2134 = vlaneseq
    %v2135 = vshrl.u32 %v2134, 7
    %v2136 = vsub.s32 %v338, %v2135
    %v2137 = vrot.slane %v2130, %v2136
    %v2138 = vlaneseq
    %v2139 = vshrl.u32 %v2138, 7
    %v2140 = vsub.s32 %v338, %v2139
    %v2141 = vrot.slane %v2133, %v2140
    %v2142 = vsel %vm347, %v2141, %v2137
    %v2144 = vsel %vm350, %v2142, 0.0
    %2145 = vadd.xlane.f32.xlu0 %v2144
    %v2146 = vpop.xlane.xlu0 %2145
    %v2147 = vrcp.pop %v2146
    %v2149 = vlaneseq
    %v2150 = vshrl.u32 %v2149, 7
    %v2151 = vsub.s32 0, %v2150
    %v2152 = vrot.slane %v2147, %v2151
    %v2153 = vlaneseq
    %v2154 = vshrl.u32 %v2153, 7
    %v2155 = vsub.s32 1, %v2154
    %v2156 = vrot.slane %v2147, %v2155
    %v2159 = vmul.f32 %v2123, %v2152
    %v2160 = vmul.f32 %v2125, %v2156
    %v2163 = vlaneseq
    %v2164 = vshrl.u32 %v2163, 7
    %v2165 = vsub.s32 %v338, %v2164
    %v2166 = vrot.slane %v2090, %v2165
    %v2167 = vlaneseq
    %v2168 = vshrl.u32 %v2167, 7
    %v2169 = vsub.s32 %v338, %v2168
    %v2170 = vrot.slane %v2093, %v2169
    %v2171 = vsel %vm347, %v2170, %v2166
    %v2173 = vsel %vm350, %v2171, -inf
    %2174 = vmax.xlane.f32.xlu0 %v2173
    %v2175 = vpop.xlane.xlu0 %2174
    %v2177 = vlaneseq
    %v2178 = vshrl.u32 %v2177, 7
    %v2179 = vsub.s32 0, %v2178
    %v2180 = vrot.slane %v2175, %v2179
    %v2181 = vlaneseq
    %v2182 = vshrl.u32 %v2181, 7
    %v2183 = vsub.s32 1, %v2182
    %v2184 = vrot.slane %v2175, %v2183
    %v2187 = vsub.f32 %v2090, %v2180
    %v2188 = vsub.f32 %v2093, %v2184
    %v2189 = vmul.f32 %v2187, 1.442695
    %v2190 = vpow.pop %v2189
    %v2191 = vmul.f32 %v2188, 1.442695
    %v2192 = vpow.pop %v2191
    %2195 = vset.pattern.permute.xlu0 0
    %2196 = vperm.xlu0 %2195, %v2190
    %v2197 = vpop.permute.xlu0 %2196
    %2198 = vset.pattern.permute.xlu0 0
    %2199 = vperm.xlu0 %2198, %v2192
    %v2200 = vpop.permute.xlu0 %2199
    %v2201 = vlaneseq
    %v2202 = vshrl.u32 %v2201, 7
    %v2203 = vsub.s32 %v338, %v2202
    %v2204 = vrot.slane %v2197, %v2203
    %v2205 = vlaneseq
    %v2206 = vshrl.u32 %v2205, 7
    %v2207 = vsub.s32 %v338, %v2206
    %v2208 = vrot.slane %v2200, %v2207
    %v2209 = vsel %vm347, %v2208, %v2204
    %v2211 = vsel %vm350, %v2209, 0.0
    %2212 = vadd.xlane.f32.xlu0 %v2211
    %v2213 = vpop.xlane.xlu0 %2212
    %v2214 = vrcp.pop %v2213
    %v2216 = vlaneseq
    %v2217 = vshrl.u32 %v2216, 7
    %v2218 = vsub.s32 0, %v2217
    %v2219 = vrot.slane %v2214, %v2218
    %v2220 = vlaneseq
    %v2221 = vshrl.u32 %v2220, 7
    %v2222 = vsub.s32 1, %v2221
    %v2223 = vrot.slane %v2214, %v2222
    %v2226 = vmul.f32 %v2190, %v2219
    %v2227 = vmul.f32 %v2192, %v2223
    %2229 = vset.pattern.permute.xlu0 0
    %2230 = vperm.xlu0 %2229, %v2159
    %v2231 = vpop.permute.xlu0 %2230
    %2234 = vset.pattern.permute.xlu0 0
    %2235 = vperm.xlu0 %2234, %v2160
    %v2236 = vpop.permute.xlu0 %2235
    %v2238 = vmul.f32 %v2231, %v151
    %v2239 = vmul.f32 %v2236, %v152
    %v2240 = vsel %vm485, %v2238, 0.0
    %v2241 = vrot.slane %v2240, 4
    %v2242 = vadd.f32 %v2240, %v2241
    %v2243 = vrot.slane %v2242, 2
    %v2244 = vadd.f32 %v2242, %v2243
    %v2245 = vrot.slane %v2244, 1
    %v2246 = vadd.f32 %v2244, %v2245
    %v2247 = vsel %vm485, %v2239, 0.0
    %v2248 = vrot.slane %v2247, 4
    %v2249 = vadd.f32 %v2247, %v2248
    %v2250 = vrot.slane %v2249, 2
    %v2251 = vadd.f32 %v2249, %v2250
    %v2252 = vrot.slane %v2251, 1
    %v2253 = vadd.f32 %v2251, %v2252
    %2255 = vset.pattern.permute.xlu0 0
    %2256 = vperm.xlu0 %2255, %v2226
    %v2257 = vpop.permute.xlu0 %2256
    %2260 = vset.pattern.permute.xlu0 0
    %2261 = vperm.xlu0 %2260, %v2227
    %v2262 = vpop.permute.xlu0 %2261
    %v2264 = vmul.f32 %v2257, %v151
    %v2265 = vmul.f32 %v2262, %v152
    %v2266 = vsel %vm485, %v2264, 0.0
    %v2267 = vrot.slane %v2266, 4
    %v2268 = vadd.f32 %v2266, %v2267
    %v2269 = vrot.slane %v2268, 2
    %v2270 = vadd.f32 %v2268, %v2269
    %v2271 = vrot.slane %v2270, 1
    %v2272 = vadd.f32 %v2270, %v2271
    %v2273 = vsel %vm485, %v2265, 0.0
    %v2274 = vrot.slane %v2273, 4
    %v2275 = vadd.f32 %v2273, %v2274
    %v2276 = vrot.slane %v2275, 2
    %v2277 = vadd.f32 %v2275, %v2276
    %v2278 = vrot.slane %v2277, 1
    %v2279 = vadd.f32 %v2277, %v2278
    %v2282 = vsel %vm347, %v2279, %v2272
    %v2283 = vsel %vm485, %v2282, 0
    %2285 = vmatprep.subr.mxu0 0.0
    %2286 = vmatpush1.msra.mxu0 0.0
    %2287 = vmatprep.subr.mxu0 0.0
    %2288 = vmatpush1.msra.mxu0 0.0
    %2289 = vmatprep.subr.mxu0 0.0
    %2290 = vmatpush1.msra.mxu0 0.0
    %2291 = vmatprep.subr.mxu0 0.0
    %2292 = vmatpush1.msra.mxu0 0.0
    %2293 = vmatprep.subr.mxu0 0.0
    %2294 = vmatpush1.msra.mxu0 0.0
    %2295 = vmatprep.subr.mxu0 0.0
    %2296 = vmatpush1.msra.mxu0 0.0
    %2297 = vmatprep.subr.mxu0 0.0
    %2298 = vmatpush1.msra.mxu0 0.0
    %2299 = vmatprep.subr.mxu0 0.0
    %2300 = vmatpush1.msra.mxu0 0.0
    %2301 = vmatprep.subr.mxu0 0.0
    %2302 = vmatpush1.msra.mxu0 0.0
    %2303 = vmatprep.subr.mxu0 0.0
    %2304 = vmatpush1.msra.mxu0 0.0
    %2305 = vmatprep.subr.mxu0 0.0
    %2306 = vmatpush1.msra.mxu0 0.0
    %2307 = vmatprep.subr.mxu0 0.0
    %2308 = vmatpush1.msra.mxu0 0.0
    %2309 = vmatprep.subr.mxu0 0.0
    %2310 = vmatpush1.msra.mxu0 0.0
    %2311 = vmatprep.subr.mxu0 0.0
    %2312 = vmatpush1.msra.mxu0 0.0
    %2313 = vmatprep.subr.mxu0 %v172
    %2314 = vmatpush1.msra.mxu0 %v171
    %2315 = vmatprep.subr.mxu0 %v170
    %2316 = vmatpush1.msra.mxu0 %v169
    %2317 = vmatprep.subr.mxu0 0.0
    %2318 = vmatpush2.msra.mxu0 0.0
    %2319 = vmatprep.subr.mxu0 0.0
    %2320 = vmatpush2.msra.mxu0 0.0
    %2321 = vmatprep.subr.mxu0 0.0
    %2322 = vmatpush2.msra.mxu0 0.0
    %2323 = vmatprep.subr.mxu0 0.0
    %2324 = vmatpush2.msra.mxu0 0.0
    %2325 = vmatprep.subr.mxu0 0.0
    %2326 = vmatpush2.msra.mxu0 0.0
    %2327 = vmatprep.subr.mxu0 0.0
    %2328 = vmatpush2.msra.mxu0 0.0
    %2329 = vmatprep.subr.mxu0 0.0
    %2330 = vmatpush2.msra.mxu0 0.0
    %2331 = vmatprep.subr.mxu0 0.0
    %2332 = vmatpush2.msra.mxu0 0.0
    %2333 = vmatprep.subr.mxu0 0.0
    %2334 = vmatpush2.msra.mxu0 0.0
    %2335 = vmatprep.subr.mxu0 0.0
    %2336 = vmatpush2.msra.mxu0 0.0
    %2337 = vmatprep.subr.mxu0 0.0
    %2338 = vmatpush2.msra.mxu0 0.0
    %2339 = vmatprep.subr.mxu0 0.0
    %2340 = vmatpush2.msra.mxu0 0.0
    %2341 = vmatprep.subr.mxu0 0.0
    %2342 = vmatpush2.msra.mxu0 0.0
    %2343 = vmatprep.subr.mxu0 0.0
    %2344 = vmatpush2.msra.mxu0 0.0
    %2345 = vmatprep.subr.mxu0 0.0
    %2346 = vmatpush2.msra.mxu0 0.0
    %2347 = vmatprep.subr.mxu0 0.0
    %2348 = vmatpush2.msra.mxu0 0.0
    %2349 = vmatprep.mubr.f32.mxu0 0.0
    %2350 = vmatmul.mubr.f32.gmra.mxu0 %v2283
    %v2351 = vpop.f32.mrf.mxu0
    %v2352 = vadd.f32 0.0, %v2351
    %v2353 = vpop.f32.mrf.mxu0
    %v2354 = vadd.f32 0.0, %v2353
    %2355 = vdwg.mxu0
    %v2358 = vsel %vm347, %v2253, %v2246
    %v2359 = vsel %vm485, %v2358, 0
    %2361 = vmatprep.subr.mxu0 0.0
    %2362 = vmatpush1.msra.mxu0 0.0
    %2363 = vmatprep.subr.mxu0 0.0
    %2364 = vmatpush1.msra.mxu0 0.0
    %2365 = vmatprep.subr.mxu0 0.0
    %2366 = vmatpush1.msra.mxu0 0.0
    %2367 = vmatprep.subr.mxu0 0.0
    %2368 = vmatpush1.msra.mxu0 0.0
    %2369 = vmatprep.subr.mxu0 0.0
    %2370 = vmatpush1.msra.mxu0 0.0
    %2371 = vmatprep.subr.mxu0 0.0
    %2372 = vmatpush1.msra.mxu0 0.0
    %2373 = vmatprep.subr.mxu0 0.0
    %2374 = vmatpush1.msra.mxu0 0.0
    %2375 = vmatprep.subr.mxu0 0.0
    %2376 = vmatpush1.msra.mxu0 0.0
    %2377 = vmatprep.subr.mxu0 0.0
    %2378 = vmatpush1.msra.mxu0 0.0
    %2379 = vmatprep.subr.mxu0 0.0
    %2380 = vmatpush1.msra.mxu0 0.0
    %2381 = vmatprep.subr.mxu0 0.0
    %2382 = vmatpush1.msra.mxu0 0.0
    %2383 = vmatprep.subr.mxu0 0.0
    %2384 = vmatpush1.msra.mxu0 0.0
    %2385 = vmatprep.subr.mxu0 0.0
    %2386 = vmatpush1.msra.mxu0 0.0
    %2387 = vmatprep.subr.mxu0 0.0
    %2388 = vmatpush1.msra.mxu0 0.0
    %2389 = vmatprep.subr.mxu0 %v168
    %2390 = vmatpush1.msra.mxu0 %v167
    %2391 = vmatprep.subr.mxu0 %v166
    %2392 = vmatpush1.msra.mxu0 %v165
    %2393 = vmatprep.subr.mxu0 0.0
    %2394 = vmatpush2.msra.mxu0 0.0
    %2395 = vmatprep.subr.mxu0 0.0
    %2396 = vmatpush2.msra.mxu0 0.0
    %2397 = vmatprep.subr.mxu0 0.0
    %2398 = vmatpush2.msra.mxu0 0.0
    %2399 = vmatprep.subr.mxu0 0.0
    %2400 = vmatpush2.msra.mxu0 0.0
    %2401 = vmatprep.subr.mxu0 0.0
    %2402 = vmatpush2.msra.mxu0 0.0
    %2403 = vmatprep.subr.mxu0 0.0
    %2404 = vmatpush2.msra.mxu0 0.0
    %2405 = vmatprep.subr.mxu0 0.0
    %2406 = vmatpush2.msra.mxu0 0.0
    %2407 = vmatprep.subr.mxu0 0.0
    %2408 = vmatpush2.msra.mxu0 0.0
    %2409 = vmatprep.subr.mxu0 0.0
    %2410 = vmatpush2.msra.mxu0 0.0
    %2411 = vmatprep.subr.mxu0 0.0
    %2412 = vmatpush2.msra.mxu0 0.0
    %2413 = vmatprep.subr.mxu0 0.0
    %2414 = vmatpush2.msra.mxu0 0.0
    %2415 = vmatprep.subr.mxu0 0.0
    %2416 = vmatpush2.msra.mxu0 0.0
    %2417 = vmatprep.subr.mxu0 0.0
    %2418 = vmatpush2.msra.mxu0 0.0
    %2419 = vmatprep.subr.mxu0 0.0
    %2420 = vmatpush2.msra.mxu0 0.0
    %2421 = vmatprep.subr.mxu0 0.0
    %2422 = vmatpush2.msra.mxu0 0.0
    %2423 = vmatprep.subr.mxu0 0.0
    %2424 = vmatpush2.msra.mxu0 0.0
    %2425 = vmatprep.mubr.f32.mxu0 0.0
    %2426 = vmatmul.mubr.f32.gmra.mxu0 %v2359
    %v2427 = vpop.f32.mrf.mxu0
    %v2428 = vadd.f32 %v2352, %v2427
    %v2429 = vpop.f32.mrf.mxu0
    %v2430 = vadd.f32 %v2354, %v2429
    %2431 = vdwg.mxu0
    %2432 = vmatprep.subr.mxu0 0.0
    %2433 = vmatpush1.msra.mxu0 0.0
    %2434 = vmatprep.subr.mxu0 0.0
    %2435 = vmatpush1.msra.mxu0 0.0
    %2436 = vmatprep.subr.mxu0 0.0
    %2437 = vmatpush1.msra.mxu0 0.0
    %2438 = vmatprep.subr.mxu0 0.0
    %2439 = vmatpush1.msra.mxu0 0.0
    %2440 = vmatprep.subr.mxu0 0.0
    %2441 = vmatpush1.msra.mxu0 0.0
    %2442 = vmatprep.subr.mxu0 0.0
    %2443 = vmatpush1.msra.mxu0 0.0
    %2444 = vmatprep.subr.mxu0 0.0
    %2445 = vmatpush1.msra.mxu0 0.0
    %2446 = vmatprep.subr.mxu0 0.0
    %2447 = vmatpush1.msra.mxu0 0.0
    %2448 = vmatprep.subr.mxu0 %v188
    %2449 = vmatpush1.msra.mxu0 %v187
    %2450 = vmatprep.subr.mxu0 %v186
    %2451 = vmatpush1.msra.mxu0 %v185
    %2452 = vmatprep.subr.mxu0 %v184
    %2453 = vmatpush1.msra.mxu0 %v183
    %2454 = vmatprep.subr.mxu0 %v182
    %2455 = vmatpush1.msra.mxu0 %v181
    %2456 = vmatprep.subr.mxu0 %v180
    %2457 = vmatpush1.msra.mxu0 %v179
    %2458 = vmatprep.subr.mxu0 %v178
    %2459 = vmatpush1.msra.mxu0 %v177
    %2460 = vmatprep.subr.mxu0 %v176
    %2461 = vmatpush1.msra.mxu0 %v175
    %2462 = vmatprep.subr.mxu0 %v174
    %2463 = vmatpush1.msra.mxu0 %v173
    %2464 = vmatprep.subr.mxu0 0.0
    %2465 = vmatpush2.msra.mxu0 0.0
    %2466 = vmatprep.subr.mxu0 0.0
    %2467 = vmatpush2.msra.mxu0 0.0
    %2468 = vmatprep.subr.mxu0 0.0
    %2469 = vmatpush2.msra.mxu0 0.0
    %2470 = vmatprep.subr.mxu0 0.0
    %2471 = vmatpush2.msra.mxu0 0.0
    %2472 = vmatprep.subr.mxu0 0.0
    %2473 = vmatpush2.msra.mxu0 0.0
    %2474 = vmatprep.subr.mxu0 0.0
    %2475 = vmatpush2.msra.mxu0 0.0
    %2476 = vmatprep.subr.mxu0 0.0
    %2477 = vmatpush2.msra.mxu0 0.0
    %2478 = vmatprep.subr.mxu0 0.0
    %2479 = vmatpush2.msra.mxu0 0.0
    %2480 = vmatprep.subr.mxu0 0.0
    %2481 = vmatpush2.msra.mxu0 0.0
    %2482 = vmatprep.subr.mxu0 0.0
    %2483 = vmatpush2.msra.mxu0 0.0
    %2484 = vmatprep.subr.mxu0 0.0
    %2485 = vmatpush2.msra.mxu0 0.0
    %2486 = vmatprep.subr.mxu0 0.0
    %2487 = vmatpush2.msra.mxu0 0.0
    %2488 = vmatprep.subr.mxu0 0.0
    %2489 = vmatpush2.msra.mxu0 0.0
    %2490 = vmatprep.subr.mxu0 0.0
    %2491 = vmatpush2.msra.mxu0 0.0
    %2492 = vmatprep.subr.mxu0 0.0
    %2493 = vmatpush2.msra.mxu0 0.0
    %2494 = vmatprep.subr.mxu0 0.0
    %2495 = vmatpush2.msra.mxu0 0.0
    %2496 = vmatprep.mubr.f32.mxu0 0.0
    %2497 = vmatmul.mubr.f32.gmra.mxu0 %v1963
    %v2498 = vpop.f32.mrf.mxu0
    %v2499 = vadd.f32 0.0, %v2498
    %v2500 = vpop.f32.mrf.mxu0
    %v2501 = vadd.f32 0.0, %v2500
    %2502 = vdwg.mxu0
    %v2503 = vadd.f32 %v2428, %v2499
    %v2504 = vadd.f32 %v2430, %v2501
    %s2505 = scalar_lea.vmem [#allocation14], 12
    %v2506 = vld [vmem:[%s2505] sm:$0xf]
    %v2509 = vunpack.c.l.s4 1983009808
    %v2510 = vunpack.c.0.s8 %v2509
    %v2511 = vlaneseq
    %v2512 = vshrl.u32 %v2511, 7
    %v2513 = vsub.s32 %v2510, %v2512
    %v2514 = vrot.slane %v2506, %v2513
    %v2515 = vcombine.high %v2514, %v2514
    %v2518 = vadd.f32 %v2503, %v2514
    %v2519 = vadd.f32 %v2504, %v2515
    %v2520 = vxor.u32 %v2518, 2147483648
    %v2521 = vxor.u32 %v2519, 2147483648
    %v2522 = vmul.f32 %v2520, 1.442695
    %v2523 = vpow.pop %v2522
    %v2524 = vmul.f32 %v2521, 1.442695
    %v2525 = vpow.pop %v2524
    %v2526 = vadd.f32 %v2523, 1.0
    %v2527 = vadd.f32 %v2525, 1.0
    %v2528 = vrcp.pop %v2526
    %v2529 = vmul.f32 1.0, %v2528
    %v2530 = vrcp.pop %v2527
    %v2531 = vmul.f32 1.0, %v2530
    %v2532 = vtanh.pop %v2519
    %v2533 = vmul.f32 %v2529, %v1954
    %v2534 = vmul.f32 %v2529, %v2532
    %2536 = vrot.lane.b32.xlu0 %v2534, 64
    %v2537 = vpop.permute.xlu0 %2536
    %v2539 = vadd.f32 %v2533, %v2537
    %v2540 = vtanh.pop %v2539
    %v2541 = vmul.f32 %v2531, %v2540
    %2543 = vrot.lane.b32.xlu0 %v2541, 64
    %v2544 = vpop.permute.xlu0 %2543
    %s2546 = scalar_lea.vmem [#allocation2], 6
    %2547 = vst.msk [vmem:[%s2546] sm:$0x3] %vm791, %v2544
    %v2548 = vsel %vm195, %v2544, 0
    %2550 = vmatprep.subr.mxu0 0.0
    %2551 = vmatpush1.msra.mxu0 0.0
    %2552 = vmatprep.subr.mxu0 0.0
    %2553 = vmatpush1.msra.mxu0 0.0
    %2554 = vmatprep.subr.mxu0 0.0
    %2555 = vmatpush1.msra.mxu0 0.0
    %2556 = vmatprep.subr.mxu0 0.0
    %2557 = vmatpush1.msra.mxu0 0.0
    %2558 = vmatprep.subr.mxu0 0.0
    %2559 = vmatpush1.msra.mxu0 0.0
    %2560 = vmatprep.subr.mxu0 0.0
    %2561 = vmatpush1.msra.mxu0 0.0
    %2562 = vmatprep.subr.mxu0 0.0
    %2563 = vmatpush1.msra.mxu0 0.0
    %2564 = vmatprep.subr.mxu0 0.0
    %2565 = vmatpush1.msra.mxu0 0.0
    %2566 = vmatprep.subr.mxu0 0.0
    %2567 = vmatpush1.msra.mxu0 %v162
    %2568 = vmatprep.subr.mxu0 0.0
    %2569 = vmatpush1.msra.mxu0 %v161
    %2570 = vmatprep.subr.mxu0 0.0
    %2571 = vmatpush1.msra.mxu0 %v160
    %2572 = vmatprep.subr.mxu0 0.0
    %2573 = vmatpush1.msra.mxu0 %v159
    %2574 = vmatprep.subr.mxu0 0.0
    %2575 = vmatpush1.msra.mxu0 %v158
    %2576 = vmatprep.subr.mxu0 0.0
    %2577 = vmatpush1.msra.mxu0 %v157
    %2578 = vmatprep.subr.mxu0 0.0
    %2579 = vmatpush1.msra.mxu0 %v156
    %2580 = vmatprep.subr.mxu0 0.0
    %2581 = vmatpush1.msra.mxu0 %v155
    %2582 = vmatprep.subr.mxu0 0.0
    %2583 = vmatpush2.msra.mxu0 0.0
    %2584 = vmatprep.subr.mxu0 0.0
    %2585 = vmatpush2.msra.mxu0 0.0
    %2586 = vmatprep.subr.mxu0 0.0
    %2587 = vmatpush2.msra.mxu0 0.0
    %2588 = vmatprep.subr.mxu0 0.0
    %2589 = vmatpush2.msra.mxu0 0.0
    %2590 = vmatprep.subr.mxu0 0.0
    %2591 = vmatpush2.msra.mxu0 0.0
    %2592 = vmatprep.subr.mxu0 0.0
    %2593 = vmatpush2.msra.mxu0 0.0
    %2594 = vmatprep.subr.mxu0 0.0
    %2595 = vmatpush2.msra.mxu0 0.0
    %2596 = vmatprep.subr.mxu0 0.0
    %2597 = vmatpush2.msra.mxu0 0.0
    %2598 = vmatprep.subr.mxu0 0.0
    %2599 = vmatpush2.msra.mxu0 0.0
    %2600 = vmatprep.subr.mxu0 0.0
    %2601 = vmatpush2.msra.mxu0 0.0
    %2602 = vmatprep.subr.mxu0 0.0
    %2603 = vmatpush2.msra.mxu0 0.0
    %2604 = vmatprep.subr.mxu0 0.0
    %2605 = vmatpush2.msra.mxu0 0.0
    %2606 = vmatprep.subr.mxu0 0.0
    %2607 = vmatpush2.msra.mxu0 0.0
    %2608 = vmatprep.subr.mxu0 0.0
    %2609 = vmatpush2.msra.mxu0 0.0
    %2610 = vmatprep.subr.mxu0 0.0
    %2611 = vmatpush2.msra.mxu0 0.0
    %2612 = vmatprep.subr.mxu0 0.0
    %2613 = vmatpush2.msra.mxu0 0.0
    %2614 = vmatprep.mubr.f32.mxu0 0.0
    %2615 = vmatmul.mubr.f32.gmra.mxu0 %v2548
    %v2616 = vpop.f32.mrf.mxu0
    %v2617 = vadd.f32 %v193, %v2616
    %v2618 = vpop.f32.mrf.mxu0
    %2619 = vdwg.mxu0
    %v2622 = vunpack.c.l.s4 1966171168
    %v2623 = vunpack.c.0.s8 %v2622
    %v2624 = vlaneseq
    %v2625 = vshrl.u32 %v2624, 7
    %v2626 = vsub.s32 %v2623, %v2625
    %v2627 = vrot.slane %v2617, %v2626
    %v2628 = vcombine.high %v2627, %v2627
    %v2630 = vunpack.c.l.s4 1966171168
    %v2631 = vunpack.c.0.s8 %v2630
    %v2632 = vlaneseq
    %v2633 = vshrl.u32 %v2632, 7
    %v2634 = vsub.s32 %v2631, %v2633
    %v2635 = vrot.slane %v2627, %v2634
    %v2637 = vunpack.c.l.s4 1966171168
    %v2638 = vunpack.c.0.s8 %v2637
    %v2639 = vlaneseq
    %v2640 = vshrl.u32 %v2639, 7
    %v2641 = vsub.s32 %v2638, %v2640
    %v2642 = vrot.slane %v2628, %v2641
    %v2643 = vlaneseq
    %v2644 = vshrl.u32 %v2643, 7
    %v2645 = vsub.s32 0, %v2644
    %v2646 = vrot.slane %v2635, %v2645
    %v2647 = vlaneseq
    %v2648 = vshrl.u32 %v2647, 7
    %v2649 = vsub.s32 0, %v2648
    %v2650 = vrot.slane %v2642, %v2649
    %v2653 = vadd.f32 %v153, %v2646
    %v2654 = vadd.f32 %v154, %v2650
    %v2655 = vtanh.pop %v2653
    %v2656 = vtanh.pop %v2654
    %v2657 = vmul.f32 %v310, %v2655
    %v2658 = vmul.f32 %v310, %v2656
    %v2659 = vsel %vm314, %v2657, 0.0
    %2660 = vadd.xlane.f32.xlu0 %v2659
    %v2661 = vpop.xlane.xlu0 %2660
    %v2662 = vsel %vm314, %v2658, 0.0
    %2663 = vadd.xlane.f32.xlu0 %v2662
    %v2664 = vpop.xlane.xlu0 %2663
    %2667 = vrot.lane.b32.xlu0 %v2657, 96
    %v2668 = vpop.permute.xlu0 %2667
    %2669 = vrot.lane.b32.xlu0 %v2658, 96
    %v2670 = vpop.permute.xlu0 %2669
    %v2673 = vsel %vm314, %v2668, 0.0
    %2674 = vadd.xlane.f32.xlu0 %v2673
    %v2675 = vpop.xlane.xlu0 %2674
    %v2676 = vsel %vm314, %v2670, 0.0
    %2677 = vadd.xlane.f32.xlu0 %v2676
    %v2678 = vpop.xlane.xlu0 %2677
    %v2681 = vlaneseq
    %v2682 = vshrl.u32 %v2681, 7
    %v2683 = vsub.s32 %v338, %v2682
    %v2684 = vrot.slane %v2661, %v2683
    %v2685 = vlaneseq
    %v2686 = vshrl.u32 %v2685, 7
    %v2687 = vsub.s32 %v338, %v2686
    %v2688 = vrot.slane %v2664, %v2687
    %v2689 = vsel %vm347, %v2688, %v2684
    %v2691 = vsel %vm350, %v2689, -inf
    %2692 = vmax.xlane.f32.xlu0 %v2691
    %v2693 = vpop.xlane.xlu0 %2692
    %v2695 = vlaneseq
    %v2696 = vshrl.u32 %v2695, 7
    %v2697 = vsub.s32 0, %v2696
    %v2698 = vrot.slane %v2693, %v2697
    %v2699 = vlaneseq
    %v2700 = vshrl.u32 %v2699, 7
    %v2701 = vsub.s32 1, %v2700
    %v2702 = vrot.slane %v2693, %v2701
    %v2705 = vsub.f32 %v2661, %v2698
    %v2706 = vsub.f32 %v2664, %v2702
    %v2707 = vmul.f32 %v2705, 1.442695
    %v2708 = vpow.pop %v2707
    %v2709 = vmul.f32 %v2706, 1.442695
    %v2710 = vpow.pop %v2709
    %2713 = vset.pattern.permute.xlu0 0
    %2714 = vperm.xlu0 %2713, %v2708
    %v2715 = vpop.permute.xlu0 %2714
    %2716 = vset.pattern.permute.xlu0 0
    %2717 = vperm.xlu0 %2716, %v2710
    %v2718 = vpop.permute.xlu0 %2717
    %v2719 = vlaneseq
    %v2720 = vshrl.u32 %v2719, 7
    %v2721 = vsub.s32 %v338, %v2720
    %v2722 = vrot.slane %v2715, %v2721
    %v2723 = vlaneseq
    %v2724 = vshrl.u32 %v2723, 7
    %v2725 = vsub.s32 %v338, %v2724
    %v2726 = vrot.slane %v2718, %v2725
    %v2727 = vsel %vm347, %v2726, %v2722
    %v2729 = vsel %vm350, %v2727, 0.0
    %2730 = vadd.xlane.f32.xlu0 %v2729
    %v2731 = vpop.xlane.xlu0 %2730
    %v2732 = vrcp.pop %v2731
    %v2734 = vlaneseq
    %v2735 = vshrl.u32 %v2734, 7
    %v2736 = vsub.s32 0, %v2735
    %v2737 = vrot.slane %v2732, %v2736
    %v2738 = vlaneseq
    %v2739 = vshrl.u32 %v2738, 7
    %v2740 = vsub.s32 1, %v2739
    %v2741 = vrot.slane %v2732, %v2740
    %v2744 = vmul.f32 %v2708, %v2737
    %v2745 = vmul.f32 %v2710, %v2741
    %v2748 = vlaneseq
    %v2749 = vshrl.u32 %v2748, 7
    %v2750 = vsub.s32 %v338, %v2749
    %v2751 = vrot.slane %v2675, %v2750
    %v2752 = vlaneseq
    %v2753 = vshrl.u32 %v2752, 7
    %v2754 = vsub.s32 %v338, %v2753
    %v2755 = vrot.slane %v2678, %v2754
    %v2756 = vsel %vm347, %v2755, %v2751
    %v2758 = vsel %vm350, %v2756, -inf
    %2759 = vmax.xlane.f32.xlu0 %v2758
    %v2760 = vpop.xlane.xlu0 %2759
    %v2762 = vlaneseq
    %v2763 = vshrl.u32 %v2762, 7
    %v2764 = vsub.s32 0, %v2763
    %v2765 = vrot.slane %v2760, %v2764
    %v2766 = vlaneseq
    %v2767 = vshrl.u32 %v2766, 7
    %v2768 = vsub.s32 1, %v2767
    %v2769 = vrot.slane %v2760, %v2768
    %v2772 = vsub.f32 %v2675, %v2765
    %v2773 = vsub.f32 %v2678, %v2769
    %v2774 = vmul.f32 %v2772, 1.442695
    %v2775 = vpow.pop %v2774
    %v2776 = vmul.f32 %v2773, 1.442695
    %v2777 = vpow.pop %v2776
    %2780 = vset.pattern.permute.xlu0 0
    %2781 = vperm.xlu0 %2780, %v2775
    %v2782 = vpop.permute.xlu0 %2781
    %2783 = vset.pattern.permute.xlu0 0
    %2784 = vperm.xlu0 %2783, %v2777
    %v2785 = vpop.permute.xlu0 %2784
    %v2786 = vlaneseq
    %v2787 = vshrl.u32 %v2786, 7
    %v2788 = vsub.s32 %v338, %v2787
    %v2789 = vrot.slane %v2782, %v2788
    %v2790 = vlaneseq
    %v2791 = vshrl.u32 %v2790, 7
    %v2792 = vsub.s32 %v338, %v2791
    %v2793 = vrot.slane %v2785, %v2792
    %v2794 = vsel %vm347, %v2793, %v2789
    %v2796 = vsel %vm350, %v2794, 0.0
    %2797 = vadd.xlane.f32.xlu0 %v2796
    %v2798 = vpop.xlane.xlu0 %2797
    %v2799 = vrcp.pop %v2798
    %v2801 = vlaneseq
    %v2802 = vshrl.u32 %v2801, 7
    %v2803 = vsub.s32 0, %v2802
    %v2804 = vrot.slane %v2799, %v2803
    %v2805 = vlaneseq
    %v2806 = vshrl.u32 %v2805, 7
    %v2807 = vsub.s32 1, %v2806
    %v2808 = vrot.slane %v2799, %v2807
    %v2811 = vmul.f32 %v2775, %v2804
    %v2812 = vmul.f32 %v2777, %v2808
    %2814 = vset.pattern.permute.xlu0 0
    %2815 = vperm.xlu0 %2814, %v2744
    %v2816 = vpop.permute.xlu0 %2815
    %2819 = vset.pattern.permute.xlu0 0
    %2820 = vperm.xlu0 %2819, %v2745
    %v2821 = vpop.permute.xlu0 %2820
    %v2823 = vmul.f32 %v2816, %v151
    %v2824 = vmul.f32 %v2821, %v152
    %v2825 = vsel %vm485, %v2823, 0.0
    %v2826 = vrot.slane %v2825, 4
    %v2827 = vadd.f32 %v2825, %v2826
    %v2828 = vrot.slane %v2827, 2
    %v2829 = vadd.f32 %v2827, %v2828
    %v2830 = vrot.slane %v2829, 1
    %v2831 = vadd.f32 %v2829, %v2830
    %v2832 = vsel %vm485, %v2824, 0.0
    %v2833 = vrot.slane %v2832, 4
    %v2834 = vadd.f32 %v2832, %v2833
    %v2835 = vrot.slane %v2834, 2
    %v2836 = vadd.f32 %v2834, %v2835
    %v2837 = vrot.slane %v2836, 1
    %v2838 = vadd.f32 %v2836, %v2837
    %2840 = vset.pattern.permute.xlu0 0
    %2841 = vperm.xlu0 %2840, %v2811
    %v2842 = vpop.permute.xlu0 %2841
    %2845 = vset.pattern.permute.xlu0 0
    %2846 = vperm.xlu0 %2845, %v2812
    %v2847 = vpop.permute.xlu0 %2846
    %v2849 = vmul.f32 %v2842, %v151
    %v2850 = vmul.f32 %v2847, %v152
    %v2851 = vsel %vm485, %v2849, 0.0
    %v2852 = vrot.slane %v2851, 4
    %v2853 = vadd.f32 %v2851, %v2852
    %v2854 = vrot.slane %v2853, 2
    %v2855 = vadd.f32 %v2853, %v2854
    %v2856 = vrot.slane %v2855, 1
    %v2857 = vadd.f32 %v2855, %v2856
    %v2858 = vsel %vm485, %v2850, 0.0
    %v2859 = vrot.slane %v2858, 4
    %v2860 = vadd.f32 %v2858, %v2859
    %v2861 = vrot.slane %v2860, 2
    %v2862 = vadd.f32 %v2860, %v2861
    %v2863 = vrot.slane %v2862, 1
    %v2864 = vadd.f32 %v2862, %v2863
    %v2867 = vsel %vm347, %v2864, %v2857
    %v2868 = vsel %vm485, %v2867, 0
    %2870 = vmatprep.subr.mxu0 0.0
    %2871 = vmatpush1.msra.mxu0 0.0
    %2872 = vmatprep.subr.mxu0 0.0
    %2873 = vmatpush1.msra.mxu0 0.0
    %2874 = vmatprep.subr.mxu0 0.0
    %2875 = vmatpush1.msra.mxu0 0.0
    %2876 = vmatprep.subr.mxu0 0.0
    %2877 = vmatpush1.msra.mxu0 0.0
    %2878 = vmatprep.subr.mxu0 0.0
    %2879 = vmatpush1.msra.mxu0 0.0
    %2880 = vmatprep.subr.mxu0 0.0
    %2881 = vmatpush1.msra.mxu0 0.0
    %2882 = vmatprep.subr.mxu0 0.0
    %2883 = vmatpush1.msra.mxu0 0.0
    %2884 = vmatprep.subr.mxu0 0.0
    %2885 = vmatpush1.msra.mxu0 0.0
    %2886 = vmatprep.subr.mxu0 0.0
    %2887 = vmatpush1.msra.mxu0 0.0
    %2888 = vmatprep.subr.mxu0 0.0
    %2889 = vmatpush1.msra.mxu0 0.0
    %2890 = vmatprep.subr.mxu0 0.0
    %2891 = vmatpush1.msra.mxu0 0.0
    %2892 = vmatprep.subr.mxu0 0.0
    %2893 = vmatpush1.msra.mxu0 0.0
    %2894 = vmatprep.subr.mxu0 0.0
    %2895 = vmatpush1.msra.mxu0 0.0
    %2896 = vmatprep.subr.mxu0 0.0
    %2897 = vmatpush1.msra.mxu0 0.0
    %2898 = vmatprep.subr.mxu0 %v172
    %2899 = vmatpush1.msra.mxu0 %v171
    %2900 = vmatprep.subr.mxu0 %v170
    %2901 = vmatpush1.msra.mxu0 %v169
    %2902 = vmatprep.subr.mxu0 0.0
    %2903 = vmatpush2.msra.mxu0 0.0
    %2904 = vmatprep.subr.mxu0 0.0
    %2905 = vmatpush2.msra.mxu0 0.0
    %2906 = vmatprep.subr.mxu0 0.0
    %2907 = vmatpush2.msra.mxu0 0.0
    %2908 = vmatprep.subr.mxu0 0.0
    %2909 = vmatpush2.msra.mxu0 0.0
    %2910 = vmatprep.subr.mxu0 0.0
    %2911 = vmatpush2.msra.mxu0 0.0
    %2912 = vmatprep.subr.mxu0 0.0
    %2913 = vmatpush2.msra.mxu0 0.0
    %2914 = vmatprep.subr.mxu0 0.0
    %2915 = vmatpush2.msra.mxu0 0.0
    %2916 = vmatprep.subr.mxu0 0.0
    %2917 = vmatpush2.msra.mxu0 0.0
    %2918 = vmatprep.subr.mxu0 0.0
    %2919 = vmatpush2.msra.mxu0 0.0
    %2920 = vmatprep.subr.mxu0 0.0
    %2921 = vmatpush2.msra.mxu0 0.0
    %2922 = vmatprep.subr.mxu0 0.0
    %2923 = vmatpush2.msra.mxu0 0.0
    %2924 = vmatprep.subr.mxu0 0.0
    %2925 = vmatpush2.msra.mxu0 0.0
    %2926 = vmatprep.subr.mxu0 0.0
    %2927 = vmatpush2.msra.mxu0 0.0
    %2928 = vmatprep.subr.mxu0 0.0
    %2929 = vmatpush2.msra.mxu0 0.0
    %2930 = vmatprep.subr.mxu0 0.0
    %2931 = vmatpush2.msra.mxu0 0.0
    %2932 = vmatprep.subr.mxu0 0.0
    %2933 = vmatpush2.msra.mxu0 0.0
    %2934 = vmatprep.mubr.f32.mxu0 0.0
    %2935 = vmatmul.mubr.f32.gmra.mxu0 %v2868
    %v2936 = vpop.f32.mrf.mxu0
    %v2937 = vadd.f32 0.0, %v2936
    %v2938 = vpop.f32.mrf.mxu0
    %v2939 = vadd.f32 0.0, %v2938
    %2940 = vdwg.mxu0
    %v2943 = vsel %vm347, %v2838, %v2831
    %v2944 = vsel %vm485, %v2943, 0
    %2946 = vmatprep.subr.mxu0 0.0
    %2947 = vmatpush1.msra.mxu0 0.0
    %2948 = vmatprep.subr.mxu0 0.0
    %2949 = vmatpush1.msra.mxu0 0.0
    %2950 = vmatprep.subr.mxu0 0.0
    %2951 = vmatpush1.msra.mxu0 0.0
    %2952 = vmatprep.subr.mxu0 0.0
    %2953 = vmatpush1.msra.mxu0 0.0
    %2954 = vmatprep.subr.mxu0 0.0
    %2955 = vmatpush1.msra.mxu0 0.0
    %2956 = vmatprep.subr.mxu0 0.0
    %2957 = vmatpush1.msra.mxu0 0.0
    %2958 = vmatprep.subr.mxu0 0.0
    %2959 = vmatpush1.msra.mxu0 0.0
    %2960 = vmatprep.subr.mxu0 0.0
    %2961 = vmatpush1.msra.mxu0 0.0
    %2962 = vmatprep.subr.mxu0 0.0
    %2963 = vmatpush1.msra.mxu0 0.0
    %2964 = vmatprep.subr.mxu0 0.0
    %2965 = vmatpush1.msra.mxu0 0.0
    %2966 = vmatprep.subr.mxu0 0.0
    %2967 = vmatpush1.msra.mxu0 0.0
    %2968 = vmatprep.subr.mxu0 0.0
    %2969 = vmatpush1.msra.mxu0 0.0
    %2970 = vmatprep.subr.mxu0 0.0
    %2971 = vmatpush1.msra.mxu0 0.0
    %2972 = vmatprep.subr.mxu0 0.0
    %2973 = vmatpush1.msra.mxu0 0.0
    %2974 = vmatprep.subr.mxu0 %v168
    %2975 = vmatpush1.msra.mxu0 %v167
    %2976 = vmatprep.subr.mxu0 %v166
    %2977 = vmatpush1.msra.mxu0 %v165
    %2978 = vmatprep.subr.mxu0 0.0
    %2979 = vmatpush2.msra.mxu0 0.0
    %2980 = vmatprep.subr.mxu0 0.0
    %2981 = vmatpush2.msra.mxu0 0.0
    %2982 = vmatprep.subr.mxu0 0.0
    %2983 = vmatpush2.msra.mxu0 0.0
    %2984 = vmatprep.subr.mxu0 0.0
    %2985 = vmatpush2.msra.mxu0 0.0
    %2986 = vmatprep.subr.mxu0 0.0
    %2987 = vmatpush2.msra.mxu0 0.0
    %2988 = vmatprep.subr.mxu0 0.0
    %2989 = vmatpush2.msra.mxu0 0.0
    %2990 = vmatprep.subr.mxu0 0.0
    %2991 = vmatpush2.msra.mxu0 0.0
    %2992 = vmatprep.subr.mxu0 0.0
    %2993 = vmatpush2.msra.mxu0 0.0
    %2994 = vmatprep.subr.mxu0 0.0
    %2995 = vmatpush2.msra.mxu0 0.0
    %2996 = vmatprep.subr.mxu0 0.0
    %2997 = vmatpush2.msra.mxu0 0.0
    %2998 = vmatprep.subr.mxu0 0.0
    %2999 = vmatpush2.msra.mxu0 0.0
    %3000 = vmatprep.subr.mxu0 0.0
    %3001 = vmatpush2.msra.mxu0 0.0
    %3002 = vmatprep.subr.mxu0 0.0
    %3003 = vmatpush2.msra.mxu0 0.0
    %3004 = vmatprep.subr.mxu0 0.0
    %3005 = vmatpush2.msra.mxu0 0.0
    %3006 = vmatprep.subr.mxu0 0.0
    %3007 = vmatpush2.msra.mxu0 0.0
    %3008 = vmatprep.subr.mxu0 0.0
    %3009 = vmatpush2.msra.mxu0 0.0
    %3010 = vmatprep.mubr.f32.mxu0 0.0
    %3011 = vmatmul.mubr.f32.gmra.mxu0 %v2944
    %v3012 = vpop.f32.mrf.mxu0
    %v3013 = vadd.f32 %v2937, %v3012
    %v3014 = vpop.f32.mrf.mxu0
    %v3015 = vadd.f32 %v2939, %v3014
    %3016 = vdwg.mxu0
    %3017 = vmatprep.subr.mxu0 0.0
    %3018 = vmatpush1.msra.mxu0 0.0
    %3019 = vmatprep.subr.mxu0 0.0
    %3020 = vmatpush1.msra.mxu0 0.0
    %3021 = vmatprep.subr.mxu0 0.0
    %3022 = vmatpush1.msra.mxu0 0.0
    %3023 = vmatprep.subr.mxu0 0.0
    %3024 = vmatpush1.msra.mxu0 0.0
    %3025 = vmatprep.subr.mxu0 0.0
    %3026 = vmatpush1.msra.mxu0 0.0
    %3027 = vmatprep.subr.mxu0 0.0
    %3028 = vmatpush1.msra.mxu0 0.0
    %3029 = vmatprep.subr.mxu0 0.0
    %3030 = vmatpush1.msra.mxu0 0.0
    %3031 = vmatprep.subr.mxu0 0.0
    %3032 = vmatpush1.msra.mxu0 0.0
    %3033 = vmatprep.subr.mxu0 %v188
    %3034 = vmatpush1.msra.mxu0 %v187
    %3035 = vmatprep.subr.mxu0 %v186
    %3036 = vmatpush1.msra.mxu0 %v185
    %3037 = vmatprep.subr.mxu0 %v184
    %3038 = vmatpush1.msra.mxu0 %v183
    %3039 = vmatprep.subr.mxu0 %v182
    %3040 = vmatpush1.msra.mxu0 %v181
    %3041 = vmatprep.subr.mxu0 %v180
    %3042 = vmatpush1.msra.mxu0 %v179
    %3043 = vmatprep.subr.mxu0 %v178
    %3044 = vmatpush1.msra.mxu0 %v177
    %3045 = vmatprep.subr.mxu0 %v176
    %3046 = vmatpush1.msra.mxu0 %v175
    %3047 = vmatprep.subr.mxu0 %v174
    %3048 = vmatpush1.msra.mxu0 %v173
    %3049 = vmatprep.subr.mxu0 0.0
    %3050 = vmatpush2.msra.mxu0 0.0
    %3051 = vmatprep.subr.mxu0 0.0
    %3052 = vmatpush2.msra.mxu0 0.0
    %3053 = vmatprep.subr.mxu0 0.0
    %3054 = vmatpush2.msra.mxu0 0.0
    %3055 = vmatprep.subr.mxu0 0.0
    %3056 = vmatpush2.msra.mxu0 0.0
    %3057 = vmatprep.subr.mxu0 0.0
    %3058 = vmatpush2.msra.mxu0 0.0
    %3059 = vmatprep.subr.mxu0 0.0
    %3060 = vmatpush2.msra.mxu0 0.0
    %3061 = vmatprep.subr.mxu0 0.0
    %3062 = vmatpush2.msra.mxu0 0.0
    %3063 = vmatprep.subr.mxu0 0.0
    %3064 = vmatpush2.msra.mxu0 0.0
    %3065 = vmatprep.subr.mxu0 0.0
    %3066 = vmatpush2.msra.mxu0 0.0
    %3067 = vmatprep.subr.mxu0 0.0
    %3068 = vmatpush2.msra.mxu0 0.0
    %3069 = vmatprep.subr.mxu0 0.0
    %3070 = vmatpush2.msra.mxu0 0.0
    %3071 = vmatprep.subr.mxu0 0.0
    %3072 = vmatpush2.msra.mxu0 0.0
    %3073 = vmatprep.subr.mxu0 0.0
    %3074 = vmatpush2.msra.mxu0 0.0
    %3075 = vmatprep.subr.mxu0 0.0
    %3076 = vmatpush2.msra.mxu0 0.0
    %3077 = vmatprep.subr.mxu0 0.0
    %3078 = vmatpush2.msra.mxu0 0.0
    %3079 = vmatprep.subr.mxu0 0.0
    %3080 = vmatpush2.msra.mxu0 0.0
    %3081 = vmatprep.mubr.f32.mxu0 0.0
    %3082 = vmatmul.mubr.f32.gmra.mxu0 %v2548
    %v3083 = vpop.f32.mrf.mxu0
    %v3084 = vadd.f32 0.0, %v3083
    %v3085 = vpop.f32.mrf.mxu0
    %v3086 = vadd.f32 0.0, %v3085
    %3087 = vdwg.mxu0
    %v3088 = vadd.f32 %v3013, %v3084
    %v3089 = vadd.f32 %v3015, %v3086
    %s3090 = scalar_lea.vmem [#allocation14], 16
    %v3091 = vld [vmem:[%s3090] sm:$0xf]
    %v3094 = vunpack.c.l.s4 1983009808
    %v3095 = vunpack.c.0.s8 %v3094
    %v3096 = vlaneseq
    %v3097 = vshrl.u32 %v3096, 7
    %v3098 = vsub.s32 %v3095, %v3097
    %v3099 = vrot.slane %v3091, %v3098
    %v3100 = vcombine.high %v3099, %v3099
    %v3103 = vadd.f32 %v3088, %v3099
    %v3104 = vadd.f32 %v3089, %v3100
    %v3105 = vxor.u32 %v3103, 2147483648
    %v3106 = vxor.u32 %v3104, 2147483648
    %v3107 = vmul.f32 %v3105, 1.442695
    %v3108 = vpow.pop %v3107
    %v3109 = vmul.f32 %v3106, 1.442695
    %v3110 = vpow.pop %v3109
    %v3111 = vadd.f32 %v3108, 1.0
    %v3112 = vadd.f32 %v3110, 1.0
    %v3113 = vrcp.pop %v3111
    %v3114 = vmul.f32 1.0, %v3113
    %v3115 = vrcp.pop %v3112
    %v3116 = vmul.f32 1.0, %v3115
    %v3117 = vtanh.pop %v3104
    %v3118 = vmul.f32 %v3114, %v2539
    %v3119 = vmul.f32 %v3114, %v3117
    %3121 = vrot.lane.b32.xlu0 %v3119, 64
    %v3122 = vpop.permute.xlu0 %3121
    %v3124 = vadd.f32 %v3118, %v3122
    %v3125 = vtanh.pop %v3124
    %v3126 = vmul.f32 %v3116, %v3125
    %3128 = vrot.lane.b32.xlu0 %v3126, 64
    %v3129 = vpop.permute.xlu0 %3128
    %s3131 = scalar_lea.vmem [#allocation2], 8
    %3132 = vst.msk [vmem:[%s3131] sm:$0x3] %vm791, %v3129
    %v3133 = vsel %vm195, %v3129, 0
    %3135 = vmatprep.subr.mxu0 0.0
    %3136 = vmatpush1.msra.mxu0 0.0
    %3137 = vmatprep.subr.mxu0 0.0
    %3138 = vmatpush1.msra.mxu0 0.0
    %3139 = vmatprep.subr.mxu0 0.0
    %3140 = vmatpush1.msra.mxu0 0.0
    %3141 = vmatprep.subr.mxu0 0.0
    %3142 = vmatpush1.msra.mxu0 0.0
    %3143 = vmatprep.subr.mxu0 0.0
    %3144 = vmatpush1.msra.mxu0 0.0
    %3145 = vmatprep.subr.mxu0 0.0
    %3146 = vmatpush1.msra.mxu0 0.0
    %3147 = vmatprep.subr.mxu0 0.0
    %3148 = vmatpush1.msra.mxu0 0.0
    %3149 = vmatprep.subr.mxu0 0.0
    %3150 = vmatpush1.msra.mxu0 0.0
    %3151 = vmatprep.subr.mxu0 0.0
    %3152 = vmatpush1.msra.mxu0 %v162
    %3153 = vmatprep.subr.mxu0 0.0
    %3154 = vmatpush1.msra.mxu0 %v161
    %3155 = vmatprep.subr.mxu0 0.0
    %3156 = vmatpush1.msra.mxu0 %v160
    %3157 = vmatprep.subr.mxu0 0.0
    %3158 = vmatpush1.msra.mxu0 %v159
    %3159 = vmatprep.subr.mxu0 0.0
    %3160 = vmatpush1.msra.mxu0 %v158
    %3161 = vmatprep.subr.mxu0 0.0
    %3162 = vmatpush1.msra.mxu0 %v157
    %3163 = vmatprep.subr.mxu0 0.0
    %3164 = vmatpush1.msra.mxu0 %v156
    %3165 = vmatprep.subr.mxu0 0.0
    %3166 = vmatpush1.msra.mxu0 %v155
    %3167 = vmatprep.subr.mxu0 0.0
    %3168 = vmatpush2.msra.mxu0 0.0
    %3169 = vmatprep.subr.mxu0 0.0
    %3170 = vmatpush2.msra.mxu0 0.0
    %3171 = vmatprep.subr.mxu0 0.0
    %3172 = vmatpush2.msra.mxu0 0.0
    %3173 = vmatprep.subr.mxu0 0.0
    %3174 = vmatpush2.msra.mxu0 0.0
    %3175 = vmatprep.subr.mxu0 0.0
    %3176 = vmatpush2.msra.mxu0 0.0
    %3177 = vmatprep.subr.mxu0 0.0
    %3178 = vmatpush2.msra.mxu0 0.0
    %3179 = vmatprep.subr.mxu0 0.0
    %3180 = vmatpush2.msra.mxu0 0.0
    %3181 = vmatprep.subr.mxu0 0.0
    %3182 = vmatpush2.msra.mxu0 0.0
    %3183 = vmatprep.subr.mxu0 0.0
    %3184 = vmatpush2.msra.mxu0 0.0
    %3185 = vmatprep.subr.mxu0 0.0
    %3186 = vmatpush2.msra.mxu0 0.0
    %3187 = vmatprep.subr.mxu0 0.0
    %3188 = vmatpush2.msra.mxu0 0.0
    %3189 = vmatprep.subr.mxu0 0.0
    %3190 = vmatpush2.msra.mxu0 0.0
    %3191 = vmatprep.subr.mxu0 0.0
    %3192 = vmatpush2.msra.mxu0 0.0
    %3193 = vmatprep.subr.mxu0 0.0
    %3194 = vmatpush2.msra.mxu0 0.0
    %3195 = vmatprep.subr.mxu0 0.0
    %3196 = vmatpush2.msra.mxu0 0.0
    %3197 = vmatprep.subr.mxu0 0.0
    %3198 = vmatpush2.msra.mxu0 0.0
    %3199 = vmatprep.mubr.f32.mxu0 0.0
    %3200 = vmatmul.mubr.f32.gmra.mxu0 %v3133
    %v3201 = vpop.f32.mrf.mxu0
    %v3202 = vadd.f32 %v193, %v3201
    %v3203 = vpop.f32.mrf.mxu0
    %3204 = vdwg.mxu0
    %v3207 = vunpack.c.l.s4 1966171168
    %v3208 = vunpack.c.0.s8 %v3207
    %v3209 = vlaneseq
    %v3210 = vshrl.u32 %v3209, 7
    %v3211 = vsub.s32 %v3208, %v3210
    %v3212 = vrot.slane %v3202, %v3211
    %v3213 = vcombine.high %v3212, %v3212
    %v3215 = vunpack.c.l.s4 1966171168
    %v3216 = vunpack.c.0.s8 %v3215
    %v3217 = vlaneseq
    %v3218 = vshrl.u32 %v3217, 7
    %v3219 = vsub.s32 %v3216, %v3218
    %v3220 = vrot.slane %v3212, %v3219
    %v3222 = vunpack.c.l.s4 1966171168
    %v3223 = vunpack.c.0.s8 %v3222
    %v3224 = vlaneseq
    %v3225 = vshrl.u32 %v3224, 7
    %v3226 = vsub.s32 %v3223, %v3225
    %v3227 = vrot.slane %v3213, %v3226
    %v3228 = vlaneseq
    %v3229 = vshrl.u32 %v3228, 7
    %v3230 = vsub.s32 0, %v3229
    %v3231 = vrot.slane %v3220, %v3230
    %v3232 = vlaneseq
    %v3233 = vshrl.u32 %v3232, 7
    %v3234 = vsub.s32 0, %v3233
    %v3235 = vrot.slane %v3227, %v3234
    %v3238 = vadd.f32 %v153, %v3231
    %v3239 = vadd.f32 %v154, %v3235
    %v3240 = vtanh.pop %v3238
    %v3241 = vtanh.pop %v3239
    %v3242 = vmul.f32 %v310, %v3240
    %v3243 = vmul.f32 %v310, %v3241
    %v3244 = vsel %vm314, %v3242, 0.0
    %3245 = vadd.xlane.f32.xlu0 %v3244
    %v3246 = vpop.xlane.xlu0 %3245
    %v3247 = vsel %vm314, %v3243, 0.0
    %3248 = vadd.xlane.f32.xlu0 %v3247
    %v3249 = vpop.xlane.xlu0 %3248
    %3252 = vrot.lane.b32.xlu0 %v3242, 96
    %v3253 = vpop.permute.xlu0 %3252
    %3254 = vrot.lane.b32.xlu0 %v3243, 96
    %v3255 = vpop.permute.xlu0 %3254
    %v3258 = vsel %vm314, %v3253, 0.0
    %3259 = vadd.xlane.f32.xlu0 %v3258
    %v3260 = vpop.xlane.xlu0 %3259
    %v3261 = vsel %vm314, %v3255, 0.0
    %3262 = vadd.xlane.f32.xlu0 %v3261
    %v3263 = vpop.xlane.xlu0 %3262
    %v3266 = vlaneseq
    %v3267 = vshrl.u32 %v3266, 7
    %v3268 = vsub.s32 %v338, %v3267
    %v3269 = vrot.slane %v3246, %v3268
    %v3270 = vlaneseq
    %v3271 = vshrl.u32 %v3270, 7
    %v3272 = vsub.s32 %v338, %v3271
    %v3273 = vrot.slane %v3249, %v3272
    %v3274 = vsel %vm347, %v3273, %v3269
    %v3276 = vsel %vm350, %v3274, -inf
    %3277 = vmax.xlane.f32.xlu0 %v3276
    %v3278 = vpop.xlane.xlu0 %3277
    %v3280 = vlaneseq
    %v3281 = vshrl.u32 %v3280, 7
    %v3282 = vsub.s32 0, %v3281
    %v3283 = vrot.slane %v3278, %v3282
    %v3284 = vlaneseq
    %v3285 = vshrl.u32 %v3284, 7
    %v3286 = vsub.s32 1, %v3285
    %v3287 = vrot.slane %v3278, %v3286
    %v3290 = vsub.f32 %v3246, %v3283
    %v3291 = vsub.f32 %v3249, %v3287
    %v3292 = vmul.f32 %v3290, 1.442695
    %v3293 = vpow.pop %v3292
    %v3294 = vmul.f32 %v3291, 1.442695
    %v3295 = vpow.pop %v3294
    %3298 = vset.pattern.permute.xlu0 0
    %3299 = vperm.xlu0 %3298, %v3293
    %v3300 = vpop.permute.xlu0 %3299
    %3301 = vset.pattern.permute.xlu0 0
    %3302 = vperm.xlu0 %3301, %v3295
    %v3303 = vpop.permute.xlu0 %3302
    %v3304 = vlaneseq
    %v3305 = vshrl.u32 %v3304, 7
    %v3306 = vsub.s32 %v338, %v3305
    %v3307 = vrot.slane %v3300, %v3306
    %v3308 = vlaneseq
    %v3309 = vshrl.u32 %v3308, 7
    %v3310 = vsub.s32 %v338, %v3309
    %v3311 = vrot.slane %v3303, %v3310
    %v3312 = vsel %vm347, %v3311, %v3307
    %v3314 = vsel %vm350, %v3312, 0.0
    %3315 = vadd.xlane.f32.xlu0 %v3314
    %v3316 = vpop.xlane.xlu0 %3315
    %v3317 = vrcp.pop %v3316
    %v3319 = vlaneseq
    %v3320 = vshrl.u32 %v3319, 7
    %v3321 = vsub.s32 0, %v3320
    %v3322 = vrot.slane %v3317, %v3321
    %v3323 = vlaneseq
    %v3324 = vshrl.u32 %v3323, 7
    %v3325 = vsub.s32 1, %v3324
    %v3326 = vrot.slane %v3317, %v3325
    %v3329 = vmul.f32 %v3293, %v3322
    %v3330 = vmul.f32 %v3295, %v3326
    %v3333 = vlaneseq
    %v3334 = vshrl.u32 %v3333, 7
    %v3335 = vsub.s32 %v338, %v3334
    %v3336 = vrot.slane %v3260, %v3335
    %v3337 = vlaneseq
    %v3338 = vshrl.u32 %v3337, 7
    %v3339 = vsub.s32 %v338, %v3338
    %v3340 = vrot.slane %v3263, %v3339
    %v3341 = vsel %vm347, %v3340, %v3336
    %v3343 = vsel %vm350, %v3341, -inf
    %3344 = vmax.xlane.f32.xlu0 %v3343
    %v3345 = vpop.xlane.xlu0 %3344
    %v3347 = vlaneseq
    %v3348 = vshrl.u32 %v3347, 7
    %v3349 = vsub.s32 0, %v3348
    %v3350 = vrot.slane %v3345, %v3349
    %v3351 = vlaneseq
    %v3352 = vshrl.u32 %v3351, 7
    %v3353 = vsub.s32 1, %v3352
    %v3354 = vrot.slane %v3345, %v3353
    %v3357 = vsub.f32 %v3260, %v3350
    %v3358 = vsub.f32 %v3263, %v3354
    %v3359 = vmul.f32 %v3357, 1.442695
    %v3360 = vpow.pop %v3359
    %v3361 = vmul.f32 %v3358, 1.442695
    %v3362 = vpow.pop %v3361
    %3365 = vset.pattern.permute.xlu0 0
    %3366 = vperm.xlu0 %3365, %v3360
    %v3367 = vpop.permute.xlu0 %3366
    %3368 = vset.pattern.permute.xlu0 0
    %3369 = vperm.xlu0 %3368, %v3362
    %v3370 = vpop.permute.xlu0 %3369
    %v3371 = vlaneseq
    %v3372 = vshrl.u32 %v3371, 7
    %v3373 = vsub.s32 %v338, %v3372
    %v3374 = vrot.slane %v3367, %v3373
    %v3375 = vlaneseq
    %v3376 = vshrl.u32 %v3375, 7
    %v3377 = vsub.s32 %v338, %v3376
    %v3378 = vrot.slane %v3370, %v3377
    %v3379 = vsel %vm347, %v3378, %v3374
    %v3381 = vsel %vm350, %v3379, 0.0
    %3382 = vadd.xlane.f32.xlu0 %v3381
    %v3383 = vpop.xlane.xlu0 %3382
    %v3384 = vrcp.pop %v3383
    %v3386 = vlaneseq
    %v3387 = vshrl.u32 %v3386, 7
    %v3388 = vsub.s32 0, %v3387
    %v3389 = vrot.slane %v3384, %v3388
    %v3390 = vlaneseq
    %v3391 = vshrl.u32 %v3390, 7
    %v3392 = vsub.s32 1, %v3391
    %v3393 = vrot.slane %v3384, %v3392
    %v3396 = vmul.f32 %v3360, %v3389
    %v3397 = vmul.f32 %v3362, %v3393
    %3399 = vset.pattern.permute.xlu0 0
    %3400 = vperm.xlu0 %3399, %v3329
    %v3401 = vpop.permute.xlu0 %3400
    %3404 = vset.pattern.permute.xlu0 0
    %3405 = vperm.xlu0 %3404, %v3330
    %v3406 = vpop.permute.xlu0 %3405
    %v3408 = vmul.f32 %v3401, %v151
    %v3409 = vmul.f32 %v3406, %v152
    %v3410 = vsel %vm485, %v3408, 0.0
    %v3411 = vrot.slane %v3410, 4
    %v3412 = vadd.f32 %v3410, %v3411
    %v3413 = vrot.slane %v3412, 2
    %v3414 = vadd.f32 %v3412, %v3413
    %v3415 = vrot.slane %v3414, 1
    %v3416 = vadd.f32 %v3414, %v3415
    %v3417 = vsel %vm485, %v3409, 0.0
    %v3418 = vrot.slane %v3417, 4
    %v3419 = vadd.f32 %v3417, %v3418
    %v3420 = vrot.slane %v3419, 2
    %v3421 = vadd.f32 %v3419, %v3420
    %v3422 = vrot.slane %v3421, 1
    %v3423 = vadd.f32 %v3421, %v3422
    %3425 = vset.pattern.permute.xlu0 0
    %3426 = vperm.xlu0 %3425, %v3396
    %v3427 = vpop.permute.xlu0 %3426
    %3430 = vset.pattern.permute.xlu0 0
    %3431 = vperm.xlu0 %3430, %v3397
    %v3432 = vpop.permute.xlu0 %3431
    %v3434 = vmul.f32 %v3427, %v151
    %v3435 = vmul.f32 %v3432, %v152
    %v3436 = vsel %vm485, %v3434, 0.0
    %v3437 = vrot.slane %v3436, 4
    %v3438 = vadd.f32 %v3436, %v3437
    %v3439 = vrot.slane %v3438, 2
    %v3440 = vadd.f32 %v3438, %v3439
    %v3441 = vrot.slane %v3440, 1
    %v3442 = vadd.f32 %v3440, %v3441
    %v3443 = vsel %vm485, %v3435, 0.0
    %v3444 = vrot.slane %v3443, 4
    %v3445 = vadd.f32 %v3443, %v3444
    %v3446 = vrot.slane %v3445, 2
    %v3447 = vadd.f32 %v3445, %v3446
    %v3448 = vrot.slane %v3447, 1
    %v3449 = vadd.f32 %v3447, %v3448
    %v3452 = vsel %vm347, %v3449, %v3442
    %v3453 = vsel %vm485, %v3452, 0
    %3455 = vmatprep.subr.mxu0 0.0
    %3456 = vmatpush1.msra.mxu0 0.0
    %3457 = vmatprep.subr.mxu0 0.0
    %3458 = vmatpush1.msra.mxu0 0.0
    %3459 = vmatprep.subr.mxu0 0.0
    %3460 = vmatpush1.msra.mxu0 0.0
    %3461 = vmatprep.subr.mxu0 0.0
    %3462 = vmatpush1.msra.mxu0 0.0
    %3463 = vmatprep.subr.mxu0 0.0
    %3464 = vmatpush1.msra.mxu0 0.0
    %3465 = vmatprep.subr.mxu0 0.0
    %3466 = vmatpush1.msra.mxu0 0.0
    %3467 = vmatprep.subr.mxu0 0.0
    %3468 = vmatpush1.msra.mxu0 0.0
    %3469 = vmatprep.subr.mxu0 0.0
    %3470 = vmatpush1.msra.mxu0 0.0
    %3471 = vmatprep.subr.mxu0 0.0
    %3472 = vmatpush1.msra.mxu0 0.0
    %3473 = vmatprep.subr.mxu0 0.0
    %3474 = vmatpush1.msra.mxu0 0.0
    %3475 = vmatprep.subr.mxu0 0.0
    %3476 = vmatpush1.msra.mxu0 0.0
    %3477 = vmatprep.subr.mxu0 0.0
    %3478 = vmatpush1.msra.mxu0 0.0
    %3479 = vmatprep.subr.mxu0 0.0
    %3480 = vmatpush1.msra.mxu0 0.0
    %3481 = vmatprep.subr.mxu0 0.0
    %3482 = vmatpush1.msra.mxu0 0.0
    %3483 = vmatprep.subr.mxu0 %v172
    %3484 = vmatpush1.msra.mxu0 %v171
    %3485 = vmatprep.subr.mxu0 %v170
    %3486 = vmatpush1.msra.mxu0 %v169
    %3487 = vmatprep.subr.mxu0 0.0
    %3488 = vmatpush2.msra.mxu0 0.0
    %3489 = vmatprep.subr.mxu0 0.0
    %3490 = vmatpush2.msra.mxu0 0.0
    %3491 = vmatprep.subr.mxu0 0.0
    %3492 = vmatpush2.msra.mxu0 0.0
    %3493 = vmatprep.subr.mxu0 0.0
    %3494 = vmatpush2.msra.mxu0 0.0
    %3495 = vmatprep.subr.mxu0 0.0
    %3496 = vmatpush2.msra.mxu0 0.0
    %3497 = vmatprep.subr.mxu0 0.0
    %3498 = vmatpush2.msra.mxu0 0.0
    %3499 = vmatprep.subr.mxu0 0.0
    %3500 = vmatpush2.msra.mxu0 0.0
    %3501 = vmatprep.subr.mxu0 0.0
    %3502 = vmatpush2.msra.mxu0 0.0
    %3503 = vmatprep.subr.mxu0 0.0
    %3504 = vmatpush2.msra.mxu0 0.0
    %3505 = vmatprep.subr.mxu0 0.0
    %3506 = vmatpush2.msra.mxu0 0.0
    %3507 = vmatprep.subr.mxu0 0.0
    %3508 = vmatpush2.msra.mxu0 0.0
    %3509 = vmatprep.subr.mxu0 0.0
    %3510 = vmatpush2.msra.mxu0 0.0
    %3511 = vmatprep.subr.mxu0 0.0
    %3512 = vmatpush2.msra.mxu0 0.0
    %3513 = vmatprep.subr.mxu0 0.0
    %3514 = vmatpush2.msra.mxu0 0.0
    %3515 = vmatprep.subr.mxu0 0.0
    %3516 = vmatpush2.msra.mxu0 0.0
    %3517 = vmatprep.subr.mxu0 0.0
    %3518 = vmatpush2.msra.mxu0 0.0
    %3519 = vmatprep.mubr.f32.mxu0 0.0
    %3520 = vmatmul.mubr.f32.gmra.mxu0 %v3453
    %v3521 = vpop.f32.mrf.mxu0
    %v3522 = vadd.f32 0.0, %v3521
    %v3523 = vpop.f32.mrf.mxu0
    %v3524 = vadd.f32 0.0, %v3523
    %3525 = vdwg.mxu0
    %v3528 = vsel %vm347, %v3423, %v3416
    %v3529 = vsel %vm485, %v3528, 0
    %3531 = vmatprep.subr.mxu0 0.0
    %3532 = vmatpush1.msra.mxu0 0.0
    %3533 = vmatprep.subr.mxu0 0.0
    %3534 = vmatpush1.msra.mxu0 0.0
    %3535 = vmatprep.subr.mxu0 0.0
    %3536 = vmatpush1.msra.mxu0 0.0
    %3537 = vmatprep.subr.mxu0 0.0
    %3538 = vmatpush1.msra.mxu0 0.0
    %3539 = vmatprep.subr.mxu0 0.0
    %3540 = vmatpush1.msra.mxu0 0.0
    %3541 = vmatprep.subr.mxu0 0.0
    %3542 = vmatpush1.msra.mxu0 0.0
    %3543 = vmatprep.subr.mxu0 0.0
    %3544 = vmatpush1.msra.mxu0 0.0
    %3545 = vmatprep.subr.mxu0 0.0
    %3546 = vmatpush1.msra.mxu0 0.0
    %3547 = vmatprep.subr.mxu0 0.0
    %3548 = vmatpush1.msra.mxu0 0.0
    %3549 = vmatprep.subr.mxu0 0.0
    %3550 = vmatpush1.msra.mxu0 0.0
    %3551 = vmatprep.subr.mxu0 0.0
    %3552 = vmatpush1.msra.mxu0 0.0
    %3553 = vmatprep.subr.mxu0 0.0
    %3554 = vmatpush1.msra.mxu0 0.0
    %3555 = vmatprep.subr.mxu0 0.0
    %3556 = vmatpush1.msra.mxu0 0.0
    %3557 = vmatprep.subr.mxu0 0.0
    %3558 = vmatpush1.msra.mxu0 0.0
    %3559 = vmatprep.subr.mxu0 %v168
    %3560 = vmatpush1.msra.mxu0 %v167
    %3561 = vmatprep.subr.mxu0 %v166
    %3562 = vmatpush1.msra.mxu0 %v165
    %3563 = vmatprep.subr.mxu0 0.0
    %3564 = vmatpush2.msra.mxu0 0.0
    %3565 = vmatprep.subr.mxu0 0.0
    %3566 = vmatpush2.msra.mxu0 0.0
    %3567 = vmatprep.subr.mxu0 0.0
    %3568 = vmatpush2.msra.mxu0 0.0
    %3569 = vmatprep.subr.mxu0 0.0
    %3570 = vmatpush2.msra.mxu0 0.0
    %3571 = vmatprep.subr.mxu0 0.0
    %3572 = vmatpush2.msra.mxu0 0.0
    %3573 = vmatprep.subr.mxu0 0.0
    %3574 = vmatpush2.msra.mxu0 0.0
    %3575 = vmatprep.subr.mxu0 0.0
    %3576 = vmatpush2.msra.mxu0 0.0
    %3577 = vmatprep.subr.mxu0 0.0
    %3578 = vmatpush2.msra.mxu0 0.0
    %3579 = vmatprep.subr.mxu0 0.0
    %3580 = vmatpush2.msra.mxu0 0.0
    %3581 = vmatprep.subr.mxu0 0.0
    %3582 = vmatpush2.msra.mxu0 0.0
    %3583 = vmatprep.subr.mxu0 0.0
    %3584 = vmatpush2.msra.mxu0 0.0
    %3585 = vmatprep.subr.mxu0 0.0
    %3586 = vmatpush2.msra.mxu0 0.0
    %3587 = vmatprep.subr.mxu0 0.0
    %3588 = vmatpush2.msra.mxu0 0.0
    %3589 = vmatprep.subr.mxu0 0.0
    %3590 = vmatpush2.msra.mxu0 0.0
    %3591 = vmatprep.subr.mxu0 0.0
    %3592 = vmatpush2.msra.mxu0 0.0
    %3593 = vmatprep.subr.mxu0 0.0
    %3594 = vmatpush2.msra.mxu0 0.0
    %3595 = vmatprep.mubr.f32.mxu0 0.0
    %3596 = vmatmul.mubr.f32.gmra.mxu0 %v3529
    %v3597 = vpop.f32.mrf.mxu0
    %v3598 = vadd.f32 %v3522, %v3597
    %v3599 = vpop.f32.mrf.mxu0
    %v3600 = vadd.f32 %v3524, %v3599
    %3601 = vdwg.mxu0
    %3602 = vmatprep.subr.mxu0 0.0
    %3603 = vmatpush1.msra.mxu0 0.0
    %3604 = vmatprep.subr.mxu0 0.0
    %3605 = vmatpush1.msra.mxu0 0.0
    %3606 = vmatprep.subr.mxu0 0.0
    %3607 = vmatpush1.msra.mxu0 0.0
    %3608 = vmatprep.subr.mxu0 0.0
    %3609 = vmatpush1.msra.mxu0 0.0
    %3610 = vmatprep.subr.mxu0 0.0
    %3611 = vmatpush1.msra.mxu0 0.0
    %3612 = vmatprep.subr.mxu0 0.0
    %3613 = vmatpush1.msra.mxu0 0.0
    %3614 = vmatprep.subr.mxu0 0.0
    %3615 = vmatpush1.msra.mxu0 0.0
    %3616 = vmatprep.subr.mxu0 0.0
    %3617 = vmatpush1.msra.mxu0 0.0
    %3618 = vmatprep.subr.mxu0 %v188
    %3619 = vmatpush1.msra.mxu0 %v187
    %3620 = vmatprep.subr.mxu0 %v186
    %3621 = vmatpush1.msra.mxu0 %v185
    %3622 = vmatprep.subr.mxu0 %v184
    %3623 = vmatpush1.msra.mxu0 %v183
    %3624 = vmatprep.subr.mxu0 %v182
    %3625 = vmatpush1.msra.mxu0 %v181
    %3626 = vmatprep.subr.mxu0 %v180
    %3627 = vmatpush1.msra.mxu0 %v179
    %3628 = vmatprep.subr.mxu0 %v178
    %3629 = vmatpush1.msra.mxu0 %v177
    %3630 = vmatprep.subr.mxu0 %v176
    %3631 = vmatpush1.msra.mxu0 %v175
    %3632 = vmatprep.subr.mxu0 %v174
    %3633 = vmatpush1.msra.mxu0 %v173
    %3634 = vmatprep.subr.mxu0 0.0
    %3635 = vmatpush2.msra.mxu0 0.0
    %3636 = vmatprep.subr.mxu0 0.0
    %3637 = vmatpush2.msra.mxu0 0.0
    %3638 = vmatprep.subr.mxu0 0.0
    %3639 = vmatpush2.msra.mxu0 0.0
    %3640 = vmatprep.subr.mxu0 0.0
    %3641 = vmatpush2.msra.mxu0 0.0
    %3642 = vmatprep.subr.mxu0 0.0
    %3643 = vmatpush2.msra.mxu0 0.0
    %3644 = vmatprep.subr.mxu0 0.0
    %3645 = vmatpush2.msra.mxu0 0.0
    %3646 = vmatprep.subr.mxu0 0.0
    %3647 = vmatpush2.msra.mxu0 0.0
    %3648 = vmatprep.subr.mxu0 0.0
    %3649 = vmatpush2.msra.mxu0 0.0
    %3650 = vmatprep.subr.mxu0 0.0
    %3651 = vmatpush2.msra.mxu0 0.0
    %3652 = vmatprep.subr.mxu0 0.0
    %3653 = vmatpush2.msra.mxu0 0.0
    %3654 = vmatprep.subr.mxu0 0.0
    %3655 = vmatpush2.msra.mxu0 0.0
    %3656 = vmatprep.subr.mxu0 0.0
    %3657 = vmatpush2.msra.mxu0 0.0
    %3658 = vmatprep.subr.mxu0 0.0
    %3659 = vmatpush2.msra.mxu0 0.0
    %3660 = vmatprep.subr.mxu0 0.0
    %3661 = vmatpush2.msra.mxu0 0.0
    %3662 = vmatprep.subr.mxu0 0.0
    %3663 = vmatpush2.msra.mxu0 0.0
    %3664 = vmatprep.subr.mxu0 0.0
    %3665 = vmatpush2.msra.mxu0 0.0
    %3666 = vmatprep.mubr.f32.mxu0 0.0
    %3667 = vmatmul.mubr.f32.gmra.mxu0 %v3133
    %v3668 = vpop.f32.mrf.mxu0
    %v3669 = vadd.f32 0.0, %v3668
    %v3670 = vpop.f32.mrf.mxu0
    %v3671 = vadd.f32 0.0, %v3670
    %3672 = vdwg.mxu0
    %v3673 = vadd.f32 %v3598, %v3669
    %v3674 = vadd.f32 %v3600, %v3671
    %s3675 = scalar_lea.vmem [#allocation14], 20
    %v3676 = vld [vmem:[%s3675] sm:$0xf]
    %v3679 = vunpack.c.l.s4 1983009808
    %v3680 = vunpack.c.0.s8 %v3679
    %v3681 = vlaneseq
    %v3682 = vshrl.u32 %v3681, 7
    %v3683 = vsub.s32 %v3680, %v3682
    %v3684 = vrot.slane %v3676, %v3683
    %v3685 = vcombine.high %v3684, %v3684
    %v3688 = vadd.f32 %v3673, %v3684
    %v3689 = vadd.f32 %v3674, %v3685
    %v3690 = vxor.u32 %v3688, 2147483648
    %v3691 = vxor.u32 %v3689, 2147483648
    %v3692 = vmul.f32 %v3690, 1.442695
    %v3693 = vpow.pop %v3692
    %v3694 = vmul.f32 %v3691, 1.442695
    %v3695 = vpow.pop %v3694
    %v3696 = vadd.f32 %v3693, 1.0
    %v3697 = vadd.f32 %v3695, 1.0
    %v3698 = vrcp.pop %v3696
    %v3699 = vmul.f32 1.0, %v3698
    %v3700 = vrcp.pop %v3697
    %v3701 = vmul.f32 1.0, %v3700
    %v3702 = vtanh.pop %v3689
    %v3703 = vmul.f32 %v3699, %v3124
    %v3704 = vmul.f32 %v3699, %v3702
    %3706 = vrot.lane.b32.xlu0 %v3704, 64
    %v3707 = vpop.permute.xlu0 %3706
    %v3709 = vadd.f32 %v3703, %v3707
    %v3710 = vtanh.pop %v3709
    %v3711 = vmul.f32 %v3701, %v3710
    %3713 = vrot.lane.b32.xlu0 %v3711, 64
    %v3714 = vpop.permute.xlu0 %3713
    %s3716 = scalar_lea.vmem [#allocation2], 10
    %3717 = vst.msk [vmem:[%s3716] sm:$0x3] %vm791, %v3714
    %v3718 = vsel %vm195, %v3714, 0
    %3720 = vmatprep.subr.mxu0 0.0
    %3721 = vmatpush1.msra.mxu0 0.0
    %3722 = vmatprep.subr.mxu0 0.0
    %3723 = vmatpush1.msra.mxu0 0.0
    %3724 = vmatprep.subr.mxu0 0.0
    %3725 = vmatpush1.msra.mxu0 0.0
    %3726 = vmatprep.subr.mxu0 0.0
    %3727 = vmatpush1.msra.mxu0 0.0
    %3728 = vmatprep.subr.mxu0 0.0
    %3729 = vmatpush1.msra.mxu0 0.0
    %3730 = vmatprep.subr.mxu0 0.0
    %3731 = vmatpush1.msra.mxu0 0.0
    %3732 = vmatprep.subr.mxu0 0.0
    %3733 = vmatpush1.msra.mxu0 0.0
    %3734 = vmatprep.subr.mxu0 0.0
    %3735 = vmatpush1.msra.mxu0 0.0
    %3736 = vmatprep.subr.mxu0 0.0
    %3737 = vmatpush1.msra.mxu0 %v162
    %3738 = vmatprep.subr.mxu0 0.0
    %3739 = vmatpush1.msra.mxu0 %v161
    %3740 = vmatprep.subr.mxu0 0.0
    %3741 = vmatpush1.msra.mxu0 %v160
    %3742 = vmatprep.subr.mxu0 0.0
    %3743 = vmatpush1.msra.mxu0 %v159
    %3744 = vmatprep.subr.mxu0 0.0
    %3745 = vmatpush1.msra.mxu0 %v158
    %3746 = vmatprep.subr.mxu0 0.0
    %3747 = vmatpush1.msra.mxu0 %v157
    %3748 = vmatprep.subr.mxu0 0.0
    %3749 = vmatpush1.msra.mxu0 %v156
    %3750 = vmatprep.subr.mxu0 0.0
    %3751 = vmatpush1.msra.mxu0 %v155
    %3752 = vmatprep.subr.mxu0 0.0
    %3753 = vmatpush2.msra.mxu0 0.0
    %3754 = vmatprep.subr.mxu0 0.0
    %3755 = vmatpush2.msra.mxu0 0.0
    %3756 = vmatprep.subr.mxu0 0.0
    %3757 = vmatpush2.msra.mxu0 0.0
    %3758 = vmatprep.subr.mxu0 0.0
    %3759 = vmatpush2.msra.mxu0 0.0
    %3760 = vmatprep.subr.mxu0 0.0
    %3761 = vmatpush2.msra.mxu0 0.0
    %3762 = vmatprep.subr.mxu0 0.0
    %3763 = vmatpush2.msra.mxu0 0.0
    %3764 = vmatprep.subr.mxu0 0.0
    %3765 = vmatpush2.msra.mxu0 0.0
    %3766 = vmatprep.subr.mxu0 0.0
    %3767 = vmatpush2.msra.mxu0 0.0
    %3768 = vmatprep.subr.mxu0 0.0
    %3769 = vmatpush2.msra.mxu0 0.0
    %3770 = vmatprep.subr.mxu0 0.0
    %3771 = vmatpush2.msra.mxu0 0.0
    %3772 = vmatprep.subr.mxu0 0.0
    %3773 = vmatpush2.msra.mxu0 0.0
    %3774 = vmatprep.subr.mxu0 0.0
    %3775 = vmatpush2.msra.mxu0 0.0
    %3776 = vmatprep.subr.mxu0 0.0
    %3777 = vmatpush2.msra.mxu0 0.0
    %3778 = vmatprep.subr.mxu0 0.0
    %3779 = vmatpush2.msra.mxu0 0.0
    %3780 = vmatprep.subr.mxu0 0.0
    %3781 = vmatpush2.msra.mxu0 0.0
    %3782 = vmatprep.subr.mxu0 0.0
    %3783 = vmatpush2.msra.mxu0 0.0
    %3784 = vmatprep.mubr.f32.mxu0 0.0
    %3785 = vmatmul.mubr.f32.gmra.mxu0 %v3718
    %v3786 = vpop.f32.mrf.mxu0
    %v3787 = vadd.f32 %v193, %v3786
    %v3788 = vpop.f32.mrf.mxu0
    %3789 = vdwg.mxu0
    %v3792 = vunpack.c.l.s4 1966171168
    %v3793 = vunpack.c.0.s8 %v3792
    %v3794 = vlaneseq
    %v3795 = vshrl.u32 %v3794, 7
    %v3796 = vsub.s32 %v3793, %v3795
    %v3797 = vrot.slane %v3787, %v3796
    %v3798 = vcombine.high %v3797, %v3797
    %v3800 = vunpack.c.l.s4 1966171168
    %v3801 = vunpack.c.0.s8 %v3800
    %v3802 = vlaneseq
    %v3803 = vshrl.u32 %v3802, 7
    %v3804 = vsub.s32 %v3801, %v3803
    %v3805 = vrot.slane %v3797, %v3804
    %v3807 = vunpack.c.l.s4 1966171168
    %v3808 = vunpack.c.0.s8 %v3807
    %v3809 = vlaneseq
    %v3810 = vshrl.u32 %v3809, 7
    %v3811 = vsub.s32 %v3808, %v3810
    %v3812 = vrot.slane %v3798, %v3811
    %v3813 = vlaneseq
    %v3814 = vshrl.u32 %v3813, 7
    %v3815 = vsub.s32 0, %v3814
    %v3816 = vrot.slane %v3805, %v3815
    %v3817 = vlaneseq
    %v3818 = vshrl.u32 %v3817, 7
    %v3819 = vsub.s32 0, %v3818
    %v3820 = vrot.slane %v3812, %v3819
    %v3823 = vadd.f32 %v153, %v3816
    %v3824 = vadd.f32 %v154, %v3820
    %v3825 = vtanh.pop %v3823
    %v3826 = vtanh.pop %v3824
    %v3827 = vmul.f32 %v310, %v3825
    %v3828 = vmul.f32 %v310, %v3826
    %v3829 = vsel %vm314, %v3827, 0.0
    %3830 = vadd.xlane.f32.xlu0 %v3829
    %v3831 = vpop.xlane.xlu0 %3830
    %v3832 = vsel %vm314, %v3828, 0.0
    %3833 = vadd.xlane.f32.xlu0 %v3832
    %v3834 = vpop.xlane.xlu0 %3833
    %3837 = vrot.lane.b32.xlu0 %v3827, 96
    %v3838 = vpop.permute.xlu0 %3837
    %3839 = vrot.lane.b32.xlu0 %v3828, 96
    %v3840 = vpop.permute.xlu0 %3839
    %v3843 = vsel %vm314, %v3838, 0.0
    %3844 = vadd.xlane.f32.xlu0 %v3843
    %v3845 = vpop.xlane.xlu0 %3844
    %v3846 = vsel %vm314, %v3840, 0.0
    %3847 = vadd.xlane.f32.xlu0 %v3846
    %v3848 = vpop.xlane.xlu0 %3847
    %v3851 = vlaneseq
    %v3852 = vshrl.u32 %v3851, 7
    %v3853 = vsub.s32 %v338, %v3852
    %v3854 = vrot.slane %v3831, %v3853
    %v3855 = vlaneseq
    %v3856 = vshrl.u32 %v3855, 7
    %v3857 = vsub.s32 %v338, %v3856
    %v3858 = vrot.slane %v3834, %v3857
    %v3859 = vsel %vm347, %v3858, %v3854
    %v3861 = vsel %vm350, %v3859, -inf
    %3862 = vmax.xlane.f32.xlu0 %v3861
    %v3863 = vpop.xlane.xlu0 %3862
    %v3865 = vlaneseq
    %v3866 = vshrl.u32 %v3865, 7
    %v3867 = vsub.s32 0, %v3866
    %v3868 = vrot.slane %v3863, %v3867
    %v3869 = vlaneseq
    %v3870 = vshrl.u32 %v3869, 7
    %v3871 = vsub.s32 1, %v3870
    %v3872 = vrot.slane %v3863, %v3871
    %v3875 = vsub.f32 %v3831, %v3868
    %v3876 = vsub.f32 %v3834, %v3872
    %v3877 = vmul.f32 %v3875, 1.442695
    %v3878 = vpow.pop %v3877
    %v3879 = vmul.f32 %v3876, 1.442695
    %v3880 = vpow.pop %v3879
    %3883 = vset.pattern.permute.xlu0 0
    %3884 = vperm.xlu0 %3883, %v3878
    %v3885 = vpop.permute.xlu0 %3884
    %3886 = vset.pattern.permute.xlu0 0
    %3887 = vperm.xlu0 %3886, %v3880
    %v3888 = vpop.permute.xlu0 %3887
    %v3889 = vlaneseq
    %v3890 = vshrl.u32 %v3889, 7
    %v3891 = vsub.s32 %v338, %v3890
    %v3892 = vrot.slane %v3885, %v3891
    %v3893 = vlaneseq
    %v3894 = vshrl.u32 %v3893, 7
    %v3895 = vsub.s32 %v338, %v3894
    %v3896 = vrot.slane %v3888, %v3895
    %v3897 = vsel %vm347, %v3896, %v3892
    %v3899 = vsel %vm350, %v3897, 0.0
    %3900 = vadd.xlane.f32.xlu0 %v3899
    %v3901 = vpop.xlane.xlu0 %3900
    %v3902 = vrcp.pop %v3901
    %v3904 = vlaneseq
    %v3905 = vshrl.u32 %v3904, 7
    %v3906 = vsub.s32 0, %v3905
    %v3907 = vrot.slane %v3902, %v3906
    %v3908 = vlaneseq
    %v3909 = vshrl.u32 %v3908, 7
    %v3910 = vsub.s32 1, %v3909
    %v3911 = vrot.slane %v3902, %v3910
    %v3914 = vmul.f32 %v3878, %v3907
    %v3915 = vmul.f32 %v3880, %v3911
    %v3918 = vlaneseq
    %v3919 = vshrl.u32 %v3918, 7
    %v3920 = vsub.s32 %v338, %v3919
    %v3921 = vrot.slane %v3845, %v3920
    %v3922 = vlaneseq
    %v3923 = vshrl.u32 %v3922, 7
    %v3924 = vsub.s32 %v338, %v3923
    %v3925 = vrot.slane %v3848, %v3924
    %v3926 = vsel %vm347, %v3925, %v3921
    %v3928 = vsel %vm350, %v3926, -inf
    %3929 = vmax.xlane.f32.xlu0 %v3928
    %v3930 = vpop.xlane.xlu0 %3929
    %v3932 = vlaneseq
    %v3933 = vshrl.u32 %v3932, 7
    %v3934 = vsub.s32 0, %v3933
    %v3935 = vrot.slane %v3930, %v3934
    %v3936 = vlaneseq
    %v3937 = vshrl.u32 %v3936, 7
    %v3938 = vsub.s32 1, %v3937
    %v3939 = vrot.slane %v3930, %v3938
    %v3942 = vsub.f32 %v3845, %v3935
    %v3943 = vsub.f32 %v3848, %v3939
    %v3944 = vmul.f32 %v3942, 1.442695
    %v3945 = vpow.pop %v3944
    %v3946 = vmul.f32 %v3943, 1.442695
    %v3947 = vpow.pop %v3946
    %3950 = vset.pattern.permute.xlu0 0
    %3951 = vperm.xlu0 %3950, %v3945
    %v3952 = vpop.permute.xlu0 %3951
    %3953 = vset.pattern.permute.xlu0 0
    %3954 = vperm.xlu0 %3953, %v3947
    %v3955 = vpop.permute.xlu0 %3954
    %v3956 = vlaneseq
    %v3957 = vshrl.u32 %v3956, 7
    %v3958 = vsub.s32 %v338, %v3957
    %v3959 = vrot.slane %v3952, %v3958
    %v3960 = vlaneseq
    %v3961 = vshrl.u32 %v3960, 7
    %v3962 = vsub.s32 %v338, %v3961
    %v3963 = vrot.slane %v3955, %v3962
    %v3964 = vsel %vm347, %v3963, %v3959
    %v3966 = vsel %vm350, %v3964, 0.0
    %3967 = vadd.xlane.f32.xlu0 %v3966
    %v3968 = vpop.xlane.xlu0 %3967
    %v3969 = vrcp.pop %v3968
    %v3971 = vlaneseq
    %v3972 = vshrl.u32 %v3971, 7
    %v3973 = vsub.s32 0, %v3972
    %v3974 = vrot.slane %v3969, %v3973
    %v3975 = vlaneseq
    %v3976 = vshrl.u32 %v3975, 7
    %v3977 = vsub.s32 1, %v3976
    %v3978 = vrot.slane %v3969, %v3977
    %v3981 = vmul.f32 %v3945, %v3974
    %v3982 = vmul.f32 %v3947, %v3978
    %3984 = vset.pattern.permute.xlu0 0
    %3985 = vperm.xlu0 %3984, %v3914
    %v3986 = vpop.permute.xlu0 %3985
    %3989 = vset.pattern.permute.xlu0 0
    %3990 = vperm.xlu0 %3989, %v3915
    %v3991 = vpop.permute.xlu0 %3990
    %v3993 = vmul.f32 %v3986, %v151
    %v3994 = vmul.f32 %v3991, %v152
    %v3995 = vsel %vm485, %v3993, 0.0
    %v3996 = vrot.slane %v3995, 4
    %v3997 = vadd.f32 %v3995, %v3996
    %v3998 = vrot.slane %v3997, 2
    %v3999 = vadd.f32 %v3997, %v3998
    %v4000 = vrot.slane %v3999, 1
    %v4001 = vadd.f32 %v3999, %v4000
    %v4002 = vsel %vm485, %v3994, 0.0
    %v4003 = vrot.slane %v4002, 4
    %v4004 = vadd.f32 %v4002, %v4003
    %v4005 = vrot.slane %v4004, 2
    %v4006 = vadd.f32 %v4004, %v4005
    %v4007 = vrot.slane %v4006, 1
    %v4008 = vadd.f32 %v4006, %v4007
    %4010 = vset.pattern.permute.xlu0 0
    %4011 = vperm.xlu0 %4010, %v3981
    %v4012 = vpop.permute.xlu0 %4011
    %4015 = vset.pattern.permute.xlu0 0
    %4016 = vperm.xlu0 %4015, %v3982
    %v4017 = vpop.permute.xlu0 %4016
    %v4019 = vmul.f32 %v4012, %v151
    %v4020 = vmul.f32 %v4017, %v152
    %v4021 = vsel %vm485, %v4019, 0.0
    %v4022 = vrot.slane %v4021, 4
    %v4023 = vadd.f32 %v4021, %v4022
    %v4024 = vrot.slane %v4023, 2
    %v4025 = vadd.f32 %v4023, %v4024
    %v4026 = vrot.slane %v4025, 1
    %v4027 = vadd.f32 %v4025, %v4026
    %v4028 = vsel %vm485, %v4020, 0.0
    %v4029 = vrot.slane %v4028, 4
    %v4030 = vadd.f32 %v4028, %v4029
    %v4031 = vrot.slane %v4030, 2
    %v4032 = vadd.f32 %v4030, %v4031
    %v4033 = vrot.slane %v4032, 1
    %v4034 = vadd.f32 %v4032, %v4033
    %v4037 = vsel %vm347, %v4034, %v4027
    %v4038 = vsel %vm485, %v4037, 0
    %4040 = vmatprep.subr.mxu0 0.0
    %4041 = vmatpush1.msra.mxu0 0.0
    %4042 = vmatprep.subr.mxu0 0.0
    %4043 = vmatpush1.msra.mxu0 0.0
    %4044 = vmatprep.subr.mxu0 0.0
    %4045 = vmatpush1.msra.mxu0 0.0
    %4046 = vmatprep.subr.mxu0 0.0
    %4047 = vmatpush1.msra.mxu0 0.0
    %4048 = vmatprep.subr.mxu0 0.0
    %4049 = vmatpush1.msra.mxu0 0.0
    %4050 = vmatprep.subr.mxu0 0.0
    %4051 = vmatpush1.msra.mxu0 0.0
    %4052 = vmatprep.subr.mxu0 0.0
    %4053 = vmatpush1.msra.mxu0 0.0
    %4054 = vmatprep.subr.mxu0 0.0
    %4055 = vmatpush1.msra.mxu0 0.0
    %4056 = vmatprep.subr.mxu0 0.0
    %4057 = vmatpush1.msra.mxu0 0.0
    %4058 = vmatprep.subr.mxu0 0.0
    %4059 = vmatpush1.msra.mxu0 0.0
    %4060 = vmatprep.subr.mxu0 0.0
    %4061 = vmatpush1.msra.mxu0 0.0
    %4062 = vmatprep.subr.mxu0 0.0
    %4063 = vmatpush1.msra.mxu0 0.0
    %4064 = vmatprep.subr.mxu0 0.0
    %4065 = vmatpush1.msra.mxu0 0.0
    %4066 = vmatprep.subr.mxu0 0.0
    %4067 = vmatpush1.msra.mxu0 0.0
    %4068 = vmatprep.subr.mxu0 %v172
    %4069 = vmatpush1.msra.mxu0 %v171
    %4070 = vmatprep.subr.mxu0 %v170
    %4071 = vmatpush1.msra.mxu0 %v169
    %4072 = vmatprep.subr.mxu0 0.0
    %4073 = vmatpush2.msra.mxu0 0.0
    %4074 = vmatprep.subr.mxu0 0.0
    %4075 = vmatpush2.msra.mxu0 0.0
    %4076 = vmatprep.subr.mxu0 0.0
    %4077 = vmatpush2.msra.mxu0 0.0
    %4078 = vmatprep.subr.mxu0 0.0
    %4079 = vmatpush2.msra.mxu0 0.0
    %4080 = vmatprep.subr.mxu0 0.0
    %4081 = vmatpush2.msra.mxu0 0.0
    %4082 = vmatprep.subr.mxu0 0.0
    %4083 = vmatpush2.msra.mxu0 0.0
    %4084 = vmatprep.subr.mxu0 0.0
    %4085 = vmatpush2.msra.mxu0 0.0
    %4086 = vmatprep.subr.mxu0 0.0
    %4087 = vmatpush2.msra.mxu0 0.0
    %4088 = vmatprep.subr.mxu0 0.0
    %4089 = vmatpush2.msra.mxu0 0.0
    %4090 = vmatprep.subr.mxu0 0.0
    %4091 = vmatpush2.msra.mxu0 0.0
    %4092 = vmatprep.subr.mxu0 0.0
    %4093 = vmatpush2.msra.mxu0 0.0
    %4094 = vmatprep.subr.mxu0 0.0
    %4095 = vmatpush2.msra.mxu0 0.0
    %4096 = vmatprep.subr.mxu0 0.0
    %4097 = vmatpush2.msra.mxu0 0.0
    %4098 = vmatprep.subr.mxu0 0.0
    %4099 = vmatpush2.msra.mxu0 0.0
    %4100 = vmatprep.subr.mxu0 0.0
    %4101 = vmatpush2.msra.mxu0 0.0
    %4102 = vmatprep.subr.mxu0 0.0
    %4103 = vmatpush2.msra.mxu0 0.0
    %4104 = vmatprep.mubr.f32.mxu0 0.0
    %4105 = vmatmul.mubr.f32.gmra.mxu0 %v4038
    %v4106 = vpop.f32.mrf.mxu0
    %v4107 = vadd.f32 0.0, %v4106
    %v4108 = vpop.f32.mrf.mxu0
    %v4109 = vadd.f32 0.0, %v4108
    %4110 = vdwg.mxu0
    %v4113 = vsel %vm347, %v4008, %v4001
    %v4114 = vsel %vm485, %v4113, 0
    %4116 = vmatprep.subr.mxu0 0.0
    %4117 = vmatpush1.msra.mxu0 0.0
    %4118 = vmatprep.subr.mxu0 0.0
    %4119 = vmatpush1.msra.mxu0 0.0
    %4120 = vmatprep.subr.mxu0 0.0
    %4121 = vmatpush1.msra.mxu0 0.0
    %4122 = vmatprep.subr.mxu0 0.0
    %4123 = vmatpush1.msra.mxu0 0.0
    %4124 = vmatprep.subr.mxu0 0.0
    %4125 = vmatpush1.msra.mxu0 0.0
    %4126 = vmatprep.subr.mxu0 0.0
    %4127 = vmatpush1.msra.mxu0 0.0
    %4128 = vmatprep.subr.mxu0 0.0
    %4129 = vmatpush1.msra.mxu0 0.0
    %4130 = vmatprep.subr.mxu0 0.0
    %4131 = vmatpush1.msra.mxu0 0.0
    %4132 = vmatprep.subr.mxu0 0.0
    %4133 = vmatpush1.msra.mxu0 0.0
    %4134 = vmatprep.subr.mxu0 0.0
    %4135 = vmatpush1.msra.mxu0 0.0
    %4136 = vmatprep.subr.mxu0 0.0
    %4137 = vmatpush1.msra.mxu0 0.0
    %4138 = vmatprep.subr.mxu0 0.0
    %4139 = vmatpush1.msra.mxu0 0.0
    %4140 = vmatprep.subr.mxu0 0.0
    %4141 = vmatpush1.msra.mxu0 0.0
    %4142 = vmatprep.subr.mxu0 0.0
    %4143 = vmatpush1.msra.mxu0 0.0
    %4144 = vmatprep.subr.mxu0 %v168
    %4145 = vmatpush1.msra.mxu0 %v167
    %4146 = vmatprep.subr.mxu0 %v166
    %4147 = vmatpush1.msra.mxu0 %v165
    %4148 = vmatprep.subr.mxu0 0.0
    %4149 = vmatpush2.msra.mxu0 0.0
    %4150 = vmatprep.subr.mxu0 0.0
    %4151 = vmatpush2.msra.mxu0 0.0
    %4152 = vmatprep.subr.mxu0 0.0
    %4153 = vmatpush2.msra.mxu0 0.0
    %4154 = vmatprep.subr.mxu0 0.0
    %4155 = vmatpush2.msra.mxu0 0.0
    %4156 = vmatprep.subr.mxu0 0.0
    %4157 = vmatpush2.msra.mxu0 0.0
    %4158 = vmatprep.subr.mxu0 0.0
    %4159 = vmatpush2.msra.mxu0 0.0
    %4160 = vmatprep.subr.mxu0 0.0
    %4161 = vmatpush2.msra.mxu0 0.0
    %4162 = vmatprep.subr.mxu0 0.0
    %4163 = vmatpush2.msra.mxu0 0.0
    %4164 = vmatprep.subr.mxu0 0.0
    %4165 = vmatpush2.msra.mxu0 0.0
    %4166 = vmatprep.subr.mxu0 0.0
    %4167 = vmatpush2.msra.mxu0 0.0
    %4168 = vmatprep.subr.mxu0 0.0
    %4169 = vmatpush2.msra.mxu0 0.0
    %4170 = vmatprep.subr.mxu0 0.0
    %4171 = vmatpush2.msra.mxu0 0.0
    %4172 = vmatprep.subr.mxu0 0.0
    %4173 = vmatpush2.msra.mxu0 0.0
    %4174 = vmatprep.subr.mxu0 0.0
    %4175 = vmatpush2.msra.mxu0 0.0
    %4176 = vmatprep.subr.mxu0 0.0
    %4177 = vmatpush2.msra.mxu0 0.0
    %4178 = vmatprep.subr.mxu0 0.0
    %4179 = vmatpush2.msra.mxu0 0.0
    %4180 = vmatprep.mubr.f32.mxu0 0.0
    %4181 = vmatmul.mubr.f32.gmra.mxu0 %v4114
    %v4182 = vpop.f32.mrf.mxu0
    %v4183 = vadd.f32 %v4107, %v4182
    %v4184 = vpop.f32.mrf.mxu0
    %v4185 = vadd.f32 %v4109, %v4184
    %4186 = vdwg.mxu0
    %4187 = vmatprep.subr.mxu0 0.0
    %4188 = vmatpush1.msra.mxu0 0.0
    %4189 = vmatprep.subr.mxu0 0.0
    %4190 = vmatpush1.msra.mxu0 0.0
    %4191 = vmatprep.subr.mxu0 0.0
    %4192 = vmatpush1.msra.mxu0 0.0
    %4193 = vmatprep.subr.mxu0 0.0
    %4194 = vmatpush1.msra.mxu0 0.0
    %4195 = vmatprep.subr.mxu0 0.0
    %4196 = vmatpush1.msra.mxu0 0.0
    %4197 = vmatprep.subr.mxu0 0.0
    %4198 = vmatpush1.msra.mxu0 0.0
    %4199 = vmatprep.subr.mxu0 0.0
    %4200 = vmatpush1.msra.mxu0 0.0
    %4201 = vmatprep.subr.mxu0 0.0
    %4202 = vmatpush1.msra.mxu0 0.0
    %4203 = vmatprep.subr.mxu0 %v188
    %4204 = vmatpush1.msra.mxu0 %v187
    %4205 = vmatprep.subr.mxu0 %v186
    %4206 = vmatpush1.msra.mxu0 %v185
    %4207 = vmatprep.subr.mxu0 %v184
    %4208 = vmatpush1.msra.mxu0 %v183
    %4209 = vmatprep.subr.mxu0 %v182
    %4210 = vmatpush1.msra.mxu0 %v181
    %4211 = vmatprep.subr.mxu0 %v180
    %4212 = vmatpush1.msra.mxu0 %v179
    %4213 = vmatprep.subr.mxu0 %v178
    %4214 = vmatpush1.msra.mxu0 %v177
    %4215 = vmatprep.subr.mxu0 %v176
    %4216 = vmatpush1.msra.mxu0 %v175
    %4217 = vmatprep.subr.mxu0 %v174
    %4218 = vmatpush1.msra.mxu0 %v173
    %4219 = vmatprep.subr.mxu0 0.0
    %4220 = vmatpush2.msra.mxu0 0.0
    %4221 = vmatprep.subr.mxu0 0.0
    %4222 = vmatpush2.msra.mxu0 0.0
    %4223 = vmatprep.subr.mxu0 0.0
    %4224 = vmatpush2.msra.mxu0 0.0
    %4225 = vmatprep.subr.mxu0 0.0
    %4226 = vmatpush2.msra.mxu0 0.0
    %4227 = vmatprep.subr.mxu0 0.0
    %4228 = vmatpush2.msra.mxu0 0.0
    %4229 = vmatprep.subr.mxu0 0.0
    %4230 = vmatpush2.msra.mxu0 0.0
    %4231 = vmatprep.subr.mxu0 0.0
    %4232 = vmatpush2.msra.mxu0 0.0
    %4233 = vmatprep.subr.mxu0 0.0
    %4234 = vmatpush2.msra.mxu0 0.0
    %4235 = vmatprep.subr.mxu0 0.0
    %4236 = vmatpush2.msra.mxu0 0.0
    %4237 = vmatprep.subr.mxu0 0.0
    %4238 = vmatpush2.msra.mxu0 0.0
    %4239 = vmatprep.subr.mxu0 0.0
    %4240 = vmatpush2.msra.mxu0 0.0
    %4241 = vmatprep.subr.mxu0 0.0
    %4242 = vmatpush2.msra.mxu0 0.0
    %4243 = vmatprep.subr.mxu0 0.0
    %4244 = vmatpush2.msra.mxu0 0.0
    %4245 = vmatprep.subr.mxu0 0.0
    %4246 = vmatpush2.msra.mxu0 0.0
    %4247 = vmatprep.subr.mxu0 0.0
    %4248 = vmatpush2.msra.mxu0 0.0
    %4249 = vmatprep.subr.mxu0 0.0
    %4250 = vmatpush2.msra.mxu0 0.0
    %4251 = vmatprep.mubr.f32.mxu0 0.0
    %4252 = vmatmul.mubr.f32.gmra.mxu0 %v3718
    %v4253 = vpop.f32.mrf.mxu0
    %v4254 = vadd.f32 0.0, %v4253
    %v4255 = vpop.f32.mrf.mxu0
    %v4256 = vadd.f32 0.0, %v4255
    %4257 = vdwg.mxu0
    %v4258 = vadd.f32 %v4183, %v4254
    %v4259 = vadd.f32 %v4185, %v4256
    %s4260 = scalar_lea.vmem [#allocation14], 24
    %v4261 = vld [vmem:[%s4260] sm:$0xf]
    %v4264 = vunpack.c.l.s4 1983009808
    %v4265 = vunpack.c.0.s8 %v4264
    %v4266 = vlaneseq
    %v4267 = vshrl.u32 %v4266, 7
    %v4268 = vsub.s32 %v4265, %v4267
    %v4269 = vrot.slane %v4261, %v4268
    %v4270 = vcombine.high %v4269, %v4269
    %v4273 = vadd.f32 %v4258, %v4269
    %v4274 = vadd.f32 %v4259, %v4270
    %v4275 = vxor.u32 %v4273, 2147483648
    %v4276 = vxor.u32 %v4274, 2147483648
    %v4277 = vmul.f32 %v4275, 1.442695
    %v4278 = vpow.pop %v4277
    %v4279 = vmul.f32 %v4276, 1.442695
    %v4280 = vpow.pop %v4279
    %v4281 = vadd.f32 %v4278, 1.0
    %v4282 = vadd.f32 %v4280, 1.0
    %v4283 = vrcp.pop %v4281
    %v4284 = vmul.f32 1.0, %v4283
    %v4285 = vrcp.pop %v4282
    %v4286 = vmul.f32 1.0, %v4285
    %v4287 = vtanh.pop %v4274
    %v4288 = vmul.f32 %v4284, %v3709
    %v4289 = vmul.f32 %v4284, %v4287
    %4291 = vrot.lane.b32.xlu0 %v4289, 64
    %v4292 = vpop.permute.xlu0 %4291
    %v4294 = vadd.f32 %v4288, %v4292
    %v4295 = vtanh.pop %v4294
    %v4296 = vmul.f32 %v4286, %v4295
    %4298 = vrot.lane.b32.xlu0 %v4296, 64
    %v4299 = vpop.permute.xlu0 %4298
    %s4301 = scalar_lea.vmem [#allocation2], 12
    %4302 = vst.msk [vmem:[%s4301] sm:$0x3] %vm791, %v4299
    %v4303 = vsel %vm195, %v4299, 0
    %4305 = vmatprep.subr.mxu0 0.0
    %4306 = vmatpush1.msra.mxu0 0.0
    %4307 = vmatprep.subr.mxu0 0.0
    %4308 = vmatpush1.msra.mxu0 0.0
    %4309 = vmatprep.subr.mxu0 0.0
    %4310 = vmatpush1.msra.mxu0 0.0
    %4311 = vmatprep.subr.mxu0 0.0
    %4312 = vmatpush1.msra.mxu0 0.0
    %4313 = vmatprep.subr.mxu0 0.0
    %4314 = vmatpush1.msra.mxu0 0.0
    %4315 = vmatprep.subr.mxu0 0.0
    %4316 = vmatpush1.msra.mxu0 0.0
    %4317 = vmatprep.subr.mxu0 0.0
    %4318 = vmatpush1.msra.mxu0 0.0
    %4319 = vmatprep.subr.mxu0 0.0
    %4320 = vmatpush1.msra.mxu0 0.0
    %4321 = vmatprep.subr.mxu0 0.0
    %4322 = vmatpush1.msra.mxu0 %v162
    %4323 = vmatprep.subr.mxu0 0.0
    %4324 = vmatpush1.msra.mxu0 %v161
    %4325 = vmatprep.subr.mxu0 0.0
    %4326 = vmatpush1.msra.mxu0 %v160
    %4327 = vmatprep.subr.mxu0 0.0
    %4328 = vmatpush1.msra.mxu0 %v159
    %4329 = vmatprep.subr.mxu0 0.0
    %4330 = vmatpush1.msra.mxu0 %v158
    %4331 = vmatprep.subr.mxu0 0.0
    %4332 = vmatpush1.msra.mxu0 %v157
    %4333 = vmatprep.subr.mxu0 0.0
    %4334 = vmatpush1.msra.mxu0 %v156
    %4335 = vmatprep.subr.mxu0 0.0
    %4336 = vmatpush1.msra.mxu0 %v155
    %4337 = vmatprep.subr.mxu0 0.0
    %4338 = vmatpush2.msra.mxu0 0.0
    %4339 = vmatprep.subr.mxu0 0.0
    %4340 = vmatpush2.msra.mxu0 0.0
    %4341 = vmatprep.subr.mxu0 0.0
    %4342 = vmatpush2.msra.mxu0 0.0
    %4343 = vmatprep.subr.mxu0 0.0
    %4344 = vmatpush2.msra.mxu0 0.0
    %4345 = vmatprep.subr.mxu0 0.0
    %4346 = vmatpush2.msra.mxu0 0.0
    %4347 = vmatprep.subr.mxu0 0.0
    %4348 = vmatpush2.msra.mxu0 0.0
    %4349 = vmatprep.subr.mxu0 0.0
    %4350 = vmatpush2.msra.mxu0 0.0
    %4351 = vmatprep.subr.mxu0 0.0
    %4352 = vmatpush2.msra.mxu0 0.0
    %4353 = vmatprep.subr.mxu0 0.0
    %4354 = vmatpush2.msra.mxu0 0.0
    %4355 = vmatprep.subr.mxu0 0.0
    %4356 = vmatpush2.msra.mxu0 0.0
    %4357 = vmatprep.subr.mxu0 0.0
    %4358 = vmatpush2.msra.mxu0 0.0
    %4359 = vmatprep.subr.mxu0 0.0
    %4360 = vmatpush2.msra.mxu0 0.0
    %4361 = vmatprep.subr.mxu0 0.0
    %4362 = vmatpush2.msra.mxu0 0.0
    %4363 = vmatprep.subr.mxu0 0.0
    %4364 = vmatpush2.msra.mxu0 0.0
    %4365 = vmatprep.subr.mxu0 0.0
    %4366 = vmatpush2.msra.mxu0 0.0
    %4367 = vmatprep.subr.mxu0 0.0
    %4368 = vmatpush2.msra.mxu0 0.0
    %4369 = vmatprep.mubr.f32.mxu0 0.0
    %4370 = vmatmul.mubr.f32.gmra.mxu0 %v4303
    %v4371 = vpop.f32.mrf.mxu0
    %v4372 = vadd.f32 %v193, %v4371
    %v4373 = vpop.f32.mrf.mxu0
    %4374 = vdwg.mxu0
    %v4377 = vunpack.c.l.s4 1966171168
    %v4378 = vunpack.c.0.s8 %v4377
    %v4379 = vlaneseq
    %v4380 = vshrl.u32 %v4379, 7
    %v4381 = vsub.s32 %v4378, %v4380
    %v4382 = vrot.slane %v4372, %v4381
    %v4383 = vcombine.high %v4382, %v4382
    %v4385 = vunpack.c.l.s4 1966171168
    %v4386 = vunpack.c.0.s8 %v4385
    %v4387 = vlaneseq
    %v4388 = vshrl.u32 %v4387, 7
    %v4389 = vsub.s32 %v4386, %v4388
    %v4390 = vrot.slane %v4382, %v4389
    %v4392 = vunpack.c.l.s4 1966171168
    %v4393 = vunpack.c.0.s8 %v4392
    %v4394 = vlaneseq
    %v4395 = vshrl.u32 %v4394, 7
    %v4396 = vsub.s32 %v4393, %v4395
    %v4397 = vrot.slane %v4383, %v4396
    %v4398 = vlaneseq
    %v4399 = vshrl.u32 %v4398, 7
    %v4400 = vsub.s32 0, %v4399
    %v4401 = vrot.slane %v4390, %v4400
    %v4402 = vlaneseq
    %v4403 = vshrl.u32 %v4402, 7
    %v4404 = vsub.s32 0, %v4403
    %v4405 = vrot.slane %v4397, %v4404
    %v4408 = vadd.f32 %v153, %v4401
    %v4409 = vadd.f32 %v154, %v4405
    %v4410 = vtanh.pop %v4408
    %v4411 = vtanh.pop %v4409
    %v4412 = vmul.f32 %v310, %v4410
    %v4413 = vmul.f32 %v310, %v4411
    %v4414 = vsel %vm314, %v4412, 0.0
    %4415 = vadd.xlane.f32.xlu0 %v4414
    %v4416 = vpop.xlane.xlu0 %4415
    %v4417 = vsel %vm314, %v4413, 0.0
    %4418 = vadd.xlane.f32.xlu0 %v4417
    %v4419 = vpop.xlane.xlu0 %4418
    %4422 = vrot.lane.b32.xlu0 %v4412, 96
    %v4423 = vpop.permute.xlu0 %4422
    %4424 = vrot.lane.b32.xlu0 %v4413, 96
    %v4425 = vpop.permute.xlu0 %4424
    %v4428 = vsel %vm314, %v4423, 0.0
    %4429 = vadd.xlane.f32.xlu0 %v4428
    %v4430 = vpop.xlane.xlu0 %4429
    %v4431 = vsel %vm314, %v4425, 0.0
    %4432 = vadd.xlane.f32.xlu0 %v4431
    %v4433 = vpop.xlane.xlu0 %4432
    %v4436 = vlaneseq
    %v4437 = vshrl.u32 %v4436, 7
    %v4438 = vsub.s32 %v338, %v4437
    %v4439 = vrot.slane %v4416, %v4438
    %v4440 = vlaneseq
    %v4441 = vshrl.u32 %v4440, 7
    %v4442 = vsub.s32 %v338, %v4441
    %v4443 = vrot.slane %v4419, %v4442
    %v4444 = vsel %vm347, %v4443, %v4439
    %v4446 = vsel %vm350, %v4444, -inf
    %4447 = vmax.xlane.f32.xlu0 %v4446
    %v4448 = vpop.xlane.xlu0 %4447
    %v4450 = vlaneseq
    %v4451 = vshrl.u32 %v4450, 7
    %v4452 = vsub.s32 0, %v4451
    %v4453 = vrot.slane %v4448, %v4452
    %v4454 = vlaneseq
    %v4455 = vshrl.u32 %v4454, 7
    %v4456 = vsub.s32 1, %v4455
    %v4457 = vrot.slane %v4448, %v4456
    %v4460 = vsub.f32 %v4416, %v4453
    %v4461 = vsub.f32 %v4419, %v4457
    %v4462 = vmul.f32 %v4460, 1.442695
    %v4463 = vpow.pop %v4462
    %v4464 = vmul.f32 %v4461, 1.442695
    %v4465 = vpow.pop %v4464
    %4468 = vset.pattern.permute.xlu0 0
    %4469 = vperm.xlu0 %4468, %v4463
    %v4470 = vpop.permute.xlu0 %4469
    %4471 = vset.pattern.permute.xlu0 0
    %4472 = vperm.xlu0 %4471, %v4465
    %v4473 = vpop.permute.xlu0 %4472
    %v4474 = vlaneseq
    %v4475 = vshrl.u32 %v4474, 7
    %v4476 = vsub.s32 %v338, %v4475
    %v4477 = vrot.slane %v4470, %v4476
    %v4478 = vlaneseq
    %v4479 = vshrl.u32 %v4478, 7
    %v4480 = vsub.s32 %v338, %v4479
    %v4481 = vrot.slane %v4473, %v4480
    %v4482 = vsel %vm347, %v4481, %v4477
    %v4484 = vsel %vm350, %v4482, 0.0
    %4485 = vadd.xlane.f32.xlu0 %v4484
    %v4486 = vpop.xlane.xlu0 %4485
    %v4487 = vrcp.pop %v4486
    %v4489 = vlaneseq
    %v4490 = vshrl.u32 %v4489, 7
    %v4491 = vsub.s32 0, %v4490
    %v4492 = vrot.slane %v4487, %v4491
    %v4493 = vlaneseq
    %v4494 = vshrl.u32 %v4493, 7
    %v4495 = vsub.s32 1, %v4494
    %v4496 = vrot.slane %v4487, %v4495
    %v4499 = vmul.f32 %v4463, %v4492
    %v4500 = vmul.f32 %v4465, %v4496
    %v4503 = vlaneseq
    %v4504 = vshrl.u32 %v4503, 7
    %v4505 = vsub.s32 %v338, %v4504
    %v4506 = vrot.slane %v4430, %v4505
    %v4507 = vlaneseq
    %v4508 = vshrl.u32 %v4507, 7
    %v4509 = vsub.s32 %v338, %v4508
    %v4510 = vrot.slane %v4433, %v4509
    %v4511 = vsel %vm347, %v4510, %v4506
    %v4513 = vsel %vm350, %v4511, -inf
    %4514 = vmax.xlane.f32.xlu0 %v4513
    %v4515 = vpop.xlane.xlu0 %4514
    %v4517 = vlaneseq
    %v4518 = vshrl.u32 %v4517, 7
    %v4519 = vsub.s32 0, %v4518
    %v4520 = vrot.slane %v4515, %v4519
    %v4521 = vlaneseq
    %v4522 = vshrl.u32 %v4521, 7
    %v4523 = vsub.s32 1, %v4522
    %v4524 = vrot.slane %v4515, %v4523
    %v4527 = vsub.f32 %v4430, %v4520
    %v4528 = vsub.f32 %v4433, %v4524
    %v4529 = vmul.f32 %v4527, 1.442695
    %v4530 = vpow.pop %v4529
    %v4531 = vmul.f32 %v4528, 1.442695
    %v4532 = vpow.pop %v4531
    %4535 = vset.pattern.permute.xlu0 0
    %4536 = vperm.xlu0 %4535, %v4530
    %v4537 = vpop.permute.xlu0 %4536
    %4538 = vset.pattern.permute.xlu0 0
    %4539 = vperm.xlu0 %4538, %v4532
    %v4540 = vpop.permute.xlu0 %4539
    %v4541 = vlaneseq
    %v4542 = vshrl.u32 %v4541, 7
    %v4543 = vsub.s32 %v338, %v4542
    %v4544 = vrot.slane %v4537, %v4543
    %v4545 = vlaneseq
    %v4546 = vshrl.u32 %v4545, 7
    %v4547 = vsub.s32 %v338, %v4546
    %v4548 = vrot.slane %v4540, %v4547
    %v4549 = vsel %vm347, %v4548, %v4544
    %v4551 = vsel %vm350, %v4549, 0.0
    %4552 = vadd.xlane.f32.xlu0 %v4551
    %v4553 = vpop.xlane.xlu0 %4552
    %v4554 = vrcp.pop %v4553
    %v4556 = vlaneseq
    %v4557 = vshrl.u32 %v4556, 7
    %v4558 = vsub.s32 0, %v4557
    %v4559 = vrot.slane %v4554, %v4558
    %v4560 = vlaneseq
    %v4561 = vshrl.u32 %v4560, 7
    %v4562 = vsub.s32 1, %v4561
    %v4563 = vrot.slane %v4554, %v4562
    %v4566 = vmul.f32 %v4530, %v4559
    %v4567 = vmul.f32 %v4532, %v4563
    %4569 = vset.pattern.permute.xlu0 0
    %4570 = vperm.xlu0 %4569, %v4499
    %v4571 = vpop.permute.xlu0 %4570
    %4574 = vset.pattern.permute.xlu0 0
    %4575 = vperm.xlu0 %4574, %v4500
    %v4576 = vpop.permute.xlu0 %4575
    %v4578 = vmul.f32 %v4571, %v151
    %v4579 = vmul.f32 %v4576, %v152
    %v4580 = vsel %vm485, %v4578, 0.0
    %v4581 = vrot.slane %v4580, 4
    %v4582 = vadd.f32 %v4580, %v4581
    %v4583 = vrot.slane %v4582, 2
    %v4584 = vadd.f32 %v4582, %v4583
    %v4585 = vrot.slane %v4584, 1
    %v4586 = vadd.f32 %v4584, %v4585
    %v4587 = vsel %vm485, %v4579, 0.0
    %v4588 = vrot.slane %v4587, 4
    %v4589 = vadd.f32 %v4587, %v4588
    %v4590 = vrot.slane %v4589, 2
    %v4591 = vadd.f32 %v4589, %v4590
    %v4592 = vrot.slane %v4591, 1
    %v4593 = vadd.f32 %v4591, %v4592
    %4595 = vset.pattern.permute.xlu0 0
    %4596 = vperm.xlu0 %4595, %v4566
    %v4597 = vpop.permute.xlu0 %4596
    %4600 = vset.pattern.permute.xlu0 0
    %4601 = vperm.xlu0 %4600, %v4567
    %v4602 = vpop.permute.xlu0 %4601
    %v4604 = vmul.f32 %v4597, %v151
    %v4605 = vmul.f32 %v4602, %v152
    %v4606 = vsel %vm485, %v4604, 0.0
    %v4607 = vrot.slane %v4606, 4
    %v4608 = vadd.f32 %v4606, %v4607
    %v4609 = vrot.slane %v4608, 2
    %v4610 = vadd.f32 %v4608, %v4609
    %v4611 = vrot.slane %v4610, 1
    %v4612 = vadd.f32 %v4610, %v4611
    %v4613 = vsel %vm485, %v4605, 0.0
    %v4614 = vrot.slane %v4613, 4
    %v4615 = vadd.f32 %v4613, %v4614
    %v4616 = vrot.slane %v4615, 2
    %v4617 = vadd.f32 %v4615, %v4616
    %v4618 = vrot.slane %v4617, 1
    %v4619 = vadd.f32 %v4617, %v4618
    %v4622 = vsel %vm347, %v4619, %v4612
    %v4623 = vsel %vm485, %v4622, 0
    %4625 = vmatprep.subr.mxu0 0.0
    %4626 = vmatpush1.msra.mxu0 0.0
    %4627 = vmatprep.subr.mxu0 0.0
    %4628 = vmatpush1.msra.mxu0 0.0
    %4629 = vmatprep.subr.mxu0 0.0
    %4630 = vmatpush1.msra.mxu0 0.0
    %4631 = vmatprep.subr.mxu0 0.0
    %4632 = vmatpush1.msra.mxu0 0.0
    %4633 = vmatprep.subr.mxu0 0.0
    %4634 = vmatpush1.msra.mxu0 0.0
    %4635 = vmatprep.subr.mxu0 0.0
    %4636 = vmatpush1.msra.mxu0 0.0
    %4637 = vmatprep.subr.mxu0 0.0
    %4638 = vmatpush1.msra.mxu0 0.0
    %4639 = vmatprep.subr.mxu0 0.0
    %4640 = vmatpush1.msra.mxu0 0.0
    %4641 = vmatprep.subr.mxu0 0.0
    %4642 = vmatpush1.msra.mxu0 0.0
    %4643 = vmatprep.subr.mxu0 0.0
    %4644 = vmatpush1.msra.mxu0 0.0
    %4645 = vmatprep.subr.mxu0 0.0
    %4646 = vmatpush1.msra.mxu0 0.0
    %4647 = vmatprep.subr.mxu0 0.0
    %4648 = vmatpush1.msra.mxu0 0.0
    %4649 = vmatprep.subr.mxu0 0.0
    %4650 = vmatpush1.msra.mxu0 0.0
    %4651 = vmatprep.subr.mxu0 0.0
    %4652 = vmatpush1.msra.mxu0 0.0
    %4653 = vmatprep.subr.mxu0 %v172
    %4654 = vmatpush1.msra.mxu0 %v171
    %4655 = vmatprep.subr.mxu0 %v170
    %4656 = vmatpush1.msra.mxu0 %v169
    %4657 = vmatprep.subr.mxu0 0.0
    %4658 = vmatpush2.msra.mxu0 0.0
    %4659 = vmatprep.subr.mxu0 0.0
    %4660 = vmatpush2.msra.mxu0 0.0
    %4661 = vmatprep.subr.mxu0 0.0
    %4662 = vmatpush2.msra.mxu0 0.0
    %4663 = vmatprep.subr.mxu0 0.0
    %4664 = vmatpush2.msra.mxu0 0.0
    %4665 = vmatprep.subr.mxu0 0.0
    %4666 = vmatpush2.msra.mxu0 0.0
    %4667 = vmatprep.subr.mxu0 0.0
    %4668 = vmatpush2.msra.mxu0 0.0
    %4669 = vmatprep.subr.mxu0 0.0
    %4670 = vmatpush2.msra.mxu0 0.0
    %4671 = vmatprep.subr.mxu0 0.0
    %4672 = vmatpush2.msra.mxu0 0.0
    %4673 = vmatprep.subr.mxu0 0.0
    %4674 = vmatpush2.msra.mxu0 0.0
    %4675 = vmatprep.subr.mxu0 0.0
    %4676 = vmatpush2.msra.mxu0 0.0
    %4677 = vmatprep.subr.mxu0 0.0
    %4678 = vmatpush2.msra.mxu0 0.0
    %4679 = vmatprep.subr.mxu0 0.0
    %4680 = vmatpush2.msra.mxu0 0.0
    %4681 = vmatprep.subr.mxu0 0.0
    %4682 = vmatpush2.msra.mxu0 0.0
    %4683 = vmatprep.subr.mxu0 0.0
    %4684 = vmatpush2.msra.mxu0 0.0
    %4685 = vmatprep.subr.mxu0 0.0
    %4686 = vmatpush2.msra.mxu0 0.0
    %4687 = vmatprep.subr.mxu0 0.0
    %4688 = vmatpush2.msra.mxu0 0.0
    %4689 = vmatprep.mubr.f32.mxu0 0.0
    %4690 = vmatmul.mubr.f32.gmra.mxu0 %v4623
    %v4691 = vpop.f32.mrf.mxu0
    %v4692 = vadd.f32 0.0, %v4691
    %v4693 = vpop.f32.mrf.mxu0
    %v4694 = vadd.f32 0.0, %v4693
    %4695 = vdwg.mxu0
    %v4698 = vsel %vm347, %v4593, %v4586
    %v4699 = vsel %vm485, %v4698, 0
    %4701 = vmatprep.subr.mxu0 0.0
    %4702 = vmatpush1.msra.mxu0 0.0
    %4703 = vmatprep.subr.mxu0 0.0
    %4704 = vmatpush1.msra.mxu0 0.0
    %4705 = vmatprep.subr.mxu0 0.0
    %4706 = vmatpush1.msra.mxu0 0.0
    %4707 = vmatprep.subr.mxu0 0.0
    %4708 = vmatpush1.msra.mxu0 0.0
    %4709 = vmatprep.subr.mxu0 0.0
    %4710 = vmatpush1.msra.mxu0 0.0
    %4711 = vmatprep.subr.mxu0 0.0
    %4712 = vmatpush1.msra.mxu0 0.0
    %4713 = vmatprep.subr.mxu0 0.0
    %4714 = vmatpush1.msra.mxu0 0.0
    %4715 = vmatprep.subr.mxu0 0.0
    %4716 = vmatpush1.msra.mxu0 0.0
    %4717 = vmatprep.subr.mxu0 0.0
    %4718 = vmatpush1.msra.mxu0 0.0
    %4719 = vmatprep.subr.mxu0 0.0
    %4720 = vmatpush1.msra.mxu0 0.0
    %4721 = vmatprep.subr.mxu0 0.0
    %4722 = vmatpush1.msra.mxu0 0.0
    %4723 = vmatprep.subr.mxu0 0.0
    %4724 = vmatpush1.msra.mxu0 0.0
    %4725 = vmatprep.subr.mxu0 0.0
    %4726 = vmatpush1.msra.mxu0 0.0
    %4727 = vmatprep.subr.mxu0 0.0
    %4728 = vmatpush1.msra.mxu0 0.0
    %4729 = vmatprep.subr.mxu0 %v168
    %4730 = vmatpush1.msra.mxu0 %v167
    %4731 = vmatprep.subr.mxu0 %v166
    %4732 = vmatpush1.msra.mxu0 %v165
    %4733 = vmatprep.subr.mxu0 0.0
    %4734 = vmatpush2.msra.mxu0 0.0
    %4735 = vmatprep.subr.mxu0 0.0
    %4736 = vmatpush2.msra.mxu0 0.0
    %4737 = vmatprep.subr.mxu0 0.0
    %4738 = vmatpush2.msra.mxu0 0.0
    %4739 = vmatprep.subr.mxu0 0.0
    %4740 = vmatpush2.msra.mxu0 0.0
    %4741 = vmatprep.subr.mxu0 0.0
    %4742 = vmatpush2.msra.mxu0 0.0
    %4743 = vmatprep.subr.mxu0 0.0
    %4744 = vmatpush2.msra.mxu0 0.0
    %4745 = vmatprep.subr.mxu0 0.0
    %4746 = vmatpush2.msra.mxu0 0.0
    %4747 = vmatprep.subr.mxu0 0.0
    %4748 = vmatpush2.msra.mxu0 0.0
    %4749 = vmatprep.subr.mxu0 0.0
    %4750 = vmatpush2.msra.mxu0 0.0
    %4751 = vmatprep.subr.mxu0 0.0
    %4752 = vmatpush2.msra.mxu0 0.0
    %4753 = vmatprep.subr.mxu0 0.0
    %4754 = vmatpush2.msra.mxu0 0.0
    %4755 = vmatprep.subr.mxu0 0.0
    %4756 = vmatpush2.msra.mxu0 0.0
    %4757 = vmatprep.subr.mxu0 0.0
    %4758 = vmatpush2.msra.mxu0 0.0
    %4759 = vmatprep.subr.mxu0 0.0
    %4760 = vmatpush2.msra.mxu0 0.0
    %4761 = vmatprep.subr.mxu0 0.0
    %4762 = vmatpush2.msra.mxu0 0.0
    %4763 = vmatprep.subr.mxu0 0.0
    %4764 = vmatpush2.msra.mxu0 0.0
    %4765 = vmatprep.mubr.f32.mxu0 0.0
    %4766 = vmatmul.mubr.f32.gmra.mxu0 %v4699
    %v4767 = vpop.f32.mrf.mxu0
    %v4768 = vadd.f32 %v4692, %v4767
    %v4769 = vpop.f32.mrf.mxu0
    %v4770 = vadd.f32 %v4694, %v4769
    %4771 = vdwg.mxu0
    %4772 = vmatprep.subr.mxu0 0.0
    %4773 = vmatpush1.msra.mxu0 0.0
    %4774 = vmatprep.subr.mxu0 0.0
    %4775 = vmatpush1.msra.mxu0 0.0
    %4776 = vmatprep.subr.mxu0 0.0
    %4777 = vmatpush1.msra.mxu0 0.0
    %4778 = vmatprep.subr.mxu0 0.0
    %4779 = vmatpush1.msra.mxu0 0.0
    %4780 = vmatprep.subr.mxu0 0.0
    %4781 = vmatpush1.msra.mxu0 0.0
    %4782 = vmatprep.subr.mxu0 0.0
    %4783 = vmatpush1.msra.mxu0 0.0
    %4784 = vmatprep.subr.mxu0 0.0
    %4785 = vmatpush1.msra.mxu0 0.0
    %4786 = vmatprep.subr.mxu0 0.0
    %4787 = vmatpush1.msra.mxu0 0.0
    %4788 = vmatprep.subr.mxu0 %v188
    %4789 = vmatpush1.msra.mxu0 %v187
    %4790 = vmatprep.subr.mxu0 %v186
    %4791 = vmatpush1.msra.mxu0 %v185
    %4792 = vmatprep.subr.mxu0 %v184
    %4793 = vmatpush1.msra.mxu0 %v183
    %4794 = vmatprep.subr.mxu0 %v182
    %4795 = vmatpush1.msra.mxu0 %v181
    %4796 = vmatprep.subr.mxu0 %v180
    %4797 = vmatpush1.msra.mxu0 %v179
    %4798 = vmatprep.subr.mxu0 %v178
    %4799 = vmatpush1.msra.mxu0 %v177
    %4800 = vmatprep.subr.mxu0 %v176
    %4801 = vmatpush1.msra.mxu0 %v175
    %4802 = vmatprep.subr.mxu0 %v174
    %4803 = vmatpush1.msra.mxu0 %v173
    %4804 = vmatprep.subr.mxu0 0.0
    %4805 = vmatpush2.msra.mxu0 0.0
    %4806 = vmatprep.subr.mxu0 0.0
    %4807 = vmatpush2.msra.mxu0 0.0
    %4808 = vmatprep.subr.mxu0 0.0
    %4809 = vmatpush2.msra.mxu0 0.0
    %4810 = vmatprep.subr.mxu0 0.0
    %4811 = vmatpush2.msra.mxu0 0.0
    %4812 = vmatprep.subr.mxu0 0.0
    %4813 = vmatpush2.msra.mxu0 0.0
    %4814 = vmatprep.subr.mxu0 0.0
    %4815 = vmatpush2.msra.mxu0 0.0
    %4816 = vmatprep.subr.mxu0 0.0
    %4817 = vmatpush2.msra.mxu0 0.0
    %4818 = vmatprep.subr.mxu0 0.0
    %4819 = vmatpush2.msra.mxu0 0.0
    %4820 = vmatprep.subr.mxu0 0.0
    %4821 = vmatpush2.msra.mxu0 0.0
    %4822 = vmatprep.subr.mxu0 0.0
    %4823 = vmatpush2.msra.mxu0 0.0
    %4824 = vmatprep.subr.mxu0 0.0
    %4825 = vmatpush2.msra.mxu0 0.0
    %4826 = vmatprep.subr.mxu0 0.0
    %4827 = vmatpush2.msra.mxu0 0.0
    %4828 = vmatprep.subr.mxu0 0.0
    %4829 = vmatpush2.msra.mxu0 0.0
    %4830 = vmatprep.subr.mxu0 0.0
    %4831 = vmatpush2.msra.mxu0 0.0
    %4832 = vmatprep.subr.mxu0 0.0
    %4833 = vmatpush2.msra.mxu0 0.0
    %4834 = vmatprep.subr.mxu0 0.0
    %4835 = vmatpush2.msra.mxu0 0.0
    %4836 = vmatprep.mubr.f32.mxu0 0.0
    %4837 = vmatmul.mubr.f32.gmra.mxu0 %v4303
    %v4838 = vpop.f32.mrf.mxu0
    %v4839 = vadd.f32 0.0, %v4838
    %v4840 = vpop.f32.mrf.mxu0
    %v4841 = vadd.f32 0.0, %v4840
    %4842 = vdwg.mxu0
    %v4843 = vadd.f32 %v4768, %v4839
    %v4844 = vadd.f32 %v4770, %v4841
    %s4845 = scalar_lea.vmem [#allocation14], 28
    %v4846 = vld [vmem:[%s4845] sm:$0xf]
    %v4849 = vunpack.c.l.s4 1983009808
    %v4850 = vunpack.c.0.s8 %v4849
    %v4851 = vlaneseq
    %v4852 = vshrl.u32 %v4851, 7
    %v4853 = vsub.s32 %v4850, %v4852
    %v4854 = vrot.slane %v4846, %v4853
    %v4855 = vcombine.high %v4854, %v4854
    %v4858 = vadd.f32 %v4843, %v4854
    %v4859 = vadd.f32 %v4844, %v4855
    %v4860 = vxor.u32 %v4858, 2147483648
    %v4861 = vxor.u32 %v4859, 2147483648
    %v4862 = vmul.f32 %v4860, 1.442695
    %v4863 = vpow.pop %v4862
    %v4864 = vmul.f32 %v4861, 1.442695
    %v4865 = vpow.pop %v4864
    %v4866 = vadd.f32 %v4863, 1.0
    %v4867 = vadd.f32 %v4865, 1.0
    %v4868 = vrcp.pop %v4866
    %v4869 = vmul.f32 1.0, %v4868
    %v4870 = vrcp.pop %v4867
    %v4871 = vmul.f32 1.0, %v4870
    %v4872 = vtanh.pop %v4859
    %v4873 = vmul.f32 %v4869, %v4294
    %v4874 = vmul.f32 %v4869, %v4872
    %4876 = vrot.lane.b32.xlu0 %v4874, 64
    %v4877 = vpop.permute.xlu0 %4876
    %v4879 = vadd.f32 %v4873, %v4877
    %v4880 = vtanh.pop %v4879
    %v4881 = vmul.f32 %v4871, %v4880
    %4883 = vrot.lane.b32.xlu0 %v4881, 64
    %v4884 = vpop.permute.xlu0 %4883
    %s4886 = scalar_lea.vmem [#allocation2], 14
    %4887 = vst.msk [vmem:[%s4886] sm:$0x3] %vm791, %v4884
    %v4888 = vld [vmem:[#allocation15] sm:$0xff]
    %v4889 = vld [vmem:[#allocation15 + $0x8] sm:$0xff]
    %v4890 = vld [vmem:[#allocation15 + $0x10] sm:$0xff]
    %v4891 = vld [vmem:[#allocation15 + $0x18] sm:$0xff]
    %v4892 = vld [vmem:[#allocation15 + $0x20] sm:$0xff]
    %v4893 = vld [vmem:[#allocation15 + $0x28] sm:$0xff]
    %v4894 = vld [vmem:[#allocation15 + $0x30] sm:$0xff]
    %v4895 = vld [vmem:[#allocation15 + $0x38] sm:$0xff]
    %v4896 = vld [vmem:[%s10] sm:$0x1]
    %vm4897 = vcmp.lt.s32.totalorder %v338, 32
    %v4898 = vld [vmem:[#allocation2] sm:$0x3]
    %v4899 = vld [vmem:[%s4886] sm:$0x3]
    %v4900 = vsel %vm4897, 1, 0
    %vm4901 = vcmp.eq.s32.totalorder %v4900, 1
    %v4902 = vsel %vm4901, %v4898, %v4899
    %4903 = vst.msk [vmem:[#allocation17] sm:$0x3] %vm791, %v4902
    %v4905 = vlaneseq
    %v4906 = vshrl.u32 %v4905, 7
    %v4907 = vsub.s32 0, %v4906
    %v4908 = vrot.slane %v4896, %v4907
    %v4911 = vsel %vm195, %v4902, 0
    %4913 = vmatprep.subr.mxu0 0.0
    %4914 = vmatpush1.msra.mxu0 0.0
    %4915 = vmatprep.subr.mxu0 0.0
    %4916 = vmatpush1.msra.mxu0 0.0
    %4917 = vmatprep.subr.mxu0 0.0
    %4918 = vmatpush1.msra.mxu0 0.0
    %4919 = vmatprep.subr.mxu0 0.0
    %4920 = vmatpush1.msra.mxu0 0.0
    %4921 = vmatprep.subr.mxu0 0.0
    %4922 = vmatpush1.msra.mxu0 0.0
    %4923 = vmatprep.subr.mxu0 0.0
    %4924 = vmatpush1.msra.mxu0 0.0
    %4925 = vmatprep.subr.mxu0 0.0
    %4926 = vmatpush1.msra.mxu0 0.0
    %4927 = vmatprep.subr.mxu0 0.0
    %4928 = vmatpush1.msra.mxu0 0.0
    %4929 = vmatprep.subr.mxu0 0.0
    %4930 = vmatpush1.msra.mxu0 %v4895
    %4931 = vmatprep.subr.mxu0 0.0
    %4932 = vmatpush1.msra.mxu0 %v4894
    %4933 = vmatprep.subr.mxu0 0.0
    %4934 = vmatpush1.msra.mxu0 %v4893
    %4935 = vmatprep.subr.mxu0 0.0
    %4936 = vmatpush1.msra.mxu0 %v4892
    %4937 = vmatprep.subr.mxu0 0.0
    %4938 = vmatpush1.msra.mxu0 %v4891
    %4939 = vmatprep.subr.mxu0 0.0
    %4940 = vmatpush1.msra.mxu0 %v4890
    %4941 = vmatprep.subr.mxu0 0.0
    %4942 = vmatpush1.msra.mxu0 %v4889
    %4943 = vmatprep.subr.mxu0 0.0
    %4944 = vmatpush1.msra.mxu0 %v4888
    %4945 = vmatprep.subr.mxu0 0.0
    %4946 = vmatpush2.msra.mxu0 0.0
    %4947 = vmatprep.subr.mxu0 0.0
    %4948 = vmatpush2.msra.mxu0 0.0
    %4949 = vmatprep.subr.mxu0 0.0
    %4950 = vmatpush2.msra.mxu0 0.0
    %4951 = vmatprep.subr.mxu0 0.0
    %4952 = vmatpush2.msra.mxu0 0.0
    %4953 = vmatprep.subr.mxu0 0.0
    %4954 = vmatpush2.msra.mxu0 0.0
    %4955 = vmatprep.subr.mxu0 0.0
    %4956 = vmatpush2.msra.mxu0 0.0
    %4957 = vmatprep.subr.mxu0 0.0
    %4958 = vmatpush2.msra.mxu0 0.0
    %4959 = vmatprep.subr.mxu0 0.0
    %4960 = vmatpush2.msra.mxu0 0.0
    %4961 = vmatprep.subr.mxu0 0.0
    %4962 = vmatpush2.msra.mxu0 0.0
    %4963 = vmatprep.subr.mxu0 0.0
    %4964 = vmatpush2.msra.mxu0 0.0
    %4965 = vmatprep.subr.mxu0 0.0
    %4966 = vmatpush2.msra.mxu0 0.0
    %4967 = vmatprep.subr.mxu0 0.0
    %4968 = vmatpush2.msra.mxu0 0.0
    %4969 = vmatprep.subr.mxu0 0.0
    %4970 = vmatpush2.msra.mxu0 0.0
    %4971 = vmatprep.subr.mxu0 0.0
    %4972 = vmatpush2.msra.mxu0 0.0
    %4973 = vmatprep.subr.mxu0 0.0
    %4974 = vmatpush2.msra.mxu0 0.0
    %4975 = vmatprep.subr.mxu0 0.0
    %4976 = vmatpush2.msra.mxu0 0.0
    %4977 = vmatprep.mubr.f32.mxu0 0.0
    %4978 = vmatmul.mubr.f32.gmra.mxu0 %v4911
    %v4979 = vpop.f32.mrf.mxu0
    %v4980 = vadd.f32 %v4908, %v4979
    %v4981 = vpop.f32.mrf.mxu0
    %4982 = vdwg.mxu0
    %4983 = vst [vmem:[#allocation18] sm:$0x3] %v4980
    %v4984 = vld [vmem:[%s1376] sm:$0x3]
    %v4985 = vld [vmem:[%s4301] sm:$0x3]
    %v4986 = vsel %vm4901, %v4984, %v4985
    %s4987 = scalar_lea.vmem [#allocation17], 2
    %4988 = vst.msk [vmem:[%s4987] sm:$0x3] %vm791, %v4986
    %v4990 = vsel %vm195, %v4986, 0
    %4992 = vmatprep.subr.mxu0 0.0
    %4993 = vmatpush1.msra.mxu0 0.0
    %4994 = vmatprep.subr.mxu0 0.0
    %4995 = vmatpush1.msra.mxu0 0.0
    %4996 = vmatprep.subr.mxu0 0.0
    %4997 = vmatpush1.msra.mxu0 0.0
    %4998 = vmatprep.subr.mxu0 0.0
    %4999 = vmatpush1.msra.mxu0 0.0
    %5000 = vmatprep.subr.mxu0 0.0
    %5001 = vmatpush1.msra.mxu0 0.0
    %5002 = vmatprep.subr.mxu0 0.0
    %5003 = vmatpush1.msra.mxu0 0.0
    %5004 = vmatprep.subr.mxu0 0.0
    %5005 = vmatpush1.msra.mxu0 0.0
    %5006 = vmatprep.subr.mxu0 0.0
    %5007 = vmatpush1.msra.mxu0 0.0
    %5008 = vmatprep.subr.mxu0 0.0
    %5009 = vmatpush1.msra.mxu0 %v4895
    %5010 = vmatprep.subr.mxu0 0.0
    %5011 = vmatpush1.msra.mxu0 %v4894
    %5012 = vmatprep.subr.mxu0 0.0
    %5013 = vmatpush1.msra.mxu0 %v4893
    %5014 = vmatprep.subr.mxu0 0.0
    %5015 = vmatpush1.msra.mxu0 %v4892
    %5016 = vmatprep.subr.mxu0 0.0
    %5017 = vmatpush1.msra.mxu0 %v4891
    %5018 = vmatprep.subr.mxu0 0.0
    %5019 = vmatpush1.msra.mxu0 %v4890
    %5020 = vmatprep.subr.mxu0 0.0
    %5021 = vmatpush1.msra.mxu0 %v4889
    %5022 = vmatprep.subr.mxu0 0.0
    %5023 = vmatpush1.msra.mxu0 %v4888
    %5024 = vmatprep.subr.mxu0 0.0
    %5025 = vmatpush2.msra.mxu0 0.0
    %5026 = vmatprep.subr.mxu0 0.0
    %5027 = vmatpush2.msra.mxu0 0.0
    %5028 = vmatprep.subr.mxu0 0.0
    %5029 = vmatpush2.msra.mxu0 0.0
    %5030 = vmatprep.subr.mxu0 0.0
    %5031 = vmatpush2.msra.mxu0 0.0
    %5032 = vmatprep.subr.mxu0 0.0
    %5033 = vmatpush2.msra.mxu0 0.0
    %5034 = vmatprep.subr.mxu0 0.0
    %5035 = vmatpush2.msra.mxu0 0.0
    %5036 = vmatprep.subr.mxu0 0.0
    %5037 = vmatpush2.msra.mxu0 0.0
    %5038 = vmatprep.subr.mxu0 0.0
    %5039 = vmatpush2.msra.mxu0 0.0
    %5040 = vmatprep.subr.mxu0 0.0
    %5041 = vmatpush2.msra.mxu0 0.0
    %5042 = vmatprep.subr.mxu0 0.0
    %5043 = vmatpush2.msra.mxu0 0.0
    %5044 = vmatprep.subr.mxu0 0.0
    %5045 = vmatpush2.msra.mxu0 0.0
    %5046 = vmatprep.subr.mxu0 0.0
    %5047 = vmatpush2.msra.mxu0 0.0
    %5048 = vmatprep.subr.mxu0 0.0
    %5049 = vmatpush2.msra.mxu0 0.0
    %5050 = vmatprep.subr.mxu0 0.0
    %5051 = vmatpush2.msra.mxu0 0.0
    %5052 = vmatprep.subr.mxu0 0.0
    %5053 = vmatpush2.msra.mxu0 0.0
    %5054 = vmatprep.subr.mxu0 0.0
    %5055 = vmatpush2.msra.mxu0 0.0
    %5056 = vmatprep.mubr.f32.mxu0 0.0
    %5057 = vmatmul.mubr.f32.gmra.mxu0 %v4990
    %v5058 = vpop.f32.mrf.mxu0
    %v5059 = vadd.f32 %v4908, %v5058
    %v5060 = vpop.f32.mrf.mxu0
    %5061 = vdwg.mxu0
    %s5062 = scalar_lea.vmem [#allocation18], 2
    %5063 = vst [vmem:[%s5062] sm:$0x3] %v5059
    %v5064 = vld [vmem:[%s1961] sm:$0x3]
    %v5065 = vld [vmem:[%s3716] sm:$0x3]
    %v5066 = vsel %vm4901, %v5064, %v5065
    %s5067 = scalar_lea.vmem [#allocation17], 4
    %5068 = vst.msk [vmem:[%s5067] sm:$0x3] %vm791, %v5066
    %v5070 = vsel %vm195, %v5066, 0
    %5072 = vmatprep.subr.mxu0 0.0
    %5073 = vmatpush1.msra.mxu0 0.0
    %5074 = vmatprep.subr.mxu0 0.0
    %5075 = vmatpush1.msra.mxu0 0.0
    %5076 = vmatprep.subr.mxu0 0.0
    %5077 = vmatpush1.msra.mxu0 0.0
    %5078 = vmatprep.subr.mxu0 0.0
    %5079 = vmatpush1.msra.mxu0 0.0
    %5080 = vmatprep.subr.mxu0 0.0
    %5081 = vmatpush1.msra.mxu0 0.0
    %5082 = vmatprep.subr.mxu0 0.0
    %5083 = vmatpush1.msra.mxu0 0.0
    %5084 = vmatprep.subr.mxu0 0.0
    %5085 = vmatpush1.msra.mxu0 0.0
    %5086 = vmatprep.subr.mxu0 0.0
    %5087 = vmatpush1.msra.mxu0 0.0
    %5088 = vmatprep.subr.mxu0 0.0
    %5089 = vmatpush1.msra.mxu0 %v4895
    %5090 = vmatprep.subr.mxu0 0.0
    %5091 = vmatpush1.msra.mxu0 %v4894
    %5092 = vmatprep.subr.mxu0 0.0
    %5093 = vmatpush1.msra.mxu0 %v4893
    %5094 = vmatprep.subr.mxu0 0.0
    %5095 = vmatpush1.msra.mxu0 %v4892
    %5096 = vmatprep.subr.mxu0 0.0
    %5097 = vmatpush1.msra.mxu0 %v4891
    %5098 = vmatprep.subr.mxu0 0.0
    %5099 = vmatpush1.msra.mxu0 %v4890
    %5100 = vmatprep.subr.mxu0 0.0
    %5101 = vmatpush1.msra.mxu0 %v4889
    %5102 = vmatprep.subr.mxu0 0.0
    %5103 = vmatpush1.msra.mxu0 %v4888
    %5104 = vmatprep.subr.mxu0 0.0
    %5105 = vmatpush2.msra.mxu0 0.0
    %5106 = vmatprep.subr.mxu0 0.0
    %5107 = vmatpush2.msra.mxu0 0.0
    %5108 = vmatprep.subr.mxu0 0.0
    %5109 = vmatpush2.msra.mxu0 0.0
    %5110 = vmatprep.subr.mxu0 0.0
    %5111 = vmatpush2.msra.mxu0 0.0
    %5112 = vmatprep.subr.mxu0 0.0
    %5113 = vmatpush2.msra.mxu0 0.0
    %5114 = vmatprep.subr.mxu0 0.0
    %5115 = vmatpush2.msra.mxu0 0.0
    %5116 = vmatprep.subr.mxu0 0.0
    %5117 = vmatpush2.msra.mxu0 0.0
    %5118 = vmatprep.subr.mxu0 0.0
    %5119 = vmatpush2.msra.mxu0 0.0
    %5120 = vmatprep.subr.mxu0 0.0
    %5121 = vmatpush2.msra.mxu0 0.0
    %5122 = vmatprep.subr.mxu0 0.0
    %5123 = vmatpush2.msra.mxu0 0.0
    %5124 = vmatprep.subr.mxu0 0.0
    %5125 = vmatpush2.msra.mxu0 0.0
    %5126 = vmatprep.subr.mxu0 0.0
    %5127 = vmatpush2.msra.mxu0 0.0
    %5128 = vmatprep.subr.mxu0 0.0
    %5129 = vmatpush2.msra.mxu0 0.0
    %5130 = vmatprep.subr.mxu0 0.0
    %5131 = vmatpush2.msra.mxu0 0.0
    %5132 = vmatprep.subr.mxu0 0.0
    %5133 = vmatpush2.msra.mxu0 0.0
    %5134 = vmatprep.subr.mxu0 0.0
    %5135 = vmatpush2.msra.mxu0 0.0
    %5136 = vmatprep.mubr.f32.mxu0 0.0
    %5137 = vmatmul.mubr.f32.gmra.mxu0 %v5070
    %v5138 = vpop.f32.mrf.mxu0
    %v5139 = vadd.f32 %v4908, %v5138
    %v5140 = vpop.f32.mrf.mxu0
    %5141 = vdwg.mxu0
    %s5142 = scalar_lea.vmem [#allocation18], 4
    %5143 = vst [vmem:[%s5142] sm:$0x3] %v5139
    %v5144 = vld [vmem:[%s2546] sm:$0x3]
    %v5145 = vld [vmem:[%s3131] sm:$0x3]
    %v5146 = vsel %vm4901, %v5144, %v5145
    %s5147 = scalar_lea.vmem [#allocation17], 6
    %5148 = vst.msk [vmem:[%s5147] sm:$0x3] %vm791, %v5146
    %v5150 = vsel %vm195, %v5146, 0
    %5152 = vmatprep.subr.mxu0 0.0
    %5153 = vmatpush1.msra.mxu0 0.0
    %5154 = vmatprep.subr.mxu0 0.0
    %5155 = vmatpush1.msra.mxu0 0.0
    %5156 = vmatprep.subr.mxu0 0.0
    %5157 = vmatpush1.msra.mxu0 0.0
    %5158 = vmatprep.subr.mxu0 0.0
    %5159 = vmatpush1.msra.mxu0 0.0
    %5160 = vmatprep.subr.mxu0 0.0
    %5161 = vmatpush1.msra.mxu0 0.0
    %5162 = vmatprep.subr.mxu0 0.0
    %5163 = vmatpush1.msra.mxu0 0.0
    %5164 = vmatprep.subr.mxu0 0.0
    %5165 = vmatpush1.msra.mxu0 0.0
    %5166 = vmatprep.subr.mxu0 0.0
    %5167 = vmatpush1.msra.mxu0 0.0
    %5168 = vmatprep.subr.mxu0 0.0
    %5169 = vmatpush1.msra.mxu0 %v4895
    %5170 = vmatprep.subr.mxu0 0.0
    %5171 = vmatpush1.msra.mxu0 %v4894
    %5172 = vmatprep.subr.mxu0 0.0
    %5173 = vmatpush1.msra.mxu0 %v4893
    %5174 = vmatprep.subr.mxu0 0.0
    %5175 = vmatpush1.msra.mxu0 %v4892
    %5176 = vmatprep.subr.mxu0 0.0
    %5177 = vmatpush1.msra.mxu0 %v4891
    %5178 = vmatprep.subr.mxu0 0.0
    %5179 = vmatpush1.msra.mxu0 %v4890
    %5180 = vmatprep.subr.mxu0 0.0
    %5181 = vmatpush1.msra.mxu0 %v4889
    %5182 = vmatprep.subr.mxu0 0.0
    %5183 = vmatpush1.msra.mxu0 %v4888
    %5184 = vmatprep.subr.mxu0 0.0
    %5185 = vmatpush2.msra.mxu0 0.0
    %5186 = vmatprep.subr.mxu0 0.0
    %5187 = vmatpush2.msra.mxu0 0.0
    %5188 = vmatprep.subr.mxu0 0.0
    %5189 = vmatpush2.msra.mxu0 0.0
    %5190 = vmatprep.subr.mxu0 0.0
    %5191 = vmatpush2.msra.mxu0 0.0
    %5192 = vmatprep.subr.mxu0 0.0
    %5193 = vmatpush2.msra.mxu0 0.0
    %5194 = vmatprep.subr.mxu0 0.0
    %5195 = vmatpush2.msra.mxu0 0.0
    %5196 = vmatprep.subr.mxu0 0.0
    %5197 = vmatpush2.msra.mxu0 0.0
    %5198 = vmatprep.subr.mxu0 0.0
    %5199 = vmatpush2.msra.mxu0 0.0
    %5200 = vmatprep.subr.mxu0 0.0
    %5201 = vmatpush2.msra.mxu0 0.0
    %5202 = vmatprep.subr.mxu0 0.0
    %5203 = vmatpush2.msra.mxu0 0.0
    %5204 = vmatprep.subr.mxu0 0.0
    %5205 = vmatpush2.msra.mxu0 0.0
    %5206 = vmatprep.subr.mxu0 0.0
    %5207 = vmatpush2.msra.mxu0 0.0
    %5208 = vmatprep.subr.mxu0 0.0
    %5209 = vmatpush2.msra.mxu0 0.0
    %5210 = vmatprep.subr.mxu0 0.0
    %5211 = vmatpush2.msra.mxu0 0.0
    %5212 = vmatprep.subr.mxu0 0.0
    %5213 = vmatpush2.msra.mxu0 0.0
    %5214 = vmatprep.subr.mxu0 0.0
    %5215 = vmatpush2.msra.mxu0 0.0
    %5216 = vmatprep.mubr.f32.mxu0 0.0
    %5217 = vmatmul.mubr.f32.gmra.mxu0 %v5150
    %v5218 = vpop.f32.mrf.mxu0
    %v5219 = vadd.f32 %v4908, %v5218
    %v5220 = vpop.f32.mrf.mxu0
    %5221 = vdwg.mxu0
    %s5222 = scalar_lea.vmem [#allocation18], 6
    %5223 = vst [vmem:[%s5222] sm:$0x3] %v5219
    %v5224 = vld [vmem:[%s3131] sm:$0x3]
    %v5225 = vld [vmem:[%s2546] sm:$0x3]
    %v5226 = vsel %vm4901, %v5224, %v5225
    %s5227 = scalar_lea.vmem [#allocation17], 8
    %5228 = vst.msk [vmem:[%s5227] sm:$0x3] %vm791, %v5226
    %v5230 = vsel %vm195, %v5226, 0
    %5232 = vmatprep.subr.mxu0 0.0
    %5233 = vmatpush1.msra.mxu0 0.0
    %5234 = vmatprep.subr.mxu0 0.0
    %5235 = vmatpush1.msra.mxu0 0.0
    %5236 = vmatprep.subr.mxu0 0.0
    %5237 = vmatpush1.msra.mxu0 0.0
    %5238 = vmatprep.subr.mxu0 0.0
    %5239 = vmatpush1.msra.mxu0 0.0
    %5240 = vmatprep.subr.mxu0 0.0
    %5241 = vmatpush1.msra.mxu0 0.0
    %5242 = vmatprep.subr.mxu0 0.0
    %5243 = vmatpush1.msra.mxu0 0.0
    %5244 = vmatprep.subr.mxu0 0.0
    %5245 = vmatpush1.msra.mxu0 0.0
    %5246 = vmatprep.subr.mxu0 0.0
    %5247 = vmatpush1.msra.mxu0 0.0
    %5248 = vmatprep.subr.mxu0 0.0
    %5249 = vmatpush1.msra.mxu0 %v4895
    %5250 = vmatprep.subr.mxu0 0.0
    %5251 = vmatpush1.msra.mxu0 %v4894
    %5252 = vmatprep.subr.mxu0 0.0
    %5253 = vmatpush1.msra.mxu0 %v4893
    %5254 = vmatprep.subr.mxu0 0.0
    %5255 = vmatpush1.msra.mxu0 %v4892
    %5256 = vmatprep.subr.mxu0 0.0
    %5257 = vmatpush1.msra.mxu0 %v4891
    %5258 = vmatprep.subr.mxu0 0.0
    %5259 = vmatpush1.msra.mxu0 %v4890
    %5260 = vmatprep.subr.mxu0 0.0
    %5261 = vmatpush1.msra.mxu0 %v4889
    %5262 = vmatprep.subr.mxu0 0.0
    %5263 = vmatpush1.msra.mxu0 %v4888
    %5264 = vmatprep.subr.mxu0 0.0
    %5265 = vmatpush2.msra.mxu0 0.0
    %5266 = vmatprep.subr.mxu0 0.0
    %5267 = vmatpush2.msra.mxu0 0.0
    %5268 = vmatprep.subr.mxu0 0.0
    %5269 = vmatpush2.msra.mxu0 0.0
    %5270 = vmatprep.subr.mxu0 0.0
    %5271 = vmatpush2.msra.mxu0 0.0
    %5272 = vmatprep.subr.mxu0 0.0
    %5273 = vmatpush2.msra.mxu0 0.0
    %5274 = vmatprep.subr.mxu0 0.0
    %5275 = vmatpush2.msra.mxu0 0.0
    %5276 = vmatprep.subr.mxu0 0.0
    %5277 = vmatpush2.msra.mxu0 0.0
    %5278 = vmatprep.subr.mxu0 0.0
    %5279 = vmatpush2.msra.mxu0 0.0
    %5280 = vmatprep.subr.mxu0 0.0
    %5281 = vmatpush2.msra.mxu0 0.0
    %5282 = vmatprep.subr.mxu0 0.0
    %5283 = vmatpush2.msra.mxu0 0.0
    %5284 = vmatprep.subr.mxu0 0.0
    %5285 = vmatpush2.msra.mxu0 0.0
    %5286 = vmatprep.subr.mxu0 0.0
    %5287 = vmatpush2.msra.mxu0 0.0
    %5288 = vmatprep.subr.mxu0 0.0
    %5289 = vmatpush2.msra.mxu0 0.0
    %5290 = vmatprep.subr.mxu0 0.0
    %5291 = vmatpush2.msra.mxu0 0.0
    %5292 = vmatprep.subr.mxu0 0.0
    %5293 = vmatpush2.msra.mxu0 0.0
    %5294 = vmatprep.subr.mxu0 0.0
    %5295 = vmatpush2.msra.mxu0 0.0
    %5296 = vmatprep.mubr.f32.mxu0 0.0
    %5297 = vmatmul.mubr.f32.gmra.mxu0 %v5230
    %v5298 = vpop.f32.mrf.mxu0
    %v5299 = vadd.f32 %v4908, %v5298
    %v5300 = vpop.f32.mrf.mxu0
    %5301 = vdwg.mxu0
    %s5302 = scalar_lea.vmem [#allocation18], 8
    %5303 = vst [vmem:[%s5302] sm:$0x3] %v5299
    %v5304 = vld [vmem:[%s3716] sm:$0x3]
    %v5305 = vld [vmem:[%s1961] sm:$0x3]
    %v5306 = vsel %vm4901, %v5304, %v5305
    %s5307 = scalar_lea.vmem [#allocation17], 10
    %5308 = vst.msk [vmem:[%s5307] sm:$0x3] %vm791, %v5306
    %v5310 = vsel %vm195, %v5306, 0
    %5312 = vmatprep.subr.mxu0 0.0
    %5313 = vmatpush1.msra.mxu0 0.0
    %5314 = vmatprep.subr.mxu0 0.0
    %5315 = vmatpush1.msra.mxu0 0.0
    %5316 = vmatprep.subr.mxu0 0.0
    %5317 = vmatpush1.msra.mxu0 0.0
    %5318 = vmatprep.subr.mxu0 0.0
    %5319 = vmatpush1.msra.mxu0 0.0
    %5320 = vmatprep.subr.mxu0 0.0
    %5321 = vmatpush1.msra.mxu0 0.0
    %5322 = vmatprep.subr.mxu0 0.0
    %5323 = vmatpush1.msra.mxu0 0.0
    %5324 = vmatprep.subr.mxu0 0.0
    %5325 = vmatpush1.msra.mxu0 0.0
    %5326 = vmatprep.subr.mxu0 0.0
    %5327 = vmatpush1.msra.mxu0 0.0
    %5328 = vmatprep.subr.mxu0 0.0
    %5329 = vmatpush1.msra.mxu0 %v4895
    %5330 = vmatprep.subr.mxu0 0.0
    %5331 = vmatpush1.msra.mxu0 %v4894
    %5332 = vmatprep.subr.mxu0 0.0
    %5333 = vmatpush1.msra.mxu0 %v4893
    %5334 = vmatprep.subr.mxu0 0.0
    %5335 = vmatpush1.msra.mxu0 %v4892
    %5336 = vmatprep.subr.mxu0 0.0
    %5337 = vmatpush1.msra.mxu0 %v4891
    %5338 = vmatprep.subr.mxu0 0.0
    %5339 = vmatpush1.msra.mxu0 %v4890
    %5340 = vmatprep.subr.mxu0 0.0
    %5341 = vmatpush1.msra.mxu0 %v4889
    %5342 = vmatprep.subr.mxu0 0.0
    %5343 = vmatpush1.msra.mxu0 %v4888
    %5344 = vmatprep.subr.mxu0 0.0
    %5345 = vmatpush2.msra.mxu0 0.0
    %5346 = vmatprep.subr.mxu0 0.0
    %5347 = vmatpush2.msra.mxu0 0.0
    %5348 = vmatprep.subr.mxu0 0.0
    %5349 = vmatpush2.msra.mxu0 0.0
    %5350 = vmatprep.subr.mxu0 0.0
    %5351 = vmatpush2.msra.mxu0 0.0
    %5352 = vmatprep.subr.mxu0 0.0
    %5353 = vmatpush2.msra.mxu0 0.0
    %5354 = vmatprep.subr.mxu0 0.0
    %5355 = vmatpush2.msra.mxu0 0.0
    %5356 = vmatprep.subr.mxu0 0.0
    %5357 = vmatpush2.msra.mxu0 0.0
    %5358 = vmatprep.subr.mxu0 0.0
    %5359 = vmatpush2.msra.mxu0 0.0
    %5360 = vmatprep.subr.mxu0 0.0
    %5361 = vmatpush2.msra.mxu0 0.0
    %5362 = vmatprep.subr.mxu0 0.0
    %5363 = vmatpush2.msra.mxu0 0.0
    %5364 = vmatprep.subr.mxu0 0.0
    %5365 = vmatpush2.msra.mxu0 0.0
    %5366 = vmatprep.subr.mxu0 0.0
    %5367 = vmatpush2.msra.mxu0 0.0
    %5368 = vmatprep.subr.mxu0 0.0
    %5369 = vmatpush2.msra.mxu0 0.0
    %5370 = vmatprep.subr.mxu0 0.0
    %5371 = vmatpush2.msra.mxu0 0.0
    %5372 = vmatprep.subr.mxu0 0.0
    %5373 = vmatpush2.msra.mxu0 0.0
    %5374 = vmatprep.subr.mxu0 0.0
    %5375 = vmatpush2.msra.mxu0 0.0
    %5376 = vmatprep.mubr.f32.mxu0 0.0
    %5377 = vmatmul.mubr.f32.gmra.mxu0 %v5310
    %v5378 = vpop.f32.mrf.mxu0
    %v5379 = vadd.f32 %v4908, %v5378
    %v5380 = vpop.f32.mrf.mxu0
    %5381 = vdwg.mxu0
    %s5382 = scalar_lea.vmem [#allocation18], 10
    %5383 = vst [vmem:[%s5382] sm:$0x3] %v5379
    %v5384 = vld [vmem:[%s4301] sm:$0x3]
    %v5385 = vld [vmem:[%s1376] sm:$0x3]
    %v5386 = vsel %vm4901, %v5384, %v5385
    %s5387 = scalar_lea.vmem [#allocation17], 12
    %5388 = vst.msk [vmem:[%s5387] sm:$0x3] %vm791, %v5386
    %v5390 = vsel %vm195, %v5386, 0
    %5392 = vmatprep.subr.mxu0 0.0
    %5393 = vmatpush1.msra.mxu0 0.0
    %5394 = vmatprep.subr.mxu0 0.0
    %5395 = vmatpush1.msra.mxu0 0.0
    %5396 = vmatprep.subr.mxu0 0.0
    %5397 = vmatpush1.msra.mxu0 0.0
    %5398 = vmatprep.subr.mxu0 0.0
    %5399 = vmatpush1.msra.mxu0 0.0
    %5400 = vmatprep.subr.mxu0 0.0
    %5401 = vmatpush1.msra.mxu0 0.0
    %5402 = vmatprep.subr.mxu0 0.0
    %5403 = vmatpush1.msra.mxu0 0.0
    %5404 = vmatprep.subr.mxu0 0.0
    %5405 = vmatpush1.msra.mxu0 0.0
    %5406 = vmatprep.subr.mxu0 0.0
    %5407 = vmatpush1.msra.mxu0 0.0
    %5408 = vmatprep.subr.mxu0 0.0
    %5409 = vmatpush1.msra.mxu0 %v4895
    %5410 = vmatprep.subr.mxu0 0.0
    %5411 = vmatpush1.msra.mxu0 %v4894
    %5412 = vmatprep.subr.mxu0 0.0
    %5413 = vmatpush1.msra.mxu0 %v4893
    %5414 = vmatprep.subr.mxu0 0.0
    %5415 = vmatpush1.msra.mxu0 %v4892
    %5416 = vmatprep.subr.mxu0 0.0
    %5417 = vmatpush1.msra.mxu0 %v4891
    %5418 = vmatprep.subr.mxu0 0.0
    %5419 = vmatpush1.msra.mxu0 %v4890
    %5420 = vmatprep.subr.mxu0 0.0
    %5421 = vmatpush1.msra.mxu0 %v4889
    %5422 = vmatprep.subr.mxu0 0.0
    %5423 = vmatpush1.msra.mxu0 %v4888
    %5424 = vmatprep.subr.mxu0 0.0
    %5425 = vmatpush2.msra.mxu0 0.0
    %5426 = vmatprep.subr.mxu0 0.0
    %5427 = vmatpush2.msra.mxu0 0.0
    %5428 = vmatprep.subr.mxu0 0.0
    %5429 = vmatpush2.msra.mxu0 0.0
    %5430 = vmatprep.subr.mxu0 0.0
    %5431 = vmatpush2.msra.mxu0 0.0
    %5432 = vmatprep.subr.mxu0 0.0
    %5433 = vmatpush2.msra.mxu0 0.0
    %5434 = vmatprep.subr.mxu0 0.0
    %5435 = vmatpush2.msra.mxu0 0.0
    %5436 = vmatprep.subr.mxu0 0.0
    %5437 = vmatpush2.msra.mxu0 0.0
    %5438 = vmatprep.subr.mxu0 0.0
    %5439 = vmatpush2.msra.mxu0 0.0
    %5440 = vmatprep.subr.mxu0 0.0
    %5441 = vmatpush2.msra.mxu0 0.0
    %5442 = vmatprep.subr.mxu0 0.0
    %5443 = vmatpush2.msra.mxu0 0.0
    %5444 = vmatprep.subr.mxu0 0.0
    %5445 = vmatpush2.msra.mxu0 0.0
    %5446 = vmatprep.subr.mxu0 0.0
    %5447 = vmatpush2.msra.mxu0 0.0
    %5448 = vmatprep.subr.mxu0 0.0
    %5449 = vmatpush2.msra.mxu0 0.0
    %5450 = vmatprep.subr.mxu0 0.0
    %5451 = vmatpush2.msra.mxu0 0.0
    %5452 = vmatprep.subr.mxu0 0.0
    %5453 = vmatpush2.msra.mxu0 0.0
    %5454 = vmatprep.subr.mxu0 0.0
    %5455 = vmatpush2.msra.mxu0 0.0
    %5456 = vmatprep.mubr.f32.mxu0 0.0
    %5457 = vmatmul.mubr.f32.gmra.mxu0 %v5390
    %v5458 = vpop.f32.mrf.mxu0
    %v5459 = vadd.f32 %v4908, %v5458
    %v5460 = vpop.f32.mrf.mxu0
    %5461 = vdwg.mxu0
    %s5462 = scalar_lea.vmem [#allocation18], 12
    %5463 = vst [vmem:[%s5462] sm:$0x3] %v5459
    %v5464 = vld [vmem:[%s4886] sm:$0x3]
    %v5465 = vld [vmem:[#allocation2] sm:$0x3]
    %v5466 = vsel %vm4901, %v5464, %v5465
    %s5467 = scalar_lea.vmem [#allocation17], 14
    %5468 = vst.msk [vmem:[%s5467] sm:$0x3] %vm791, %v5466
    %v5470 = vsel %vm195, %v5466, 0
    %5472 = vmatprep.subr.mxu0 0.0
    %5473 = vmatpush1.msra.mxu0 0.0
    %5474 = vmatprep.subr.mxu0 0.0
    %5475 = vmatpush1.msra.mxu0 0.0
    %5476 = vmatprep.subr.mxu0 0.0
    %5477 = vmatpush1.msra.mxu0 0.0
    %5478 = vmatprep.subr.mxu0 0.0
    %5479 = vmatpush1.msra.mxu0 0.0
    %5480 = vmatprep.subr.mxu0 0.0
    %5481 = vmatpush1.msra.mxu0 0.0
    %5482 = vmatprep.subr.mxu0 0.0
    %5483 = vmatpush1.msra.mxu0 0.0
    %5484 = vmatprep.subr.mxu0 0.0
    %5485 = vmatpush1.msra.mxu0 0.0
    %5486 = vmatprep.subr.mxu0 0.0
    %5487 = vmatpush1.msra.mxu0 0.0
    %5488 = vmatprep.subr.mxu0 0.0
    %5489 = vmatpush1.msra.mxu0 %v4895
    %5490 = vmatprep.subr.mxu0 0.0
    %5491 = vmatpush1.msra.mxu0 %v4894
    %5492 = vmatprep.subr.mxu0 0.0
    %5493 = vmatpush1.msra.mxu0 %v4893
    %5494 = vmatprep.subr.mxu0 0.0
    %5495 = vmatpush1.msra.mxu0 %v4892
    %5496 = vmatprep.subr.mxu0 0.0
    %5497 = vmatpush1.msra.mxu0 %v4891
    %5498 = vmatprep.subr.mxu0 0.0
    %5499 = vmatpush1.msra.mxu0 %v4890
    %5500 = vmatprep.subr.mxu0 0.0
    %5501 = vmatpush1.msra.mxu0 %v4889
    %5502 = vmatprep.subr.mxu0 0.0
    %5503 = vmatpush1.msra.mxu0 %v4888
    %5504 = vmatprep.subr.mxu0 0.0
    %5505 = vmatpush2.msra.mxu0 0.0
    %5506 = vmatprep.subr.mxu0 0.0
    %5507 = vmatpush2.msra.mxu0 0.0
    %5508 = vmatprep.subr.mxu0 0.0
    %5509 = vmatpush2.msra.mxu0 0.0
    %5510 = vmatprep.subr.mxu0 0.0
    %5511 = vmatpush2.msra.mxu0 0.0
    %5512 = vmatprep.subr.mxu0 0.0
    %5513 = vmatpush2.msra.mxu0 0.0
    %5514 = vmatprep.subr.mxu0 0.0
    %5515 = vmatpush2.msra.mxu0 0.0
    %5516 = vmatprep.subr.mxu0 0.0
    %5517 = vmatpush2.msra.mxu0 0.0
    %5518 = vmatprep.subr.mxu0 0.0
    %5519 = vmatpush2.msra.mxu0 0.0
    %5520 = vmatprep.subr.mxu0 0.0
    %5521 = vmatpush2.msra.mxu0 0.0
    %5522 = vmatprep.subr.mxu0 0.0
    %5523 = vmatpush2.msra.mxu0 0.0
    %5524 = vmatprep.subr.mxu0 0.0
    %5525 = vmatpush2.msra.mxu0 0.0
    %5526 = vmatprep.subr.mxu0 0.0
    %5527 = vmatpush2.msra.mxu0 0.0
    %5528 = vmatprep.subr.mxu0 0.0
    %5529 = vmatpush2.msra.mxu0 0.0
    %5530 = vmatprep.subr.mxu0 0.0
    %5531 = vmatpush2.msra.mxu0 0.0
    %5532 = vmatprep.subr.mxu0 0.0
    %5533 = vmatpush2.msra.mxu0 0.0
    %5534 = vmatprep.subr.mxu0 0.0
    %5535 = vmatpush2.msra.mxu0 0.0
    %5536 = vmatprep.mubr.f32.mxu0 0.0
    %5537 = vmatmul.mubr.f32.gmra.mxu0 %v5470
    %v5538 = vpop.f32.mrf.mxu0
    %v5539 = vadd.f32 %v4908, %v5538
    %v5540 = vpop.f32.mrf.mxu0
    %5541 = vdwg.mxu0
    %s5542 = scalar_lea.vmem [#allocation18], 14
    %5543 = vst [vmem:[%s5542] sm:$0x3] %v5539
    // Predicated region
    $region78: #{tpu_custom_call.1} parent=1 // pred_check
      _
    $region79: #{tpu_custom_call.1} parent=1 // pred_check_branch
      %5545 = sbr.rel (0) target = $region81
    $region80: #{tpu_custom_call.1} parent=1 // pred_region
      %s5547 = ssub.s32 256, 256
      %5548 = vsyncadd [#allocation5], %s5547
      %s5549 = sshll.u32 [#allocation17], 4
      %s5550 = int_to_ptr.vmem [resolvable:$true] %s5549
      %5555 = dma.vmem_to_hbm [thread:$0]  %s5550, 256, %s11, [#allocation5], 32, 32, 2
    $region81: #{tpu_custom_call.1} parent=1 // pred_fallthru
      _
    // Predicated region
    $region82: #{tpu_custom_call.1} parent=1 // pred_check
      _
    $region83: #{tpu_custom_call.1} parent=1 // pred_check_branch
      %5557 = sbr.rel (0) target = $region85
    $region84: #{tpu_custom_call.1} parent=1 // pred_region
      %s5559 = ssub.s32 256, 256
      %5560 = vsyncadd [#allocation19], %s5559
      %s5561 = sshll.u32 [#allocation18], 4
      %s5562 = int_to_ptr.vmem [resolvable:$true] %s5561
      %5567 = dma.vmem_to_hbm [thread:$0]  %s5562, 256, %s12, [#allocation19], 32, 32, 2
    $region85: #{tpu_custom_call.1} parent=1 // pred_fallthru
      _
    // Predicated region
    $region86: #{tpu_custom_call.1} parent=1 // pred_check
      _
    $region87: #{tpu_custom_call.1} parent=1 // pred_check_branch
      %5569 = sbr.rel (0) target = $region89
    $region88: #{tpu_custom_call.1} parent=1 // pred_region
      %5570 = dma.done [#allocation5], 256
    $region89: #{tpu_custom_call.1} parent=1 // pred_fallthru
      _
    // Predicated region
    $region90: #{tpu_custom_call.1} parent=1 // pred_check
      _
    $region91: #{tpu_custom_call.1} parent=1 // pred_check_branch
      %5572 = sbr.rel (0) target = $region93
    $region92: #{tpu_custom_call.1} parent=1 // pred_region
      %5573 = dma.done [#allocation19], 256
    $region93: #{tpu_custom_call.1} parent=1 // pred_fallthru
      _
    %5574 = vsyncpa [#allocation4], 1
    %5575 = vsyncpa [#allocation7], 1
    %5576 = vsyncpa [#allocation10], 1
    %5577 = vsyncpa [#allocation13], 1
    %5578 = vsyncpa [#allocation16], 1
    %5579 = vsyncpa [#allocation5], 1
    %5580 = vsyncpa [#allocation19], 1

</llo_original>
